<compile_context>
chip_gen: v6e
topology: v6e:2x2x1
jax: 0.10.0
libtpu: 0.0.40
codegen_flags: <defaults>
</compile_context>

<pallas_src>
import jax
import jax.numpy as jnp
from jax.experimental import pallas as pl
from jax.experimental.pallas import tpu as pltpu

EPS = 1e-5
LANE = 128
MXU_DTYPE = jnp.bfloat16   # MXU-native; accumulation stays f32.


def _round_up(v, m):
    return (v + m - 1) // m * m


def _basic_block_kernel(x_ref, w1_ref, g1_ref, b1_ref, w2_ref, g2_ref, b2_ref,
                        o_ref):
    N, Hp, Wp, C = x_ref.shape            # x comes in halo-padded, channels UNpadded
    H, W = Hp - 2, Wp - 2
    Cp = o_ref.shape[-1]                  # output channels padded to 128 lanes
    M = N * H * W

    x = x_ref[...]                        # (N, H+2, W+2, C) f32
    xb = x.astype(MXU_DTYPE)

    def conv3x3(hb, w_ref):
        # hb: (N, H+2, W+2, Cin) bf16 halo-padded; w_ref: (9, Cin, Cp) bf16.
        # 9 accumulating K=Cin matmuls -- no im2col slab, no K padding; the
        # chained adds accumulate in-place in the MXU result buffer on v7x.
        acc = None
        for t in range(9):
            ky, kx = divmod(t, 3)
            tap = hb[:, ky:ky + H, kx:kx + W, :].reshape(M, hb.shape[-1])
            d = jnp.dot(tap, w_ref[t], preferred_element_type=jnp.float32)
            acc = d if acc is None else acc + d
        return acc                        # (M, Cp) f32

    def batchnorm(acc, g, b):
        # Training-mode BN over rows; two-pass (centered) variance to avoid the
        # E[x^2]-E[x]^2 cancellation risk flagged in review.  These reductions
        # touch a tiny f32 accumulator; cost is negligible vs. the matmuls.
        inv_m = jnp.float32(1.0 / M)
        mean = jnp.sum(acc, axis=0, keepdims=True) * inv_m
        cen = acc - mean
        var = jnp.sum(cen * cen, axis=0, keepdims=True) * inv_m   # biased var
        return cen * jax.lax.rsqrt(var + EPS) * g + b

    # ---- conv1 -> bn1 -> relu (lane-dense (M, Cp) f32, stays in VMEM) ----
    h = jnp.maximum(batchnorm(conv3x3(xb, w1_ref), g1_ref[...], b1_ref[...]),
                    0.0)

    # ---- halo-pad relu output (true channels only, bf16) for conv2 ----
    hb = h[:, :C].astype(MXU_DTYPE).reshape(N, H, W, C)
    zr = jnp.zeros((N, 1, W, C), MXU_DTYPE)
    hb = jnp.concatenate([zr, hb, zr], axis=1)
    zc = jnp.zeros((N, H + 2, 1, C), MXU_DTYPE)
    hb = jnp.concatenate([zc, hb, zc], axis=2)

    # ---- conv2 -> bn2 -> + residual -> relu ----
    y = batchnorm(conv3x3(hb, w2_ref), g2_ref[...], b2_ref[...])
    res = x[:, 1:1 + H, 1:1 + W, :].reshape(M, C)          # f32 residual
    if Cp > C:
        res = jnp.concatenate(
            [res, jnp.zeros((M, Cp - C), jnp.float32)], axis=-1)
    o_ref[...] = jnp.maximum(y + res, 0.0).reshape(N, H, W, Cp)


def basic_block_forward(x_nchw, params):
    """BasicBlock forward. x_nchw: (N, C, H, W) float32. Returns (N, C, H, W)."""
    N, C, H, W = x_nchw.shape
    Cp = _round_up(C, LANE)

    # NCHW -> NHWC + spatial halo pad, fused into one XLA transpose/pad chain.
    # Channels stay UNpadded here: they are only the matmul K dim.
    x = jnp.transpose(x_nchw, (0, 2, 3, 1)).astype(jnp.float32)
    xp = jnp.pad(x, ((0, 0), (1, 1), (1, 1), (0, 0)))

    def prep_w(w_oihw):
        # OIHW -> (ky,kx,Cin,Cout) -> (9, Cin, Cp) bf16; only Cout is lane-padded.
        cout, cin = w_oihw.shape[0], w_oihw.shape[1]
        wt = jnp.transpose(w_oihw, (2, 3, 1, 0)).reshape(9, cin, cout)
        wt = jnp.pad(wt.astype(jnp.float32), ((0, 0), (0, 0), (0, Cp - cout)))
        return wt.astype(MXU_DTYPE)

    def prep_gb(g, b):
        g = jnp.pad(g.astype(jnp.float32), (0, Cp - C), constant_values=1.0)
        b = jnp.pad(b.astype(jnp.float32), (0, Cp - C))
        return g.reshape(1, Cp), b.reshape(1, Cp)

    w1 = prep_w(params["conv1_w"])
    w2 = prep_w(params["conv2_w"])
    g1, b1 = prep_gb(params["bn1_gamma"], params["bn1_beta"])
    g2, b2 = prep_gb(params["bn2_gamma"], params["bn2_beta"])

    m_rows = N * H * W
    cost = pl.CostEstimate(
        flops=4 * m_rows * 9 * C * Cp,                       # 2 convs: 2*M*K*N each
        transcendentals=2 * Cp,                              # rsqrt per channel
        bytes_accessed=int(xp.size * 4 + w1.size * 2 + w2.size * 2
                           + 4 * Cp * 4 + m_rows * Cp * 4))

    vmem = pl.BlockSpec(memory_space=pltpu.MemorySpace.VMEM)
    out = pl.pallas_call(
        _basic_block_kernel,
        out_shape=jax.ShapeDtypeStruct((N, H, W, Cp), jnp.float32),
        in_specs=[vmem] * 7,
        out_specs=vmem,
        compiler_params=pltpu.CompilerParams(
            vmem_limit_bytes=32 * 1024 * 1024),
        cost_estimate=cost,
    )(xp, w1, g1, b1, w2, g2, b2)

    # TODO(synk): keep NHWC end-to-end in a real model to drop these transposes.
    return jnp.transpose(out[..., :C], (0, 3, 1, 2))


def _reference(x_nchw, params):
    """Pure-JAX f32 reference (same semantics) for the correctness check."""
    x = jnp.transpose(x_nchw, (0, 2, 3, 1))

    def conv(h, w_oihw):
        w = jnp.transpose(w_oihw, (2, 3, 1, 0))
        return jax.lax.conv_general_dilated(
            h, w, (1, 1), "SAME",
            dimension_numbers=("NHWC", "HWIO", "NHWC"),
            precision=jax.lax.Precision.HIGHEST)

    def bn(h, g, b):
        m = jnp.mean(h, axis=(0, 1, 2), keepdims=True)
        v = jnp.mean(jnp.square(h - m), axis=(0, 1, 2), keepdims=True)
        return (h - m) * jax.lax.rsqrt(v + EPS) * g + b

    h = jax.nn.relu(bn(conv(x, params["conv1_w"]),
                       params["bn1_gamma"], params["bn1_beta"]))
    h = bn(conv(h, params["conv2_w"]), params["bn2_gamma"], params["bn2_beta"])
    h = jax.nn.relu(h + x)
    return jnp.transpose(h, (0, 3, 1, 2))


if __name__ == "__main__":
    key = jax.random.PRNGKey(0)
    kx, k1, k2 = jax.random.split(key, 3)

    N, C, H, W = 2, 8, 16, 16        # inplanes == planes, stride=1, no downsample
    planes = C

    x = jax.random.normal(kx, (N, C, H, W), jnp.float32)
    params = dict(
        conv1_w=jax.random.normal(k1, (planes, C, 3, 3), jnp.float32)
                / jnp.sqrt(9.0 * C),
        conv2_w=jax.random.normal(k2, (planes, planes, 3, 3), jnp.float32)
                / jnp.sqrt(9.0 * planes),
        bn1_gamma=jnp.ones((planes,), jnp.float32),
        bn1_beta=jnp.zeros((planes,), jnp.float32),
        bn2_gamma=jnp.ones((planes,), jnp.float32),
        bn2_beta=jnp.zeros((planes,), jnp.float32),
    )

    fwd = jax.jit(basic_block_forward)
    out = jax.block_until_ready(fwd(x, params))
    ref = _reference(x, params)

    assert out.shape == (N, C, H, W), out.shape
    # Tolerance sized for bf16 MXU operands (f32 accumulation) vs f32 reference.
    assert jnp.allclose(out, ref, atol=3e-2, rtol=3e-2), \
        float(jnp.max(jnp.abs(out - ref)))
    print("KERNEL_OK")
</pallas_src>

<mosaic_0001>
module attributes {stable_mosaic.version = 11 : i64} {
  func.func @_basic_block_kernel(%arg0: memref<2x18x18x8xf32, #tpu.memory_space<vmem>>, %arg1: memref<9x8x128xbf16, #tpu.memory_space<vmem>>, %arg2: memref<1x128xf32, #tpu.memory_space<vmem>>, %arg3: memref<1x128xf32, #tpu.memory_space<vmem>>, %arg4: memref<9x8x128xbf16, #tpu.memory_space<vmem>>, %arg5: memref<1x128xf32, #tpu.memory_space<vmem>>, %arg6: memref<1x128xf32, #tpu.memory_space<vmem>>, %arg7: memref<2x16x16x128xf32, #tpu.memory_space<vmem>>) attributes {dimension_semantics = [], scalar_prefetch = 0 : i64, scratch_operands = 0 : i64, tpu.core_type = #tpu.core_type<tc>} {
    %c0 = arith.constant 0 : index
    %c0_0 = arith.constant 0 : index
    %c0_1 = arith.constant 0 : index
    %c0_2 = arith.constant 0 : index
    %0 = vector.load %arg0[%c0, %c0_0, %c0_1, %c0_2] : memref<2x18x18x8xf32, #tpu.memory_space<vmem>>, vector<2x18x18x8xf32>
    %1 = arith.truncf %0 : vector<2x18x18x8xf32> to vector<2x18x18x8xbf16>
    %2 = vector.extract_strided_slice %1 {offsets = [0, 0, 0, 0], sizes = [2, 16, 16, 8], strides = [1, 1, 1, 1]} : vector<2x18x18x8xbf16> to vector<2x16x16x8xbf16>
    %3 = vector.shape_cast %2 : vector<2x16x16x8xbf16> to vector<512x8xbf16>
    %c0_3 = arith.constant 0 : index
    %c0_4 = arith.constant 0 : index
    %c0_5 = arith.constant 0 : index
    %4 = vector.load %arg1[%c0_3, %c0_4, %c0_5] : memref<9x8x128xbf16, #tpu.memory_space<vmem>>, vector<1x8x128xbf16>
    %5 = vector.shape_cast %4 : vector<1x8x128xbf16> to vector<8x128xbf16>
    %cst = arith.constant dense<0.000000e+00> : vector<512x128xf32>
    %6 = tpu.matmul %3, %5, %cst {dimension_numbers = #tpu.dot_dimension_numbers<[1], [0], [0], [1], [0, 0, 1, 1], [], []>} : vector<512x8xbf16>, vector<8x128xbf16>, vector<512x128xf32> -> vector<512x128xf32>
    %7 = vector.extract_strided_slice %1 {offsets = [0, 0, 1, 0], sizes = [2, 16, 16, 8], strides = [1, 1, 1, 1]} : vector<2x18x18x8xbf16> to vector<2x16x16x8xbf16>
    %8 = vector.shape_cast %7 : vector<2x16x16x8xbf16> to vector<512x8xbf16>
    %c1 = arith.constant 1 : index
    %c0_6 = arith.constant 0 : index
    %c0_7 = arith.constant 0 : index
    %9 = vector.load %arg1[%c1, %c0_6, %c0_7] : memref<9x8x128xbf16, #tpu.memory_space<vmem>>, vector<1x8x128xbf16>
    %10 = vector.shape_cast %9 : vector<1x8x128xbf16> to vector<8x128xbf16>
    %cst_8 = arith.constant dense<0.000000e+00> : vector<512x128xf32>
    %11 = tpu.matmul %8, %10, %cst_8 {dimension_numbers = #tpu.dot_dimension_numbers<[1], [0], [0], [1], [0, 0, 1, 1], [], []>} : vector<512x8xbf16>, vector<8x128xbf16>, vector<512x128xf32> -> vector<512x128xf32>
    %12 = arith.addf %6, %11 : vector<512x128xf32>
    %13 = vector.extract_strided_slice %1 {offsets = [0, 0, 2, 0], sizes = [2, 16, 16, 8], strides = [1, 1, 1, 1]} : vector<2x18x18x8xbf16> to vector<2x16x16x8xbf16>
    %14 = vector.shape_cast %13 : vector<2x16x16x8xbf16> to vector<512x8xbf16>
    %c2 = arith.constant 2 : index
    %c0_9 = arith.constant 0 : index
    %c0_10 = arith.constant 0 : index
    %15 = vector.load %arg1[%c2, %c0_9, %c0_10] : memref<9x8x128xbf16, #tpu.memory_space<vmem>>, vector<1x8x128xbf16>
    %16 = vector.shape_cast %15 : vector<1x8x128xbf16> to vector<8x128xbf16>
    %cst_11 = arith.constant dense<0.000000e+00> : vector<512x128xf32>
    %17 = tpu.matmul %14, %16, %cst_11 {dimension_numbers = #tpu.dot_dimension_numbers<[1], [0], [0], [1], [0, 0, 1, 1], [], []>} : vector<512x8xbf16>, vector<8x128xbf16>, vector<512x128xf32> -> vector<512x128xf32>
    %18 = arith.addf %12, %17 : vector<512x128xf32>
    %19 = vector.extract_strided_slice %1 {offsets = [0, 1, 0, 0], sizes = [2, 16, 16, 8], strides = [1, 1, 1, 1]} : vector<2x18x18x8xbf16> to vector<2x16x16x8xbf16>
    %20 = vector.shape_cast %19 : vector<2x16x16x8xbf16> to vector<512x8xbf16>
    %c3 = arith.constant 3 : index
    %c0_12 = arith.constant 0 : index
    %c0_13 = arith.constant 0 : index
    %21 = vector.load %arg1[%c3, %c0_12, %c0_13] : memref<9x8x128xbf16, #tpu.memory_space<vmem>>, vector<1x8x128xbf16>
    %22 = vector.shape_cast %21 : vector<1x8x128xbf16> to vector<8x128xbf16>
    %cst_14 = arith.constant dense<0.000000e+00> : vector<512x128xf32>
    %23 = tpu.matmul %20, %22, %cst_14 {dimension_numbers = #tpu.dot_dimension_numbers<[1], [0], [0], [1], [0, 0, 1, 1], [], []>} : vector<512x8xbf16>, vector<8x128xbf16>, vector<512x128xf32> -> vector<512x128xf32>
    %24 = arith.addf %18, %23 : vector<512x128xf32>
    %25 = vector.extract_strided_slice %1 {offsets = [0, 1, 1, 0], sizes = [2, 16, 16, 8], strides = [1, 1, 1, 1]} : vector<2x18x18x8xbf16> to vector<2x16x16x8xbf16>
    %26 = vector.shape_cast %25 : vector<2x16x16x8xbf16> to vector<512x8xbf16>
    %c4 = arith.constant 4 : index
    %c0_15 = arith.constant 0 : index
    %c0_16 = arith.constant 0 : index
    %27 = vector.load %arg1[%c4, %c0_15, %c0_16] : memref<9x8x128xbf16, #tpu.memory_space<vmem>>, vector<1x8x128xbf16>
    %28 = vector.shape_cast %27 : vector<1x8x128xbf16> to vector<8x128xbf16>
    %cst_17 = arith.constant dense<0.000000e+00> : vector<512x128xf32>
    %29 = tpu.matmul %26, %28, %cst_17 {dimension_numbers = #tpu.dot_dimension_numbers<[1], [0], [0], [1], [0, 0, 1, 1], [], []>} : vector<512x8xbf16>, vector<8x128xbf16>, vector<512x128xf32> -> vector<512x128xf32>
    %30 = arith.addf %24, %29 : vector<512x128xf32>
    %31 = vector.extract_strided_slice %1 {offsets = [0, 1, 2, 0], sizes = [2, 16, 16, 8], strides = [1, 1, 1, 1]} : vector<2x18x18x8xbf16> to vector<2x16x16x8xbf16>
    %32 = vector.shape_cast %31 : vector<2x16x16x8xbf16> to vector<512x8xbf16>
    %c5 = arith.constant 5 : index
    %c0_18 = arith.constant 0 : index
    %c0_19 = arith.constant 0 : index
    %33 = vector.load %arg1[%c5, %c0_18, %c0_19] : memref<9x8x128xbf16, #tpu.memory_space<vmem>>, vector<1x8x128xbf16>
    %34 = vector.shape_cast %33 : vector<1x8x128xbf16> to vector<8x128xbf16>
    %cst_20 = arith.constant dense<0.000000e+00> : vector<512x128xf32>
    %35 = tpu.matmul %32, %34, %cst_20 {dimension_numbers = #tpu.dot_dimension_numbers<[1], [0], [0], [1], [0, 0, 1, 1], [], []>} : vector<512x8xbf16>, vector<8x128xbf16>, vector<512x128xf32> -> vector<512x128xf32>
    %36 = arith.addf %30, %35 : vector<512x128xf32>
    %37 = vector.extract_strided_slice %1 {offsets = [0, 2, 0, 0], sizes = [2, 16, 16, 8], strides = [1, 1, 1, 1]} : vector<2x18x18x8xbf16> to vector<2x16x16x8xbf16>
    %38 = vector.shape_cast %37 : vector<2x16x16x8xbf16> to vector<512x8xbf16>
    %c6 = arith.constant 6 : index
    %c0_21 = arith.constant 0 : index
    %c0_22 = arith.constant 0 : index
    %39 = vector.load %arg1[%c6, %c0_21, %c0_22] : memref<9x8x128xbf16, #tpu.memory_space<vmem>>, vector<1x8x128xbf16>
    %40 = vector.shape_cast %39 : vector<1x8x128xbf16> to vector<8x128xbf16>
    %cst_23 = arith.constant dense<0.000000e+00> : vector<512x128xf32>
    %41 = tpu.matmul %38, %40, %cst_23 {dimension_numbers = #tpu.dot_dimension_numbers<[1], [0], [0], [1], [0, 0, 1, 1], [], []>} : vector<512x8xbf16>, vector<8x128xbf16>, vector<512x128xf32> -> vector<512x128xf32>
    %42 = arith.addf %36, %41 : vector<512x128xf32>
    %43 = vector.extract_strided_slice %1 {offsets = [0, 2, 1, 0], sizes = [2, 16, 16, 8], strides = [1, 1, 1, 1]} : vector<2x18x18x8xbf16> to vector<2x16x16x8xbf16>
    %44 = vector.shape_cast %43 : vector<2x16x16x8xbf16> to vector<512x8xbf16>
    %c7 = arith.constant 7 : index
    %c0_24 = arith.constant 0 : index
    %c0_25 = arith.constant 0 : index
    %45 = vector.load %arg1[%c7, %c0_24, %c0_25] : memref<9x8x128xbf16, #tpu.memory_space<vmem>>, vector<1x8x128xbf16>
    %46 = vector.shape_cast %45 : vector<1x8x128xbf16> to vector<8x128xbf16>
    %cst_26 = arith.constant dense<0.000000e+00> : vector<512x128xf32>
    %47 = tpu.matmul %44, %46, %cst_26 {dimension_numbers = #tpu.dot_dimension_numbers<[1], [0], [0], [1], [0, 0, 1, 1], [], []>} : vector<512x8xbf16>, vector<8x128xbf16>, vector<512x128xf32> -> vector<512x128xf32>
    %48 = arith.addf %42, %47 : vector<512x128xf32>
    %49 = vector.extract_strided_slice %1 {offsets = [0, 2, 2, 0], sizes = [2, 16, 16, 8], strides = [1, 1, 1, 1]} : vector<2x18x18x8xbf16> to vector<2x16x16x8xbf16>
    %50 = vector.shape_cast %49 : vector<2x16x16x8xbf16> to vector<512x8xbf16>
    %c8 = arith.constant 8 : index
    %c0_27 = arith.constant 0 : index
    %c0_28 = arith.constant 0 : index
    %51 = vector.load %arg1[%c8, %c0_27, %c0_28] : memref<9x8x128xbf16, #tpu.memory_space<vmem>>, vector<1x8x128xbf16>
    %52 = vector.shape_cast %51 : vector<1x8x128xbf16> to vector<8x128xbf16>
    %cst_29 = arith.constant dense<0.000000e+00> : vector<512x128xf32>
    %53 = tpu.matmul %50, %52, %cst_29 {dimension_numbers = #tpu.dot_dimension_numbers<[1], [0], [0], [1], [0, 0, 1, 1], [], []>} : vector<512x8xbf16>, vector<8x128xbf16>, vector<512x128xf32> -> vector<512x128xf32>
    %54 = arith.addf %48, %53 : vector<512x128xf32>
    %c0_30 = arith.constant 0 : index
    %c0_31 = arith.constant 0 : index
    %55 = vector.load %arg2[%c0_30, %c0_31] : memref<1x128xf32, #tpu.memory_space<vmem>>, vector<1x128xf32>
    %c0_32 = arith.constant 0 : index
    %c0_33 = arith.constant 0 : index
    %56 = vector.load %arg3[%c0_32, %c0_33] : memref<1x128xf32, #tpu.memory_space<vmem>>, vector<1x128xf32>
    %cst_34 = arith.constant dense<0.000000e+00> : vector<128xf32>
    %57 = vector.multi_reduction <add>, %54, %cst_34 [0] : vector<512x128xf32> to vector<128xf32>
    %58 = vector.shape_cast %57 : vector<128xf32> to vector<1x128xf32>
    %cst_35 = arith.constant 0.001953125 : f32
    %59 = vector.broadcast %cst_35 : f32 to vector<1x128xf32>
    %60 = arith.mulf %58, %59 : vector<1x128xf32>
    %61 = vector.broadcast %60 : vector<1x128xf32> to vector<512x128xf32>
    %62 = arith.subf %54, %61 : vector<512x128xf32>
    %63 = arith.mulf %62, %62 : vector<512x128xf32>
    %cst_36 = arith.constant dense<0.000000e+00> : vector<128xf32>
    %64 = vector.multi_reduction <add>, %63, %cst_36 [0] : vector<512x128xf32> to vector<128xf32>
    %65 = vector.shape_cast %64 : vector<128xf32> to vector<1x128xf32>
    %cst_37 = arith.constant 0.001953125 : f32
    %66 = vector.broadcast %cst_37 : f32 to vector<1x128xf32>
    %67 = arith.mulf %65, %66 : vector<1x128xf32>
    %cst_38 = arith.constant 9.99999974E-6 : f32
    %68 = vector.broadcast %cst_38 : f32 to vector<1x128xf32>
    %69 = arith.addf %67, %68 : vector<1x128xf32>
    %70 = math.rsqrt %69 : vector<1x128xf32>
    %71 = vector.broadcast %70 : vector<1x128xf32> to vector<512x128xf32>
    %72 = arith.mulf %62, %71 : vector<512x128xf32>
    %73 = vector.broadcast %55 : vector<1x128xf32> to vector<512x128xf32>
    %74 = arith.mulf %72, %73 : vector<512x128xf32>
    %75 = vector.broadcast %56 : vector<1x128xf32> to vector<512x128xf32>
    %76 = arith.addf %74, %75 : vector<512x128xf32>
    %cst_39 = arith.constant 0.000000e+00 : f32
    %77 = vector.broadcast %cst_39 : f32 to vector<512x128xf32>
    %78 = arith.maximumf %76, %77 : vector<512x128xf32>
    %79 = vector.extract_strided_slice %78 {offsets = [0, 0], sizes = [512, 8], strides = [1, 1]} : vector<512x128xf32> to vector<512x8xf32>
    %80 = arith.truncf %79 : vector<512x8xf32> to vector<512x8xbf16>
    %81 = vector.shape_cast %80 : vector<512x8xbf16> to vector<2x16x16x8xbf16>
    %cst_40 = arith.constant 0.000000e+00 : bf16
    %82 = vector.broadcast %cst_40 : bf16 to vector<2x1x16x8xbf16>
    %83 = tpu.concatenate %82, %81, %82 in 1 : vector<2x1x16x8xbf16>, vector<2x16x16x8xbf16>, vector<2x1x16x8xbf16> -> vector<2x18x16x8xbf16>
    %cst_41 = arith.constant 0.000000e+00 : bf16
    %84 = vector.broadcast %cst_41 : bf16 to vector<2x18x1x8xbf16>
    %85 = tpu.concatenate %84, %83, %84 in 2 : vector<2x18x1x8xbf16>, vector<2x18x16x8xbf16>, vector<2x18x1x8xbf16> -> vector<2x18x18x8xbf16>
    %86 = vector.extract_strided_slice %85 {offsets = [0, 0, 0, 0], sizes = [2, 16, 16, 8], strides = [1, 1, 1, 1]} : vector<2x18x18x8xbf16> to vector<2x16x16x8xbf16>
    %87 = vector.shape_cast %86 : vector<2x16x16x8xbf16> to vector<512x8xbf16>
    %c0_42 = arith.constant 0 : index
    %c0_43 = arith.constant 0 : index
    %c0_44 = arith.constant 0 : index
    %88 = vector.load %arg4[%c0_42, %c0_43, %c0_44] : memref<9x8x128xbf16, #tpu.memory_space<vmem>>, vector<1x8x128xbf16>
    %89 = vector.shape_cast %88 : vector<1x8x128xbf16> to vector<8x128xbf16>
    %cst_45 = arith.constant dense<0.000000e+00> : vector<512x128xf32>
    %90 = tpu.matmul %87, %89, %cst_45 {dimension_numbers = #tpu.dot_dimension_numbers<[1], [0], [0], [1], [0, 0, 1, 1], [], []>} : vector<512x8xbf16>, vector<8x128xbf16>, vector<512x128xf32> -> vector<512x128xf32>
    %91 = vector.extract_strided_slice %85 {offsets = [0, 0, 1, 0], sizes = [2, 16, 16, 8], strides = [1, 1, 1, 1]} : vector<2x18x18x8xbf16> to vector<2x16x16x8xbf16>
    %92 = vector.shape_cast %91 : vector<2x16x16x8xbf16> to vector<512x8xbf16>
    %c1_46 = arith.constant 1 : index
    %c0_47 = arith.constant 0 : index
    %c0_48 = arith.constant 0 : index
    %93 = vector.load %arg4[%c1_46, %c0_47, %c0_48] : memref<9x8x128xbf16, #tpu.memory_space<vmem>>, vector<1x8x128xbf16>
    %94 = vector.shape_cast %93 : vector<1x8x128xbf16> to vector<8x128xbf16>
    %cst_49 = arith.constant dense<0.000000e+00> : vector<512x128xf32>
    %95 = tpu.matmul %92, %94, %cst_49 {dimension_numbers = #tpu.dot_dimension_numbers<[1], [0], [0], [1], [0, 0, 1, 1], [], []>} : vector<512x8xbf16>, vector<8x128xbf16>, vector<512x128xf32> -> vector<512x128xf32>
    %96 = arith.addf %90, %95 : vector<512x128xf32>
    %97 = vector.extract_strided_slice %85 {offsets = [0, 0, 2, 0], sizes = [2, 16, 16, 8], strides = [1, 1, 1, 1]} : vector<2x18x18x8xbf16> to vector<2x16x16x8xbf16>
    %98 = vector.shape_cast %97 : vector<2x16x16x8xbf16> to vector<512x8xbf16>
    %c2_50 = arith.constant 2 : index
    %c0_51 = arith.constant 0 : index
    %c0_52 = arith.constant 0 : index
    %99 = vector.load %arg4[%c2_50, %c0_51, %c0_52] : memref<9x8x128xbf16, #tpu.memory_space<vmem>>, vector<1x8x128xbf16>
    %100 = vector.shape_cast %99 : vector<1x8x128xbf16> to vector<8x128xbf16>
    %cst_53 = arith.constant dense<0.000000e+00> : vector<512x128xf32>
    %101 = tpu.matmul %98, %100, %cst_53 {dimension_numbers = #tpu.dot_dimension_numbers<[1], [0], [0], [1], [0, 0, 1, 1], [], []>} : vector<512x8xbf16>, vector<8x128xbf16>, vector<512x128xf32> -> vector<512x128xf32>
    %102 = arith.addf %96, %101 : vector<512x128xf32>
    %103 = vector.extract_strided_slice %85 {offsets = [0, 1, 0, 0], sizes = [2, 16, 16, 8], strides = [1, 1, 1, 1]} : vector<2x18x18x8xbf16> to vector<2x16x16x8xbf16>
    %104 = vector.shape_cast %103 : vector<2x16x16x8xbf16> to vector<512x8xbf16>
    %c3_54 = arith.constant 3 : index
    %c0_55 = arith.constant 0 : index
    %c0_56 = arith.constant 0 : index
    %105 = vector.load %arg4[%c3_54, %c0_55, %c0_56] : memref<9x8x128xbf16, #tpu.memory_space<vmem>>, vector<1x8x128xbf16>
    %106 = vector.shape_cast %105 : vector<1x8x128xbf16> to vector<8x128xbf16>
    %cst_57 = arith.constant dense<0.000000e+00> : vector<512x128xf32>
    %107 = tpu.matmul %104, %106, %cst_57 {dimension_numbers = #tpu.dot_dimension_numbers<[1], [0], [0], [1], [0, 0, 1, 1], [], []>} : vector<512x8xbf16>, vector<8x128xbf16>, vector<512x128xf32> -> vector<512x128xf32>
    %108 = arith.addf %102, %107 : vector<512x128xf32>
    %109 = vector.extract_strided_slice %85 {offsets = [0, 1, 1, 0], sizes = [2, 16, 16, 8], strides = [1, 1, 1, 1]} : vector<2x18x18x8xbf16> to vector<2x16x16x8xbf16>
    %110 = vector.shape_cast %109 : vector<2x16x16x8xbf16> to vector<512x8xbf16>
    %c4_58 = arith.constant 4 : index
    %c0_59 = arith.constant 0 : index
    %c0_60 = arith.constant 0 : index
    %111 = vector.load %arg4[%c4_58, %c0_59, %c0_60] : memref<9x8x128xbf16, #tpu.memory_space<vmem>>, vector<1x8x128xbf16>
    %112 = vector.shape_cast %111 : vector<1x8x128xbf16> to vector<8x128xbf16>
    %cst_61 = arith.constant dense<0.000000e+00> : vector<512x128xf32>
    %113 = tpu.matmul %110, %112, %cst_61 {dimension_numbers = #tpu.dot_dimension_numbers<[1], [0], [0], [1], [0, 0, 1, 1], [], []>} : vector<512x8xbf16>, vector<8x128xbf16>, vector<512x128xf32> -> vector<512x128xf32>
    %114 = arith.addf %108, %113 : vector<512x128xf32>
    %115 = vector.extract_strided_slice %85 {offsets = [0, 1, 2, 0], sizes = [2, 16, 16, 8], strides = [1, 1, 1, 1]} : vector<2x18x18x8xbf16> to vector<2x16x16x8xbf16>
    %116 = vector.shape_cast %115 : vector<2x16x16x8xbf16> to vector<512x8xbf16>
    %c5_62 = arith.constant 5 : index
    %c0_63 = arith.constant 0 : index
    %c0_64 = arith.constant 0 : index
    %117 = vector.load %arg4[%c5_62, %c0_63, %c0_64] : memref<9x8x128xbf16, #tpu.memory_space<vmem>>, vector<1x8x128xbf16>
    %118 = vector.shape_cast %117 : vector<1x8x128xbf16> to vector<8x128xbf16>
    %cst_65 = arith.constant dense<0.000000e+00> : vector<512x128xf32>
    %119 = tpu.matmul %116, %118, %cst_65 {dimension_numbers = #tpu.dot_dimension_numbers<[1], [0], [0], [1], [0, 0, 1, 1], [], []>} : vector<512x8xbf16>, vector<8x128xbf16>, vector<512x128xf32> -> vector<512x128xf32>
    %120 = arith.addf %114, %119 : vector<512x128xf32>
    %121 = vector.extract_strided_slice %85 {offsets = [0, 2, 0, 0], sizes = [2, 16, 16, 8], strides = [1, 1, 1, 1]} : vector<2x18x18x8xbf16> to vector<2x16x16x8xbf16>
    %122 = vector.shape_cast %121 : vector<2x16x16x8xbf16> to vector<512x8xbf16>
    %c6_66 = arith.constant 6 : index
    %c0_67 = arith.constant 0 : index
    %c0_68 = arith.constant 0 : index
    %123 = vector.load %arg4[%c6_66, %c0_67, %c0_68] : memref<9x8x128xbf16, #tpu.memory_space<vmem>>, vector<1x8x128xbf16>
    %124 = vector.shape_cast %123 : vector<1x8x128xbf16> to vector<8x128xbf16>
    %cst_69 = arith.constant dense<0.000000e+00> : vector<512x128xf32>
    %125 = tpu.matmul %122, %124, %cst_69 {dimension_numbers = #tpu.dot_dimension_numbers<[1], [0], [0], [1], [0, 0, 1, 1], [], []>} : vector<512x8xbf16>, vector<8x128xbf16>, vector<512x128xf32> -> vector<512x128xf32>
    %126 = arith.addf %120, %125 : vector<512x128xf32>
    %127 = vector.extract_strided_slice %85 {offsets = [0, 2, 1, 0], sizes = [2, 16, 16, 8], strides = [1, 1, 1, 1]} : vector<2x18x18x8xbf16> to vector<2x16x16x8xbf16>
    %128 = vector.shape_cast %127 : vector<2x16x16x8xbf16> to vector<512x8xbf16>
    %c7_70 = arith.constant 7 : index
    %c0_71 = arith.constant 0 : index
    %c0_72 = arith.constant 0 : index
    %129 = vector.load %arg4[%c7_70, %c0_71, %c0_72] : memref<9x8x128xbf16, #tpu.memory_space<vmem>>, vector<1x8x128xbf16>
    %130 = vector.shape_cast %129 : vector<1x8x128xbf16> to vector<8x128xbf16>
    %cst_73 = arith.constant dense<0.000000e+00> : vector<512x128xf32>
    %131 = tpu.matmul %128, %130, %cst_73 {dimension_numbers = #tpu.dot_dimension_numbers<[1], [0], [0], [1], [0, 0, 1, 1], [], []>} : vector<512x8xbf16>, vector<8x128xbf16>, vector<512x128xf32> -> vector<512x128xf32>
    %132 = arith.addf %126, %131 : vector<512x128xf32>
    %133 = vector.extract_strided_slice %85 {offsets = [0, 2, 2, 0], sizes = [2, 16, 16, 8], strides = [1, 1, 1, 1]} : vector<2x18x18x8xbf16> to vector<2x16x16x8xbf16>
    %134 = vector.shape_cast %133 : vector<2x16x16x8xbf16> to vector<512x8xbf16>
    %c8_74 = arith.constant 8 : index
    %c0_75 = arith.constant 0 : index
    %c0_76 = arith.constant 0 : index
    %135 = vector.load %arg4[%c8_74, %c0_75, %c0_76] : memref<9x8x128xbf16, #tpu.memory_space<vmem>>, vector<1x8x128xbf16>
    %136 = vector.shape_cast %135 : vector<1x8x128xbf16> to vector<8x128xbf16>
    %cst_77 = arith.constant dense<0.000000e+00> : vector<512x128xf32>
    %137 = tpu.matmul %134, %136, %cst_77 {dimension_numbers = #tpu.dot_dimension_numbers<[1], [0], [0], [1], [0, 0, 1, 1], [], []>} : vector<512x8xbf16>, vector<8x128xbf16>, vector<512x128xf32> -> vector<512x128xf32>
    %138 = arith.addf %132, %137 : vector<512x128xf32>
    %c0_78 = arith.constant 0 : index
    %c0_79 = arith.constant 0 : index
    %139 = vector.load %arg5[%c0_78, %c0_79] : memref<1x128xf32, #tpu.memory_space<vmem>>, vector<1x128xf32>
    %c0_80 = arith.constant 0 : index
    %c0_81 = arith.constant 0 : index
    %140 = vector.load %arg6[%c0_80, %c0_81] : memref<1x128xf32, #tpu.memory_space<vmem>>, vector<1x128xf32>
    %cst_82 = arith.constant dense<0.000000e+00> : vector<128xf32>
    %141 = vector.multi_reduction <add>, %138, %cst_82 [0] : vector<512x128xf32> to vector<128xf32>
    %142 = vector.shape_cast %141 : vector<128xf32> to vector<1x128xf32>
    %cst_83 = arith.constant 0.001953125 : f32
    %143 = vector.broadcast %cst_83 : f32 to vector<1x128xf32>
    %144 = arith.mulf %142, %143 : vector<1x128xf32>
    %145 = vector.broadcast %144 : vector<1x128xf32> to vector<512x128xf32>
    %146 = arith.subf %138, %145 : vector<512x128xf32>
    %147 = arith.mulf %146, %146 : vector<512x128xf32>
    %cst_84 = arith.constant dense<0.000000e+00> : vector<128xf32>
    %148 = vector.multi_reduction <add>, %147, %cst_84 [0] : vector<512x128xf32> to vector<128xf32>
    %149 = vector.shape_cast %148 : vector<128xf32> to vector<1x128xf32>
    %cst_85 = arith.constant 0.001953125 : f32
    %150 = vector.broadcast %cst_85 : f32 to vector<1x128xf32>
    %151 = arith.mulf %149, %150 : vector<1x128xf32>
    %cst_86 = arith.constant 9.99999974E-6 : f32
    %152 = vector.broadcast %cst_86 : f32 to vector<1x128xf32>
    %153 = arith.addf %151, %152 : vector<1x128xf32>
    %154 = math.rsqrt %153 : vector<1x128xf32>
    %155 = vector.broadcast %154 : vector<1x128xf32> to vector<512x128xf32>
    %156 = arith.mulf %146, %155 : vector<512x128xf32>
    %157 = vector.broadcast %139 : vector<1x128xf32> to vector<512x128xf32>
    %158 = arith.mulf %156, %157 : vector<512x128xf32>
    %159 = vector.broadcast %140 : vector<1x128xf32> to vector<512x128xf32>
    %160 = arith.addf %158, %159 : vector<512x128xf32>
    %161 = vector.extract_strided_slice %0 {offsets = [0, 1, 1, 0], sizes = [2, 16, 16, 8], strides = [1, 1, 1, 1]} : vector<2x18x18x8xf32> to vector<2x16x16x8xf32>
    %162 = vector.shape_cast %161 : vector<2x16x16x8xf32> to vector<512x8xf32>
    %cst_87 = arith.constant 0.000000e+00 : f32
    %163 = vector.broadcast %cst_87 : f32 to vector<512x120xf32>
    %164 = tpu.concatenate %162, %163 in 1 : vector<512x8xf32>, vector<512x120xf32> -> vector<512x128xf32>
    %165 = arith.addf %160, %164 : vector<512x128xf32>
    %cst_88 = arith.constant 0.000000e+00 : f32
    %166 = vector.broadcast %cst_88 : f32 to vector<512x128xf32>
    %167 = arith.maximumf %165, %166 : vector<512x128xf32>
    %168 = vector.shape_cast %167 : vector<512x128xf32> to vector<2x16x16x128xf32>
    %c0_89 = arith.constant 0 : index
    %c0_90 = arith.constant 0 : index
    %c0_91 = arith.constant 0 : index
    %c0_92 = arith.constant 0 : index
    %169 = vector.load %arg7[%c0_89, %c0_90, %c0_91, %c0_92] : memref<2x16x16x128xf32, #tpu.memory_space<vmem>>, vector<2x16x16x128xf32>
    tpu.vector_store %arg7[%c0_89, %c0_90, %c0_91, %c0_92], %168 {strides = array<i32>} : memref<2x16x16x128xf32, #tpu.memory_space<vmem>>, vector<2x16x16x128xf32>,
    return
  }
}

</mosaic_0001>

<llo_original>
// kernel: basic_block_forward.1
$region0: #{basic_block_forward.1}
  #allocation0 [shape = 'u32[]', space=smem, size = 0x4, offset = 0x4, fixed_abs, tag = 'smem constant byte address 0x4 - core index']
  #allocation1 [shape = 'u32[144,128]{1,0:T(1,128)}', space=vmem, size = 0x12000, scoped, tag = 'internal scratch']
  %s0 = inlined_call_operand.vmem [shape: f32[2,18,18,8], index: 0, kind: input, shape index: {}]
  %s1 = inlined_call_operand.vmem [shape: bf16[9,8,128], index: 1, kind: input, shape index: {}]
  %s2 = inlined_call_operand.vmem [shape: f32[1,128], index: 2, kind: input, shape index: {}]
  %s3 = inlined_call_operand.vmem [shape: f32[1,128], index: 3, kind: input, shape index: {}]
  %s4 = inlined_call_operand.vmem [shape: bf16[9,8,128], index: 4, kind: input, shape index: {}]
  %s5 = inlined_call_operand.vmem [shape: f32[1,128], index: 5, kind: input, shape index: {}]
  %s6 = inlined_call_operand.vmem [shape: f32[1,128], index: 6, kind: input, shape index: {}]
  %s7 = inlined_call_operand.vmem [shape: f32[2,16,16,128], index: 7, kind: output, shape index: {}]
  %s8 = sld [smem:[#allocation0]]
  $region38: #{basic_block_forward.1} parent=0
    _
  %s10 = ssub.s32 1, %s8
  %s11 = scalar_select 0, %s10, %s8
  // Predicated region
  $region2: #{basic_block_forward.1} parent=0 // pred_check
    _
  $region3: #{basic_block_forward.1} parent=0 // pred_check_branch
    %13 = sbr.rel (0) target = $region5
  $region4: #{basic_block_forward.1} parent=0 // pred_region
    _
  $region5: #{basic_block_forward.1} parent=0 // pred_fallthru
    _
  // Predicated region
  $region6: #{basic_block_forward.1} parent=0 // pred_check
    _
  $region7: #{basic_block_forward.1} parent=0 // pred_check_branch
    %15 = sbr.rel (0) target = $region9
  $region8: #{basic_block_forward.1} parent=0 // pred_region
    _
  $region9: #{basic_block_forward.1} parent=0 // pred_fallthru
    _
  // Predicated region
  $region10: #{basic_block_forward.1} parent=0 // pred_check
    _
  $region11: #{basic_block_forward.1} parent=0 // pred_check_branch
    %17 = sbr.rel (0) target = $region13
  $region12: #{basic_block_forward.1} parent=0 // pred_region
    _
  $region13: #{basic_block_forward.1} parent=0 // pred_fallthru
    _
  // Predicated region
  $region14: #{basic_block_forward.1} parent=0 // pred_check
    _
  $region15: #{basic_block_forward.1} parent=0 // pred_check_branch
    %19 = sbr.rel (0) target = $region17
  $region16: #{basic_block_forward.1} parent=0 // pred_region
    _
  $region17: #{basic_block_forward.1} parent=0 // pred_fallthru
    _
  // Predicated region
  $region18: #{basic_block_forward.1} parent=0 // pred_check
    _
  $region19: #{basic_block_forward.1} parent=0 // pred_check_branch
    %21 = sbr.rel (0) target = $region21
  $region20: #{basic_block_forward.1} parent=0 // pred_region
    _
  $region21: #{basic_block_forward.1} parent=0 // pred_fallthru
    _
  // Predicated region
  $region22: #{basic_block_forward.1} parent=0 // pred_check
    _
  $region23: #{basic_block_forward.1} parent=0 // pred_check_branch
    %23 = sbr.rel (0) target = $region25
  $region24: #{basic_block_forward.1} parent=0 // pred_region
    _
  $region25: #{basic_block_forward.1} parent=0 // pred_fallthru
    _
  // Predicated region
  $region26: #{basic_block_forward.1} parent=0 // pred_check
    _
  $region27: #{basic_block_forward.1} parent=0 // pred_check_branch
    %25 = sbr.rel (0) target = $region29
  $region28: #{basic_block_forward.1} parent=0 // pred_region
    _
  $region29: #{basic_block_forward.1} parent=0 // pred_fallthru
    _
  %v27 = vld [vmem:[%s0] sm:$0xff]
  %v28 = vld [vmem:[%s0 + $0x8] sm:$0xff]
  %v29 = vld [vmem:[%s0 + $0x10] sm:$0x3]
  %v30 = vld [vmem:[%s0 + $0x18] sm:$0xff]
  %v31 = vld [vmem:[%s0 + $0x20] sm:$0xff]
  %v32 = vld [vmem:[%s0 + $0x28] sm:$0x3]
  %v33 = vld [vmem:[%s0 + $0x30] sm:$0xff]
  %v34 = vld [vmem:[%s0 + $0x38] sm:$0xff]
  %v35 = vld [vmem:[%s0 + $0x40] sm:$0x3]
  %v36 = vld [vmem:[%s0 + $0x48] sm:$0xff]
  %v37 = vld [vmem:[%s0 + $0x50] sm:$0xff]
  %v38 = vld [vmem:[%s0 + $0x58] sm:$0x3]
  %v39 = vld [vmem:[%s0 + $0x60] sm:$0xff]
  %v40 = vld [vmem:[%s0 + $0x68] sm:$0xff]
  %v41 = vld [vmem:[%s0 + $0x70] sm:$0x3]
  %v42 = vld [vmem:[%s0 + $0x78] sm:$0xff]
  %v43 = vld [vmem:[%s0 + $0x80] sm:$0xff]
  %v44 = vld [vmem:[%s0 + $0x88] sm:$0x3]
  %v45 = vld [vmem:[%s0 + $0x90] sm:$0xff]
  %v46 = vld [vmem:[%s0 + $0x98] sm:$0xff]
  %v47 = vld [vmem:[%s0 + $0xa0] sm:$0x3]
  %v48 = vld [vmem:[%s0 + $0xa8] sm:$0xff]
  %v49 = vld [vmem:[%s0 + $0xb0] sm:$0xff]
  %v50 = vld [vmem:[%s0 + $0xb8] sm:$0x3]
  %v51 = vld [vmem:[%s0 + $0xc0] sm:$0xff]
  %v52 = vld [vmem:[%s0 + $0xc8] sm:$0xff]
  %v53 = vld [vmem:[%s0 + $0xd0] sm:$0x3]
  %v54 = vld [vmem:[%s0 + $0xd8] sm:$0xff]
  %v55 = vld [vmem:[%s0 + $0xe0] sm:$0xff]
  %v56 = vld [vmem:[%s0 + $0xe8] sm:$0x3]
  %v57 = vld [vmem:[%s0 + $0xf0] sm:$0xff]
  %v58 = vld [vmem:[%s0 + $0xf8] sm:$0xff]
  %v59 = vld [vmem:[%s0 + $0x100] sm:$0x3]
  %v60 = vld [vmem:[%s0 + $0x108] sm:$0xff]
  %v61 = vld [vmem:[%s0 + $0x110] sm:$0xff]
  %v62 = vld [vmem:[%s0 + $0x118] sm:$0x3]
  %v63 = vld [vmem:[%s0 + $0x120] sm:$0xff]
  %v64 = vld [vmem:[%s0 + $0x128] sm:$0xff]
  %v65 = vld [vmem:[%s0 + $0x130] sm:$0x3]
  %v66 = vld [vmem:[%s0 + $0x138] sm:$0xff]
  %v67 = vld [vmem:[%s0 + $0x140] sm:$0xff]
  %v68 = vld [vmem:[%s0 + $0x148] sm:$0x3]
  %v69 = vld [vmem:[%s0 + $0x150] sm:$0xff]
  %v70 = vld [vmem:[%s0 + $0x158] sm:$0xff]
  %v71 = vld [vmem:[%s0 + $0x160] sm:$0x3]
  %v72 = vld [vmem:[%s0 + $0x168] sm:$0xff]
  %v73 = vld [vmem:[%s0 + $0x170] sm:$0xff]
  %v74 = vld [vmem:[%s0 + $0x178] sm:$0x3]
  %v75 = vld [vmem:[%s0 + $0x180] sm:$0xff]
  %v76 = vld [vmem:[%s0 + $0x188] sm:$0xff]
  %v77 = vld [vmem:[%s0 + $0x190] sm:$0x3]
  %v78 = vld [vmem:[%s0 + $0x198] sm:$0xff]
  %v79 = vld [vmem:[%s0 + $0x1a0] sm:$0xff]
  %v80 = vld [vmem:[%s0 + $0x1a8] sm:$0x3]
  %v81 = vld [vmem:[%s0 + $0x1b0] sm:$0xff]
  %v82 = vld [vmem:[%s0 + $0x1b8] sm:$0xff]
  %v83 = vld [vmem:[%s0 + $0x1c0] sm:$0x3]
  %v84 = vld [vmem:[%s0 + $0x1c8] sm:$0xff]
  %v85 = vld [vmem:[%s0 + $0x1d0] sm:$0xff]
  %v86 = vld [vmem:[%s0 + $0x1d8] sm:$0x3]
  %v87 = vld [vmem:[%s0 + $0x1e0] sm:$0xff]
  %v88 = vld [vmem:[%s0 + $0x1e8] sm:$0xff]
  %v89 = vld [vmem:[%s0 + $0x1f0] sm:$0x3]
  %v90 = vld [vmem:[%s0 + $0x1f8] sm:$0xff]
  %v91 = vld [vmem:[%s0 + $0x200] sm:$0xff]
  %v92 = vld [vmem:[%s0 + $0x208] sm:$0x3]
  %v93 = vld [vmem:[%s0 + $0x210] sm:$0xff]
  %v94 = vld [vmem:[%s0 + $0x218] sm:$0xff]
  %v95 = vld [vmem:[%s0 + $0x220] sm:$0x3]
  %v96 = vld [vmem:[%s0 + $0x228] sm:$0xff]
  %v97 = vld [vmem:[%s0 + $0x230] sm:$0xff]
  %v98 = vld [vmem:[%s0 + $0x238] sm:$0x3]
  %v99 = vld [vmem:[%s0 + $0x240] sm:$0xff]
  %v100 = vld [vmem:[%s0 + $0x248] sm:$0xff]
  %v101 = vld [vmem:[%s0 + $0x250] sm:$0x3]
  %v102 = vld [vmem:[%s0 + $0x258] sm:$0xff]
  %v103 = vld [vmem:[%s0 + $0x260] sm:$0xff]
  %v104 = vld [vmem:[%s0 + $0x268] sm:$0x3]
  %v105 = vld [vmem:[%s0 + $0x270] sm:$0xff]
  %v106 = vld [vmem:[%s0 + $0x278] sm:$0xff]
  %v107 = vld [vmem:[%s0 + $0x280] sm:$0x3]
  %v108 = vld [vmem:[%s0 + $0x288] sm:$0xff]
  %v109 = vld [vmem:[%s0 + $0x290] sm:$0xff]
  %v110 = vld [vmem:[%s0 + $0x298] sm:$0x3]
  %v111 = vld [vmem:[%s0 + $0x2a0] sm:$0xff]
  %v112 = vld [vmem:[%s0 + $0x2a8] sm:$0xff]
  %v113 = vld [vmem:[%s0 + $0x2b0] sm:$0x3]
  %v114 = vld [vmem:[%s0 + $0x2b8] sm:$0xff]
  %v115 = vld [vmem:[%s0 + $0x2c0] sm:$0xff]
  %v116 = vld [vmem:[%s0 + $0x2c8] sm:$0x3]
  %v117 = vld [vmem:[%s0 + $0x2d0] sm:$0xff]
  %v118 = vld [vmem:[%s0 + $0x2d8] sm:$0xff]
  %v119 = vld [vmem:[%s0 + $0x2e0] sm:$0x3]
  %v120 = vld [vmem:[%s0 + $0x2e8] sm:$0xff]
  %v121 = vld [vmem:[%s0 + $0x2f0] sm:$0xff]
  %v122 = vld [vmem:[%s0 + $0x2f8] sm:$0x3]
  %v123 = vld [vmem:[%s0 + $0x300] sm:$0xff]
  %v124 = vld [vmem:[%s0 + $0x308] sm:$0xff]
  %v125 = vld [vmem:[%s0 + $0x310] sm:$0x3]
  %v126 = vld [vmem:[%s0 + $0x318] sm:$0xff]
  %v127 = vld [vmem:[%s0 + $0x320] sm:$0xff]
  %v128 = vld [vmem:[%s0 + $0x328] sm:$0x3]
  %v129 = vld [vmem:[%s0 + $0x330] sm:$0xff]
  %v130 = vld [vmem:[%s0 + $0x338] sm:$0xff]
  %v131 = vld [vmem:[%s0 + $0x340] sm:$0x3]
  %v132 = vld [vmem:[%s0 + $0x348] sm:$0xff]
  %v133 = vld [vmem:[%s0 + $0x350] sm:$0xff]
  %v134 = vld [vmem:[%s0 + $0x358] sm:$0x3]
  %v135 = vpack.c.bf16 %v28, %v27
  %v136 = vpack.c.bf16 %v29, %v29
  %v137 = vpack.c.bf16 %v31, %v30
  %v138 = vpack.c.bf16 %v32, %v32
  %v139 = vpack.c.bf16 %v34, %v33
  %v140 = vpack.c.bf16 %v35, %v35
  %v141 = vpack.c.bf16 %v37, %v36
  %v142 = vpack.c.bf16 %v38, %v38
  %v143 = vpack.c.bf16 %v40, %v39
  %v144 = vpack.c.bf16 %v41, %v41
  %v145 = vpack.c.bf16 %v43, %v42
  %v146 = vpack.c.bf16 %v44, %v44
  %v147 = vpack.c.bf16 %v46, %v45
  %v148 = vpack.c.bf16 %v47, %v47
  %v149 = vpack.c.bf16 %v49, %v48
  %v150 = vpack.c.bf16 %v50, %v50
  %v151 = vpack.c.bf16 %v52, %v51
  %v152 = vpack.c.bf16 %v53, %v53
  %v153 = vpack.c.bf16 %v55, %v54
  %v154 = vpack.c.bf16 %v56, %v56
  %v155 = vpack.c.bf16 %v58, %v57
  %v156 = vpack.c.bf16 %v59, %v59
  %v157 = vpack.c.bf16 %v61, %v60
  %v158 = vpack.c.bf16 %v62, %v62
  %v159 = vpack.c.bf16 %v64, %v63
  %v160 = vpack.c.bf16 %v65, %v65
  %v161 = vpack.c.bf16 %v67, %v66
  %v162 = vpack.c.bf16 %v68, %v68
  %v163 = vpack.c.bf16 %v70, %v69
  %v164 = vpack.c.bf16 %v71, %v71
  %v165 = vpack.c.bf16 %v73, %v72
  %v166 = vpack.c.bf16 %v74, %v74
  %v167 = vpack.c.bf16 %v76, %v75
  %v168 = vpack.c.bf16 %v77, %v77
  %v169 = vpack.c.bf16 %v79, %v78
  %v170 = vpack.c.bf16 %v80, %v80
  %v171 = vpack.c.bf16 %v82, %v81
  %v172 = vpack.c.bf16 %v83, %v83
  %v173 = vpack.c.bf16 %v85, %v84
  %v174 = vpack.c.bf16 %v86, %v86
  %v175 = vpack.c.bf16 %v88, %v87
  %v176 = vpack.c.bf16 %v89, %v89
  %v177 = vpack.c.bf16 %v91, %v90
  %v178 = vpack.c.bf16 %v92, %v92
  %v179 = vpack.c.bf16 %v94, %v93
  %v180 = vpack.c.bf16 %v95, %v95
  %v181 = vpack.c.bf16 %v97, %v96
  %v182 = vpack.c.bf16 %v98, %v98
  %v183 = vpack.c.bf16 %v100, %v99
  %v184 = vpack.c.bf16 %v101, %v101
  %v185 = vpack.c.bf16 %v103, %v102
  %v186 = vpack.c.bf16 %v104, %v104
  %v187 = vpack.c.bf16 %v106, %v105
  %v188 = vpack.c.bf16 %v107, %v107
  %v189 = vpack.c.bf16 %v109, %v108
  %v190 = vpack.c.bf16 %v110, %v110
  %v191 = vpack.c.bf16 %v112, %v111
  %v192 = vpack.c.bf16 %v113, %v113
  %v193 = vpack.c.bf16 %v115, %v114
  %v194 = vpack.c.bf16 %v116, %v116
  %v195 = vpack.c.bf16 %v118, %v117
  %v196 = vpack.c.bf16 %v119, %v119
  %v197 = vpack.c.bf16 %v121, %v120
  %v198 = vpack.c.bf16 %v122, %v122
  %v199 = vpack.c.bf16 %v124, %v123
  %v200 = vpack.c.bf16 %v125, %v125
  %v201 = vpack.c.bf16 %v127, %v126
  %v202 = vpack.c.bf16 %v128, %v128
  %v203 = vpack.c.bf16 %v130, %v129
  %v204 = vpack.c.bf16 %v131, %v131
  %v205 = vpack.c.bf16 %v133, %v132
  %v206 = vpack.c.bf16 %v134, %v134
  %v207 = vld [vmem:[%s1] sm:$0xf]
  %vm208 = vsmask.f32 7424
  %v210 = vshrl.u32 %v135, 16
  %v212 = vshll.u32 %v135, 16
  %v214 = vrot.slane %v212, 1
  %v215 = vor.u32 %v210, %v214
  %v217 = vshll.u32 %v136, 16
  %v219 = vrot.slane %v217, 1
  %v220 = vsel %vm208, %v215, %v219
  %v222 = vshrl.u32 %v137, 16
  %v224 = vshll.u32 %v137, 16
  %v226 = vrot.slane %v224, 1
  %v227 = vor.u32 %v222, %v226
  %v229 = vshll.u32 %v138, 16
  %v231 = vrot.slane %v229, 1
  %v232 = vsel %vm208, %v227, %v231
  %v234 = vshrl.u32 %v139, 16
  %v236 = vshll.u32 %v139, 16
  %v238 = vrot.slane %v236, 1
  %v239 = vor.u32 %v234, %v238
  %v241 = vshll.u32 %v140, 16
  %v243 = vrot.slane %v241, 1
  %v244 = vsel %vm208, %v239, %v243
  %v246 = vshrl.u32 %v141, 16
  %v248 = vshll.u32 %v141, 16
  %v250 = vrot.slane %v248, 1
  %v251 = vor.u32 %v246, %v250
  %v253 = vshll.u32 %v142, 16
  %v255 = vrot.slane %v253, 1
  %v256 = vsel %vm208, %v251, %v255
  %v258 = vshrl.u32 %v143, 16
  %v260 = vshll.u32 %v143, 16
  %v262 = vrot.slane %v260, 1
  %v263 = vor.u32 %v258, %v262
  %v265 = vshll.u32 %v144, 16
  %v267 = vrot.slane %v265, 1
  %v268 = vsel %vm208, %v263, %v267
  %v270 = vshrl.u32 %v145, 16
  %v272 = vshll.u32 %v145, 16
  %v274 = vrot.slane %v272, 1
  %v275 = vor.u32 %v270, %v274
  %v277 = vshll.u32 %v146, 16
  %v279 = vrot.slane %v277, 1
  %v280 = vsel %vm208, %v275, %v279
  %v282 = vshrl.u32 %v147, 16
  %v284 = vshll.u32 %v147, 16
  %v286 = vrot.slane %v284, 1
  %v287 = vor.u32 %v282, %v286
  %v289 = vshll.u32 %v148, 16
  %v291 = vrot.slane %v289, 1
  %v292 = vsel %vm208, %v287, %v291
  %v294 = vshrl.u32 %v149, 16
  %v296 = vshll.u32 %v149, 16
  %v298 = vrot.slane %v296, 1
  %v299 = vor.u32 %v294, %v298
  %v301 = vshll.u32 %v150, 16
  %v303 = vrot.slane %v301, 1
  %v304 = vsel %vm208, %v299, %v303
  %v306 = vshrl.u32 %v151, 16
  %v308 = vshll.u32 %v151, 16
  %v310 = vrot.slane %v308, 1
  %v311 = vor.u32 %v306, %v310
  %v313 = vshll.u32 %v152, 16
  %v315 = vrot.slane %v313, 1
  %v316 = vsel %vm208, %v311, %v315
  %v318 = vshrl.u32 %v153, 16
  %v320 = vshll.u32 %v153, 16
  %v322 = vrot.slane %v320, 1
  %v323 = vor.u32 %v318, %v322
  %v325 = vshll.u32 %v154, 16
  %v327 = vrot.slane %v325, 1
  %v328 = vsel %vm208, %v323, %v327
  %v330 = vshrl.u32 %v155, 16
  %v332 = vshll.u32 %v155, 16
  %v334 = vrot.slane %v332, 1
  %v335 = vor.u32 %v330, %v334
  %v337 = vshll.u32 %v156, 16
  %v339 = vrot.slane %v337, 1
  %v340 = vsel %vm208, %v335, %v339
  %v342 = vshrl.u32 %v157, 16
  %v344 = vshll.u32 %v157, 16
  %v346 = vrot.slane %v344, 1
  %v347 = vor.u32 %v342, %v346
  %v349 = vshll.u32 %v158, 16
  %v351 = vrot.slane %v349, 1
  %v352 = vsel %vm208, %v347, %v351
  %v354 = vshrl.u32 %v159, 16
  %v356 = vshll.u32 %v159, 16
  %v358 = vrot.slane %v356, 1
  %v359 = vor.u32 %v354, %v358
  %v361 = vshll.u32 %v160, 16
  %v363 = vrot.slane %v361, 1
  %v364 = vsel %vm208, %v359, %v363
  %v366 = vshrl.u32 %v161, 16
  %v368 = vshll.u32 %v161, 16
  %v370 = vrot.slane %v368, 1
  %v371 = vor.u32 %v366, %v370
  %v373 = vshll.u32 %v162, 16
  %v375 = vrot.slane %v373, 1
  %v376 = vsel %vm208, %v371, %v375
  %v378 = vshrl.u32 %v163, 16
  %v380 = vshll.u32 %v163, 16
  %v382 = vrot.slane %v380, 1
  %v383 = vor.u32 %v378, %v382
  %v385 = vshll.u32 %v164, 16
  %v387 = vrot.slane %v385, 1
  %v388 = vsel %vm208, %v383, %v387
  %v390 = vshrl.u32 %v165, 16
  %v392 = vshll.u32 %v165, 16
  %v394 = vrot.slane %v392, 1
  %v395 = vor.u32 %v390, %v394
  %v397 = vshll.u32 %v166, 16
  %v399 = vrot.slane %v397, 1
  %v400 = vsel %vm208, %v395, %v399
  %v402 = vshrl.u32 %v171, 16
  %v404 = vshll.u32 %v171, 16
  %v406 = vrot.slane %v404, 1
  %v407 = vor.u32 %v402, %v406
  %v409 = vshll.u32 %v172, 16
  %v411 = vrot.slane %v409, 1
  %v412 = vsel %vm208, %v407, %v411
  %v414 = vshrl.u32 %v173, 16
  %v416 = vshll.u32 %v173, 16
  %v418 = vrot.slane %v416, 1
  %v419 = vor.u32 %v414, %v418
  %v421 = vshll.u32 %v174, 16
  %v423 = vrot.slane %v421, 1
  %v424 = vsel %vm208, %v419, %v423
  %v426 = vshrl.u32 %v175, 16
  %v428 = vshll.u32 %v175, 16
  %v430 = vrot.slane %v428, 1
  %v431 = vor.u32 %v426, %v430
  %v433 = vshll.u32 %v176, 16
  %v435 = vrot.slane %v433, 1
  %v436 = vsel %vm208, %v431, %v435
  %v438 = vshrl.u32 %v177, 16
  %v440 = vshll.u32 %v177, 16
  %v442 = vrot.slane %v440, 1
  %v443 = vor.u32 %v438, %v442
  %v445 = vshll.u32 %v178, 16
  %v447 = vrot.slane %v445, 1
  %v448 = vsel %vm208, %v443, %v447
  %v450 = vshrl.u32 %v179, 16
  %v452 = vshll.u32 %v179, 16
  %v454 = vrot.slane %v452, 1
  %v455 = vor.u32 %v450, %v454
  %v457 = vshll.u32 %v180, 16
  %v459 = vrot.slane %v457, 1
  %v460 = vsel %vm208, %v455, %v459
  %v462 = vshrl.u32 %v181, 16
  %v464 = vshll.u32 %v181, 16
  %v466 = vrot.slane %v464, 1
  %v467 = vor.u32 %v462, %v466
  %v469 = vshll.u32 %v182, 16
  %v471 = vrot.slane %v469, 1
  %v472 = vsel %vm208, %v467, %v471
  %v474 = vshrl.u32 %v183, 16
  %v476 = vshll.u32 %v183, 16
  %v478 = vrot.slane %v476, 1
  %v479 = vor.u32 %v474, %v478
  %v481 = vshll.u32 %v184, 16
  %v483 = vrot.slane %v481, 1
  %v484 = vsel %vm208, %v479, %v483
  %v486 = vshrl.u32 %v185, 16
  %v488 = vshll.u32 %v185, 16
  %v490 = vrot.slane %v488, 1
  %v491 = vor.u32 %v486, %v490
  %v493 = vshll.u32 %v186, 16
  %v495 = vrot.slane %v493, 1
  %v496 = vsel %vm208, %v491, %v495
  %v498 = vshrl.u32 %v187, 16
  %v500 = vshll.u32 %v187, 16
  %v502 = vrot.slane %v500, 1
  %v503 = vor.u32 %v498, %v502
  %v505 = vshll.u32 %v188, 16
  %v507 = vrot.slane %v505, 1
  %v508 = vsel %vm208, %v503, %v507
  %v510 = vshrl.u32 %v189, 16
  %v512 = vshll.u32 %v189, 16
  %v514 = vrot.slane %v512, 1
  %v515 = vor.u32 %v510, %v514
  %v517 = vshll.u32 %v190, 16
  %v519 = vrot.slane %v517, 1
  %v520 = vsel %vm208, %v515, %v519
  %v522 = vshrl.u32 %v191, 16
  %v524 = vshll.u32 %v191, 16
  %v526 = vrot.slane %v524, 1
  %v527 = vor.u32 %v522, %v526
  %v529 = vshll.u32 %v192, 16
  %v531 = vrot.slane %v529, 1
  %v532 = vsel %vm208, %v527, %v531
  %v534 = vshrl.u32 %v193, 16
  %v536 = vshll.u32 %v193, 16
  %v538 = vrot.slane %v536, 1
  %v539 = vor.u32 %v534, %v538
  %v541 = vshll.u32 %v194, 16
  %v543 = vrot.slane %v541, 1
  %v544 = vsel %vm208, %v539, %v543
  %v546 = vshrl.u32 %v195, 16
  %v548 = vshll.u32 %v195, 16
  %v550 = vrot.slane %v548, 1
  %v551 = vor.u32 %v546, %v550
  %v553 = vshll.u32 %v196, 16
  %v555 = vrot.slane %v553, 1
  %v556 = vsel %vm208, %v551, %v555
  %v558 = vshrl.u32 %v197, 16
  %v560 = vshll.u32 %v197, 16
  %v562 = vrot.slane %v560, 1
  %v563 = vor.u32 %v558, %v562
  %v565 = vshll.u32 %v198, 16
  %v567 = vrot.slane %v565, 1
  %v568 = vsel %vm208, %v563, %v567
  %v570 = vshrl.u32 %v199, 16
  %v572 = vshll.u32 %v199, 16
  %v574 = vrot.slane %v572, 1
  %v575 = vor.u32 %v570, %v574
  %v577 = vshll.u32 %v200, 16
  %v579 = vrot.slane %v577, 1
  %v580 = vsel %vm208, %v575, %v579
  %v582 = vshrl.u32 %v201, 16
  %v584 = vshll.u32 %v201, 16
  %v586 = vrot.slane %v584, 1
  %v587 = vor.u32 %v582, %v586
  %v589 = vshll.u32 %v202, 16
  %v591 = vrot.slane %v589, 1
  %v592 = vsel %vm208, %v587, %v591
  %s593 = scalar_lea.vmem %s1, 4
  %v594 = vld [vmem:[%s593] sm:$0xf]
  %vm595 = vcmask 64512
  %v597 = vsel %vm595, %v220, 0
  %v600 = vsel %vm595, %v232, 0
  %v603 = vsel %vm595, %v244, 0
  %v606 = vsel %vm595, %v256, 0
  %v609 = vsel %vm595, %v268, 0
  %v612 = vsel %vm595, %v280, 0
  %v615 = vsel %vm595, %v292, 0
  %v618 = vsel %vm595, %v304, 0
  %v621 = vsel %vm595, %v316, 0
  %v624 = vsel %vm595, %v328, 0
  %v627 = vsel %vm595, %v340, 0
  %v630 = vsel %vm595, %v352, 0
  %v633 = vsel %vm595, %v364, 0
  %v636 = vsel %vm595, %v376, 0
  %v639 = vsel %vm595, %v388, 0
  %v642 = vsel %vm595, %v400, 0
  %v645 = vsel %vm595, %v412, 0
  %v648 = vsel %vm595, %v424, 0
  %v651 = vsel %vm595, %v436, 0
  %v654 = vsel %vm595, %v448, 0
  %v657 = vsel %vm595, %v460, 0
  %v660 = vsel %vm595, %v472, 0
  %v663 = vsel %vm595, %v484, 0
  %v666 = vsel %vm595, %v496, 0
  %v669 = vsel %vm595, %v508, 0
  %v672 = vsel %vm595, %v520, 0
  %v675 = vsel %vm595, %v532, 0
  %v678 = vsel %vm595, %v544, 0
  %v681 = vsel %vm595, %v556, 0
  %v684 = vsel %vm595, %v568, 0
  %v687 = vsel %vm595, %v580, 0
  %v690 = vsel %vm595, %v592, 0
  %vm692 = vcmask 1043456
  %v694 = vsel %vm692, %v594, 0
  %696 = vmatprep.subr.bf16.mxu0 0
  %697 = vmatpush1.bf16.msra.mxu0 0
  %698 = vmatprep.subr.bf16.mxu0 0
  %699 = vmatpush1.bf16.msra.mxu0 0
  %700 = vmatprep.subr.bf16.mxu0 0
  %701 = vmatpush1.bf16.msra.mxu0 0
  %702 = vmatprep.subr.bf16.mxu0 0
  %703 = vmatpush1.bf16.msra.mxu0 0
  %704 = vmatprep.subr.bf16.mxu0 0
  %705 = vmatpush1.bf16.msra.mxu0 0
  %706 = vmatprep.subr.bf16.mxu0 0
  %707 = vmatpush1.bf16.msra.mxu0 0
  %708 = vmatprep.subr.bf16.mxu0 0
  %709 = vmatpush1.bf16.msra.mxu0 0
  %710 = vmatprep.subr.bf16.mxu0 0
  %711 = vmatpush1.bf16.msra.mxu0 %v694
  %712 = vmatprep.subr.bf16.mxu0 0
  %713 = vmatpush2.bf16.msra.mxu0 0
  %714 = vmatprep.subr.bf16.mxu0 0
  %715 = vmatpush2.bf16.msra.mxu0 0
  %716 = vmatprep.subr.bf16.mxu0 0
  %717 = vmatpush2.bf16.msra.mxu0 0
  %718 = vmatprep.subr.bf16.mxu0 0
  %719 = vmatpush2.bf16.msra.mxu0 0
  %720 = vmatprep.subr.bf16.mxu0 0
  %721 = vmatpush2.bf16.msra.mxu0 0
  %722 = vmatprep.subr.bf16.mxu0 0
  %723 = vmatpush2.bf16.msra.mxu0 0
  %724 = vmatprep.subr.bf16.mxu0 0
  %725 = vmatpush2.bf16.msra.mxu0 0
  %726 = vmatprep.subr.bf16.mxu0 0
  %727 = vmatpush2.bf16.msra.mxu0 0
  %728 = vmatprep.mubr.bf16.mxu0 0
  %729 = vmatmul.mubr.bf16.gmra.mxu0 %v597
  %v730 = vpop.f32.mrf.mxu0
  %v731 = vadd.f32 0.0, %v730
  %v732 = vpop.f32.mrf.mxu0
  %v733 = vpop.f32.mrf.mxu0
  %v734 = vadd.f32 0.0, %v733
  %v735 = vpop.f32.mrf.mxu0
  %736 = vmatprep.mubr.bf16.mxu0 0
  %737 = vmatmul.mubr.bf16.gmra.mxu0 %v600
  %v738 = vpop.f32.mrf.mxu0
  %v739 = vadd.f32 0.0, %v738
  %v740 = vpop.f32.mrf.mxu0
  %v741 = vpop.f32.mrf.mxu0
  %v742 = vadd.f32 0.0, %v741
  %v743 = vpop.f32.mrf.mxu0
  %744 = vmatprep.mubr.bf16.mxu0 0
  %745 = vmatmul.mubr.bf16.gmra.mxu0 %v603
  %v746 = vpop.f32.mrf.mxu0
  %v747 = vadd.f32 0.0, %v746
  %v748 = vpop.f32.mrf.mxu0
  %v749 = vpop.f32.mrf.mxu0
  %v750 = vadd.f32 0.0, %v749
  %v751 = vpop.f32.mrf.mxu0
  %752 = vmatprep.mubr.bf16.mxu0 0
  %753 = vmatmul.mubr.bf16.gmra.mxu0 %v606
  %v754 = vpop.f32.mrf.mxu0
  %v755 = vadd.f32 0.0, %v754
  %v756 = vpop.f32.mrf.mxu0
  %v757 = vpop.f32.mrf.mxu0
  %v758 = vadd.f32 0.0, %v757
  %v759 = vpop.f32.mrf.mxu0
  %760 = vmatprep.mubr.bf16.mxu0 0
  %761 = vmatmul.mubr.bf16.gmra.mxu0 %v609
  %v762 = vpop.f32.mrf.mxu0
  %v763 = vadd.f32 0.0, %v762
  %v764 = vpop.f32.mrf.mxu0
  %v765 = vpop.f32.mrf.mxu0
  %v766 = vadd.f32 0.0, %v765
  %v767 = vpop.f32.mrf.mxu0
  %768 = vmatprep.mubr.bf16.mxu0 0
  %769 = vmatmul.mubr.bf16.gmra.mxu0 %v612
  %v770 = vpop.f32.mrf.mxu0
  %v771 = vadd.f32 0.0, %v770
  %v772 = vpop.f32.mrf.mxu0
  %v773 = vpop.f32.mrf.mxu0
  %v774 = vadd.f32 0.0, %v773
  %v775 = vpop.f32.mrf.mxu0
  %776 = vmatprep.mubr.bf16.mxu0 0
  %777 = vmatmul.mubr.bf16.gmra.mxu0 %v615
  %v778 = vpop.f32.mrf.mxu0
  %v779 = vadd.f32 0.0, %v778
  %v780 = vpop.f32.mrf.mxu0
  %v781 = vpop.f32.mrf.mxu0
  %v782 = vadd.f32 0.0, %v781
  %v783 = vpop.f32.mrf.mxu0
  %784 = vmatprep.mubr.bf16.mxu0 0
  %785 = vmatmul.mubr.bf16.gmra.mxu0 %v618
  %v786 = vpop.f32.mrf.mxu0
  %v787 = vadd.f32 0.0, %v786
  %v788 = vpop.f32.mrf.mxu0
  %v789 = vpop.f32.mrf.mxu0
  %v790 = vadd.f32 0.0, %v789
  %v791 = vpop.f32.mrf.mxu0
  %792 = vmatprep.mubr.bf16.mxu0 0
  %793 = vmatmul.mubr.bf16.gmra.mxu0 %v621
  %v794 = vpop.f32.mrf.mxu0
  %v795 = vadd.f32 0.0, %v794
  %v796 = vpop.f32.mrf.mxu0
  %v797 = vpop.f32.mrf.mxu0
  %v798 = vadd.f32 0.0, %v797
  %v799 = vpop.f32.mrf.mxu0
  %800 = vmatprep.mubr.bf16.mxu0 0
  %801 = vmatmul.mubr.bf16.gmra.mxu0 %v624
  %v802 = vpop.f32.mrf.mxu0
  %v803 = vadd.f32 0.0, %v802
  %v804 = vpop.f32.mrf.mxu0
  %v805 = vpop.f32.mrf.mxu0
  %v806 = vadd.f32 0.0, %v805
  %v807 = vpop.f32.mrf.mxu0
  %808 = vmatprep.mubr.bf16.mxu0 0
  %809 = vmatmul.mubr.bf16.gmra.mxu0 %v627
  %v810 = vpop.f32.mrf.mxu0
  %v811 = vadd.f32 0.0, %v810
  %v812 = vpop.f32.mrf.mxu0
  %v813 = vpop.f32.mrf.mxu0
  %v814 = vadd.f32 0.0, %v813
  %v815 = vpop.f32.mrf.mxu0
  %816 = vmatprep.mubr.bf16.mxu0 0
  %817 = vmatmul.mubr.bf16.gmra.mxu0 %v630
  %v818 = vpop.f32.mrf.mxu0
  %v819 = vadd.f32 0.0, %v818
  %v820 = vpop.f32.mrf.mxu0
  %v821 = vpop.f32.mrf.mxu0
  %v822 = vadd.f32 0.0, %v821
  %v823 = vpop.f32.mrf.mxu0
  %824 = vmatprep.mubr.bf16.mxu0 0
  %825 = vmatmul.mubr.bf16.gmra.mxu0 %v633
  %v826 = vpop.f32.mrf.mxu0
  %v827 = vadd.f32 0.0, %v826
  %v828 = vpop.f32.mrf.mxu0
  %v829 = vpop.f32.mrf.mxu0
  %v830 = vadd.f32 0.0, %v829
  %v831 = vpop.f32.mrf.mxu0
  %832 = vmatprep.mubr.bf16.mxu0 0
  %833 = vmatmul.mubr.bf16.gmra.mxu0 %v636
  %v834 = vpop.f32.mrf.mxu0
  %v835 = vadd.f32 0.0, %v834
  %v836 = vpop.f32.mrf.mxu0
  %v837 = vpop.f32.mrf.mxu0
  %v838 = vadd.f32 0.0, %v837
  %v839 = vpop.f32.mrf.mxu0
  %840 = vmatprep.mubr.bf16.mxu0 0
  %841 = vmatmul.mubr.bf16.gmra.mxu0 %v639
  %v842 = vpop.f32.mrf.mxu0
  %v843 = vadd.f32 0.0, %v842
  %v844 = vpop.f32.mrf.mxu0
  %v845 = vpop.f32.mrf.mxu0
  %v846 = vadd.f32 0.0, %v845
  %v847 = vpop.f32.mrf.mxu0
  %848 = vmatprep.mubr.bf16.mxu0 0
  %849 = vmatmul.mubr.bf16.gmra.mxu0 %v642
  %v850 = vpop.f32.mrf.mxu0
  %v851 = vadd.f32 0.0, %v850
  %v852 = vpop.f32.mrf.mxu0
  %v853 = vpop.f32.mrf.mxu0
  %v854 = vadd.f32 0.0, %v853
  %v855 = vpop.f32.mrf.mxu0
  %856 = vmatprep.mubr.bf16.mxu0 0
  %857 = vmatmul.mubr.bf16.gmra.mxu0 %v645
  %v858 = vpop.f32.mrf.mxu0
  %v859 = vadd.f32 0.0, %v858
  %v860 = vpop.f32.mrf.mxu0
  %v861 = vpop.f32.mrf.mxu0
  %v862 = vadd.f32 0.0, %v861
  %v863 = vpop.f32.mrf.mxu0
  %864 = vmatprep.mubr.bf16.mxu0 0
  %865 = vmatmul.mubr.bf16.gmra.mxu0 %v648
  %v866 = vpop.f32.mrf.mxu0
  %v867 = vadd.f32 0.0, %v866
  %v868 = vpop.f32.mrf.mxu0
  %v869 = vpop.f32.mrf.mxu0
  %v870 = vadd.f32 0.0, %v869
  %v871 = vpop.f32.mrf.mxu0
  %872 = vmatprep.mubr.bf16.mxu0 0
  %873 = vmatmul.mubr.bf16.gmra.mxu0 %v651
  %v874 = vpop.f32.mrf.mxu0
  %v875 = vadd.f32 0.0, %v874
  %v876 = vpop.f32.mrf.mxu0
  %v877 = vpop.f32.mrf.mxu0
  %v878 = vadd.f32 0.0, %v877
  %v879 = vpop.f32.mrf.mxu0
  %880 = vmatprep.mubr.bf16.mxu0 0
  %881 = vmatmul.mubr.bf16.gmra.mxu0 %v654
  %v882 = vpop.f32.mrf.mxu0
  %v883 = vadd.f32 0.0, %v882
  %v884 = vpop.f32.mrf.mxu0
  %v885 = vpop.f32.mrf.mxu0
  %v886 = vadd.f32 0.0, %v885
  %v887 = vpop.f32.mrf.mxu0
  %888 = vmatprep.mubr.bf16.mxu0 0
  %889 = vmatmul.mubr.bf16.gmra.mxu0 %v657
  %v890 = vpop.f32.mrf.mxu0
  %v891 = vadd.f32 0.0, %v890
  %v892 = vpop.f32.mrf.mxu0
  %v893 = vpop.f32.mrf.mxu0
  %v894 = vadd.f32 0.0, %v893
  %v895 = vpop.f32.mrf.mxu0
  %896 = vmatprep.mubr.bf16.mxu0 0
  %897 = vmatmul.mubr.bf16.gmra.mxu0 %v660
  %v898 = vpop.f32.mrf.mxu0
  %v899 = vadd.f32 0.0, %v898
  %v900 = vpop.f32.mrf.mxu0
  %v901 = vpop.f32.mrf.mxu0
  %v902 = vadd.f32 0.0, %v901
  %v903 = vpop.f32.mrf.mxu0
  %904 = vmatprep.mubr.bf16.mxu0 0
  %905 = vmatmul.mubr.bf16.gmra.mxu0 %v663
  %v906 = vpop.f32.mrf.mxu0
  %v907 = vadd.f32 0.0, %v906
  %v908 = vpop.f32.mrf.mxu0
  %v909 = vpop.f32.mrf.mxu0
  %v910 = vadd.f32 0.0, %v909
  %v911 = vpop.f32.mrf.mxu0
  %912 = vmatprep.mubr.bf16.mxu0 0
  %913 = vmatmul.mubr.bf16.gmra.mxu0 %v666
  %v914 = vpop.f32.mrf.mxu0
  %v915 = vadd.f32 0.0, %v914
  %v916 = vpop.f32.mrf.mxu0
  %v917 = vpop.f32.mrf.mxu0
  %v918 = vadd.f32 0.0, %v917
  %v919 = vpop.f32.mrf.mxu0
  %920 = vmatprep.mubr.bf16.mxu0 0
  %921 = vmatmul.mubr.bf16.gmra.mxu0 %v669
  %v922 = vpop.f32.mrf.mxu0
  %v923 = vadd.f32 0.0, %v922
  %v924 = vpop.f32.mrf.mxu0
  %v925 = vpop.f32.mrf.mxu0
  %v926 = vadd.f32 0.0, %v925
  %v927 = vpop.f32.mrf.mxu0
  %928 = vmatprep.mubr.bf16.mxu0 0
  %929 = vmatmul.mubr.bf16.gmra.mxu0 %v672
  %v930 = vpop.f32.mrf.mxu0
  %v931 = vadd.f32 0.0, %v930
  %v932 = vpop.f32.mrf.mxu0
  %v933 = vpop.f32.mrf.mxu0
  %v934 = vadd.f32 0.0, %v933
  %v935 = vpop.f32.mrf.mxu0
  %936 = vmatprep.mubr.bf16.mxu0 0
  %937 = vmatmul.mubr.bf16.gmra.mxu0 %v675
  %v938 = vpop.f32.mrf.mxu0
  %v939 = vadd.f32 0.0, %v938
  %v940 = vpop.f32.mrf.mxu0
  %v941 = vpop.f32.mrf.mxu0
  %v942 = vadd.f32 0.0, %v941
  %v943 = vpop.f32.mrf.mxu0
  %944 = vmatprep.mubr.bf16.mxu0 0
  %945 = vmatmul.mubr.bf16.gmra.mxu0 %v678
  %v946 = vpop.f32.mrf.mxu0
  %v947 = vadd.f32 0.0, %v946
  %v948 = vpop.f32.mrf.mxu0
  %v949 = vpop.f32.mrf.mxu0
  %v950 = vadd.f32 0.0, %v949
  %v951 = vpop.f32.mrf.mxu0
  %952 = vmatprep.mubr.bf16.mxu0 0
  %953 = vmatmul.mubr.bf16.gmra.mxu0 %v681
  %v954 = vpop.f32.mrf.mxu0
  %v955 = vadd.f32 0.0, %v954
  %v956 = vpop.f32.mrf.mxu0
  %v957 = vpop.f32.mrf.mxu0
  %v958 = vadd.f32 0.0, %v957
  %v959 = vpop.f32.mrf.mxu0
  %960 = vmatprep.mubr.bf16.mxu0 0
  %961 = vmatmul.mubr.bf16.gmra.mxu0 %v684
  %v962 = vpop.f32.mrf.mxu0
  %v963 = vadd.f32 0.0, %v962
  %v964 = vpop.f32.mrf.mxu0
  %v965 = vpop.f32.mrf.mxu0
  %v966 = vadd.f32 0.0, %v965
  %v967 = vpop.f32.mrf.mxu0
  %968 = vmatprep.mubr.bf16.mxu0 0
  %969 = vmatmul.mubr.bf16.gmra.mxu0 %v687
  %v970 = vpop.f32.mrf.mxu0
  %v971 = vadd.f32 0.0, %v970
  %v972 = vpop.f32.mrf.mxu0
  %v973 = vpop.f32.mrf.mxu0
  %v974 = vadd.f32 0.0, %v973
  %v975 = vpop.f32.mrf.mxu0
  %976 = vmatprep.mubr.bf16.mxu0 0
  %977 = vmatmul.mubr.bf16.gmra.mxu0 %v690
  %v978 = vpop.f32.mrf.mxu0
  %v979 = vadd.f32 0.0, %v978
  %v980 = vpop.f32.mrf.mxu0
  %v981 = vpop.f32.mrf.mxu0
  %v982 = vadd.f32 0.0, %v981
  %v983 = vpop.f32.mrf.mxu0
  %984 = vdwg.mxu0
  %v985 = vsel %vm595, %v135, 0
  %v987 = vsel %vm595, %v137, 0
  %v989 = vsel %vm595, %v139, 0
  %v991 = vsel %vm595, %v141, 0
  %v993 = vsel %vm595, %v143, 0
  %v995 = vsel %vm595, %v145, 0
  %v997 = vsel %vm595, %v147, 0
  %v999 = vsel %vm595, %v149, 0
  %v1001 = vsel %vm595, %v151, 0
  %v1003 = vsel %vm595, %v153, 0
  %v1005 = vsel %vm595, %v155, 0
  %v1007 = vsel %vm595, %v157, 0
  %v1009 = vsel %vm595, %v159, 0
  %v1011 = vsel %vm595, %v161, 0
  %v1013 = vsel %vm595, %v163, 0
  %v1015 = vsel %vm595, %v165, 0
  %v1017 = vsel %vm595, %v171, 0
  %v1019 = vsel %vm595, %v173, 0
  %v1021 = vsel %vm595, %v175, 0
  %v1023 = vsel %vm595, %v177, 0
  %v1025 = vsel %vm595, %v179, 0
  %v1027 = vsel %vm595, %v181, 0
  %v1029 = vsel %vm595, %v183, 0
  %v1031 = vsel %vm595, %v185, 0
  %v1033 = vsel %vm595, %v187, 0
  %v1035 = vsel %vm595, %v189, 0
  %v1037 = vsel %vm595, %v191, 0
  %v1039 = vsel %vm595, %v193, 0
  %v1041 = vsel %vm595, %v195, 0
  %v1043 = vsel %vm595, %v197, 0
  %v1045 = vsel %vm595, %v199, 0
  %v1047 = vsel %vm595, %v201, 0
  %v1050 = vsel %vm692, %v207, 0
  %1052 = vmatprep.subr.bf16.mxu0 0
  %1053 = vmatpush1.bf16.msra.mxu0 0
  %1054 = vmatprep.subr.bf16.mxu0 0
  %1055 = vmatpush1.bf16.msra.mxu0 0
  %1056 = vmatprep.subr.bf16.mxu0 0
  %1057 = vmatpush1.bf16.msra.mxu0 0
  %1058 = vmatprep.subr.bf16.mxu0 0
  %1059 = vmatpush1.bf16.msra.mxu0 0
  %1060 = vmatprep.subr.bf16.mxu0 0
  %1061 = vmatpush1.bf16.msra.mxu0 0
  %1062 = vmatprep.subr.bf16.mxu0 0
  %1063 = vmatpush1.bf16.msra.mxu0 0
  %1064 = vmatprep.subr.bf16.mxu0 0
  %1065 = vmatpush1.bf16.msra.mxu0 0
  %1066 = vmatprep.subr.bf16.mxu0 0
  %1067 = vmatpush1.bf16.msra.mxu0 %v1050
  %1068 = vmatprep.subr.bf16.mxu0 0
  %1069 = vmatpush2.bf16.msra.mxu0 0
  %1070 = vmatprep.subr.bf16.mxu0 0
  %1071 = vmatpush2.bf16.msra.mxu0 0
  %1072 = vmatprep.subr.bf16.mxu0 0
  %1073 = vmatpush2.bf16.msra.mxu0 0
  %1074 = vmatprep.subr.bf16.mxu0 0
  %1075 = vmatpush2.bf16.msra.mxu0 0
  %1076 = vmatprep.subr.bf16.mxu0 0
  %1077 = vmatpush2.bf16.msra.mxu0 0
  %1078 = vmatprep.subr.bf16.mxu0 0
  %1079 = vmatpush2.bf16.msra.mxu0 0
  %1080 = vmatprep.subr.bf16.mxu0 0
  %1081 = vmatpush2.bf16.msra.mxu0 0
  %1082 = vmatprep.subr.bf16.mxu0 0
  %1083 = vmatpush2.bf16.msra.mxu0 0
  %1084 = vmatprep.mubr.bf16.mxu0 0
  %1085 = vmatmul.mubr.bf16.gmra.mxu0 %v985
  %v1086 = vpop.f32.mrf.mxu0
  %v1087 = vadd.f32 %v731, %v1086
  %v1088 = vpop.f32.mrf.mxu0
  %v1089 = vpop.f32.mrf.mxu0
  %v1090 = vadd.f32 %v734, %v1089
  %v1091 = vpop.f32.mrf.mxu0
  %1092 = vmatprep.mubr.bf16.mxu0 0
  %1093 = vmatmul.mubr.bf16.gmra.mxu0 %v987
  %v1094 = vpop.f32.mrf.mxu0
  %v1095 = vadd.f32 %v739, %v1094
  %v1096 = vpop.f32.mrf.mxu0
  %v1097 = vpop.f32.mrf.mxu0
  %v1098 = vadd.f32 %v742, %v1097
  %v1099 = vpop.f32.mrf.mxu0
  %1100 = vmatprep.mubr.bf16.mxu0 0
  %1101 = vmatmul.mubr.bf16.gmra.mxu0 %v989
  %v1102 = vpop.f32.mrf.mxu0
  %v1103 = vadd.f32 %v747, %v1102
  %v1104 = vpop.f32.mrf.mxu0
  %v1105 = vpop.f32.mrf.mxu0
  %v1106 = vadd.f32 %v750, %v1105
  %v1107 = vpop.f32.mrf.mxu0
  %1108 = vmatprep.mubr.bf16.mxu0 0
  %1109 = vmatmul.mubr.bf16.gmra.mxu0 %v991
  %v1110 = vpop.f32.mrf.mxu0
  %v1111 = vadd.f32 %v755, %v1110
  %v1112 = vpop.f32.mrf.mxu0
  %v1113 = vpop.f32.mrf.mxu0
  %v1114 = vadd.f32 %v758, %v1113
  %v1115 = vpop.f32.mrf.mxu0
  %1116 = vmatprep.mubr.bf16.mxu0 0
  %1117 = vmatmul.mubr.bf16.gmra.mxu0 %v993
  %v1118 = vpop.f32.mrf.mxu0
  %v1119 = vadd.f32 %v763, %v1118
  %v1120 = vpop.f32.mrf.mxu0
  %v1121 = vpop.f32.mrf.mxu0
  %v1122 = vadd.f32 %v766, %v1121
  %v1123 = vpop.f32.mrf.mxu0
  %1124 = vmatprep.mubr.bf16.mxu0 0
  %1125 = vmatmul.mubr.bf16.gmra.mxu0 %v995
  %v1126 = vpop.f32.mrf.mxu0
  %v1127 = vadd.f32 %v771, %v1126
  %v1128 = vpop.f32.mrf.mxu0
  %v1129 = vpop.f32.mrf.mxu0
  %v1130 = vadd.f32 %v774, %v1129
  %v1131 = vpop.f32.mrf.mxu0
  %1132 = vmatprep.mubr.bf16.mxu0 0
  %1133 = vmatmul.mubr.bf16.gmra.mxu0 %v997
  %v1134 = vpop.f32.mrf.mxu0
  %v1135 = vadd.f32 %v779, %v1134
  %v1136 = vpop.f32.mrf.mxu0
  %v1137 = vpop.f32.mrf.mxu0
  %v1138 = vadd.f32 %v782, %v1137
  %v1139 = vpop.f32.mrf.mxu0
  %1140 = vmatprep.mubr.bf16.mxu0 0
  %1141 = vmatmul.mubr.bf16.gmra.mxu0 %v999
  %v1142 = vpop.f32.mrf.mxu0
  %v1143 = vadd.f32 %v787, %v1142
  %v1144 = vpop.f32.mrf.mxu0
  %v1145 = vpop.f32.mrf.mxu0
  %v1146 = vadd.f32 %v790, %v1145
  %v1147 = vpop.f32.mrf.mxu0
  %1148 = vmatprep.mubr.bf16.mxu0 0
  %1149 = vmatmul.mubr.bf16.gmra.mxu0 %v1001
  %v1150 = vpop.f32.mrf.mxu0
  %v1151 = vadd.f32 %v795, %v1150
  %v1152 = vpop.f32.mrf.mxu0
  %v1153 = vpop.f32.mrf.mxu0
  %v1154 = vadd.f32 %v798, %v1153
  %v1155 = vpop.f32.mrf.mxu0
  %1156 = vmatprep.mubr.bf16.mxu0 0
  %1157 = vmatmul.mubr.bf16.gmra.mxu0 %v1003
  %v1158 = vpop.f32.mrf.mxu0
  %v1159 = vadd.f32 %v803, %v1158
  %v1160 = vpop.f32.mrf.mxu0
  %v1161 = vpop.f32.mrf.mxu0
  %v1162 = vadd.f32 %v806, %v1161
  %v1163 = vpop.f32.mrf.mxu0
  %1164 = vmatprep.mubr.bf16.mxu0 0
  %1165 = vmatmul.mubr.bf16.gmra.mxu0 %v1005
  %v1166 = vpop.f32.mrf.mxu0
  %v1167 = vadd.f32 %v811, %v1166
  %v1168 = vpop.f32.mrf.mxu0
  %v1169 = vpop.f32.mrf.mxu0
  %v1170 = vadd.f32 %v814, %v1169
  %v1171 = vpop.f32.mrf.mxu0
  %1172 = vmatprep.mubr.bf16.mxu0 0
  %1173 = vmatmul.mubr.bf16.gmra.mxu0 %v1007
  %v1174 = vpop.f32.mrf.mxu0
  %v1175 = vadd.f32 %v819, %v1174
  %v1176 = vpop.f32.mrf.mxu0
  %v1177 = vpop.f32.mrf.mxu0
  %v1178 = vadd.f32 %v822, %v1177
  %v1179 = vpop.f32.mrf.mxu0
  %1180 = vmatprep.mubr.bf16.mxu0 0
  %1181 = vmatmul.mubr.bf16.gmra.mxu0 %v1009
  %v1182 = vpop.f32.mrf.mxu0
  %v1183 = vadd.f32 %v827, %v1182
  %v1184 = vpop.f32.mrf.mxu0
  %v1185 = vpop.f32.mrf.mxu0
  %v1186 = vadd.f32 %v830, %v1185
  %v1187 = vpop.f32.mrf.mxu0
  %1188 = vmatprep.mubr.bf16.mxu0 0
  %1189 = vmatmul.mubr.bf16.gmra.mxu0 %v1011
  %v1190 = vpop.f32.mrf.mxu0
  %v1191 = vadd.f32 %v835, %v1190
  %v1192 = vpop.f32.mrf.mxu0
  %v1193 = vpop.f32.mrf.mxu0
  %v1194 = vadd.f32 %v838, %v1193
  %v1195 = vpop.f32.mrf.mxu0
  %1196 = vmatprep.mubr.bf16.mxu0 0
  %1197 = vmatmul.mubr.bf16.gmra.mxu0 %v1013
  %v1198 = vpop.f32.mrf.mxu0
  %v1199 = vadd.f32 %v843, %v1198
  %v1200 = vpop.f32.mrf.mxu0
  %v1201 = vpop.f32.mrf.mxu0
  %v1202 = vadd.f32 %v846, %v1201
  %v1203 = vpop.f32.mrf.mxu0
  %1204 = vmatprep.mubr.bf16.mxu0 0
  %1205 = vmatmul.mubr.bf16.gmra.mxu0 %v1015
  %v1206 = vpop.f32.mrf.mxu0
  %v1207 = vadd.f32 %v851, %v1206
  %v1208 = vpop.f32.mrf.mxu0
  %v1209 = vpop.f32.mrf.mxu0
  %v1210 = vadd.f32 %v854, %v1209
  %v1211 = vpop.f32.mrf.mxu0
  %1212 = vmatprep.mubr.bf16.mxu0 0
  %1213 = vmatmul.mubr.bf16.gmra.mxu0 %v1017
  %v1214 = vpop.f32.mrf.mxu0
  %v1215 = vadd.f32 %v859, %v1214
  %v1216 = vpop.f32.mrf.mxu0
  %v1217 = vpop.f32.mrf.mxu0
  %v1218 = vadd.f32 %v862, %v1217
  %v1219 = vpop.f32.mrf.mxu0
  %1220 = vmatprep.mubr.bf16.mxu0 0
  %1221 = vmatmul.mubr.bf16.gmra.mxu0 %v1019
  %v1222 = vpop.f32.mrf.mxu0
  %v1223 = vadd.f32 %v867, %v1222
  %v1224 = vpop.f32.mrf.mxu0
  %v1225 = vpop.f32.mrf.mxu0
  %v1226 = vadd.f32 %v870, %v1225
  %v1227 = vpop.f32.mrf.mxu0
  %1228 = vmatprep.mubr.bf16.mxu0 0
  %1229 = vmatmul.mubr.bf16.gmra.mxu0 %v1021
  %v1230 = vpop.f32.mrf.mxu0
  %v1231 = vadd.f32 %v875, %v1230
  %v1232 = vpop.f32.mrf.mxu0
  %v1233 = vpop.f32.mrf.mxu0
  %v1234 = vadd.f32 %v878, %v1233
  %v1235 = vpop.f32.mrf.mxu0
  %1236 = vmatprep.mubr.bf16.mxu0 0
  %1237 = vmatmul.mubr.bf16.gmra.mxu0 %v1023
  %v1238 = vpop.f32.mrf.mxu0
  %v1239 = vadd.f32 %v883, %v1238
  %v1240 = vpop.f32.mrf.mxu0
  %v1241 = vpop.f32.mrf.mxu0
  %v1242 = vadd.f32 %v886, %v1241
  %v1243 = vpop.f32.mrf.mxu0
  %1244 = vmatprep.mubr.bf16.mxu0 0
  %1245 = vmatmul.mubr.bf16.gmra.mxu0 %v1025
  %v1246 = vpop.f32.mrf.mxu0
  %v1247 = vadd.f32 %v891, %v1246
  %v1248 = vpop.f32.mrf.mxu0
  %v1249 = vpop.f32.mrf.mxu0
  %v1250 = vadd.f32 %v894, %v1249
  %v1251 = vpop.f32.mrf.mxu0
  %1252 = vmatprep.mubr.bf16.mxu0 0
  %1253 = vmatmul.mubr.bf16.gmra.mxu0 %v1027
  %v1254 = vpop.f32.mrf.mxu0
  %v1255 = vadd.f32 %v899, %v1254
  %v1256 = vpop.f32.mrf.mxu0
  %v1257 = vpop.f32.mrf.mxu0
  %v1258 = vadd.f32 %v902, %v1257
  %v1259 = vpop.f32.mrf.mxu0
  %1260 = vmatprep.mubr.bf16.mxu0 0
  %1261 = vmatmul.mubr.bf16.gmra.mxu0 %v1029
  %v1262 = vpop.f32.mrf.mxu0
  %v1263 = vadd.f32 %v907, %v1262
  %v1264 = vpop.f32.mrf.mxu0
  %v1265 = vpop.f32.mrf.mxu0
  %v1266 = vadd.f32 %v910, %v1265
  %v1267 = vpop.f32.mrf.mxu0
  %1268 = vmatprep.mubr.bf16.mxu0 0
  %1269 = vmatmul.mubr.bf16.gmra.mxu0 %v1031
  %v1270 = vpop.f32.mrf.mxu0
  %v1271 = vadd.f32 %v915, %v1270
  %v1272 = vpop.f32.mrf.mxu0
  %v1273 = vpop.f32.mrf.mxu0
  %v1274 = vadd.f32 %v918, %v1273
  %v1275 = vpop.f32.mrf.mxu0
  %1276 = vmatprep.mubr.bf16.mxu0 0
  %1277 = vmatmul.mubr.bf16.gmra.mxu0 %v1033
  %v1278 = vpop.f32.mrf.mxu0
  %v1279 = vadd.f32 %v923, %v1278
  %v1280 = vpop.f32.mrf.mxu0
  %v1281 = vpop.f32.mrf.mxu0
  %v1282 = vadd.f32 %v926, %v1281
  %v1283 = vpop.f32.mrf.mxu0
  %1284 = vmatprep.mubr.bf16.mxu0 0
  %1285 = vmatmul.mubr.bf16.gmra.mxu0 %v1035
  %v1286 = vpop.f32.mrf.mxu0
  %v1287 = vadd.f32 %v931, %v1286
  %v1288 = vpop.f32.mrf.mxu0
  %v1289 = vpop.f32.mrf.mxu0
  %v1290 = vadd.f32 %v934, %v1289
  %v1291 = vpop.f32.mrf.mxu0
  %1292 = vmatprep.mubr.bf16.mxu0 0
  %1293 = vmatmul.mubr.bf16.gmra.mxu0 %v1037
  %v1294 = vpop.f32.mrf.mxu0
  %v1295 = vadd.f32 %v939, %v1294
  %v1296 = vpop.f32.mrf.mxu0
  %v1297 = vpop.f32.mrf.mxu0
  %v1298 = vadd.f32 %v942, %v1297
  %v1299 = vpop.f32.mrf.mxu0
  %1300 = vmatprep.mubr.bf16.mxu0 0
  %1301 = vmatmul.mubr.bf16.gmra.mxu0 %v1039
  %v1302 = vpop.f32.mrf.mxu0
  %v1303 = vadd.f32 %v947, %v1302
  %v1304 = vpop.f32.mrf.mxu0
  %v1305 = vpop.f32.mrf.mxu0
  %v1306 = vadd.f32 %v950, %v1305
  %v1307 = vpop.f32.mrf.mxu0
  %1308 = vmatprep.mubr.bf16.mxu0 0
  %1309 = vmatmul.mubr.bf16.gmra.mxu0 %v1041
  %v1310 = vpop.f32.mrf.mxu0
  %v1311 = vadd.f32 %v955, %v1310
  %v1312 = vpop.f32.mrf.mxu0
  %v1313 = vpop.f32.mrf.mxu0
  %v1314 = vadd.f32 %v958, %v1313
  %v1315 = vpop.f32.mrf.mxu0
  %1316 = vmatprep.mubr.bf16.mxu0 0
  %1317 = vmatmul.mubr.bf16.gmra.mxu0 %v1043
  %v1318 = vpop.f32.mrf.mxu0
  %v1319 = vadd.f32 %v963, %v1318
  %v1320 = vpop.f32.mrf.mxu0
  %v1321 = vpop.f32.mrf.mxu0
  %v1322 = vadd.f32 %v966, %v1321
  %v1323 = vpop.f32.mrf.mxu0
  %1324 = vmatprep.mubr.bf16.mxu0 0
  %1325 = vmatmul.mubr.bf16.gmra.mxu0 %v1045
  %v1326 = vpop.f32.mrf.mxu0
  %v1327 = vadd.f32 %v971, %v1326
  %v1328 = vpop.f32.mrf.mxu0
  %v1329 = vpop.f32.mrf.mxu0
  %v1330 = vadd.f32 %v974, %v1329
  %v1331 = vpop.f32.mrf.mxu0
  %1332 = vmatprep.mubr.bf16.mxu0 0
  %1333 = vmatmul.mubr.bf16.gmra.mxu0 %v1047
  %v1334 = vpop.f32.mrf.mxu0
  %v1335 = vadd.f32 %v979, %v1334
  %v1336 = vpop.f32.mrf.mxu0
  %v1337 = vpop.f32.mrf.mxu0
  %v1338 = vadd.f32 %v982, %v1337
  %v1339 = vpop.f32.mrf.mxu0
  %1340 = vdwg.mxu0
  %vm1405 = vcmask 1046528
  %v1406 = vrot.slane %v135, 1
  %v1407 = vrot.slane %v136, 1
  %v1408 = vsel %vm1405, %v1406, %v1407
  %v1409 = vrot.slane %v137, 1
  %v1410 = vrot.slane %v138, 1
  %v1411 = vsel %vm1405, %v1409, %v1410
  %v1412 = vrot.slane %v139, 1
  %v1413 = vrot.slane %v140, 1
  %v1414 = vsel %vm1405, %v1412, %v1413
  %v1415 = vrot.slane %v141, 1
  %v1416 = vrot.slane %v142, 1
  %v1417 = vsel %vm1405, %v1415, %v1416
  %v1418 = vrot.slane %v143, 1
  %v1419 = vrot.slane %v144, 1
  %v1420 = vsel %vm1405, %v1418, %v1419
  %v1421 = vrot.slane %v145, 1
  %v1422 = vrot.slane %v146, 1
  %v1423 = vsel %vm1405, %v1421, %v1422
  %v1424 = vrot.slane %v147, 1
  %v1425 = vrot.slane %v148, 1
  %v1426 = vsel %vm1405, %v1424, %v1425
  %v1427 = vrot.slane %v149, 1
  %v1428 = vrot.slane %v150, 1
  %v1429 = vsel %vm1405, %v1427, %v1428
  %v1430 = vrot.slane %v151, 1
  %v1431 = vrot.slane %v152, 1
  %v1432 = vsel %vm1405, %v1430, %v1431
  %v1433 = vrot.slane %v153, 1
  %v1434 = vrot.slane %v154, 1
  %v1435 = vsel %vm1405, %v1433, %v1434
  %v1436 = vrot.slane %v155, 1
  %v1437 = vrot.slane %v156, 1
  %v1438 = vsel %vm1405, %v1436, %v1437
  %v1439 = vrot.slane %v157, 1
  %v1440 = vrot.slane %v158, 1
  %v1441 = vsel %vm1405, %v1439, %v1440
  %v1442 = vrot.slane %v159, 1
  %v1443 = vrot.slane %v160, 1
  %v1444 = vsel %vm1405, %v1442, %v1443
  %v1445 = vrot.slane %v161, 1
  %v1446 = vrot.slane %v162, 1
  %v1447 = vsel %vm1405, %v1445, %v1446
  %v1448 = vrot.slane %v163, 1
  %v1449 = vrot.slane %v164, 1
  %v1450 = vsel %vm1405, %v1448, %v1449
  %v1451 = vrot.slane %v165, 1
  %v1452 = vrot.slane %v166, 1
  %v1453 = vsel %vm1405, %v1451, %v1452
  %v1454 = vrot.slane %v171, 1
  %v1455 = vrot.slane %v172, 1
  %v1456 = vsel %vm1405, %v1454, %v1455
  %v1457 = vrot.slane %v173, 1
  %v1458 = vrot.slane %v174, 1
  %v1459 = vsel %vm1405, %v1457, %v1458
  %v1460 = vrot.slane %v175, 1
  %v1461 = vrot.slane %v176, 1
  %v1462 = vsel %vm1405, %v1460, %v1461
  %v1463 = vrot.slane %v177, 1
  %v1464 = vrot.slane %v178, 1
  %v1465 = vsel %vm1405, %v1463, %v1464
  %v1466 = vrot.slane %v179, 1
  %v1467 = vrot.slane %v180, 1
  %v1468 = vsel %vm1405, %v1466, %v1467
  %v1469 = vrot.slane %v181, 1
  %v1470 = vrot.slane %v182, 1
  %v1471 = vsel %vm1405, %v1469, %v1470
  %v1472 = vrot.slane %v183, 1
  %v1473 = vrot.slane %v184, 1
  %v1474 = vsel %vm1405, %v1472, %v1473
  %v1475 = vrot.slane %v185, 1
  %v1476 = vrot.slane %v186, 1
  %v1477 = vsel %vm1405, %v1475, %v1476
  %v1478 = vrot.slane %v187, 1
  %v1479 = vrot.slane %v188, 1
  %v1480 = vsel %vm1405, %v1478, %v1479
  %v1481 = vrot.slane %v189, 1
  %v1482 = vrot.slane %v190, 1
  %v1483 = vsel %vm1405, %v1481, %v1482
  %v1484 = vrot.slane %v191, 1
  %v1485 = vrot.slane %v192, 1
  %v1486 = vsel %vm1405, %v1484, %v1485
  %v1487 = vrot.slane %v193, 1
  %v1488 = vrot.slane %v194, 1
  %v1489 = vsel %vm1405, %v1487, %v1488
  %v1490 = vrot.slane %v195, 1
  %v1491 = vrot.slane %v196, 1
  %v1492 = vsel %vm1405, %v1490, %v1491
  %v1493 = vrot.slane %v197, 1
  %v1494 = vrot.slane %v198, 1
  %v1495 = vsel %vm1405, %v1493, %v1494
  %v1496 = vrot.slane %v199, 1
  %v1497 = vrot.slane %v200, 1
  %v1498 = vsel %vm1405, %v1496, %v1497
  %v1499 = vrot.slane %v201, 1
  %v1500 = vrot.slane %v202, 1
  %v1501 = vsel %vm1405, %v1499, %v1500
  %s1502 = scalar_lea.vmem %s1, 8
  %v1503 = vld [vmem:[%s1502] sm:$0xf]
  %v1505 = vsel %vm595, %v1408, 0
  %v1508 = vsel %vm595, %v1411, 0
  %v1511 = vsel %vm595, %v1414, 0
  %v1514 = vsel %vm595, %v1417, 0
  %v1517 = vsel %vm595, %v1420, 0
  %v1520 = vsel %vm595, %v1423, 0
  %v1523 = vsel %vm595, %v1426, 0
  %v1526 = vsel %vm595, %v1429, 0
  %v1529 = vsel %vm595, %v1432, 0
  %v1532 = vsel %vm595, %v1435, 0
  %v1535 = vsel %vm595, %v1438, 0
  %v1538 = vsel %vm595, %v1441, 0
  %v1541 = vsel %vm595, %v1444, 0
  %v1544 = vsel %vm595, %v1447, 0
  %v1547 = vsel %vm595, %v1450, 0
  %v1550 = vsel %vm595, %v1453, 0
  %v1553 = vsel %vm595, %v1456, 0
  %v1556 = vsel %vm595, %v1459, 0
  %v1559 = vsel %vm595, %v1462, 0
  %v1562 = vsel %vm595, %v1465, 0
  %v1565 = vsel %vm595, %v1468, 0
  %v1568 = vsel %vm595, %v1471, 0
  %v1571 = vsel %vm595, %v1474, 0
  %v1574 = vsel %vm595, %v1477, 0
  %v1577 = vsel %vm595, %v1480, 0
  %v1580 = vsel %vm595, %v1483, 0
  %v1583 = vsel %vm595, %v1486, 0
  %v1586 = vsel %vm595, %v1489, 0
  %v1589 = vsel %vm595, %v1492, 0
  %v1592 = vsel %vm595, %v1495, 0
  %v1595 = vsel %vm595, %v1498, 0
  %v1598 = vsel %vm595, %v1501, 0
  %v1601 = vsel %vm692, %v1503, 0
  %1603 = vmatprep.subr.bf16.mxu0 0
  %1604 = vmatpush1.bf16.msra.mxu0 0
  %1605 = vmatprep.subr.bf16.mxu0 0
  %1606 = vmatpush1.bf16.msra.mxu0 0
  %1607 = vmatprep.subr.bf16.mxu0 0
  %1608 = vmatpush1.bf16.msra.mxu0 0
  %1609 = vmatprep.subr.bf16.mxu0 0
  %1610 = vmatpush1.bf16.msra.mxu0 0
  %1611 = vmatprep.subr.bf16.mxu0 0
  %1612 = vmatpush1.bf16.msra.mxu0 0
  %1613 = vmatprep.subr.bf16.mxu0 0
  %1614 = vmatpush1.bf16.msra.mxu0 0
  %1615 = vmatprep.subr.bf16.mxu0 0
  %1616 = vmatpush1.bf16.msra.mxu0 0
  %1617 = vmatprep.subr.bf16.mxu0 0
  %1618 = vmatpush1.bf16.msra.mxu0 %v1601
  %1619 = vmatprep.subr.bf16.mxu0 0
  %1620 = vmatpush2.bf16.msra.mxu0 0
  %1621 = vmatprep.subr.bf16.mxu0 0
  %1622 = vmatpush2.bf16.msra.mxu0 0
  %1623 = vmatprep.subr.bf16.mxu0 0
  %1624 = vmatpush2.bf16.msra.mxu0 0
  %1625 = vmatprep.subr.bf16.mxu0 0
  %1626 = vmatpush2.bf16.msra.mxu0 0
  %1627 = vmatprep.subr.bf16.mxu0 0
  %1628 = vmatpush2.bf16.msra.mxu0 0
  %1629 = vmatprep.subr.bf16.mxu0 0
  %1630 = vmatpush2.bf16.msra.mxu0 0
  %1631 = vmatprep.subr.bf16.mxu0 0
  %1632 = vmatpush2.bf16.msra.mxu0 0
  %1633 = vmatprep.subr.bf16.mxu0 0
  %1634 = vmatpush2.bf16.msra.mxu0 0
  %1635 = vmatprep.mubr.bf16.mxu0 0
  %1636 = vmatmul.mubr.bf16.gmra.mxu0 %v1505
  %v1637 = vpop.f32.mrf.mxu0
  %v1638 = vadd.f32 0.0, %v1637
  %v1639 = vpop.f32.mrf.mxu0
  %v1640 = vpop.f32.mrf.mxu0
  %v1641 = vadd.f32 0.0, %v1640
  %v1642 = vpop.f32.mrf.mxu0
  %1643 = vmatprep.mubr.bf16.mxu0 0
  %1644 = vmatmul.mubr.bf16.gmra.mxu0 %v1508
  %v1645 = vpop.f32.mrf.mxu0
  %v1646 = vadd.f32 0.0, %v1645
  %v1647 = vpop.f32.mrf.mxu0
  %v1648 = vpop.f32.mrf.mxu0
  %v1649 = vadd.f32 0.0, %v1648
  %v1650 = vpop.f32.mrf.mxu0
  %1651 = vmatprep.mubr.bf16.mxu0 0
  %1652 = vmatmul.mubr.bf16.gmra.mxu0 %v1511
  %v1653 = vpop.f32.mrf.mxu0
  %v1654 = vadd.f32 0.0, %v1653
  %v1655 = vpop.f32.mrf.mxu0
  %v1656 = vpop.f32.mrf.mxu0
  %v1657 = vadd.f32 0.0, %v1656
  %v1658 = vpop.f32.mrf.mxu0
  %1659 = vmatprep.mubr.bf16.mxu0 0
  %1660 = vmatmul.mubr.bf16.gmra.mxu0 %v1514
  %v1661 = vpop.f32.mrf.mxu0
  %v1662 = vadd.f32 0.0, %v1661
  %v1663 = vpop.f32.mrf.mxu0
  %v1664 = vpop.f32.mrf.mxu0
  %v1665 = vadd.f32 0.0, %v1664
  %v1666 = vpop.f32.mrf.mxu0
  %1667 = vmatprep.mubr.bf16.mxu0 0
  %1668 = vmatmul.mubr.bf16.gmra.mxu0 %v1517
  %v1669 = vpop.f32.mrf.mxu0
  %v1670 = vadd.f32 0.0, %v1669
  %v1671 = vpop.f32.mrf.mxu0
  %v1672 = vpop.f32.mrf.mxu0
  %v1673 = vadd.f32 0.0, %v1672
  %v1674 = vpop.f32.mrf.mxu0
  %1675 = vmatprep.mubr.bf16.mxu0 0
  %1676 = vmatmul.mubr.bf16.gmra.mxu0 %v1520
  %v1677 = vpop.f32.mrf.mxu0
  %v1678 = vadd.f32 0.0, %v1677
  %v1679 = vpop.f32.mrf.mxu0
  %v1680 = vpop.f32.mrf.mxu0
  %v1681 = vadd.f32 0.0, %v1680
  %v1682 = vpop.f32.mrf.mxu0
  %1683 = vmatprep.mubr.bf16.mxu0 0
  %1684 = vmatmul.mubr.bf16.gmra.mxu0 %v1523
  %v1685 = vpop.f32.mrf.mxu0
  %v1686 = vadd.f32 0.0, %v1685
  %v1687 = vpop.f32.mrf.mxu0
  %v1688 = vpop.f32.mrf.mxu0
  %v1689 = vadd.f32 0.0, %v1688
  %v1690 = vpop.f32.mrf.mxu0
  %1691 = vmatprep.mubr.bf16.mxu0 0
  %1692 = vmatmul.mubr.bf16.gmra.mxu0 %v1526
  %v1693 = vpop.f32.mrf.mxu0
  %v1694 = vadd.f32 0.0, %v1693
  %v1695 = vpop.f32.mrf.mxu0
  %v1696 = vpop.f32.mrf.mxu0
  %v1697 = vadd.f32 0.0, %v1696
  %v1698 = vpop.f32.mrf.mxu0
  %1699 = vmatprep.mubr.bf16.mxu0 0
  %1700 = vmatmul.mubr.bf16.gmra.mxu0 %v1529
  %v1701 = vpop.f32.mrf.mxu0
  %v1702 = vadd.f32 0.0, %v1701
  %v1703 = vpop.f32.mrf.mxu0
  %v1704 = vpop.f32.mrf.mxu0
  %v1705 = vadd.f32 0.0, %v1704
  %v1706 = vpop.f32.mrf.mxu0
  %1707 = vmatprep.mubr.bf16.mxu0 0
  %1708 = vmatmul.mubr.bf16.gmra.mxu0 %v1532
  %v1709 = vpop.f32.mrf.mxu0
  %v1710 = vadd.f32 0.0, %v1709
  %v1711 = vpop.f32.mrf.mxu0
  %v1712 = vpop.f32.mrf.mxu0
  %v1713 = vadd.f32 0.0, %v1712
  %v1714 = vpop.f32.mrf.mxu0
  %1715 = vmatprep.mubr.bf16.mxu0 0
  %1716 = vmatmul.mubr.bf16.gmra.mxu0 %v1535
  %v1717 = vpop.f32.mrf.mxu0
  %v1718 = vadd.f32 0.0, %v1717
  %v1719 = vpop.f32.mrf.mxu0
  %v1720 = vpop.f32.mrf.mxu0
  %v1721 = vadd.f32 0.0, %v1720
  %v1722 = vpop.f32.mrf.mxu0
  %1723 = vmatprep.mubr.bf16.mxu0 0
  %1724 = vmatmul.mubr.bf16.gmra.mxu0 %v1538
  %v1725 = vpop.f32.mrf.mxu0
  %v1726 = vadd.f32 0.0, %v1725
  %v1727 = vpop.f32.mrf.mxu0
  %v1728 = vpop.f32.mrf.mxu0
  %v1729 = vadd.f32 0.0, %v1728
  %v1730 = vpop.f32.mrf.mxu0
  %1731 = vmatprep.mubr.bf16.mxu0 0
  %1732 = vmatmul.mubr.bf16.gmra.mxu0 %v1541
  %v1733 = vpop.f32.mrf.mxu0
  %v1734 = vadd.f32 0.0, %v1733
  %v1735 = vpop.f32.mrf.mxu0
  %v1736 = vpop.f32.mrf.mxu0
  %v1737 = vadd.f32 0.0, %v1736
  %v1738 = vpop.f32.mrf.mxu0
  %1739 = vmatprep.mubr.bf16.mxu0 0
  %1740 = vmatmul.mubr.bf16.gmra.mxu0 %v1544
  %v1741 = vpop.f32.mrf.mxu0
  %v1742 = vadd.f32 0.0, %v1741
  %v1743 = vpop.f32.mrf.mxu0
  %v1744 = vpop.f32.mrf.mxu0
  %v1745 = vadd.f32 0.0, %v1744
  %v1746 = vpop.f32.mrf.mxu0
  %1747 = vmatprep.mubr.bf16.mxu0 0
  %1748 = vmatmul.mubr.bf16.gmra.mxu0 %v1547
  %v1749 = vpop.f32.mrf.mxu0
  %v1750 = vadd.f32 0.0, %v1749
  %v1751 = vpop.f32.mrf.mxu0
  %v1752 = vpop.f32.mrf.mxu0
  %v1753 = vadd.f32 0.0, %v1752
  %v1754 = vpop.f32.mrf.mxu0
  %1755 = vmatprep.mubr.bf16.mxu0 0
  %1756 = vmatmul.mubr.bf16.gmra.mxu0 %v1550
  %v1757 = vpop.f32.mrf.mxu0
  %v1758 = vadd.f32 0.0, %v1757
  %v1759 = vpop.f32.mrf.mxu0
  %v1760 = vpop.f32.mrf.mxu0
  %v1761 = vadd.f32 0.0, %v1760
  %v1762 = vpop.f32.mrf.mxu0
  %1763 = vmatprep.mubr.bf16.mxu0 0
  %1764 = vmatmul.mubr.bf16.gmra.mxu0 %v1553
  %v1765 = vpop.f32.mrf.mxu0
  %v1766 = vadd.f32 0.0, %v1765
  %v1767 = vpop.f32.mrf.mxu0
  %v1768 = vpop.f32.mrf.mxu0
  %v1769 = vadd.f32 0.0, %v1768
  %v1770 = vpop.f32.mrf.mxu0
  %1771 = vmatprep.mubr.bf16.mxu0 0
  %1772 = vmatmul.mubr.bf16.gmra.mxu0 %v1556
  %v1773 = vpop.f32.mrf.mxu0
  %v1774 = vadd.f32 0.0, %v1773
  %v1775 = vpop.f32.mrf.mxu0
  %v1776 = vpop.f32.mrf.mxu0
  %v1777 = vadd.f32 0.0, %v1776
  %v1778 = vpop.f32.mrf.mxu0
  %1779 = vmatprep.mubr.bf16.mxu0 0
  %1780 = vmatmul.mubr.bf16.gmra.mxu0 %v1559
  %v1781 = vpop.f32.mrf.mxu0
  %v1782 = vadd.f32 0.0, %v1781
  %v1783 = vpop.f32.mrf.mxu0
  %v1784 = vpop.f32.mrf.mxu0
  %v1785 = vadd.f32 0.0, %v1784
  %v1786 = vpop.f32.mrf.mxu0
  %1787 = vmatprep.mubr.bf16.mxu0 0
  %1788 = vmatmul.mubr.bf16.gmra.mxu0 %v1562
  %v1789 = vpop.f32.mrf.mxu0
  %v1790 = vadd.f32 0.0, %v1789
  %v1791 = vpop.f32.mrf.mxu0
  %v1792 = vpop.f32.mrf.mxu0
  %v1793 = vadd.f32 0.0, %v1792
  %v1794 = vpop.f32.mrf.mxu0
  %1795 = vmatprep.mubr.bf16.mxu0 0
  %1796 = vmatmul.mubr.bf16.gmra.mxu0 %v1565
  %v1797 = vpop.f32.mrf.mxu0
  %v1798 = vadd.f32 0.0, %v1797
  %v1799 = vpop.f32.mrf.mxu0
  %v1800 = vpop.f32.mrf.mxu0
  %v1801 = vadd.f32 0.0, %v1800
  %v1802 = vpop.f32.mrf.mxu0
  %1803 = vmatprep.mubr.bf16.mxu0 0
  %1804 = vmatmul.mubr.bf16.gmra.mxu0 %v1568
  %v1805 = vpop.f32.mrf.mxu0
  %v1806 = vadd.f32 0.0, %v1805
  %v1807 = vpop.f32.mrf.mxu0
  %v1808 = vpop.f32.mrf.mxu0
  %v1809 = vadd.f32 0.0, %v1808
  %v1810 = vpop.f32.mrf.mxu0
  %1811 = vmatprep.mubr.bf16.mxu0 0
  %1812 = vmatmul.mubr.bf16.gmra.mxu0 %v1571
  %v1813 = vpop.f32.mrf.mxu0
  %v1814 = vadd.f32 0.0, %v1813
  %v1815 = vpop.f32.mrf.mxu0
  %v1816 = vpop.f32.mrf.mxu0
  %v1817 = vadd.f32 0.0, %v1816
  %v1818 = vpop.f32.mrf.mxu0
  %1819 = vmatprep.mubr.bf16.mxu0 0
  %1820 = vmatmul.mubr.bf16.gmra.mxu0 %v1574
  %v1821 = vpop.f32.mrf.mxu0
  %v1822 = vadd.f32 0.0, %v1821
  %v1823 = vpop.f32.mrf.mxu0
  %v1824 = vpop.f32.mrf.mxu0
  %v1825 = vadd.f32 0.0, %v1824
  %v1826 = vpop.f32.mrf.mxu0
  %1827 = vmatprep.mubr.bf16.mxu0 0
  %1828 = vmatmul.mubr.bf16.gmra.mxu0 %v1577
  %v1829 = vpop.f32.mrf.mxu0
  %v1830 = vadd.f32 0.0, %v1829
  %v1831 = vpop.f32.mrf.mxu0
  %v1832 = vpop.f32.mrf.mxu0
  %v1833 = vadd.f32 0.0, %v1832
  %v1834 = vpop.f32.mrf.mxu0
  %1835 = vmatprep.mubr.bf16.mxu0 0
  %1836 = vmatmul.mubr.bf16.gmra.mxu0 %v1580
  %v1837 = vpop.f32.mrf.mxu0
  %v1838 = vadd.f32 0.0, %v1837
  %v1839 = vpop.f32.mrf.mxu0
  %v1840 = vpop.f32.mrf.mxu0
  %v1841 = vadd.f32 0.0, %v1840
  %v1842 = vpop.f32.mrf.mxu0
  %1843 = vmatprep.mubr.bf16.mxu0 0
  %1844 = vmatmul.mubr.bf16.gmra.mxu0 %v1583
  %v1845 = vpop.f32.mrf.mxu0
  %v1846 = vadd.f32 0.0, %v1845
  %v1847 = vpop.f32.mrf.mxu0
  %v1848 = vpop.f32.mrf.mxu0
  %v1849 = vadd.f32 0.0, %v1848
  %v1850 = vpop.f32.mrf.mxu0
  %1851 = vmatprep.mubr.bf16.mxu0 0
  %1852 = vmatmul.mubr.bf16.gmra.mxu0 %v1586
  %v1853 = vpop.f32.mrf.mxu0
  %v1854 = vadd.f32 0.0, %v1853
  %v1855 = vpop.f32.mrf.mxu0
  %v1856 = vpop.f32.mrf.mxu0
  %v1857 = vadd.f32 0.0, %v1856
  %v1858 = vpop.f32.mrf.mxu0
  %1859 = vmatprep.mubr.bf16.mxu0 0
  %1860 = vmatmul.mubr.bf16.gmra.mxu0 %v1589
  %v1861 = vpop.f32.mrf.mxu0
  %v1862 = vadd.f32 0.0, %v1861
  %v1863 = vpop.f32.mrf.mxu0
  %v1864 = vpop.f32.mrf.mxu0
  %v1865 = vadd.f32 0.0, %v1864
  %v1866 = vpop.f32.mrf.mxu0
  %1867 = vmatprep.mubr.bf16.mxu0 0
  %1868 = vmatmul.mubr.bf16.gmra.mxu0 %v1592
  %v1869 = vpop.f32.mrf.mxu0
  %v1870 = vadd.f32 0.0, %v1869
  %v1871 = vpop.f32.mrf.mxu0
  %v1872 = vpop.f32.mrf.mxu0
  %v1873 = vadd.f32 0.0, %v1872
  %v1874 = vpop.f32.mrf.mxu0
  %1875 = vmatprep.mubr.bf16.mxu0 0
  %1876 = vmatmul.mubr.bf16.gmra.mxu0 %v1595
  %v1877 = vpop.f32.mrf.mxu0
  %v1878 = vadd.f32 0.0, %v1877
  %v1879 = vpop.f32.mrf.mxu0
  %v1880 = vpop.f32.mrf.mxu0
  %v1881 = vadd.f32 0.0, %v1880
  %v1882 = vpop.f32.mrf.mxu0
  %1883 = vmatprep.mubr.bf16.mxu0 0
  %1884 = vmatmul.mubr.bf16.gmra.mxu0 %v1598
  %v1885 = vpop.f32.mrf.mxu0
  %v1886 = vadd.f32 0.0, %v1885
  %v1887 = vpop.f32.mrf.mxu0
  %v1888 = vpop.f32.mrf.mxu0
  %v1889 = vadd.f32 0.0, %v1888
  %v1890 = vpop.f32.mrf.mxu0
  %1891 = vdwg.mxu0
  %v1892 = vadd.f32 %v1087, %v1638
  %v1893 = vadd.f32 %v1090, %v1641
  %v1894 = vadd.f32 %v1095, %v1646
  %v1895 = vadd.f32 %v1098, %v1649
  %v1896 = vadd.f32 %v1103, %v1654
  %v1897 = vadd.f32 %v1106, %v1657
  %v1898 = vadd.f32 %v1111, %v1662
  %v1899 = vadd.f32 %v1114, %v1665
  %v1900 = vadd.f32 %v1119, %v1670
  %v1901 = vadd.f32 %v1122, %v1673
  %v1902 = vadd.f32 %v1127, %v1678
  %v1903 = vadd.f32 %v1130, %v1681
  %v1904 = vadd.f32 %v1135, %v1686
  %v1905 = vadd.f32 %v1138, %v1689
  %v1906 = vadd.f32 %v1143, %v1694
  %v1907 = vadd.f32 %v1146, %v1697
  %v1908 = vadd.f32 %v1151, %v1702
  %v1909 = vadd.f32 %v1154, %v1705
  %v1910 = vadd.f32 %v1159, %v1710
  %v1911 = vadd.f32 %v1162, %v1713
  %v1912 = vadd.f32 %v1167, %v1718
  %v1913 = vadd.f32 %v1170, %v1721
  %v1914 = vadd.f32 %v1175, %v1726
  %v1915 = vadd.f32 %v1178, %v1729
  %v1916 = vadd.f32 %v1183, %v1734
  %v1917 = vadd.f32 %v1186, %v1737
  %v1918 = vadd.f32 %v1191, %v1742
  %v1919 = vadd.f32 %v1194, %v1745
  %v1920 = vadd.f32 %v1199, %v1750
  %v1921 = vadd.f32 %v1202, %v1753
  %v1922 = vadd.f32 %v1207, %v1758
  %v1923 = vadd.f32 %v1210, %v1761
  %v1924 = vadd.f32 %v1215, %v1766
  %v1925 = vadd.f32 %v1218, %v1769
  %v1926 = vadd.f32 %v1223, %v1774
  %v1927 = vadd.f32 %v1226, %v1777
  %v1928 = vadd.f32 %v1231, %v1782
  %v1929 = vadd.f32 %v1234, %v1785
  %v1930 = vadd.f32 %v1239, %v1790
  %v1931 = vadd.f32 %v1242, %v1793
  %v1932 = vadd.f32 %v1247, %v1798
  %v1933 = vadd.f32 %v1250, %v1801
  %v1934 = vadd.f32 %v1255, %v1806
  %v1935 = vadd.f32 %v1258, %v1809
  %v1936 = vadd.f32 %v1263, %v1814
  %v1937 = vadd.f32 %v1266, %v1817
  %v1938 = vadd.f32 %v1271, %v1822
  %v1939 = vadd.f32 %v1274, %v1825
  %v1940 = vadd.f32 %v1279, %v1830
  %v1941 = vadd.f32 %v1282, %v1833
  %v1942 = vadd.f32 %v1287, %v1838
  %v1943 = vadd.f32 %v1290, %v1841
  %v1944 = vadd.f32 %v1295, %v1846
  %v1945 = vadd.f32 %v1298, %v1849
  %v1946 = vadd.f32 %v1303, %v1854
  %v1947 = vadd.f32 %v1306, %v1857
  %v1948 = vadd.f32 %v1311, %v1862
  %v1949 = vadd.f32 %v1314, %v1865
  %v1950 = vadd.f32 %v1319, %v1870
  %v1951 = vadd.f32 %v1322, %v1873
  %v1952 = vadd.f32 %v1327, %v1878
  %v1953 = vadd.f32 %v1330, %v1881
  %v1954 = vadd.f32 %v1335, %v1886
  %v1955 = vadd.f32 %v1338, %v1889
  %s1956 = scalar_lea.vmem %s1, 12
  %v1957 = vld [vmem:[%s1956] sm:$0xf]
  %v1959 = vsel %vm595, %v167, 0
  %v1962 = vsel %vm595, %v203, 0
  %v1965 = vsel %vm692, %v1957, 0
  %1967 = vmatprep.subr.bf16.mxu0 0
  %1968 = vmatpush1.bf16.msra.mxu0 0
  %1969 = vmatprep.subr.bf16.mxu0 0
  %1970 = vmatpush1.bf16.msra.mxu0 0
  %1971 = vmatprep.subr.bf16.mxu0 0
  %1972 = vmatpush1.bf16.msra.mxu0 0
  %1973 = vmatprep.subr.bf16.mxu0 0
  %1974 = vmatpush1.bf16.msra.mxu0 0
  %1975 = vmatprep.subr.bf16.mxu0 0
  %1976 = vmatpush1.bf16.msra.mxu0 0
  %1977 = vmatprep.subr.bf16.mxu0 0
  %1978 = vmatpush1.bf16.msra.mxu0 0
  %1979 = vmatprep.subr.bf16.mxu0 0
  %1980 = vmatpush1.bf16.msra.mxu0 0
  %1981 = vmatprep.subr.bf16.mxu0 0
  %1982 = vmatpush1.bf16.msra.mxu0 %v1965
  %1983 = vmatprep.subr.bf16.mxu0 0
  %1984 = vmatpush2.bf16.msra.mxu0 0
  %1985 = vmatprep.subr.bf16.mxu0 0
  %1986 = vmatpush2.bf16.msra.mxu0 0
  %1987 = vmatprep.subr.bf16.mxu0 0
  %1988 = vmatpush2.bf16.msra.mxu0 0
  %1989 = vmatprep.subr.bf16.mxu0 0
  %1990 = vmatpush2.bf16.msra.mxu0 0
  %1991 = vmatprep.subr.bf16.mxu0 0
  %1992 = vmatpush2.bf16.msra.mxu0 0
  %1993 = vmatprep.subr.bf16.mxu0 0
  %1994 = vmatpush2.bf16.msra.mxu0 0
  %1995 = vmatprep.subr.bf16.mxu0 0
  %1996 = vmatpush2.bf16.msra.mxu0 0
  %1997 = vmatprep.subr.bf16.mxu0 0
  %1998 = vmatpush2.bf16.msra.mxu0 0
  %1999 = vmatprep.mubr.bf16.mxu0 0
  %2000 = vmatmul.mubr.bf16.gmra.mxu0 %v987
  %v2001 = vpop.f32.mrf.mxu0
  %v2002 = vadd.f32 0.0, %v2001
  %v2003 = vpop.f32.mrf.mxu0
  %v2004 = vpop.f32.mrf.mxu0
  %v2005 = vadd.f32 0.0, %v2004
  %v2006 = vpop.f32.mrf.mxu0
  %2007 = vmatprep.mubr.bf16.mxu0 0
  %2008 = vmatmul.mubr.bf16.gmra.mxu0 %v989
  %v2009 = vpop.f32.mrf.mxu0
  %v2010 = vadd.f32 0.0, %v2009
  %v2011 = vpop.f32.mrf.mxu0
  %v2012 = vpop.f32.mrf.mxu0
  %v2013 = vadd.f32 0.0, %v2012
  %v2014 = vpop.f32.mrf.mxu0
  %2015 = vmatprep.mubr.bf16.mxu0 0
  %2016 = vmatmul.mubr.bf16.gmra.mxu0 %v991
  %v2017 = vpop.f32.mrf.mxu0
  %v2018 = vadd.f32 0.0, %v2017
  %v2019 = vpop.f32.mrf.mxu0
  %v2020 = vpop.f32.mrf.mxu0
  %v2021 = vadd.f32 0.0, %v2020
  %v2022 = vpop.f32.mrf.mxu0
  %2023 = vmatprep.mubr.bf16.mxu0 0
  %2024 = vmatmul.mubr.bf16.gmra.mxu0 %v993
  %v2025 = vpop.f32.mrf.mxu0
  %v2026 = vadd.f32 0.0, %v2025
  %v2027 = vpop.f32.mrf.mxu0
  %v2028 = vpop.f32.mrf.mxu0
  %v2029 = vadd.f32 0.0, %v2028
  %v2030 = vpop.f32.mrf.mxu0
  %2031 = vmatprep.mubr.bf16.mxu0 0
  %2032 = vmatmul.mubr.bf16.gmra.mxu0 %v995
  %v2033 = vpop.f32.mrf.mxu0
  %v2034 = vadd.f32 0.0, %v2033
  %v2035 = vpop.f32.mrf.mxu0
  %v2036 = vpop.f32.mrf.mxu0
  %v2037 = vadd.f32 0.0, %v2036
  %v2038 = vpop.f32.mrf.mxu0
  %2039 = vmatprep.mubr.bf16.mxu0 0
  %2040 = vmatmul.mubr.bf16.gmra.mxu0 %v997
  %v2041 = vpop.f32.mrf.mxu0
  %v2042 = vadd.f32 0.0, %v2041
  %v2043 = vpop.f32.mrf.mxu0
  %v2044 = vpop.f32.mrf.mxu0
  %v2045 = vadd.f32 0.0, %v2044
  %v2046 = vpop.f32.mrf.mxu0
  %2047 = vmatprep.mubr.bf16.mxu0 0
  %2048 = vmatmul.mubr.bf16.gmra.mxu0 %v999
  %v2049 = vpop.f32.mrf.mxu0
  %v2050 = vadd.f32 0.0, %v2049
  %v2051 = vpop.f32.mrf.mxu0
  %v2052 = vpop.f32.mrf.mxu0
  %v2053 = vadd.f32 0.0, %v2052
  %v2054 = vpop.f32.mrf.mxu0
  %2055 = vmatprep.mubr.bf16.mxu0 0
  %2056 = vmatmul.mubr.bf16.gmra.mxu0 %v1001
  %v2057 = vpop.f32.mrf.mxu0
  %v2058 = vadd.f32 0.0, %v2057
  %v2059 = vpop.f32.mrf.mxu0
  %v2060 = vpop.f32.mrf.mxu0
  %v2061 = vadd.f32 0.0, %v2060
  %v2062 = vpop.f32.mrf.mxu0
  %2063 = vmatprep.mubr.bf16.mxu0 0
  %2064 = vmatmul.mubr.bf16.gmra.mxu0 %v1003
  %v2065 = vpop.f32.mrf.mxu0
  %v2066 = vadd.f32 0.0, %v2065
  %v2067 = vpop.f32.mrf.mxu0
  %v2068 = vpop.f32.mrf.mxu0
  %v2069 = vadd.f32 0.0, %v2068
  %v2070 = vpop.f32.mrf.mxu0
  %2071 = vmatprep.mubr.bf16.mxu0 0
  %2072 = vmatmul.mubr.bf16.gmra.mxu0 %v1005
  %v2073 = vpop.f32.mrf.mxu0
  %v2074 = vadd.f32 0.0, %v2073
  %v2075 = vpop.f32.mrf.mxu0
  %v2076 = vpop.f32.mrf.mxu0
  %v2077 = vadd.f32 0.0, %v2076
  %v2078 = vpop.f32.mrf.mxu0
  %2079 = vmatprep.mubr.bf16.mxu0 0
  %2080 = vmatmul.mubr.bf16.gmra.mxu0 %v1007
  %v2081 = vpop.f32.mrf.mxu0
  %v2082 = vadd.f32 0.0, %v2081
  %v2083 = vpop.f32.mrf.mxu0
  %v2084 = vpop.f32.mrf.mxu0
  %v2085 = vadd.f32 0.0, %v2084
  %v2086 = vpop.f32.mrf.mxu0
  %2087 = vmatprep.mubr.bf16.mxu0 0
  %2088 = vmatmul.mubr.bf16.gmra.mxu0 %v1009
  %v2089 = vpop.f32.mrf.mxu0
  %v2090 = vadd.f32 0.0, %v2089
  %v2091 = vpop.f32.mrf.mxu0
  %v2092 = vpop.f32.mrf.mxu0
  %v2093 = vadd.f32 0.0, %v2092
  %v2094 = vpop.f32.mrf.mxu0
  %2095 = vmatprep.mubr.bf16.mxu0 0
  %2096 = vmatmul.mubr.bf16.gmra.mxu0 %v1011
  %v2097 = vpop.f32.mrf.mxu0
  %v2098 = vadd.f32 0.0, %v2097
  %v2099 = vpop.f32.mrf.mxu0
  %v2100 = vpop.f32.mrf.mxu0
  %v2101 = vadd.f32 0.0, %v2100
  %v2102 = vpop.f32.mrf.mxu0
  %2103 = vmatprep.mubr.bf16.mxu0 0
  %2104 = vmatmul.mubr.bf16.gmra.mxu0 %v1013
  %v2105 = vpop.f32.mrf.mxu0
  %v2106 = vadd.f32 0.0, %v2105
  %v2107 = vpop.f32.mrf.mxu0
  %v2108 = vpop.f32.mrf.mxu0
  %v2109 = vadd.f32 0.0, %v2108
  %v2110 = vpop.f32.mrf.mxu0
  %2111 = vmatprep.mubr.bf16.mxu0 0
  %2112 = vmatmul.mubr.bf16.gmra.mxu0 %v1015
  %v2113 = vpop.f32.mrf.mxu0
  %v2114 = vadd.f32 0.0, %v2113
  %v2115 = vpop.f32.mrf.mxu0
  %v2116 = vpop.f32.mrf.mxu0
  %v2117 = vadd.f32 0.0, %v2116
  %v2118 = vpop.f32.mrf.mxu0
  %2119 = vmatprep.mubr.bf16.mxu0 0
  %2120 = vmatmul.mubr.bf16.gmra.mxu0 %v1959
  %v2121 = vpop.f32.mrf.mxu0
  %v2122 = vadd.f32 0.0, %v2121
  %v2123 = vpop.f32.mrf.mxu0
  %v2124 = vpop.f32.mrf.mxu0
  %v2125 = vadd.f32 0.0, %v2124
  %v2126 = vpop.f32.mrf.mxu0
  %2127 = vmatprep.mubr.bf16.mxu0 0
  %2128 = vmatmul.mubr.bf16.gmra.mxu0 %v1019
  %v2129 = vpop.f32.mrf.mxu0
  %v2130 = vadd.f32 0.0, %v2129
  %v2131 = vpop.f32.mrf.mxu0
  %v2132 = vpop.f32.mrf.mxu0
  %v2133 = vadd.f32 0.0, %v2132
  %v2134 = vpop.f32.mrf.mxu0
  %2135 = vmatprep.mubr.bf16.mxu0 0
  %2136 = vmatmul.mubr.bf16.gmra.mxu0 %v1021
  %v2137 = vpop.f32.mrf.mxu0
  %v2138 = vadd.f32 0.0, %v2137
  %v2139 = vpop.f32.mrf.mxu0
  %v2140 = vpop.f32.mrf.mxu0
  %v2141 = vadd.f32 0.0, %v2140
  %v2142 = vpop.f32.mrf.mxu0
  %2143 = vmatprep.mubr.bf16.mxu0 0
  %2144 = vmatmul.mubr.bf16.gmra.mxu0 %v1023
  %v2145 = vpop.f32.mrf.mxu0
  %v2146 = vadd.f32 0.0, %v2145
  %v2147 = vpop.f32.mrf.mxu0
  %v2148 = vpop.f32.mrf.mxu0
  %v2149 = vadd.f32 0.0, %v2148
  %v2150 = vpop.f32.mrf.mxu0
  %2151 = vmatprep.mubr.bf16.mxu0 0
  %2152 = vmatmul.mubr.bf16.gmra.mxu0 %v1025
  %v2153 = vpop.f32.mrf.mxu0
  %v2154 = vadd.f32 0.0, %v2153
  %v2155 = vpop.f32.mrf.mxu0
  %v2156 = vpop.f32.mrf.mxu0
  %v2157 = vadd.f32 0.0, %v2156
  %v2158 = vpop.f32.mrf.mxu0
  %2159 = vmatprep.mubr.bf16.mxu0 0
  %2160 = vmatmul.mubr.bf16.gmra.mxu0 %v1027
  %v2161 = vpop.f32.mrf.mxu0
  %v2162 = vadd.f32 0.0, %v2161
  %v2163 = vpop.f32.mrf.mxu0
  %v2164 = vpop.f32.mrf.mxu0
  %v2165 = vadd.f32 0.0, %v2164
  %v2166 = vpop.f32.mrf.mxu0
  %2167 = vmatprep.mubr.bf16.mxu0 0
  %2168 = vmatmul.mubr.bf16.gmra.mxu0 %v1029
  %v2169 = vpop.f32.mrf.mxu0
  %v2170 = vadd.f32 0.0, %v2169
  %v2171 = vpop.f32.mrf.mxu0
  %v2172 = vpop.f32.mrf.mxu0
  %v2173 = vadd.f32 0.0, %v2172
  %v2174 = vpop.f32.mrf.mxu0
  %2175 = vmatprep.mubr.bf16.mxu0 0
  %2176 = vmatmul.mubr.bf16.gmra.mxu0 %v1031
  %v2177 = vpop.f32.mrf.mxu0
  %v2178 = vadd.f32 0.0, %v2177
  %v2179 = vpop.f32.mrf.mxu0
  %v2180 = vpop.f32.mrf.mxu0
  %v2181 = vadd.f32 0.0, %v2180
  %v2182 = vpop.f32.mrf.mxu0
  %2183 = vmatprep.mubr.bf16.mxu0 0
  %2184 = vmatmul.mubr.bf16.gmra.mxu0 %v1033
  %v2185 = vpop.f32.mrf.mxu0
  %v2186 = vadd.f32 0.0, %v2185
  %v2187 = vpop.f32.mrf.mxu0
  %v2188 = vpop.f32.mrf.mxu0
  %v2189 = vadd.f32 0.0, %v2188
  %v2190 = vpop.f32.mrf.mxu0
  %2191 = vmatprep.mubr.bf16.mxu0 0
  %2192 = vmatmul.mubr.bf16.gmra.mxu0 %v1035
  %v2193 = vpop.f32.mrf.mxu0
  %v2194 = vadd.f32 0.0, %v2193
  %v2195 = vpop.f32.mrf.mxu0
  %v2196 = vpop.f32.mrf.mxu0
  %v2197 = vadd.f32 0.0, %v2196
  %v2198 = vpop.f32.mrf.mxu0
  %2199 = vmatprep.mubr.bf16.mxu0 0
  %2200 = vmatmul.mubr.bf16.gmra.mxu0 %v1037
  %v2201 = vpop.f32.mrf.mxu0
  %v2202 = vadd.f32 0.0, %v2201
  %v2203 = vpop.f32.mrf.mxu0
  %v2204 = vpop.f32.mrf.mxu0
  %v2205 = vadd.f32 0.0, %v2204
  %v2206 = vpop.f32.mrf.mxu0
  %2207 = vmatprep.mubr.bf16.mxu0 0
  %2208 = vmatmul.mubr.bf16.gmra.mxu0 %v1039
  %v2209 = vpop.f32.mrf.mxu0
  %v2210 = vadd.f32 0.0, %v2209
  %v2211 = vpop.f32.mrf.mxu0
  %v2212 = vpop.f32.mrf.mxu0
  %v2213 = vadd.f32 0.0, %v2212
  %v2214 = vpop.f32.mrf.mxu0
  %2215 = vmatprep.mubr.bf16.mxu0 0
  %2216 = vmatmul.mubr.bf16.gmra.mxu0 %v1041
  %v2217 = vpop.f32.mrf.mxu0
  %v2218 = vadd.f32 0.0, %v2217
  %v2219 = vpop.f32.mrf.mxu0
  %v2220 = vpop.f32.mrf.mxu0
  %v2221 = vadd.f32 0.0, %v2220
  %v2222 = vpop.f32.mrf.mxu0
  %2223 = vmatprep.mubr.bf16.mxu0 0
  %2224 = vmatmul.mubr.bf16.gmra.mxu0 %v1043
  %v2225 = vpop.f32.mrf.mxu0
  %v2226 = vadd.f32 0.0, %v2225
  %v2227 = vpop.f32.mrf.mxu0
  %v2228 = vpop.f32.mrf.mxu0
  %v2229 = vadd.f32 0.0, %v2228
  %v2230 = vpop.f32.mrf.mxu0
  %2231 = vmatprep.mubr.bf16.mxu0 0
  %2232 = vmatmul.mubr.bf16.gmra.mxu0 %v1045
  %v2233 = vpop.f32.mrf.mxu0
  %v2234 = vadd.f32 0.0, %v2233
  %v2235 = vpop.f32.mrf.mxu0
  %v2236 = vpop.f32.mrf.mxu0
  %v2237 = vadd.f32 0.0, %v2236
  %v2238 = vpop.f32.mrf.mxu0
  %2239 = vmatprep.mubr.bf16.mxu0 0
  %2240 = vmatmul.mubr.bf16.gmra.mxu0 %v1047
  %v2241 = vpop.f32.mrf.mxu0
  %v2242 = vadd.f32 0.0, %v2241
  %v2243 = vpop.f32.mrf.mxu0
  %v2244 = vpop.f32.mrf.mxu0
  %v2245 = vadd.f32 0.0, %v2244
  %v2246 = vpop.f32.mrf.mxu0
  %2247 = vmatprep.mubr.bf16.mxu0 0
  %2248 = vmatmul.mubr.bf16.gmra.mxu0 %v1962
  %v2249 = vpop.f32.mrf.mxu0
  %v2250 = vadd.f32 0.0, %v2249
  %v2251 = vpop.f32.mrf.mxu0
  %v2252 = vpop.f32.mrf.mxu0
  %v2253 = vadd.f32 0.0, %v2252
  %v2254 = vpop.f32.mrf.mxu0
  %2255 = vdwg.mxu0
  %v2256 = vadd.f32 %v1892, %v2002
  %v2257 = vadd.f32 %v1893, %v2005
  %v2258 = vadd.f32 %v1894, %v2010
  %v2259 = vadd.f32 %v1895, %v2013
  %v2260 = vadd.f32 %v1896, %v2018
  %v2261 = vadd.f32 %v1897, %v2021
  %v2262 = vadd.f32 %v1898, %v2026
  %v2263 = vadd.f32 %v1899, %v2029
  %v2264 = vadd.f32 %v1900, %v2034
  %v2265 = vadd.f32 %v1901, %v2037
  %v2266 = vadd.f32 %v1902, %v2042
  %v2267 = vadd.f32 %v1903, %v2045
  %v2268 = vadd.f32 %v1904, %v2050
  %v2269 = vadd.f32 %v1905, %v2053
  %v2270 = vadd.f32 %v1906, %v2058
  %v2271 = vadd.f32 %v1907, %v2061
  %v2272 = vadd.f32 %v1908, %v2066
  %v2273 = vadd.f32 %v1909, %v2069
  %v2274 = vadd.f32 %v1910, %v2074
  %v2275 = vadd.f32 %v1911, %v2077
  %v2276 = vadd.f32 %v1912, %v2082
  %v2277 = vadd.f32 %v1913, %v2085
  %v2278 = vadd.f32 %v1914, %v2090
  %v2279 = vadd.f32 %v1915, %v2093
  %v2280 = vadd.f32 %v1916, %v2098
  %v2281 = vadd.f32 %v1917, %v2101
  %v2282 = vadd.f32 %v1918, %v2106
  %v2283 = vadd.f32 %v1919, %v2109
  %v2284 = vadd.f32 %v1920, %v2114
  %v2285 = vadd.f32 %v1921, %v2117
  %v2286 = vadd.f32 %v1922, %v2122
  %v2287 = vadd.f32 %v1923, %v2125
  %v2288 = vadd.f32 %v1924, %v2130
  %v2289 = vadd.f32 %v1925, %v2133
  %v2290 = vadd.f32 %v1926, %v2138
  %v2291 = vadd.f32 %v1927, %v2141
  %v2292 = vadd.f32 %v1928, %v2146
  %v2293 = vadd.f32 %v1929, %v2149
  %v2294 = vadd.f32 %v1930, %v2154
  %v2295 = vadd.f32 %v1931, %v2157
  %v2296 = vadd.f32 %v1932, %v2162
  %v2297 = vadd.f32 %v1933, %v2165
  %v2298 = vadd.f32 %v1934, %v2170
  %v2299 = vadd.f32 %v1935, %v2173
  %v2300 = vadd.f32 %v1936, %v2178
  %v2301 = vadd.f32 %v1937, %v2181
  %v2302 = vadd.f32 %v1938, %v2186
  %v2303 = vadd.f32 %v1939, %v2189
  %v2304 = vadd.f32 %v1940, %v2194
  %v2305 = vadd.f32 %v1941, %v2197
  %v2306 = vadd.f32 %v1942, %v2202
  %v2307 = vadd.f32 %v1943, %v2205
  %v2308 = vadd.f32 %v1944, %v2210
  %v2309 = vadd.f32 %v1945, %v2213
  %v2310 = vadd.f32 %v1946, %v2218
  %v2311 = vadd.f32 %v1947, %v2221
  %v2312 = vadd.f32 %v1948, %v2226
  %v2313 = vadd.f32 %v1949, %v2229
  %v2314 = vadd.f32 %v1950, %v2234
  %v2315 = vadd.f32 %v1951, %v2237
  %v2316 = vadd.f32 %v1952, %v2242
  %v2317 = vadd.f32 %v1953, %v2245
  %v2318 = vadd.f32 %v1954, %v2250
  %v2319 = vadd.f32 %v1955, %v2253
  %v2320 = vshrl.u32 %v167, 16
  %v2322 = vshll.u32 %v167, 16
  %v2324 = vrot.slane %v2322, 1
  %v2325 = vor.u32 %v2320, %v2324
  %v2327 = vshll.u32 %v168, 16
  %v2329 = vrot.slane %v2327, 1
  %v2330 = vsel %vm208, %v2325, %v2329
  %v2331 = vshrl.u32 %v203, 16
  %v2333 = vshll.u32 %v203, 16
  %v2335 = vrot.slane %v2333, 1
  %v2336 = vor.u32 %v2331, %v2335
  %v2338 = vshll.u32 %v204, 16
  %v2340 = vrot.slane %v2338, 1
  %v2341 = vsel %vm208, %v2336, %v2340
  %s2342 = scalar_lea.vmem %s1, 16
  %v2343 = vld [vmem:[%s2342] sm:$0xf]
  %v2345 = vsel %vm595, %v2330, 0
  %v2348 = vsel %vm595, %v2341, 0
  %v2351 = vsel %vm692, %v2343, 0
  %2353 = vmatprep.subr.bf16.mxu0 0
  %2354 = vmatpush1.bf16.msra.mxu0 0
  %2355 = vmatprep.subr.bf16.mxu0 0
  %2356 = vmatpush1.bf16.msra.mxu0 0
  %2357 = vmatprep.subr.bf16.mxu0 0
  %2358 = vmatpush1.bf16.msra.mxu0 0
  %2359 = vmatprep.subr.bf16.mxu0 0
  %2360 = vmatpush1.bf16.msra.mxu0 0
  %2361 = vmatprep.subr.bf16.mxu0 0
  %2362 = vmatpush1.bf16.msra.mxu0 0
  %2363 = vmatprep.subr.bf16.mxu0 0
  %2364 = vmatpush1.bf16.msra.mxu0 0
  %2365 = vmatprep.subr.bf16.mxu0 0
  %2366 = vmatpush1.bf16.msra.mxu0 0
  %2367 = vmatprep.subr.bf16.mxu0 0
  %2368 = vmatpush1.bf16.msra.mxu0 %v2351
  %2369 = vmatprep.subr.bf16.mxu0 0
  %2370 = vmatpush2.bf16.msra.mxu0 0
  %2371 = vmatprep.subr.bf16.mxu0 0
  %2372 = vmatpush2.bf16.msra.mxu0 0
  %2373 = vmatprep.subr.bf16.mxu0 0
  %2374 = vmatpush2.bf16.msra.mxu0 0
  %2375 = vmatprep.subr.bf16.mxu0 0
  %2376 = vmatpush2.bf16.msra.mxu0 0
  %2377 = vmatprep.subr.bf16.mxu0 0
  %2378 = vmatpush2.bf16.msra.mxu0 0
  %2379 = vmatprep.subr.bf16.mxu0 0
  %2380 = vmatpush2.bf16.msra.mxu0 0
  %2381 = vmatprep.subr.bf16.mxu0 0
  %2382 = vmatpush2.bf16.msra.mxu0 0
  %2383 = vmatprep.subr.bf16.mxu0 0
  %2384 = vmatpush2.bf16.msra.mxu0 0
  %2385 = vmatprep.mubr.bf16.mxu0 0
  %2386 = vmatmul.mubr.bf16.gmra.mxu0 %v600
  %v2387 = vpop.f32.mrf.mxu0
  %v2388 = vadd.f32 0.0, %v2387
  %v2389 = vpop.f32.mrf.mxu0
  %v2390 = vpop.f32.mrf.mxu0
  %v2391 = vadd.f32 0.0, %v2390
  %v2392 = vpop.f32.mrf.mxu0
  %2393 = vmatprep.mubr.bf16.mxu0 0
  %2394 = vmatmul.mubr.bf16.gmra.mxu0 %v603
  %v2395 = vpop.f32.mrf.mxu0
  %v2396 = vadd.f32 0.0, %v2395
  %v2397 = vpop.f32.mrf.mxu0
  %v2398 = vpop.f32.mrf.mxu0
  %v2399 = vadd.f32 0.0, %v2398
  %v2400 = vpop.f32.mrf.mxu0
  %2401 = vmatprep.mubr.bf16.mxu0 0
  %2402 = vmatmul.mubr.bf16.gmra.mxu0 %v606
  %v2403 = vpop.f32.mrf.mxu0
  %v2404 = vadd.f32 0.0, %v2403
  %v2405 = vpop.f32.mrf.mxu0
  %v2406 = vpop.f32.mrf.mxu0
  %v2407 = vadd.f32 0.0, %v2406
  %v2408 = vpop.f32.mrf.mxu0
  %2409 = vmatprep.mubr.bf16.mxu0 0
  %2410 = vmatmul.mubr.bf16.gmra.mxu0 %v609
  %v2411 = vpop.f32.mrf.mxu0
  %v2412 = vadd.f32 0.0, %v2411
  %v2413 = vpop.f32.mrf.mxu0
  %v2414 = vpop.f32.mrf.mxu0
  %v2415 = vadd.f32 0.0, %v2414
  %v2416 = vpop.f32.mrf.mxu0
  %2417 = vmatprep.mubr.bf16.mxu0 0
  %2418 = vmatmul.mubr.bf16.gmra.mxu0 %v612
  %v2419 = vpop.f32.mrf.mxu0
  %v2420 = vadd.f32 0.0, %v2419
  %v2421 = vpop.f32.mrf.mxu0
  %v2422 = vpop.f32.mrf.mxu0
  %v2423 = vadd.f32 0.0, %v2422
  %v2424 = vpop.f32.mrf.mxu0
  %2425 = vmatprep.mubr.bf16.mxu0 0
  %2426 = vmatmul.mubr.bf16.gmra.mxu0 %v615
  %v2427 = vpop.f32.mrf.mxu0
  %v2428 = vadd.f32 0.0, %v2427
  %v2429 = vpop.f32.mrf.mxu0
  %v2430 = vpop.f32.mrf.mxu0
  %v2431 = vadd.f32 0.0, %v2430
  %v2432 = vpop.f32.mrf.mxu0
  %2433 = vmatprep.mubr.bf16.mxu0 0
  %2434 = vmatmul.mubr.bf16.gmra.mxu0 %v618
  %v2435 = vpop.f32.mrf.mxu0
  %v2436 = vadd.f32 0.0, %v2435
  %v2437 = vpop.f32.mrf.mxu0
  %v2438 = vpop.f32.mrf.mxu0
  %v2439 = vadd.f32 0.0, %v2438
  %v2440 = vpop.f32.mrf.mxu0
  %2441 = vmatprep.mubr.bf16.mxu0 0
  %2442 = vmatmul.mubr.bf16.gmra.mxu0 %v621
  %v2443 = vpop.f32.mrf.mxu0
  %v2444 = vadd.f32 0.0, %v2443
  %v2445 = vpop.f32.mrf.mxu0
  %v2446 = vpop.f32.mrf.mxu0
  %v2447 = vadd.f32 0.0, %v2446
  %v2448 = vpop.f32.mrf.mxu0
  %2449 = vmatprep.mubr.bf16.mxu0 0
  %2450 = vmatmul.mubr.bf16.gmra.mxu0 %v624
  %v2451 = vpop.f32.mrf.mxu0
  %v2452 = vadd.f32 0.0, %v2451
  %v2453 = vpop.f32.mrf.mxu0
  %v2454 = vpop.f32.mrf.mxu0
  %v2455 = vadd.f32 0.0, %v2454
  %v2456 = vpop.f32.mrf.mxu0
  %2457 = vmatprep.mubr.bf16.mxu0 0
  %2458 = vmatmul.mubr.bf16.gmra.mxu0 %v627
  %v2459 = vpop.f32.mrf.mxu0
  %v2460 = vadd.f32 0.0, %v2459
  %v2461 = vpop.f32.mrf.mxu0
  %v2462 = vpop.f32.mrf.mxu0
  %v2463 = vadd.f32 0.0, %v2462
  %v2464 = vpop.f32.mrf.mxu0
  %2465 = vmatprep.mubr.bf16.mxu0 0
  %2466 = vmatmul.mubr.bf16.gmra.mxu0 %v630
  %v2467 = vpop.f32.mrf.mxu0
  %v2468 = vadd.f32 0.0, %v2467
  %v2469 = vpop.f32.mrf.mxu0
  %v2470 = vpop.f32.mrf.mxu0
  %v2471 = vadd.f32 0.0, %v2470
  %v2472 = vpop.f32.mrf.mxu0
  %2473 = vmatprep.mubr.bf16.mxu0 0
  %2474 = vmatmul.mubr.bf16.gmra.mxu0 %v633
  %v2475 = vpop.f32.mrf.mxu0
  %v2476 = vadd.f32 0.0, %v2475
  %v2477 = vpop.f32.mrf.mxu0
  %v2478 = vpop.f32.mrf.mxu0
  %v2479 = vadd.f32 0.0, %v2478
  %v2480 = vpop.f32.mrf.mxu0
  %2481 = vmatprep.mubr.bf16.mxu0 0
  %2482 = vmatmul.mubr.bf16.gmra.mxu0 %v636
  %v2483 = vpop.f32.mrf.mxu0
  %v2484 = vadd.f32 0.0, %v2483
  %v2485 = vpop.f32.mrf.mxu0
  %v2486 = vpop.f32.mrf.mxu0
  %v2487 = vadd.f32 0.0, %v2486
  %v2488 = vpop.f32.mrf.mxu0
  %2489 = vmatprep.mubr.bf16.mxu0 0
  %2490 = vmatmul.mubr.bf16.gmra.mxu0 %v639
  %v2491 = vpop.f32.mrf.mxu0
  %v2492 = vadd.f32 0.0, %v2491
  %v2493 = vpop.f32.mrf.mxu0
  %v2494 = vpop.f32.mrf.mxu0
  %v2495 = vadd.f32 0.0, %v2494
  %v2496 = vpop.f32.mrf.mxu0
  %2497 = vmatprep.mubr.bf16.mxu0 0
  %2498 = vmatmul.mubr.bf16.gmra.mxu0 %v642
  %v2499 = vpop.f32.mrf.mxu0
  %v2500 = vadd.f32 0.0, %v2499
  %v2501 = vpop.f32.mrf.mxu0
  %v2502 = vpop.f32.mrf.mxu0
  %v2503 = vadd.f32 0.0, %v2502
  %v2504 = vpop.f32.mrf.mxu0
  %2505 = vmatprep.mubr.bf16.mxu0 0
  %2506 = vmatmul.mubr.bf16.gmra.mxu0 %v2345
  %v2507 = vpop.f32.mrf.mxu0
  %v2508 = vadd.f32 0.0, %v2507
  %v2509 = vpop.f32.mrf.mxu0
  %v2510 = vpop.f32.mrf.mxu0
  %v2511 = vadd.f32 0.0, %v2510
  %v2512 = vpop.f32.mrf.mxu0
  %2513 = vmatprep.mubr.bf16.mxu0 0
  %2514 = vmatmul.mubr.bf16.gmra.mxu0 %v648
  %v2515 = vpop.f32.mrf.mxu0
  %v2516 = vadd.f32 0.0, %v2515
  %v2517 = vpop.f32.mrf.mxu0
  %v2518 = vpop.f32.mrf.mxu0
  %v2519 = vadd.f32 0.0, %v2518
  %v2520 = vpop.f32.mrf.mxu0
  %2521 = vmatprep.mubr.bf16.mxu0 0
  %2522 = vmatmul.mubr.bf16.gmra.mxu0 %v651
  %v2523 = vpop.f32.mrf.mxu0
  %v2524 = vadd.f32 0.0, %v2523
  %v2525 = vpop.f32.mrf.mxu0
  %v2526 = vpop.f32.mrf.mxu0
  %v2527 = vadd.f32 0.0, %v2526
  %v2528 = vpop.f32.mrf.mxu0
  %2529 = vmatprep.mubr.bf16.mxu0 0
  %2530 = vmatmul.mubr.bf16.gmra.mxu0 %v654
  %v2531 = vpop.f32.mrf.mxu0
  %v2532 = vadd.f32 0.0, %v2531
  %v2533 = vpop.f32.mrf.mxu0
  %v2534 = vpop.f32.mrf.mxu0
  %v2535 = vadd.f32 0.0, %v2534
  %v2536 = vpop.f32.mrf.mxu0
  %2537 = vmatprep.mubr.bf16.mxu0 0
  %2538 = vmatmul.mubr.bf16.gmra.mxu0 %v657
  %v2539 = vpop.f32.mrf.mxu0
  %v2540 = vadd.f32 0.0, %v2539
  %v2541 = vpop.f32.mrf.mxu0
  %v2542 = vpop.f32.mrf.mxu0
  %v2543 = vadd.f32 0.0, %v2542
  %v2544 = vpop.f32.mrf.mxu0
  %2545 = vmatprep.mubr.bf16.mxu0 0
  %2546 = vmatmul.mubr.bf16.gmra.mxu0 %v660
  %v2547 = vpop.f32.mrf.mxu0
  %v2548 = vadd.f32 0.0, %v2547
  %v2549 = vpop.f32.mrf.mxu0
  %v2550 = vpop.f32.mrf.mxu0
  %v2551 = vadd.f32 0.0, %v2550
  %v2552 = vpop.f32.mrf.mxu0
  %2553 = vmatprep.mubr.bf16.mxu0 0
  %2554 = vmatmul.mubr.bf16.gmra.mxu0 %v663
  %v2555 = vpop.f32.mrf.mxu0
  %v2556 = vadd.f32 0.0, %v2555
  %v2557 = vpop.f32.mrf.mxu0
  %v2558 = vpop.f32.mrf.mxu0
  %v2559 = vadd.f32 0.0, %v2558
  %v2560 = vpop.f32.mrf.mxu0
  %2561 = vmatprep.mubr.bf16.mxu0 0
  %2562 = vmatmul.mubr.bf16.gmra.mxu0 %v666
  %v2563 = vpop.f32.mrf.mxu0
  %v2564 = vadd.f32 0.0, %v2563
  %v2565 = vpop.f32.mrf.mxu0
  %v2566 = vpop.f32.mrf.mxu0
  %v2567 = vadd.f32 0.0, %v2566
  %v2568 = vpop.f32.mrf.mxu0
  %2569 = vmatprep.mubr.bf16.mxu0 0
  %2570 = vmatmul.mubr.bf16.gmra.mxu0 %v669
  %v2571 = vpop.f32.mrf.mxu0
  %v2572 = vadd.f32 0.0, %v2571
  %v2573 = vpop.f32.mrf.mxu0
  %v2574 = vpop.f32.mrf.mxu0
  %v2575 = vadd.f32 0.0, %v2574
  %v2576 = vpop.f32.mrf.mxu0
  %2577 = vmatprep.mubr.bf16.mxu0 0
  %2578 = vmatmul.mubr.bf16.gmra.mxu0 %v672
  %v2579 = vpop.f32.mrf.mxu0
  %v2580 = vadd.f32 0.0, %v2579
  %v2581 = vpop.f32.mrf.mxu0
  %v2582 = vpop.f32.mrf.mxu0
  %v2583 = vadd.f32 0.0, %v2582
  %v2584 = vpop.f32.mrf.mxu0
  %2585 = vmatprep.mubr.bf16.mxu0 0
  %2586 = vmatmul.mubr.bf16.gmra.mxu0 %v675
  %v2587 = vpop.f32.mrf.mxu0
  %v2588 = vadd.f32 0.0, %v2587
  %v2589 = vpop.f32.mrf.mxu0
  %v2590 = vpop.f32.mrf.mxu0
  %v2591 = vadd.f32 0.0, %v2590
  %v2592 = vpop.f32.mrf.mxu0
  %2593 = vmatprep.mubr.bf16.mxu0 0
  %2594 = vmatmul.mubr.bf16.gmra.mxu0 %v678
  %v2595 = vpop.f32.mrf.mxu0
  %v2596 = vadd.f32 0.0, %v2595
  %v2597 = vpop.f32.mrf.mxu0
  %v2598 = vpop.f32.mrf.mxu0
  %v2599 = vadd.f32 0.0, %v2598
  %v2600 = vpop.f32.mrf.mxu0
  %2601 = vmatprep.mubr.bf16.mxu0 0
  %2602 = vmatmul.mubr.bf16.gmra.mxu0 %v681
  %v2603 = vpop.f32.mrf.mxu0
  %v2604 = vadd.f32 0.0, %v2603
  %v2605 = vpop.f32.mrf.mxu0
  %v2606 = vpop.f32.mrf.mxu0
  %v2607 = vadd.f32 0.0, %v2606
  %v2608 = vpop.f32.mrf.mxu0
  %2609 = vmatprep.mubr.bf16.mxu0 0
  %2610 = vmatmul.mubr.bf16.gmra.mxu0 %v684
  %v2611 = vpop.f32.mrf.mxu0
  %v2612 = vadd.f32 0.0, %v2611
  %v2613 = vpop.f32.mrf.mxu0
  %v2614 = vpop.f32.mrf.mxu0
  %v2615 = vadd.f32 0.0, %v2614
  %v2616 = vpop.f32.mrf.mxu0
  %2617 = vmatprep.mubr.bf16.mxu0 0
  %2618 = vmatmul.mubr.bf16.gmra.mxu0 %v687
  %v2619 = vpop.f32.mrf.mxu0
  %v2620 = vadd.f32 0.0, %v2619
  %v2621 = vpop.f32.mrf.mxu0
  %v2622 = vpop.f32.mrf.mxu0
  %v2623 = vadd.f32 0.0, %v2622
  %v2624 = vpop.f32.mrf.mxu0
  %2625 = vmatprep.mubr.bf16.mxu0 0
  %2626 = vmatmul.mubr.bf16.gmra.mxu0 %v690
  %v2627 = vpop.f32.mrf.mxu0
  %v2628 = vadd.f32 0.0, %v2627
  %v2629 = vpop.f32.mrf.mxu0
  %v2630 = vpop.f32.mrf.mxu0
  %v2631 = vadd.f32 0.0, %v2630
  %v2632 = vpop.f32.mrf.mxu0
  %2633 = vmatprep.mubr.bf16.mxu0 0
  %2634 = vmatmul.mubr.bf16.gmra.mxu0 %v2348
  %v2635 = vpop.f32.mrf.mxu0
  %v2636 = vadd.f32 0.0, %v2635
  %v2637 = vpop.f32.mrf.mxu0
  %v2638 = vpop.f32.mrf.mxu0
  %v2639 = vadd.f32 0.0, %v2638
  %v2640 = vpop.f32.mrf.mxu0
  %2641 = vdwg.mxu0
  %v2642 = vadd.f32 %v2256, %v2388
  %v2643 = vadd.f32 %v2257, %v2391
  %v2644 = vadd.f32 %v2258, %v2396
  %v2645 = vadd.f32 %v2259, %v2399
  %v2646 = vadd.f32 %v2260, %v2404
  %v2647 = vadd.f32 %v2261, %v2407
  %v2648 = vadd.f32 %v2262, %v2412
  %v2649 = vadd.f32 %v2263, %v2415
  %v2650 = vadd.f32 %v2264, %v2420
  %v2651 = vadd.f32 %v2265, %v2423
  %v2652 = vadd.f32 %v2266, %v2428
  %v2653 = vadd.f32 %v2267, %v2431
  %v2654 = vadd.f32 %v2268, %v2436
  %v2655 = vadd.f32 %v2269, %v2439
  %v2656 = vadd.f32 %v2270, %v2444
  %v2657 = vadd.f32 %v2271, %v2447
  %v2658 = vadd.f32 %v2272, %v2452
  %v2659 = vadd.f32 %v2273, %v2455
  %v2660 = vadd.f32 %v2274, %v2460
  %v2661 = vadd.f32 %v2275, %v2463
  %v2662 = vadd.f32 %v2276, %v2468
  %v2663 = vadd.f32 %v2277, %v2471
  %v2664 = vadd.f32 %v2278, %v2476
  %v2665 = vadd.f32 %v2279, %v2479
  %v2666 = vadd.f32 %v2280, %v2484
  %v2667 = vadd.f32 %v2281, %v2487
  %v2668 = vadd.f32 %v2282, %v2492
  %v2669 = vadd.f32 %v2283, %v2495
  %v2670 = vadd.f32 %v2284, %v2500
  %v2671 = vadd.f32 %v2285, %v2503
  %v2672 = vadd.f32 %v2286, %v2508
  %v2673 = vadd.f32 %v2287, %v2511
  %v2674 = vadd.f32 %v2288, %v2516
  %v2675 = vadd.f32 %v2289, %v2519
  %v2676 = vadd.f32 %v2290, %v2524
  %v2677 = vadd.f32 %v2291, %v2527
  %v2678 = vadd.f32 %v2292, %v2532
  %v2679 = vadd.f32 %v2293, %v2535
  %v2680 = vadd.f32 %v2294, %v2540
  %v2681 = vadd.f32 %v2295, %v2543
  %v2682 = vadd.f32 %v2296, %v2548
  %v2683 = vadd.f32 %v2297, %v2551
  %v2684 = vadd.f32 %v2298, %v2556
  %v2685 = vadd.f32 %v2299, %v2559
  %v2686 = vadd.f32 %v2300, %v2564
  %v2687 = vadd.f32 %v2301, %v2567
  %v2688 = vadd.f32 %v2302, %v2572
  %v2689 = vadd.f32 %v2303, %v2575
  %v2690 = vadd.f32 %v2304, %v2580
  %v2691 = vadd.f32 %v2305, %v2583
  %v2692 = vadd.f32 %v2306, %v2588
  %v2693 = vadd.f32 %v2307, %v2591
  %v2694 = vadd.f32 %v2308, %v2596
  %v2695 = vadd.f32 %v2309, %v2599
  %v2696 = vadd.f32 %v2310, %v2604
  %v2697 = vadd.f32 %v2311, %v2607
  %v2698 = vadd.f32 %v2312, %v2612
  %v2699 = vadd.f32 %v2313, %v2615
  %v2700 = vadd.f32 %v2314, %v2620
  %v2701 = vadd.f32 %v2315, %v2623
  %v2702 = vadd.f32 %v2316, %v2628
  %v2703 = vadd.f32 %v2317, %v2631
  %v2704 = vadd.f32 %v2318, %v2636
  %v2705 = vadd.f32 %v2319, %v2639
  %v2710 = vrot.slane %v167, 1
  %v2711 = vrot.slane %v168, 1
  %v2712 = vsel %vm1405, %v2710, %v2711
  %v2713 = vrot.slane %v203, 1
  %v2714 = vrot.slane %v204, 1
  %v2715 = vsel %vm1405, %v2713, %v2714
  %s2716 = scalar_lea.vmem %s1, 20
  %v2717 = vld [vmem:[%s2716] sm:$0xf]
  %v2719 = vsel %vm595, %v2712, 0
  %v2722 = vsel %vm595, %v2715, 0
  %v2725 = vsel %vm692, %v2717, 0
  %2727 = vmatprep.subr.bf16.mxu0 0
  %2728 = vmatpush1.bf16.msra.mxu0 0
  %2729 = vmatprep.subr.bf16.mxu0 0
  %2730 = vmatpush1.bf16.msra.mxu0 0
  %2731 = vmatprep.subr.bf16.mxu0 0
  %2732 = vmatpush1.bf16.msra.mxu0 0
  %2733 = vmatprep.subr.bf16.mxu0 0
  %2734 = vmatpush1.bf16.msra.mxu0 0
  %2735 = vmatprep.subr.bf16.mxu0 0
  %2736 = vmatpush1.bf16.msra.mxu0 0
  %2737 = vmatprep.subr.bf16.mxu0 0
  %2738 = vmatpush1.bf16.msra.mxu0 0
  %2739 = vmatprep.subr.bf16.mxu0 0
  %2740 = vmatpush1.bf16.msra.mxu0 0
  %2741 = vmatprep.subr.bf16.mxu0 0
  %2742 = vmatpush1.bf16.msra.mxu0 %v2725
  %2743 = vmatprep.subr.bf16.mxu0 0
  %2744 = vmatpush2.bf16.msra.mxu0 0
  %2745 = vmatprep.subr.bf16.mxu0 0
  %2746 = vmatpush2.bf16.msra.mxu0 0
  %2747 = vmatprep.subr.bf16.mxu0 0
  %2748 = vmatpush2.bf16.msra.mxu0 0
  %2749 = vmatprep.subr.bf16.mxu0 0
  %2750 = vmatpush2.bf16.msra.mxu0 0
  %2751 = vmatprep.subr.bf16.mxu0 0
  %2752 = vmatpush2.bf16.msra.mxu0 0
  %2753 = vmatprep.subr.bf16.mxu0 0
  %2754 = vmatpush2.bf16.msra.mxu0 0
  %2755 = vmatprep.subr.bf16.mxu0 0
  %2756 = vmatpush2.bf16.msra.mxu0 0
  %2757 = vmatprep.subr.bf16.mxu0 0
  %2758 = vmatpush2.bf16.msra.mxu0 0
  %2759 = vmatprep.mubr.bf16.mxu0 0
  %2760 = vmatmul.mubr.bf16.gmra.mxu0 %v1508
  %v2761 = vpop.f32.mrf.mxu0
  %v2762 = vadd.f32 0.0, %v2761
  %v2763 = vpop.f32.mrf.mxu0
  %v2764 = vpop.f32.mrf.mxu0
  %v2765 = vadd.f32 0.0, %v2764
  %v2766 = vpop.f32.mrf.mxu0
  %2767 = vmatprep.mubr.bf16.mxu0 0
  %2768 = vmatmul.mubr.bf16.gmra.mxu0 %v1511
  %v2769 = vpop.f32.mrf.mxu0
  %v2770 = vadd.f32 0.0, %v2769
  %v2771 = vpop.f32.mrf.mxu0
  %v2772 = vpop.f32.mrf.mxu0
  %v2773 = vadd.f32 0.0, %v2772
  %v2774 = vpop.f32.mrf.mxu0
  %2775 = vmatprep.mubr.bf16.mxu0 0
  %2776 = vmatmul.mubr.bf16.gmra.mxu0 %v1514
  %v2777 = vpop.f32.mrf.mxu0
  %v2778 = vadd.f32 0.0, %v2777
  %v2779 = vpop.f32.mrf.mxu0
  %v2780 = vpop.f32.mrf.mxu0
  %v2781 = vadd.f32 0.0, %v2780
  %v2782 = vpop.f32.mrf.mxu0
  %2783 = vmatprep.mubr.bf16.mxu0 0
  %2784 = vmatmul.mubr.bf16.gmra.mxu0 %v1517
  %v2785 = vpop.f32.mrf.mxu0
  %v2786 = vadd.f32 0.0, %v2785
  %v2787 = vpop.f32.mrf.mxu0
  %v2788 = vpop.f32.mrf.mxu0
  %v2789 = vadd.f32 0.0, %v2788
  %v2790 = vpop.f32.mrf.mxu0
  %2791 = vmatprep.mubr.bf16.mxu0 0
  %2792 = vmatmul.mubr.bf16.gmra.mxu0 %v1520
  %v2793 = vpop.f32.mrf.mxu0
  %v2794 = vadd.f32 0.0, %v2793
  %v2795 = vpop.f32.mrf.mxu0
  %v2796 = vpop.f32.mrf.mxu0
  %v2797 = vadd.f32 0.0, %v2796
  %v2798 = vpop.f32.mrf.mxu0
  %2799 = vmatprep.mubr.bf16.mxu0 0
  %2800 = vmatmul.mubr.bf16.gmra.mxu0 %v1523
  %v2801 = vpop.f32.mrf.mxu0
  %v2802 = vadd.f32 0.0, %v2801
  %v2803 = vpop.f32.mrf.mxu0
  %v2804 = vpop.f32.mrf.mxu0
  %v2805 = vadd.f32 0.0, %v2804
  %v2806 = vpop.f32.mrf.mxu0
  %2807 = vmatprep.mubr.bf16.mxu0 0
  %2808 = vmatmul.mubr.bf16.gmra.mxu0 %v1526
  %v2809 = vpop.f32.mrf.mxu0
  %v2810 = vadd.f32 0.0, %v2809
  %v2811 = vpop.f32.mrf.mxu0
  %v2812 = vpop.f32.mrf.mxu0
  %v2813 = vadd.f32 0.0, %v2812
  %v2814 = vpop.f32.mrf.mxu0
  %2815 = vmatprep.mubr.bf16.mxu0 0
  %2816 = vmatmul.mubr.bf16.gmra.mxu0 %v1529
  %v2817 = vpop.f32.mrf.mxu0
  %v2818 = vadd.f32 0.0, %v2817
  %v2819 = vpop.f32.mrf.mxu0
  %v2820 = vpop.f32.mrf.mxu0
  %v2821 = vadd.f32 0.0, %v2820
  %v2822 = vpop.f32.mrf.mxu0
  %2823 = vmatprep.mubr.bf16.mxu0 0
  %2824 = vmatmul.mubr.bf16.gmra.mxu0 %v1532
  %v2825 = vpop.f32.mrf.mxu0
  %v2826 = vadd.f32 0.0, %v2825
  %v2827 = vpop.f32.mrf.mxu0
  %v2828 = vpop.f32.mrf.mxu0
  %v2829 = vadd.f32 0.0, %v2828
  %v2830 = vpop.f32.mrf.mxu0
  %2831 = vmatprep.mubr.bf16.mxu0 0
  %2832 = vmatmul.mubr.bf16.gmra.mxu0 %v1535
  %v2833 = vpop.f32.mrf.mxu0
  %v2834 = vadd.f32 0.0, %v2833
  %v2835 = vpop.f32.mrf.mxu0
  %v2836 = vpop.f32.mrf.mxu0
  %v2837 = vadd.f32 0.0, %v2836
  %v2838 = vpop.f32.mrf.mxu0
  %2839 = vmatprep.mubr.bf16.mxu0 0
  %2840 = vmatmul.mubr.bf16.gmra.mxu0 %v1538
  %v2841 = vpop.f32.mrf.mxu0
  %v2842 = vadd.f32 0.0, %v2841
  %v2843 = vpop.f32.mrf.mxu0
  %v2844 = vpop.f32.mrf.mxu0
  %v2845 = vadd.f32 0.0, %v2844
  %v2846 = vpop.f32.mrf.mxu0
  %2847 = vmatprep.mubr.bf16.mxu0 0
  %2848 = vmatmul.mubr.bf16.gmra.mxu0 %v1541
  %v2849 = vpop.f32.mrf.mxu0
  %v2850 = vadd.f32 0.0, %v2849
  %v2851 = vpop.f32.mrf.mxu0
  %v2852 = vpop.f32.mrf.mxu0
  %v2853 = vadd.f32 0.0, %v2852
  %v2854 = vpop.f32.mrf.mxu0
  %2855 = vmatprep.mubr.bf16.mxu0 0
  %2856 = vmatmul.mubr.bf16.gmra.mxu0 %v1544
  %v2857 = vpop.f32.mrf.mxu0
  %v2858 = vadd.f32 0.0, %v2857
  %v2859 = vpop.f32.mrf.mxu0
  %v2860 = vpop.f32.mrf.mxu0
  %v2861 = vadd.f32 0.0, %v2860
  %v2862 = vpop.f32.mrf.mxu0
  %2863 = vmatprep.mubr.bf16.mxu0 0
  %2864 = vmatmul.mubr.bf16.gmra.mxu0 %v1547
  %v2865 = vpop.f32.mrf.mxu0
  %v2866 = vadd.f32 0.0, %v2865
  %v2867 = vpop.f32.mrf.mxu0
  %v2868 = vpop.f32.mrf.mxu0
  %v2869 = vadd.f32 0.0, %v2868
  %v2870 = vpop.f32.mrf.mxu0
  %2871 = vmatprep.mubr.bf16.mxu0 0
  %2872 = vmatmul.mubr.bf16.gmra.mxu0 %v1550
  %v2873 = vpop.f32.mrf.mxu0
  %v2874 = vadd.f32 0.0, %v2873
  %v2875 = vpop.f32.mrf.mxu0
  %v2876 = vpop.f32.mrf.mxu0
  %v2877 = vadd.f32 0.0, %v2876
  %v2878 = vpop.f32.mrf.mxu0
  %2879 = vmatprep.mubr.bf16.mxu0 0
  %2880 = vmatmul.mubr.bf16.gmra.mxu0 %v2719
  %v2881 = vpop.f32.mrf.mxu0
  %v2882 = vadd.f32 0.0, %v2881
  %v2883 = vpop.f32.mrf.mxu0
  %v2884 = vpop.f32.mrf.mxu0
  %v2885 = vadd.f32 0.0, %v2884
  %v2886 = vpop.f32.mrf.mxu0
  %2887 = vmatprep.mubr.bf16.mxu0 0
  %2888 = vmatmul.mubr.bf16.gmra.mxu0 %v1556
  %v2889 = vpop.f32.mrf.mxu0
  %v2890 = vadd.f32 0.0, %v2889
  %v2891 = vpop.f32.mrf.mxu0
  %v2892 = vpop.f32.mrf.mxu0
  %v2893 = vadd.f32 0.0, %v2892
  %v2894 = vpop.f32.mrf.mxu0
  %2895 = vmatprep.mubr.bf16.mxu0 0
  %2896 = vmatmul.mubr.bf16.gmra.mxu0 %v1559
  %v2897 = vpop.f32.mrf.mxu0
  %v2898 = vadd.f32 0.0, %v2897
  %v2899 = vpop.f32.mrf.mxu0
  %v2900 = vpop.f32.mrf.mxu0
  %v2901 = vadd.f32 0.0, %v2900
  %v2902 = vpop.f32.mrf.mxu0
  %2903 = vmatprep.mubr.bf16.mxu0 0
  %2904 = vmatmul.mubr.bf16.gmra.mxu0 %v1562
  %v2905 = vpop.f32.mrf.mxu0
  %v2906 = vadd.f32 0.0, %v2905
  %v2907 = vpop.f32.mrf.mxu0
  %v2908 = vpop.f32.mrf.mxu0
  %v2909 = vadd.f32 0.0, %v2908
  %v2910 = vpop.f32.mrf.mxu0
  %2911 = vmatprep.mubr.bf16.mxu0 0
  %2912 = vmatmul.mubr.bf16.gmra.mxu0 %v1565
  %v2913 = vpop.f32.mrf.mxu0
  %v2914 = vadd.f32 0.0, %v2913
  %v2915 = vpop.f32.mrf.mxu0
  %v2916 = vpop.f32.mrf.mxu0
  %v2917 = vadd.f32 0.0, %v2916
  %v2918 = vpop.f32.mrf.mxu0
  %2919 = vmatprep.mubr.bf16.mxu0 0
  %2920 = vmatmul.mubr.bf16.gmra.mxu0 %v1568
  %v2921 = vpop.f32.mrf.mxu0
  %v2922 = vadd.f32 0.0, %v2921
  %v2923 = vpop.f32.mrf.mxu0
  %v2924 = vpop.f32.mrf.mxu0
  %v2925 = vadd.f32 0.0, %v2924
  %v2926 = vpop.f32.mrf.mxu0
  %2927 = vmatprep.mubr.bf16.mxu0 0
  %2928 = vmatmul.mubr.bf16.gmra.mxu0 %v1571
  %v2929 = vpop.f32.mrf.mxu0
  %v2930 = vadd.f32 0.0, %v2929
  %v2931 = vpop.f32.mrf.mxu0
  %v2932 = vpop.f32.mrf.mxu0
  %v2933 = vadd.f32 0.0, %v2932
  %v2934 = vpop.f32.mrf.mxu0
  %2935 = vmatprep.mubr.bf16.mxu0 0
  %2936 = vmatmul.mubr.bf16.gmra.mxu0 %v1574
  %v2937 = vpop.f32.mrf.mxu0
  %v2938 = vadd.f32 0.0, %v2937
  %v2939 = vpop.f32.mrf.mxu0
  %v2940 = vpop.f32.mrf.mxu0
  %v2941 = vadd.f32 0.0, %v2940
  %v2942 = vpop.f32.mrf.mxu0
  %2943 = vmatprep.mubr.bf16.mxu0 0
  %2944 = vmatmul.mubr.bf16.gmra.mxu0 %v1577
  %v2945 = vpop.f32.mrf.mxu0
  %v2946 = vadd.f32 0.0, %v2945
  %v2947 = vpop.f32.mrf.mxu0
  %v2948 = vpop.f32.mrf.mxu0
  %v2949 = vadd.f32 0.0, %v2948
  %v2950 = vpop.f32.mrf.mxu0
  %2951 = vmatprep.mubr.bf16.mxu0 0
  %2952 = vmatmul.mubr.bf16.gmra.mxu0 %v1580
  %v2953 = vpop.f32.mrf.mxu0
  %v2954 = vadd.f32 0.0, %v2953
  %v2955 = vpop.f32.mrf.mxu0
  %v2956 = vpop.f32.mrf.mxu0
  %v2957 = vadd.f32 0.0, %v2956
  %v2958 = vpop.f32.mrf.mxu0
  %2959 = vmatprep.mubr.bf16.mxu0 0
  %2960 = vmatmul.mubr.bf16.gmra.mxu0 %v1583
  %v2961 = vpop.f32.mrf.mxu0
  %v2962 = vadd.f32 0.0, %v2961
  %v2963 = vpop.f32.mrf.mxu0
  %v2964 = vpop.f32.mrf.mxu0
  %v2965 = vadd.f32 0.0, %v2964
  %v2966 = vpop.f32.mrf.mxu0
  %2967 = vmatprep.mubr.bf16.mxu0 0
  %2968 = vmatmul.mubr.bf16.gmra.mxu0 %v1586
  %v2969 = vpop.f32.mrf.mxu0
  %v2970 = vadd.f32 0.0, %v2969
  %v2971 = vpop.f32.mrf.mxu0
  %v2972 = vpop.f32.mrf.mxu0
  %v2973 = vadd.f32 0.0, %v2972
  %v2974 = vpop.f32.mrf.mxu0
  %2975 = vmatprep.mubr.bf16.mxu0 0
  %2976 = vmatmul.mubr.bf16.gmra.mxu0 %v1589
  %v2977 = vpop.f32.mrf.mxu0
  %v2978 = vadd.f32 0.0, %v2977
  %v2979 = vpop.f32.mrf.mxu0
  %v2980 = vpop.f32.mrf.mxu0
  %v2981 = vadd.f32 0.0, %v2980
  %v2982 = vpop.f32.mrf.mxu0
  %2983 = vmatprep.mubr.bf16.mxu0 0
  %2984 = vmatmul.mubr.bf16.gmra.mxu0 %v1592
  %v2985 = vpop.f32.mrf.mxu0
  %v2986 = vadd.f32 0.0, %v2985
  %v2987 = vpop.f32.mrf.mxu0
  %v2988 = vpop.f32.mrf.mxu0
  %v2989 = vadd.f32 0.0, %v2988
  %v2990 = vpop.f32.mrf.mxu0
  %2991 = vmatprep.mubr.bf16.mxu0 0
  %2992 = vmatmul.mubr.bf16.gmra.mxu0 %v1595
  %v2993 = vpop.f32.mrf.mxu0
  %v2994 = vadd.f32 0.0, %v2993
  %v2995 = vpop.f32.mrf.mxu0
  %v2996 = vpop.f32.mrf.mxu0
  %v2997 = vadd.f32 0.0, %v2996
  %v2998 = vpop.f32.mrf.mxu0
  %2999 = vmatprep.mubr.bf16.mxu0 0
  %3000 = vmatmul.mubr.bf16.gmra.mxu0 %v1598
  %v3001 = vpop.f32.mrf.mxu0
  %v3002 = vadd.f32 0.0, %v3001
  %v3003 = vpop.f32.mrf.mxu0
  %v3004 = vpop.f32.mrf.mxu0
  %v3005 = vadd.f32 0.0, %v3004
  %v3006 = vpop.f32.mrf.mxu0
  %3007 = vmatprep.mubr.bf16.mxu0 0
  %3008 = vmatmul.mubr.bf16.gmra.mxu0 %v2722
  %v3009 = vpop.f32.mrf.mxu0
  %v3010 = vadd.f32 0.0, %v3009
  %v3011 = vpop.f32.mrf.mxu0
  %v3012 = vpop.f32.mrf.mxu0
  %v3013 = vadd.f32 0.0, %v3012
  %v3014 = vpop.f32.mrf.mxu0
  %3015 = vdwg.mxu0
  %v3016 = vadd.f32 %v2642, %v2762
  %v3017 = vadd.f32 %v2643, %v2765
  %v3018 = vadd.f32 %v2644, %v2770
  %v3019 = vadd.f32 %v2645, %v2773
  %v3020 = vadd.f32 %v2646, %v2778
  %v3021 = vadd.f32 %v2647, %v2781
  %v3022 = vadd.f32 %v2648, %v2786
  %v3023 = vadd.f32 %v2649, %v2789
  %v3024 = vadd.f32 %v2650, %v2794
  %v3025 = vadd.f32 %v2651, %v2797
  %v3026 = vadd.f32 %v2652, %v2802
  %v3027 = vadd.f32 %v2653, %v2805
  %v3028 = vadd.f32 %v2654, %v2810
  %v3029 = vadd.f32 %v2655, %v2813
  %v3030 = vadd.f32 %v2656, %v2818
  %v3031 = vadd.f32 %v2657, %v2821
  %v3032 = vadd.f32 %v2658, %v2826
  %v3033 = vadd.f32 %v2659, %v2829
  %v3034 = vadd.f32 %v2660, %v2834
  %v3035 = vadd.f32 %v2661, %v2837
  %v3036 = vadd.f32 %v2662, %v2842
  %v3037 = vadd.f32 %v2663, %v2845
  %v3038 = vadd.f32 %v2664, %v2850
  %v3039 = vadd.f32 %v2665, %v2853
  %v3040 = vadd.f32 %v2666, %v2858
  %v3041 = vadd.f32 %v2667, %v2861
  %v3042 = vadd.f32 %v2668, %v2866
  %v3043 = vadd.f32 %v2669, %v2869
  %v3044 = vadd.f32 %v2670, %v2874
  %v3045 = vadd.f32 %v2671, %v2877
  %v3046 = vadd.f32 %v2672, %v2882
  %v3047 = vadd.f32 %v2673, %v2885
  %v3048 = vadd.f32 %v2674, %v2890
  %v3049 = vadd.f32 %v2675, %v2893
  %v3050 = vadd.f32 %v2676, %v2898
  %v3051 = vadd.f32 %v2677, %v2901
  %v3052 = vadd.f32 %v2678, %v2906
  %v3053 = vadd.f32 %v2679, %v2909
  %v3054 = vadd.f32 %v2680, %v2914
  %v3055 = vadd.f32 %v2681, %v2917
  %v3056 = vadd.f32 %v2682, %v2922
  %v3057 = vadd.f32 %v2683, %v2925
  %v3058 = vadd.f32 %v2684, %v2930
  %v3059 = vadd.f32 %v2685, %v2933
  %v3060 = vadd.f32 %v2686, %v2938
  %v3061 = vadd.f32 %v2687, %v2941
  %v3062 = vadd.f32 %v2688, %v2946
  %v3063 = vadd.f32 %v2689, %v2949
  %v3064 = vadd.f32 %v2690, %v2954
  %v3065 = vadd.f32 %v2691, %v2957
  %v3066 = vadd.f32 %v2692, %v2962
  %v3067 = vadd.f32 %v2693, %v2965
  %v3068 = vadd.f32 %v2694, %v2970
  %v3069 = vadd.f32 %v2695, %v2973
  %v3070 = vadd.f32 %v2696, %v2978
  %v3071 = vadd.f32 %v2697, %v2981
  %v3072 = vadd.f32 %v2698, %v2986
  %v3073 = vadd.f32 %v2699, %v2989
  %v3074 = vadd.f32 %v2700, %v2994
  %v3075 = vadd.f32 %v2701, %v2997
  %v3076 = vadd.f32 %v2702, %v3002
  %v3077 = vadd.f32 %v2703, %v3005
  %v3078 = vadd.f32 %v2704, %v3010
  %v3079 = vadd.f32 %v2705, %v3013
  %s3080 = scalar_lea.vmem %s1, 24
  %v3081 = vld [vmem:[%s3080] sm:$0xf]
  %v3083 = vsel %vm595, %v169, 0
  %v3086 = vsel %vm595, %v205, 0
  %v3089 = vsel %vm692, %v3081, 0
  %3091 = vmatprep.subr.bf16.mxu0 0
  %3092 = vmatpush1.bf16.msra.mxu0 0
  %3093 = vmatprep.subr.bf16.mxu0 0
  %3094 = vmatpush1.bf16.msra.mxu0 0
  %3095 = vmatprep.subr.bf16.mxu0 0
  %3096 = vmatpush1.bf16.msra.mxu0 0
  %3097 = vmatprep.subr.bf16.mxu0 0
  %3098 = vmatpush1.bf16.msra.mxu0 0
  %3099 = vmatprep.subr.bf16.mxu0 0
  %3100 = vmatpush1.bf16.msra.mxu0 0
  %3101 = vmatprep.subr.bf16.mxu0 0
  %3102 = vmatpush1.bf16.msra.mxu0 0
  %3103 = vmatprep.subr.bf16.mxu0 0
  %3104 = vmatpush1.bf16.msra.mxu0 0
  %3105 = vmatprep.subr.bf16.mxu0 0
  %3106 = vmatpush1.bf16.msra.mxu0 %v3089
  %3107 = vmatprep.subr.bf16.mxu0 0
  %3108 = vmatpush2.bf16.msra.mxu0 0
  %3109 = vmatprep.subr.bf16.mxu0 0
  %3110 = vmatpush2.bf16.msra.mxu0 0
  %3111 = vmatprep.subr.bf16.mxu0 0
  %3112 = vmatpush2.bf16.msra.mxu0 0
  %3113 = vmatprep.subr.bf16.mxu0 0
  %3114 = vmatpush2.bf16.msra.mxu0 0
  %3115 = vmatprep.subr.bf16.mxu0 0
  %3116 = vmatpush2.bf16.msra.mxu0 0
  %3117 = vmatprep.subr.bf16.mxu0 0
  %3118 = vmatpush2.bf16.msra.mxu0 0
  %3119 = vmatprep.subr.bf16.mxu0 0
  %3120 = vmatpush2.bf16.msra.mxu0 0
  %3121 = vmatprep.subr.bf16.mxu0 0
  %3122 = vmatpush2.bf16.msra.mxu0 0
  %3123 = vmatprep.mubr.bf16.mxu0 0
  %3124 = vmatmul.mubr.bf16.gmra.mxu0 %v989
  %v3125 = vpop.f32.mrf.mxu0
  %v3126 = vadd.f32 0.0, %v3125
  %v3127 = vpop.f32.mrf.mxu0
  %v3128 = vpop.f32.mrf.mxu0
  %v3129 = vadd.f32 0.0, %v3128
  %v3130 = vpop.f32.mrf.mxu0
  %3131 = vmatprep.mubr.bf16.mxu0 0
  %3132 = vmatmul.mubr.bf16.gmra.mxu0 %v991
  %v3133 = vpop.f32.mrf.mxu0
  %v3134 = vadd.f32 0.0, %v3133
  %v3135 = vpop.f32.mrf.mxu0
  %v3136 = vpop.f32.mrf.mxu0
  %v3137 = vadd.f32 0.0, %v3136
  %v3138 = vpop.f32.mrf.mxu0
  %3139 = vmatprep.mubr.bf16.mxu0 0
  %3140 = vmatmul.mubr.bf16.gmra.mxu0 %v993
  %v3141 = vpop.f32.mrf.mxu0
  %v3142 = vadd.f32 0.0, %v3141
  %v3143 = vpop.f32.mrf.mxu0
  %v3144 = vpop.f32.mrf.mxu0
  %v3145 = vadd.f32 0.0, %v3144
  %v3146 = vpop.f32.mrf.mxu0
  %3147 = vmatprep.mubr.bf16.mxu0 0
  %3148 = vmatmul.mubr.bf16.gmra.mxu0 %v995
  %v3149 = vpop.f32.mrf.mxu0
  %v3150 = vadd.f32 0.0, %v3149
  %v3151 = vpop.f32.mrf.mxu0
  %v3152 = vpop.f32.mrf.mxu0
  %v3153 = vadd.f32 0.0, %v3152
  %v3154 = vpop.f32.mrf.mxu0
  %3155 = vmatprep.mubr.bf16.mxu0 0
  %3156 = vmatmul.mubr.bf16.gmra.mxu0 %v997
  %v3157 = vpop.f32.mrf.mxu0
  %v3158 = vadd.f32 0.0, %v3157
  %v3159 = vpop.f32.mrf.mxu0
  %v3160 = vpop.f32.mrf.mxu0
  %v3161 = vadd.f32 0.0, %v3160
  %v3162 = vpop.f32.mrf.mxu0
  %3163 = vmatprep.mubr.bf16.mxu0 0
  %3164 = vmatmul.mubr.bf16.gmra.mxu0 %v999
  %v3165 = vpop.f32.mrf.mxu0
  %v3166 = vadd.f32 0.0, %v3165
  %v3167 = vpop.f32.mrf.mxu0
  %v3168 = vpop.f32.mrf.mxu0
  %v3169 = vadd.f32 0.0, %v3168
  %v3170 = vpop.f32.mrf.mxu0
  %3171 = vmatprep.mubr.bf16.mxu0 0
  %3172 = vmatmul.mubr.bf16.gmra.mxu0 %v1001
  %v3173 = vpop.f32.mrf.mxu0
  %v3174 = vadd.f32 0.0, %v3173
  %v3175 = vpop.f32.mrf.mxu0
  %v3176 = vpop.f32.mrf.mxu0
  %v3177 = vadd.f32 0.0, %v3176
  %v3178 = vpop.f32.mrf.mxu0
  %3179 = vmatprep.mubr.bf16.mxu0 0
  %3180 = vmatmul.mubr.bf16.gmra.mxu0 %v1003
  %v3181 = vpop.f32.mrf.mxu0
  %v3182 = vadd.f32 0.0, %v3181
  %v3183 = vpop.f32.mrf.mxu0
  %v3184 = vpop.f32.mrf.mxu0
  %v3185 = vadd.f32 0.0, %v3184
  %v3186 = vpop.f32.mrf.mxu0
  %3187 = vmatprep.mubr.bf16.mxu0 0
  %3188 = vmatmul.mubr.bf16.gmra.mxu0 %v1005
  %v3189 = vpop.f32.mrf.mxu0
  %v3190 = vadd.f32 0.0, %v3189
  %v3191 = vpop.f32.mrf.mxu0
  %v3192 = vpop.f32.mrf.mxu0
  %v3193 = vadd.f32 0.0, %v3192
  %v3194 = vpop.f32.mrf.mxu0
  %3195 = vmatprep.mubr.bf16.mxu0 0
  %3196 = vmatmul.mubr.bf16.gmra.mxu0 %v1007
  %v3197 = vpop.f32.mrf.mxu0
  %v3198 = vadd.f32 0.0, %v3197
  %v3199 = vpop.f32.mrf.mxu0
  %v3200 = vpop.f32.mrf.mxu0
  %v3201 = vadd.f32 0.0, %v3200
  %v3202 = vpop.f32.mrf.mxu0
  %3203 = vmatprep.mubr.bf16.mxu0 0
  %3204 = vmatmul.mubr.bf16.gmra.mxu0 %v1009
  %v3205 = vpop.f32.mrf.mxu0
  %v3206 = vadd.f32 0.0, %v3205
  %v3207 = vpop.f32.mrf.mxu0
  %v3208 = vpop.f32.mrf.mxu0
  %v3209 = vadd.f32 0.0, %v3208
  %v3210 = vpop.f32.mrf.mxu0
  %3211 = vmatprep.mubr.bf16.mxu0 0
  %3212 = vmatmul.mubr.bf16.gmra.mxu0 %v1011
  %v3213 = vpop.f32.mrf.mxu0
  %v3214 = vadd.f32 0.0, %v3213
  %v3215 = vpop.f32.mrf.mxu0
  %v3216 = vpop.f32.mrf.mxu0
  %v3217 = vadd.f32 0.0, %v3216
  %v3218 = vpop.f32.mrf.mxu0
  %3219 = vmatprep.mubr.bf16.mxu0 0
  %3220 = vmatmul.mubr.bf16.gmra.mxu0 %v1013
  %v3221 = vpop.f32.mrf.mxu0
  %v3222 = vadd.f32 0.0, %v3221
  %v3223 = vpop.f32.mrf.mxu0
  %v3224 = vpop.f32.mrf.mxu0
  %v3225 = vadd.f32 0.0, %v3224
  %v3226 = vpop.f32.mrf.mxu0
  %3227 = vmatprep.mubr.bf16.mxu0 0
  %3228 = vmatmul.mubr.bf16.gmra.mxu0 %v1015
  %v3229 = vpop.f32.mrf.mxu0
  %v3230 = vadd.f32 0.0, %v3229
  %v3231 = vpop.f32.mrf.mxu0
  %v3232 = vpop.f32.mrf.mxu0
  %v3233 = vadd.f32 0.0, %v3232
  %v3234 = vpop.f32.mrf.mxu0
  %3235 = vmatprep.mubr.bf16.mxu0 0
  %3236 = vmatmul.mubr.bf16.gmra.mxu0 %v1959
  %v3237 = vpop.f32.mrf.mxu0
  %v3238 = vadd.f32 0.0, %v3237
  %v3239 = vpop.f32.mrf.mxu0
  %v3240 = vpop.f32.mrf.mxu0
  %v3241 = vadd.f32 0.0, %v3240
  %v3242 = vpop.f32.mrf.mxu0
  %3243 = vmatprep.mubr.bf16.mxu0 0
  %3244 = vmatmul.mubr.bf16.gmra.mxu0 %v3083
  %v3245 = vpop.f32.mrf.mxu0
  %v3246 = vadd.f32 0.0, %v3245
  %v3247 = vpop.f32.mrf.mxu0
  %v3248 = vpop.f32.mrf.mxu0
  %v3249 = vadd.f32 0.0, %v3248
  %v3250 = vpop.f32.mrf.mxu0
  %3251 = vmatprep.mubr.bf16.mxu0 0
  %3252 = vmatmul.mubr.bf16.gmra.mxu0 %v1021
  %v3253 = vpop.f32.mrf.mxu0
  %v3254 = vadd.f32 0.0, %v3253
  %v3255 = vpop.f32.mrf.mxu0
  %v3256 = vpop.f32.mrf.mxu0
  %v3257 = vadd.f32 0.0, %v3256
  %v3258 = vpop.f32.mrf.mxu0
  %3259 = vmatprep.mubr.bf16.mxu0 0
  %3260 = vmatmul.mubr.bf16.gmra.mxu0 %v1023
  %v3261 = vpop.f32.mrf.mxu0
  %v3262 = vadd.f32 0.0, %v3261
  %v3263 = vpop.f32.mrf.mxu0
  %v3264 = vpop.f32.mrf.mxu0
  %v3265 = vadd.f32 0.0, %v3264
  %v3266 = vpop.f32.mrf.mxu0
  %3267 = vmatprep.mubr.bf16.mxu0 0
  %3268 = vmatmul.mubr.bf16.gmra.mxu0 %v1025
  %v3269 = vpop.f32.mrf.mxu0
  %v3270 = vadd.f32 0.0, %v3269
  %v3271 = vpop.f32.mrf.mxu0
  %v3272 = vpop.f32.mrf.mxu0
  %v3273 = vadd.f32 0.0, %v3272
  %v3274 = vpop.f32.mrf.mxu0
  %3275 = vmatprep.mubr.bf16.mxu0 0
  %3276 = vmatmul.mubr.bf16.gmra.mxu0 %v1027
  %v3277 = vpop.f32.mrf.mxu0
  %v3278 = vadd.f32 0.0, %v3277
  %v3279 = vpop.f32.mrf.mxu0
  %v3280 = vpop.f32.mrf.mxu0
  %v3281 = vadd.f32 0.0, %v3280
  %v3282 = vpop.f32.mrf.mxu0
  %3283 = vmatprep.mubr.bf16.mxu0 0
  %3284 = vmatmul.mubr.bf16.gmra.mxu0 %v1029
  %v3285 = vpop.f32.mrf.mxu0
  %v3286 = vadd.f32 0.0, %v3285
  %v3287 = vpop.f32.mrf.mxu0
  %v3288 = vpop.f32.mrf.mxu0
  %v3289 = vadd.f32 0.0, %v3288
  %v3290 = vpop.f32.mrf.mxu0
  %3291 = vmatprep.mubr.bf16.mxu0 0
  %3292 = vmatmul.mubr.bf16.gmra.mxu0 %v1031
  %v3293 = vpop.f32.mrf.mxu0
  %v3294 = vadd.f32 0.0, %v3293
  %v3295 = vpop.f32.mrf.mxu0
  %v3296 = vpop.f32.mrf.mxu0
  %v3297 = vadd.f32 0.0, %v3296
  %v3298 = vpop.f32.mrf.mxu0
  %3299 = vmatprep.mubr.bf16.mxu0 0
  %3300 = vmatmul.mubr.bf16.gmra.mxu0 %v1033
  %v3301 = vpop.f32.mrf.mxu0
  %v3302 = vadd.f32 0.0, %v3301
  %v3303 = vpop.f32.mrf.mxu0
  %v3304 = vpop.f32.mrf.mxu0
  %v3305 = vadd.f32 0.0, %v3304
  %v3306 = vpop.f32.mrf.mxu0
  %3307 = vmatprep.mubr.bf16.mxu0 0
  %3308 = vmatmul.mubr.bf16.gmra.mxu0 %v1035
  %v3309 = vpop.f32.mrf.mxu0
  %v3310 = vadd.f32 0.0, %v3309
  %v3311 = vpop.f32.mrf.mxu0
  %v3312 = vpop.f32.mrf.mxu0
  %v3313 = vadd.f32 0.0, %v3312
  %v3314 = vpop.f32.mrf.mxu0
  %3315 = vmatprep.mubr.bf16.mxu0 0
  %3316 = vmatmul.mubr.bf16.gmra.mxu0 %v1037
  %v3317 = vpop.f32.mrf.mxu0
  %v3318 = vadd.f32 0.0, %v3317
  %v3319 = vpop.f32.mrf.mxu0
  %v3320 = vpop.f32.mrf.mxu0
  %v3321 = vadd.f32 0.0, %v3320
  %v3322 = vpop.f32.mrf.mxu0
  %3323 = vmatprep.mubr.bf16.mxu0 0
  %3324 = vmatmul.mubr.bf16.gmra.mxu0 %v1039
  %v3325 = vpop.f32.mrf.mxu0
  %v3326 = vadd.f32 0.0, %v3325
  %v3327 = vpop.f32.mrf.mxu0
  %v3328 = vpop.f32.mrf.mxu0
  %v3329 = vadd.f32 0.0, %v3328
  %v3330 = vpop.f32.mrf.mxu0
  %3331 = vmatprep.mubr.bf16.mxu0 0
  %3332 = vmatmul.mubr.bf16.gmra.mxu0 %v1041
  %v3333 = vpop.f32.mrf.mxu0
  %v3334 = vadd.f32 0.0, %v3333
  %v3335 = vpop.f32.mrf.mxu0
  %v3336 = vpop.f32.mrf.mxu0
  %v3337 = vadd.f32 0.0, %v3336
  %v3338 = vpop.f32.mrf.mxu0
  %3339 = vmatprep.mubr.bf16.mxu0 0
  %3340 = vmatmul.mubr.bf16.gmra.mxu0 %v1043
  %v3341 = vpop.f32.mrf.mxu0
  %v3342 = vadd.f32 0.0, %v3341
  %v3343 = vpop.f32.mrf.mxu0
  %v3344 = vpop.f32.mrf.mxu0
  %v3345 = vadd.f32 0.0, %v3344
  %v3346 = vpop.f32.mrf.mxu0
  %3347 = vmatprep.mubr.bf16.mxu0 0
  %3348 = vmatmul.mubr.bf16.gmra.mxu0 %v1045
  %v3349 = vpop.f32.mrf.mxu0
  %v3350 = vadd.f32 0.0, %v3349
  %v3351 = vpop.f32.mrf.mxu0
  %v3352 = vpop.f32.mrf.mxu0
  %v3353 = vadd.f32 0.0, %v3352
  %v3354 = vpop.f32.mrf.mxu0
  %3355 = vmatprep.mubr.bf16.mxu0 0
  %3356 = vmatmul.mubr.bf16.gmra.mxu0 %v1047
  %v3357 = vpop.f32.mrf.mxu0
  %v3358 = vadd.f32 0.0, %v3357
  %v3359 = vpop.f32.mrf.mxu0
  %v3360 = vpop.f32.mrf.mxu0
  %v3361 = vadd.f32 0.0, %v3360
  %v3362 = vpop.f32.mrf.mxu0
  %3363 = vmatprep.mubr.bf16.mxu0 0
  %3364 = vmatmul.mubr.bf16.gmra.mxu0 %v1962
  %v3365 = vpop.f32.mrf.mxu0
  %v3366 = vadd.f32 0.0, %v3365
  %v3367 = vpop.f32.mrf.mxu0
  %v3368 = vpop.f32.mrf.mxu0
  %v3369 = vadd.f32 0.0, %v3368
  %v3370 = vpop.f32.mrf.mxu0
  %3371 = vmatprep.mubr.bf16.mxu0 0
  %3372 = vmatmul.mubr.bf16.gmra.mxu0 %v3086
  %v3373 = vpop.f32.mrf.mxu0
  %v3374 = vadd.f32 0.0, %v3373
  %v3375 = vpop.f32.mrf.mxu0
  %v3376 = vpop.f32.mrf.mxu0
  %v3377 = vadd.f32 0.0, %v3376
  %v3378 = vpop.f32.mrf.mxu0
  %3379 = vdwg.mxu0
  %v3380 = vadd.f32 %v3016, %v3126
  %v3381 = vadd.f32 %v3017, %v3129
  %v3382 = vadd.f32 %v3018, %v3134
  %v3383 = vadd.f32 %v3019, %v3137
  %v3384 = vadd.f32 %v3020, %v3142
  %v3385 = vadd.f32 %v3021, %v3145
  %v3386 = vadd.f32 %v3022, %v3150
  %v3387 = vadd.f32 %v3023, %v3153
  %v3388 = vadd.f32 %v3024, %v3158
  %v3389 = vadd.f32 %v3025, %v3161
  %v3390 = vadd.f32 %v3026, %v3166
  %v3391 = vadd.f32 %v3027, %v3169
  %v3392 = vadd.f32 %v3028, %v3174
  %v3393 = vadd.f32 %v3029, %v3177
  %v3394 = vadd.f32 %v3030, %v3182
  %v3395 = vadd.f32 %v3031, %v3185
  %v3396 = vadd.f32 %v3032, %v3190
  %v3397 = vadd.f32 %v3033, %v3193
  %v3398 = vadd.f32 %v3034, %v3198
  %v3399 = vadd.f32 %v3035, %v3201
  %v3400 = vadd.f32 %v3036, %v3206
  %v3401 = vadd.f32 %v3037, %v3209
  %v3402 = vadd.f32 %v3038, %v3214
  %v3403 = vadd.f32 %v3039, %v3217
  %v3404 = vadd.f32 %v3040, %v3222
  %v3405 = vadd.f32 %v3041, %v3225
  %v3406 = vadd.f32 %v3042, %v3230
  %v3407 = vadd.f32 %v3043, %v3233
  %v3408 = vadd.f32 %v3044, %v3238
  %v3409 = vadd.f32 %v3045, %v3241
  %v3410 = vadd.f32 %v3046, %v3246
  %v3411 = vadd.f32 %v3047, %v3249
  %v3412 = vadd.f32 %v3048, %v3254
  %v3413 = vadd.f32 %v3049, %v3257
  %v3414 = vadd.f32 %v3050, %v3262
  %v3415 = vadd.f32 %v3051, %v3265
  %v3416 = vadd.f32 %v3052, %v3270
  %v3417 = vadd.f32 %v3053, %v3273
  %v3418 = vadd.f32 %v3054, %v3278
  %v3419 = vadd.f32 %v3055, %v3281
  %v3420 = vadd.f32 %v3056, %v3286
  %v3421 = vadd.f32 %v3057, %v3289
  %v3422 = vadd.f32 %v3058, %v3294
  %v3423 = vadd.f32 %v3059, %v3297
  %v3424 = vadd.f32 %v3060, %v3302
  %v3425 = vadd.f32 %v3061, %v3305
  %v3426 = vadd.f32 %v3062, %v3310
  %v3427 = vadd.f32 %v3063, %v3313
  %v3428 = vadd.f32 %v3064, %v3318
  %v3429 = vadd.f32 %v3065, %v3321
  %v3430 = vadd.f32 %v3066, %v3326
  %v3431 = vadd.f32 %v3067, %v3329
  %v3432 = vadd.f32 %v3068, %v3334
  %v3433 = vadd.f32 %v3069, %v3337
  %v3434 = vadd.f32 %v3070, %v3342
  %v3435 = vadd.f32 %v3071, %v3345
  %v3436 = vadd.f32 %v3072, %v3350
  %v3437 = vadd.f32 %v3073, %v3353
  %v3438 = vadd.f32 %v3074, %v3358
  %v3439 = vadd.f32 %v3075, %v3361
  %v3440 = vadd.f32 %v3076, %v3366
  %v3441 = vadd.f32 %v3077, %v3369
  %v3442 = vadd.f32 %v3078, %v3374
  %v3443 = vadd.f32 %v3079, %v3377
  %v3444 = vshrl.u32 %v169, 16
  %v3446 = vshll.u32 %v169, 16
  %v3448 = vrot.slane %v3446, 1
  %v3449 = vor.u32 %v3444, %v3448
  %v3451 = vshll.u32 %v170, 16
  %v3453 = vrot.slane %v3451, 1
  %v3454 = vsel %vm208, %v3449, %v3453
  %v3455 = vshrl.u32 %v205, 16
  %v3457 = vshll.u32 %v205, 16
  %v3459 = vrot.slane %v3457, 1
  %v3460 = vor.u32 %v3455, %v3459
  %v3462 = vshll.u32 %v206, 16
  %v3464 = vrot.slane %v3462, 1
  %v3465 = vsel %vm208, %v3460, %v3464
  %s3466 = scalar_lea.vmem %s1, 28
  %v3467 = vld [vmem:[%s3466] sm:$0xf]
  %v3469 = vsel %vm595, %v3454, 0
  %v3472 = vsel %vm595, %v3465, 0
  %v3475 = vsel %vm692, %v3467, 0
  %3477 = vmatprep.subr.bf16.mxu0 0
  %3478 = vmatpush1.bf16.msra.mxu0 0
  %3479 = vmatprep.subr.bf16.mxu0 0
  %3480 = vmatpush1.bf16.msra.mxu0 0
  %3481 = vmatprep.subr.bf16.mxu0 0
  %3482 = vmatpush1.bf16.msra.mxu0 0
  %3483 = vmatprep.subr.bf16.mxu0 0
  %3484 = vmatpush1.bf16.msra.mxu0 0
  %3485 = vmatprep.subr.bf16.mxu0 0
  %3486 = vmatpush1.bf16.msra.mxu0 0
  %3487 = vmatprep.subr.bf16.mxu0 0
  %3488 = vmatpush1.bf16.msra.mxu0 0
  %3489 = vmatprep.subr.bf16.mxu0 0
  %3490 = vmatpush1.bf16.msra.mxu0 0
  %3491 = vmatprep.subr.bf16.mxu0 0
  %3492 = vmatpush1.bf16.msra.mxu0 %v3475
  %3493 = vmatprep.subr.bf16.mxu0 0
  %3494 = vmatpush2.bf16.msra.mxu0 0
  %3495 = vmatprep.subr.bf16.mxu0 0
  %3496 = vmatpush2.bf16.msra.mxu0 0
  %3497 = vmatprep.subr.bf16.mxu0 0
  %3498 = vmatpush2.bf16.msra.mxu0 0
  %3499 = vmatprep.subr.bf16.mxu0 0
  %3500 = vmatpush2.bf16.msra.mxu0 0
  %3501 = vmatprep.subr.bf16.mxu0 0
  %3502 = vmatpush2.bf16.msra.mxu0 0
  %3503 = vmatprep.subr.bf16.mxu0 0
  %3504 = vmatpush2.bf16.msra.mxu0 0
  %3505 = vmatprep.subr.bf16.mxu0 0
  %3506 = vmatpush2.bf16.msra.mxu0 0
  %3507 = vmatprep.subr.bf16.mxu0 0
  %3508 = vmatpush2.bf16.msra.mxu0 0
  %3509 = vmatprep.mubr.bf16.mxu0 0
  %3510 = vmatmul.mubr.bf16.gmra.mxu0 %v603
  %v3511 = vpop.f32.mrf.mxu0
  %v3512 = vadd.f32 0.0, %v3511
  %v3513 = vpop.f32.mrf.mxu0
  %v3514 = vpop.f32.mrf.mxu0
  %v3515 = vadd.f32 0.0, %v3514
  %v3516 = vpop.f32.mrf.mxu0
  %3517 = vmatprep.mubr.bf16.mxu0 0
  %3518 = vmatmul.mubr.bf16.gmra.mxu0 %v606
  %v3519 = vpop.f32.mrf.mxu0
  %v3520 = vadd.f32 0.0, %v3519
  %v3521 = vpop.f32.mrf.mxu0
  %v3522 = vpop.f32.mrf.mxu0
  %v3523 = vadd.f32 0.0, %v3522
  %v3524 = vpop.f32.mrf.mxu0
  %3525 = vmatprep.mubr.bf16.mxu0 0
  %3526 = vmatmul.mubr.bf16.gmra.mxu0 %v609
  %v3527 = vpop.f32.mrf.mxu0
  %v3528 = vadd.f32 0.0, %v3527
  %v3529 = vpop.f32.mrf.mxu0
  %v3530 = vpop.f32.mrf.mxu0
  %v3531 = vadd.f32 0.0, %v3530
  %v3532 = vpop.f32.mrf.mxu0
  %3533 = vmatprep.mubr.bf16.mxu0 0
  %3534 = vmatmul.mubr.bf16.gmra.mxu0 %v612
  %v3535 = vpop.f32.mrf.mxu0
  %v3536 = vadd.f32 0.0, %v3535
  %v3537 = vpop.f32.mrf.mxu0
  %v3538 = vpop.f32.mrf.mxu0
  %v3539 = vadd.f32 0.0, %v3538
  %v3540 = vpop.f32.mrf.mxu0
  %3541 = vmatprep.mubr.bf16.mxu0 0
  %3542 = vmatmul.mubr.bf16.gmra.mxu0 %v615
  %v3543 = vpop.f32.mrf.mxu0
  %v3544 = vadd.f32 0.0, %v3543
  %v3545 = vpop.f32.mrf.mxu0
  %v3546 = vpop.f32.mrf.mxu0
  %v3547 = vadd.f32 0.0, %v3546
  %v3548 = vpop.f32.mrf.mxu0
  %3549 = vmatprep.mubr.bf16.mxu0 0
  %3550 = vmatmul.mubr.bf16.gmra.mxu0 %v618
  %v3551 = vpop.f32.mrf.mxu0
  %v3552 = vadd.f32 0.0, %v3551
  %v3553 = vpop.f32.mrf.mxu0
  %v3554 = vpop.f32.mrf.mxu0
  %v3555 = vadd.f32 0.0, %v3554
  %v3556 = vpop.f32.mrf.mxu0
  %3557 = vmatprep.mubr.bf16.mxu0 0
  %3558 = vmatmul.mubr.bf16.gmra.mxu0 %v621
  %v3559 = vpop.f32.mrf.mxu0
  %v3560 = vadd.f32 0.0, %v3559
  %v3561 = vpop.f32.mrf.mxu0
  %v3562 = vpop.f32.mrf.mxu0
  %v3563 = vadd.f32 0.0, %v3562
  %v3564 = vpop.f32.mrf.mxu0
  %3565 = vmatprep.mubr.bf16.mxu0 0
  %3566 = vmatmul.mubr.bf16.gmra.mxu0 %v624
  %v3567 = vpop.f32.mrf.mxu0
  %v3568 = vadd.f32 0.0, %v3567
  %v3569 = vpop.f32.mrf.mxu0
  %v3570 = vpop.f32.mrf.mxu0
  %v3571 = vadd.f32 0.0, %v3570
  %v3572 = vpop.f32.mrf.mxu0
  %3573 = vmatprep.mubr.bf16.mxu0 0
  %3574 = vmatmul.mubr.bf16.gmra.mxu0 %v627
  %v3575 = vpop.f32.mrf.mxu0
  %v3576 = vadd.f32 0.0, %v3575
  %v3577 = vpop.f32.mrf.mxu0
  %v3578 = vpop.f32.mrf.mxu0
  %v3579 = vadd.f32 0.0, %v3578
  %v3580 = vpop.f32.mrf.mxu0
  %3581 = vmatprep.mubr.bf16.mxu0 0
  %3582 = vmatmul.mubr.bf16.gmra.mxu0 %v630
  %v3583 = vpop.f32.mrf.mxu0
  %v3584 = vadd.f32 0.0, %v3583
  %v3585 = vpop.f32.mrf.mxu0
  %v3586 = vpop.f32.mrf.mxu0
  %v3587 = vadd.f32 0.0, %v3586
  %v3588 = vpop.f32.mrf.mxu0
  %3589 = vmatprep.mubr.bf16.mxu0 0
  %3590 = vmatmul.mubr.bf16.gmra.mxu0 %v633
  %v3591 = vpop.f32.mrf.mxu0
  %v3592 = vadd.f32 0.0, %v3591
  %v3593 = vpop.f32.mrf.mxu0
  %v3594 = vpop.f32.mrf.mxu0
  %v3595 = vadd.f32 0.0, %v3594
  %v3596 = vpop.f32.mrf.mxu0
  %3597 = vmatprep.mubr.bf16.mxu0 0
  %3598 = vmatmul.mubr.bf16.gmra.mxu0 %v636
  %v3599 = vpop.f32.mrf.mxu0
  %v3600 = vadd.f32 0.0, %v3599
  %v3601 = vpop.f32.mrf.mxu0
  %v3602 = vpop.f32.mrf.mxu0
  %v3603 = vadd.f32 0.0, %v3602
  %v3604 = vpop.f32.mrf.mxu0
  %3605 = vmatprep.mubr.bf16.mxu0 0
  %3606 = vmatmul.mubr.bf16.gmra.mxu0 %v639
  %v3607 = vpop.f32.mrf.mxu0
  %v3608 = vadd.f32 0.0, %v3607
  %v3609 = vpop.f32.mrf.mxu0
  %v3610 = vpop.f32.mrf.mxu0
  %v3611 = vadd.f32 0.0, %v3610
  %v3612 = vpop.f32.mrf.mxu0
  %3613 = vmatprep.mubr.bf16.mxu0 0
  %3614 = vmatmul.mubr.bf16.gmra.mxu0 %v642
  %v3615 = vpop.f32.mrf.mxu0
  %v3616 = vadd.f32 0.0, %v3615
  %v3617 = vpop.f32.mrf.mxu0
  %v3618 = vpop.f32.mrf.mxu0
  %v3619 = vadd.f32 0.0, %v3618
  %v3620 = vpop.f32.mrf.mxu0
  %3621 = vmatprep.mubr.bf16.mxu0 0
  %3622 = vmatmul.mubr.bf16.gmra.mxu0 %v2345
  %v3623 = vpop.f32.mrf.mxu0
  %v3624 = vadd.f32 0.0, %v3623
  %v3625 = vpop.f32.mrf.mxu0
  %v3626 = vpop.f32.mrf.mxu0
  %v3627 = vadd.f32 0.0, %v3626
  %v3628 = vpop.f32.mrf.mxu0
  %3629 = vmatprep.mubr.bf16.mxu0 0
  %3630 = vmatmul.mubr.bf16.gmra.mxu0 %v3469
  %v3631 = vpop.f32.mrf.mxu0
  %v3632 = vadd.f32 0.0, %v3631
  %v3633 = vpop.f32.mrf.mxu0
  %v3634 = vpop.f32.mrf.mxu0
  %v3635 = vadd.f32 0.0, %v3634
  %v3636 = vpop.f32.mrf.mxu0
  %3637 = vmatprep.mubr.bf16.mxu0 0
  %3638 = vmatmul.mubr.bf16.gmra.mxu0 %v651
  %v3639 = vpop.f32.mrf.mxu0
  %v3640 = vadd.f32 0.0, %v3639
  %v3641 = vpop.f32.mrf.mxu0
  %v3642 = vpop.f32.mrf.mxu0
  %v3643 = vadd.f32 0.0, %v3642
  %v3644 = vpop.f32.mrf.mxu0
  %3645 = vmatprep.mubr.bf16.mxu0 0
  %3646 = vmatmul.mubr.bf16.gmra.mxu0 %v654
  %v3647 = vpop.f32.mrf.mxu0
  %v3648 = vadd.f32 0.0, %v3647
  %v3649 = vpop.f32.mrf.mxu0
  %v3650 = vpop.f32.mrf.mxu0
  %v3651 = vadd.f32 0.0, %v3650
  %v3652 = vpop.f32.mrf.mxu0
  %3653 = vmatprep.mubr.bf16.mxu0 0
  %3654 = vmatmul.mubr.bf16.gmra.mxu0 %v657
  %v3655 = vpop.f32.mrf.mxu0
  %v3656 = vadd.f32 0.0, %v3655
  %v3657 = vpop.f32.mrf.mxu0
  %v3658 = vpop.f32.mrf.mxu0
  %v3659 = vadd.f32 0.0, %v3658
  %v3660 = vpop.f32.mrf.mxu0
  %3661 = vmatprep.mubr.bf16.mxu0 0
  %3662 = vmatmul.mubr.bf16.gmra.mxu0 %v660
  %v3663 = vpop.f32.mrf.mxu0
  %v3664 = vadd.f32 0.0, %v3663
  %v3665 = vpop.f32.mrf.mxu0
  %v3666 = vpop.f32.mrf.mxu0
  %v3667 = vadd.f32 0.0, %v3666
  %v3668 = vpop.f32.mrf.mxu0
  %3669 = vmatprep.mubr.bf16.mxu0 0
  %3670 = vmatmul.mubr.bf16.gmra.mxu0 %v663
  %v3671 = vpop.f32.mrf.mxu0
  %v3672 = vadd.f32 0.0, %v3671
  %v3673 = vpop.f32.mrf.mxu0
  %v3674 = vpop.f32.mrf.mxu0
  %v3675 = vadd.f32 0.0, %v3674
  %v3676 = vpop.f32.mrf.mxu0
  %3677 = vmatprep.mubr.bf16.mxu0 0
  %3678 = vmatmul.mubr.bf16.gmra.mxu0 %v666
  %v3679 = vpop.f32.mrf.mxu0
  %v3680 = vadd.f32 0.0, %v3679
  %v3681 = vpop.f32.mrf.mxu0
  %v3682 = vpop.f32.mrf.mxu0
  %v3683 = vadd.f32 0.0, %v3682
  %v3684 = vpop.f32.mrf.mxu0
  %3685 = vmatprep.mubr.bf16.mxu0 0
  %3686 = vmatmul.mubr.bf16.gmra.mxu0 %v669
  %v3687 = vpop.f32.mrf.mxu0
  %v3688 = vadd.f32 0.0, %v3687
  %v3689 = vpop.f32.mrf.mxu0
  %v3690 = vpop.f32.mrf.mxu0
  %v3691 = vadd.f32 0.0, %v3690
  %v3692 = vpop.f32.mrf.mxu0
  %3693 = vmatprep.mubr.bf16.mxu0 0
  %3694 = vmatmul.mubr.bf16.gmra.mxu0 %v672
  %v3695 = vpop.f32.mrf.mxu0
  %v3696 = vadd.f32 0.0, %v3695
  %v3697 = vpop.f32.mrf.mxu0
  %v3698 = vpop.f32.mrf.mxu0
  %v3699 = vadd.f32 0.0, %v3698
  %v3700 = vpop.f32.mrf.mxu0
  %3701 = vmatprep.mubr.bf16.mxu0 0
  %3702 = vmatmul.mubr.bf16.gmra.mxu0 %v675
  %v3703 = vpop.f32.mrf.mxu0
  %v3704 = vadd.f32 0.0, %v3703
  %v3705 = vpop.f32.mrf.mxu0
  %v3706 = vpop.f32.mrf.mxu0
  %v3707 = vadd.f32 0.0, %v3706
  %v3708 = vpop.f32.mrf.mxu0
  %3709 = vmatprep.mubr.bf16.mxu0 0
  %3710 = vmatmul.mubr.bf16.gmra.mxu0 %v678
  %v3711 = vpop.f32.mrf.mxu0
  %v3712 = vadd.f32 0.0, %v3711
  %v3713 = vpop.f32.mrf.mxu0
  %v3714 = vpop.f32.mrf.mxu0
  %v3715 = vadd.f32 0.0, %v3714
  %v3716 = vpop.f32.mrf.mxu0
  %3717 = vmatprep.mubr.bf16.mxu0 0
  %3718 = vmatmul.mubr.bf16.gmra.mxu0 %v681
  %v3719 = vpop.f32.mrf.mxu0
  %v3720 = vadd.f32 0.0, %v3719
  %v3721 = vpop.f32.mrf.mxu0
  %v3722 = vpop.f32.mrf.mxu0
  %v3723 = vadd.f32 0.0, %v3722
  %v3724 = vpop.f32.mrf.mxu0
  %3725 = vmatprep.mubr.bf16.mxu0 0
  %3726 = vmatmul.mubr.bf16.gmra.mxu0 %v684
  %v3727 = vpop.f32.mrf.mxu0
  %v3728 = vadd.f32 0.0, %v3727
  %v3729 = vpop.f32.mrf.mxu0
  %v3730 = vpop.f32.mrf.mxu0
  %v3731 = vadd.f32 0.0, %v3730
  %v3732 = vpop.f32.mrf.mxu0
  %3733 = vmatprep.mubr.bf16.mxu0 0
  %3734 = vmatmul.mubr.bf16.gmra.mxu0 %v687
  %v3735 = vpop.f32.mrf.mxu0
  %v3736 = vadd.f32 0.0, %v3735
  %v3737 = vpop.f32.mrf.mxu0
  %v3738 = vpop.f32.mrf.mxu0
  %v3739 = vadd.f32 0.0, %v3738
  %v3740 = vpop.f32.mrf.mxu0
  %3741 = vmatprep.mubr.bf16.mxu0 0
  %3742 = vmatmul.mubr.bf16.gmra.mxu0 %v690
  %v3743 = vpop.f32.mrf.mxu0
  %v3744 = vadd.f32 0.0, %v3743
  %v3745 = vpop.f32.mrf.mxu0
  %v3746 = vpop.f32.mrf.mxu0
  %v3747 = vadd.f32 0.0, %v3746
  %v3748 = vpop.f32.mrf.mxu0
  %3749 = vmatprep.mubr.bf16.mxu0 0
  %3750 = vmatmul.mubr.bf16.gmra.mxu0 %v2348
  %v3751 = vpop.f32.mrf.mxu0
  %v3752 = vadd.f32 0.0, %v3751
  %v3753 = vpop.f32.mrf.mxu0
  %v3754 = vpop.f32.mrf.mxu0
  %v3755 = vadd.f32 0.0, %v3754
  %v3756 = vpop.f32.mrf.mxu0
  %3757 = vmatprep.mubr.bf16.mxu0 0
  %3758 = vmatmul.mubr.bf16.gmra.mxu0 %v3472
  %v3759 = vpop.f32.mrf.mxu0
  %v3760 = vadd.f32 0.0, %v3759
  %v3761 = vpop.f32.mrf.mxu0
  %v3762 = vpop.f32.mrf.mxu0
  %v3763 = vadd.f32 0.0, %v3762
  %v3764 = vpop.f32.mrf.mxu0
  %3765 = vdwg.mxu0
  %v3766 = vadd.f32 %v3380, %v3512
  %v3767 = vadd.f32 %v3381, %v3515
  %v3768 = vadd.f32 %v3382, %v3520
  %v3769 = vadd.f32 %v3383, %v3523
  %v3770 = vadd.f32 %v3384, %v3528
  %v3771 = vadd.f32 %v3385, %v3531
  %v3772 = vadd.f32 %v3386, %v3536
  %v3773 = vadd.f32 %v3387, %v3539
  %v3774 = vadd.f32 %v3388, %v3544
  %v3775 = vadd.f32 %v3389, %v3547
  %v3776 = vadd.f32 %v3390, %v3552
  %v3777 = vadd.f32 %v3391, %v3555
  %v3778 = vadd.f32 %v3392, %v3560
  %v3779 = vadd.f32 %v3393, %v3563
  %v3780 = vadd.f32 %v3394, %v3568
  %v3781 = vadd.f32 %v3395, %v3571
  %v3782 = vadd.f32 %v3396, %v3576
  %v3783 = vadd.f32 %v3397, %v3579
  %v3784 = vadd.f32 %v3398, %v3584
  %v3785 = vadd.f32 %v3399, %v3587
  %v3786 = vadd.f32 %v3400, %v3592
  %v3787 = vadd.f32 %v3401, %v3595
  %v3788 = vadd.f32 %v3402, %v3600
  %v3789 = vadd.f32 %v3403, %v3603
  %v3790 = vadd.f32 %v3404, %v3608
  %v3791 = vadd.f32 %v3405, %v3611
  %v3792 = vadd.f32 %v3406, %v3616
  %v3793 = vadd.f32 %v3407, %v3619
  %v3794 = vadd.f32 %v3408, %v3624
  %v3795 = vadd.f32 %v3409, %v3627
  %v3796 = vadd.f32 %v3410, %v3632
  %v3797 = vadd.f32 %v3411, %v3635
  %v3798 = vadd.f32 %v3412, %v3640
  %v3799 = vadd.f32 %v3413, %v3643
  %v3800 = vadd.f32 %v3414, %v3648
  %v3801 = vadd.f32 %v3415, %v3651
  %v3802 = vadd.f32 %v3416, %v3656
  %v3803 = vadd.f32 %v3417, %v3659
  %v3804 = vadd.f32 %v3418, %v3664
  %v3805 = vadd.f32 %v3419, %v3667
  %v3806 = vadd.f32 %v3420, %v3672
  %v3807 = vadd.f32 %v3421, %v3675
  %v3808 = vadd.f32 %v3422, %v3680
  %v3809 = vadd.f32 %v3423, %v3683
  %v3810 = vadd.f32 %v3424, %v3688
  %v3811 = vadd.f32 %v3425, %v3691
  %v3812 = vadd.f32 %v3426, %v3696
  %v3813 = vadd.f32 %v3427, %v3699
  %v3814 = vadd.f32 %v3428, %v3704
  %v3815 = vadd.f32 %v3429, %v3707
  %v3816 = vadd.f32 %v3430, %v3712
  %v3817 = vadd.f32 %v3431, %v3715
  %v3818 = vadd.f32 %v3432, %v3720
  %v3819 = vadd.f32 %v3433, %v3723
  %v3820 = vadd.f32 %v3434, %v3728
  %v3821 = vadd.f32 %v3435, %v3731
  %v3822 = vadd.f32 %v3436, %v3736
  %v3823 = vadd.f32 %v3437, %v3739
  %v3824 = vadd.f32 %v3438, %v3744
  %v3825 = vadd.f32 %v3439, %v3747
  %v3826 = vadd.f32 %v3440, %v3752
  %v3827 = vadd.f32 %v3441, %v3755
  %v3828 = vadd.f32 %v3442, %v3760
  %v3829 = vadd.f32 %v3443, %v3763
  %v3834 = vrot.slane %v169, 1
  %v3835 = vrot.slane %v170, 1
  %v3836 = vsel %vm1405, %v3834, %v3835
  %v3837 = vrot.slane %v205, 1
  %v3838 = vrot.slane %v206, 1
  %v3839 = vsel %vm1405, %v3837, %v3838
  %s3840 = scalar_lea.vmem %s1, 32
  %v3841 = vld [vmem:[%s3840] sm:$0xf]
  %v3843 = vsel %vm595, %v3836, 0
  %v3846 = vsel %vm595, %v3839, 0
  %v3849 = vsel %vm692, %v3841, 0
  %3851 = vmatprep.subr.bf16.mxu0 0
  %3852 = vmatpush1.bf16.msra.mxu0 0
  %3853 = vmatprep.subr.bf16.mxu0 0
  %3854 = vmatpush1.bf16.msra.mxu0 0
  %3855 = vmatprep.subr.bf16.mxu0 0
  %3856 = vmatpush1.bf16.msra.mxu0 0
  %3857 = vmatprep.subr.bf16.mxu0 0
  %3858 = vmatpush1.bf16.msra.mxu0 0
  %3859 = vmatprep.subr.bf16.mxu0 0
  %3860 = vmatpush1.bf16.msra.mxu0 0
  %3861 = vmatprep.subr.bf16.mxu0 0
  %3862 = vmatpush1.bf16.msra.mxu0 0
  %3863 = vmatprep.subr.bf16.mxu0 0
  %3864 = vmatpush1.bf16.msra.mxu0 0
  %3865 = vmatprep.subr.bf16.mxu0 0
  %3866 = vmatpush1.bf16.msra.mxu0 %v3849
  %3867 = vmatprep.subr.bf16.mxu0 0
  %3868 = vmatpush2.bf16.msra.mxu0 0
  %3869 = vmatprep.subr.bf16.mxu0 0
  %3870 = vmatpush2.bf16.msra.mxu0 0
  %3871 = vmatprep.subr.bf16.mxu0 0
  %3872 = vmatpush2.bf16.msra.mxu0 0
  %3873 = vmatprep.subr.bf16.mxu0 0
  %3874 = vmatpush2.bf16.msra.mxu0 0
  %3875 = vmatprep.subr.bf16.mxu0 0
  %3876 = vmatpush2.bf16.msra.mxu0 0
  %3877 = vmatprep.subr.bf16.mxu0 0
  %3878 = vmatpush2.bf16.msra.mxu0 0
  %3879 = vmatprep.subr.bf16.mxu0 0
  %3880 = vmatpush2.bf16.msra.mxu0 0
  %3881 = vmatprep.subr.bf16.mxu0 0
  %3882 = vmatpush2.bf16.msra.mxu0 0
  %3883 = vmatprep.mubr.bf16.mxu0 0
  %3884 = vmatmul.mubr.bf16.gmra.mxu0 %v1511
  %v3885 = vpop.f32.mrf.mxu0
  %v3886 = vadd.f32 0.0, %v3885
  %v3887 = vpop.f32.mrf.mxu0
  %v3888 = vpop.f32.mrf.mxu0
  %v3889 = vadd.f32 0.0, %v3888
  %v3890 = vpop.f32.mrf.mxu0
  %3891 = vmatprep.mubr.bf16.mxu0 0
  %3892 = vmatmul.mubr.bf16.gmra.mxu0 %v1514
  %v3893 = vpop.f32.mrf.mxu0
  %v3894 = vadd.f32 0.0, %v3893
  %v3895 = vpop.f32.mrf.mxu0
  %v3896 = vpop.f32.mrf.mxu0
  %v3897 = vadd.f32 0.0, %v3896
  %v3898 = vpop.f32.mrf.mxu0
  %3899 = vmatprep.mubr.bf16.mxu0 0
  %3900 = vmatmul.mubr.bf16.gmra.mxu0 %v1517
  %v3901 = vpop.f32.mrf.mxu0
  %v3902 = vadd.f32 0.0, %v3901
  %v3903 = vpop.f32.mrf.mxu0
  %v3904 = vpop.f32.mrf.mxu0
  %v3905 = vadd.f32 0.0, %v3904
  %v3906 = vpop.f32.mrf.mxu0
  %3907 = vmatprep.mubr.bf16.mxu0 0
  %3908 = vmatmul.mubr.bf16.gmra.mxu0 %v1520
  %v3909 = vpop.f32.mrf.mxu0
  %v3910 = vadd.f32 0.0, %v3909
  %v3911 = vpop.f32.mrf.mxu0
  %v3912 = vpop.f32.mrf.mxu0
  %v3913 = vadd.f32 0.0, %v3912
  %v3914 = vpop.f32.mrf.mxu0
  %3915 = vmatprep.mubr.bf16.mxu0 0
  %3916 = vmatmul.mubr.bf16.gmra.mxu0 %v1523
  %v3917 = vpop.f32.mrf.mxu0
  %v3918 = vadd.f32 0.0, %v3917
  %v3919 = vpop.f32.mrf.mxu0
  %v3920 = vpop.f32.mrf.mxu0
  %v3921 = vadd.f32 0.0, %v3920
  %v3922 = vpop.f32.mrf.mxu0
  %3923 = vmatprep.mubr.bf16.mxu0 0
  %3924 = vmatmul.mubr.bf16.gmra.mxu0 %v1526
  %v3925 = vpop.f32.mrf.mxu0
  %v3926 = vadd.f32 0.0, %v3925
  %v3927 = vpop.f32.mrf.mxu0
  %v3928 = vpop.f32.mrf.mxu0
  %v3929 = vadd.f32 0.0, %v3928
  %v3930 = vpop.f32.mrf.mxu0
  %3931 = vmatprep.mubr.bf16.mxu0 0
  %3932 = vmatmul.mubr.bf16.gmra.mxu0 %v1529
  %v3933 = vpop.f32.mrf.mxu0
  %v3934 = vadd.f32 0.0, %v3933
  %v3935 = vpop.f32.mrf.mxu0
  %v3936 = vpop.f32.mrf.mxu0
  %v3937 = vadd.f32 0.0, %v3936
  %v3938 = vpop.f32.mrf.mxu0
  %3939 = vmatprep.mubr.bf16.mxu0 0
  %3940 = vmatmul.mubr.bf16.gmra.mxu0 %v1532
  %v3941 = vpop.f32.mrf.mxu0
  %v3942 = vadd.f32 0.0, %v3941
  %v3943 = vpop.f32.mrf.mxu0
  %v3944 = vpop.f32.mrf.mxu0
  %v3945 = vadd.f32 0.0, %v3944
  %v3946 = vpop.f32.mrf.mxu0
  %3947 = vmatprep.mubr.bf16.mxu0 0
  %3948 = vmatmul.mubr.bf16.gmra.mxu0 %v1535
  %v3949 = vpop.f32.mrf.mxu0
  %v3950 = vadd.f32 0.0, %v3949
  %v3951 = vpop.f32.mrf.mxu0
  %v3952 = vpop.f32.mrf.mxu0
  %v3953 = vadd.f32 0.0, %v3952
  %v3954 = vpop.f32.mrf.mxu0
  %3955 = vmatprep.mubr.bf16.mxu0 0
  %3956 = vmatmul.mubr.bf16.gmra.mxu0 %v1538
  %v3957 = vpop.f32.mrf.mxu0
  %v3958 = vadd.f32 0.0, %v3957
  %v3959 = vpop.f32.mrf.mxu0
  %v3960 = vpop.f32.mrf.mxu0
  %v3961 = vadd.f32 0.0, %v3960
  %v3962 = vpop.f32.mrf.mxu0
  %3963 = vmatprep.mubr.bf16.mxu0 0
  %3964 = vmatmul.mubr.bf16.gmra.mxu0 %v1541
  %v3965 = vpop.f32.mrf.mxu0
  %v3966 = vadd.f32 0.0, %v3965
  %v3967 = vpop.f32.mrf.mxu0
  %v3968 = vpop.f32.mrf.mxu0
  %v3969 = vadd.f32 0.0, %v3968
  %v3970 = vpop.f32.mrf.mxu0
  %3971 = vmatprep.mubr.bf16.mxu0 0
  %3972 = vmatmul.mubr.bf16.gmra.mxu0 %v1544
  %v3973 = vpop.f32.mrf.mxu0
  %v3974 = vadd.f32 0.0, %v3973
  %v3975 = vpop.f32.mrf.mxu0
  %v3976 = vpop.f32.mrf.mxu0
  %v3977 = vadd.f32 0.0, %v3976
  %v3978 = vpop.f32.mrf.mxu0
  %3979 = vmatprep.mubr.bf16.mxu0 0
  %3980 = vmatmul.mubr.bf16.gmra.mxu0 %v1547
  %v3981 = vpop.f32.mrf.mxu0
  %v3982 = vadd.f32 0.0, %v3981
  %v3983 = vpop.f32.mrf.mxu0
  %v3984 = vpop.f32.mrf.mxu0
  %v3985 = vadd.f32 0.0, %v3984
  %v3986 = vpop.f32.mrf.mxu0
  %3987 = vmatprep.mubr.bf16.mxu0 0
  %3988 = vmatmul.mubr.bf16.gmra.mxu0 %v1550
  %v3989 = vpop.f32.mrf.mxu0
  %v3990 = vadd.f32 0.0, %v3989
  %v3991 = vpop.f32.mrf.mxu0
  %v3992 = vpop.f32.mrf.mxu0
  %v3993 = vadd.f32 0.0, %v3992
  %v3994 = vpop.f32.mrf.mxu0
  %3995 = vmatprep.mubr.bf16.mxu0 0
  %3996 = vmatmul.mubr.bf16.gmra.mxu0 %v2719
  %v3997 = vpop.f32.mrf.mxu0
  %v3998 = vadd.f32 0.0, %v3997
  %v3999 = vpop.f32.mrf.mxu0
  %v4000 = vpop.f32.mrf.mxu0
  %v4001 = vadd.f32 0.0, %v4000
  %v4002 = vpop.f32.mrf.mxu0
  %4003 = vmatprep.mubr.bf16.mxu0 0
  %4004 = vmatmul.mubr.bf16.gmra.mxu0 %v3843
  %v4005 = vpop.f32.mrf.mxu0
  %v4006 = vadd.f32 0.0, %v4005
  %v4007 = vpop.f32.mrf.mxu0
  %v4008 = vpop.f32.mrf.mxu0
  %v4009 = vadd.f32 0.0, %v4008
  %v4010 = vpop.f32.mrf.mxu0
  %4011 = vmatprep.mubr.bf16.mxu0 0
  %4012 = vmatmul.mubr.bf16.gmra.mxu0 %v1559
  %v4013 = vpop.f32.mrf.mxu0
  %v4014 = vadd.f32 0.0, %v4013
  %v4015 = vpop.f32.mrf.mxu0
  %v4016 = vpop.f32.mrf.mxu0
  %v4017 = vadd.f32 0.0, %v4016
  %v4018 = vpop.f32.mrf.mxu0
  %4019 = vmatprep.mubr.bf16.mxu0 0
  %4020 = vmatmul.mubr.bf16.gmra.mxu0 %v1562
  %v4021 = vpop.f32.mrf.mxu0
  %v4022 = vadd.f32 0.0, %v4021
  %v4023 = vpop.f32.mrf.mxu0
  %v4024 = vpop.f32.mrf.mxu0
  %v4025 = vadd.f32 0.0, %v4024
  %v4026 = vpop.f32.mrf.mxu0
  %4027 = vmatprep.mubr.bf16.mxu0 0
  %4028 = vmatmul.mubr.bf16.gmra.mxu0 %v1565
  %v4029 = vpop.f32.mrf.mxu0
  %v4030 = vadd.f32 0.0, %v4029
  %v4031 = vpop.f32.mrf.mxu0
  %v4032 = vpop.f32.mrf.mxu0
  %v4033 = vadd.f32 0.0, %v4032
  %v4034 = vpop.f32.mrf.mxu0
  %4035 = vmatprep.mubr.bf16.mxu0 0
  %4036 = vmatmul.mubr.bf16.gmra.mxu0 %v1568
  %v4037 = vpop.f32.mrf.mxu0
  %v4038 = vadd.f32 0.0, %v4037
  %v4039 = vpop.f32.mrf.mxu0
  %v4040 = vpop.f32.mrf.mxu0
  %v4041 = vadd.f32 0.0, %v4040
  %v4042 = vpop.f32.mrf.mxu0
  %4043 = vmatprep.mubr.bf16.mxu0 0
  %4044 = vmatmul.mubr.bf16.gmra.mxu0 %v1571
  %v4045 = vpop.f32.mrf.mxu0
  %v4046 = vadd.f32 0.0, %v4045
  %v4047 = vpop.f32.mrf.mxu0
  %v4048 = vpop.f32.mrf.mxu0
  %v4049 = vadd.f32 0.0, %v4048
  %v4050 = vpop.f32.mrf.mxu0
  %4051 = vmatprep.mubr.bf16.mxu0 0
  %4052 = vmatmul.mubr.bf16.gmra.mxu0 %v1574
  %v4053 = vpop.f32.mrf.mxu0
  %v4054 = vadd.f32 0.0, %v4053
  %v4055 = vpop.f32.mrf.mxu0
  %v4056 = vpop.f32.mrf.mxu0
  %v4057 = vadd.f32 0.0, %v4056
  %v4058 = vpop.f32.mrf.mxu0
  %4059 = vmatprep.mubr.bf16.mxu0 0
  %4060 = vmatmul.mubr.bf16.gmra.mxu0 %v1577
  %v4061 = vpop.f32.mrf.mxu0
  %v4062 = vadd.f32 0.0, %v4061
  %v4063 = vpop.f32.mrf.mxu0
  %v4064 = vpop.f32.mrf.mxu0
  %v4065 = vadd.f32 0.0, %v4064
  %v4066 = vpop.f32.mrf.mxu0
  %4067 = vmatprep.mubr.bf16.mxu0 0
  %4068 = vmatmul.mubr.bf16.gmra.mxu0 %v1580
  %v4069 = vpop.f32.mrf.mxu0
  %v4070 = vadd.f32 0.0, %v4069
  %v4071 = vpop.f32.mrf.mxu0
  %v4072 = vpop.f32.mrf.mxu0
  %v4073 = vadd.f32 0.0, %v4072
  %v4074 = vpop.f32.mrf.mxu0
  %4075 = vmatprep.mubr.bf16.mxu0 0
  %4076 = vmatmul.mubr.bf16.gmra.mxu0 %v1583
  %v4077 = vpop.f32.mrf.mxu0
  %v4078 = vadd.f32 0.0, %v4077
  %v4079 = vpop.f32.mrf.mxu0
  %v4080 = vpop.f32.mrf.mxu0
  %v4081 = vadd.f32 0.0, %v4080
  %v4082 = vpop.f32.mrf.mxu0
  %4083 = vmatprep.mubr.bf16.mxu0 0
  %4084 = vmatmul.mubr.bf16.gmra.mxu0 %v1586
  %v4085 = vpop.f32.mrf.mxu0
  %v4086 = vadd.f32 0.0, %v4085
  %v4087 = vpop.f32.mrf.mxu0
  %v4088 = vpop.f32.mrf.mxu0
  %v4089 = vadd.f32 0.0, %v4088
  %v4090 = vpop.f32.mrf.mxu0
  %4091 = vmatprep.mubr.bf16.mxu0 0
  %4092 = vmatmul.mubr.bf16.gmra.mxu0 %v1589
  %v4093 = vpop.f32.mrf.mxu0
  %v4094 = vadd.f32 0.0, %v4093
  %v4095 = vpop.f32.mrf.mxu0
  %v4096 = vpop.f32.mrf.mxu0
  %v4097 = vadd.f32 0.0, %v4096
  %v4098 = vpop.f32.mrf.mxu0
  %4099 = vmatprep.mubr.bf16.mxu0 0
  %4100 = vmatmul.mubr.bf16.gmra.mxu0 %v1592
  %v4101 = vpop.f32.mrf.mxu0
  %v4102 = vadd.f32 0.0, %v4101
  %v4103 = vpop.f32.mrf.mxu0
  %v4104 = vpop.f32.mrf.mxu0
  %v4105 = vadd.f32 0.0, %v4104
  %v4106 = vpop.f32.mrf.mxu0
  %4107 = vmatprep.mubr.bf16.mxu0 0
  %4108 = vmatmul.mubr.bf16.gmra.mxu0 %v1595
  %v4109 = vpop.f32.mrf.mxu0
  %v4110 = vadd.f32 0.0, %v4109
  %v4111 = vpop.f32.mrf.mxu0
  %v4112 = vpop.f32.mrf.mxu0
  %v4113 = vadd.f32 0.0, %v4112
  %v4114 = vpop.f32.mrf.mxu0
  %4115 = vmatprep.mubr.bf16.mxu0 0
  %4116 = vmatmul.mubr.bf16.gmra.mxu0 %v1598
  %v4117 = vpop.f32.mrf.mxu0
  %v4118 = vadd.f32 0.0, %v4117
  %v4119 = vpop.f32.mrf.mxu0
  %v4120 = vpop.f32.mrf.mxu0
  %v4121 = vadd.f32 0.0, %v4120
  %v4122 = vpop.f32.mrf.mxu0
  %4123 = vmatprep.mubr.bf16.mxu0 0
  %4124 = vmatmul.mubr.bf16.gmra.mxu0 %v2722
  %v4125 = vpop.f32.mrf.mxu0
  %v4126 = vadd.f32 0.0, %v4125
  %v4127 = vpop.f32.mrf.mxu0
  %v4128 = vpop.f32.mrf.mxu0
  %v4129 = vadd.f32 0.0, %v4128
  %v4130 = vpop.f32.mrf.mxu0
  %4131 = vmatprep.mubr.bf16.mxu0 0
  %4132 = vmatmul.mubr.bf16.gmra.mxu0 %v3846
  %v4133 = vpop.f32.mrf.mxu0
  %v4134 = vadd.f32 0.0, %v4133
  %v4135 = vpop.f32.mrf.mxu0
  %v4136 = vpop.f32.mrf.mxu0
  %v4137 = vadd.f32 0.0, %v4136
  %v4138 = vpop.f32.mrf.mxu0
  %4139 = vdwg.mxu0
  %v4140 = vadd.f32 %v3766, %v3886
  %v4141 = vadd.f32 %v3767, %v3889
  %v4142 = vadd.f32 %v3768, %v3894
  %v4143 = vadd.f32 %v3769, %v3897
  %v4144 = vadd.f32 %v3770, %v3902
  %v4145 = vadd.f32 %v3771, %v3905
  %v4146 = vadd.f32 %v3772, %v3910
  %v4147 = vadd.f32 %v3773, %v3913
  %v4148 = vadd.f32 %v3774, %v3918
  %v4149 = vadd.f32 %v3775, %v3921
  %v4150 = vadd.f32 %v3776, %v3926
  %v4151 = vadd.f32 %v3777, %v3929
  %v4152 = vadd.f32 %v3778, %v3934
  %v4153 = vadd.f32 %v3779, %v3937
  %v4154 = vadd.f32 %v3780, %v3942
  %v4155 = vadd.f32 %v3781, %v3945
  %v4156 = vadd.f32 %v3782, %v3950
  %v4157 = vadd.f32 %v3783, %v3953
  %v4158 = vadd.f32 %v3784, %v3958
  %v4159 = vadd.f32 %v3785, %v3961
  %v4160 = vadd.f32 %v3786, %v3966
  %v4161 = vadd.f32 %v3787, %v3969
  %v4162 = vadd.f32 %v3788, %v3974
  %v4163 = vadd.f32 %v3789, %v3977
  %v4164 = vadd.f32 %v3790, %v3982
  %v4165 = vadd.f32 %v3791, %v3985
  %v4166 = vadd.f32 %v3792, %v3990
  %v4167 = vadd.f32 %v3793, %v3993
  %v4168 = vadd.f32 %v3794, %v3998
  %v4169 = vadd.f32 %v3795, %v4001
  %v4170 = vadd.f32 %v3796, %v4006
  %v4171 = vadd.f32 %v3797, %v4009
  %v4172 = vadd.f32 %v3798, %v4014
  %v4173 = vadd.f32 %v3799, %v4017
  %v4174 = vadd.f32 %v3800, %v4022
  %v4175 = vadd.f32 %v3801, %v4025
  %v4176 = vadd.f32 %v3802, %v4030
  %v4177 = vadd.f32 %v3803, %v4033
  %v4178 = vadd.f32 %v3804, %v4038
  %v4179 = vadd.f32 %v3805, %v4041
  %v4180 = vadd.f32 %v3806, %v4046
  %v4181 = vadd.f32 %v3807, %v4049
  %v4182 = vadd.f32 %v3808, %v4054
  %v4183 = vadd.f32 %v3809, %v4057
  %v4184 = vadd.f32 %v3810, %v4062
  %v4185 = vadd.f32 %v3811, %v4065
  %v4186 = vadd.f32 %v3812, %v4070
  %v4187 = vadd.f32 %v3813, %v4073
  %v4188 = vadd.f32 %v3814, %v4078
  %v4189 = vadd.f32 %v3815, %v4081
  %v4190 = vadd.f32 %v3816, %v4086
  %v4191 = vadd.f32 %v3817, %v4089
  %v4192 = vadd.f32 %v3818, %v4094
  %v4193 = vadd.f32 %v3819, %v4097
  %v4194 = vadd.f32 %v3820, %v4102
  %v4195 = vadd.f32 %v3821, %v4105
  %v4196 = vadd.f32 %v3822, %v4110
  %v4197 = vadd.f32 %v3823, %v4113
  %v4198 = vadd.f32 %v3824, %v4118
  %v4199 = vadd.f32 %v3825, %v4121
  %v4200 = vadd.f32 %v3826, %v4126
  %v4201 = vadd.f32 %v3827, %v4129
  %v4202 = vadd.f32 %v3828, %v4134
  %v4203 = vadd.f32 %v3829, %v4137
  %v4204 = vld [vmem:[%s2] sm:$0x1]
  %v4205 = vld [vmem:[%s3] sm:$0x1]
  %v4206 = vadd.f32 %v4140, %v4141
  %v4207 = vadd.f32 %v4206, %v4142
  %v4208 = vadd.f32 %v4207, %v4143
  %v4209 = vadd.f32 %v4208, %v4144
  %v4210 = vadd.f32 %v4209, %v4145
  %v4211 = vadd.f32 %v4210, %v4146
  %v4212 = vadd.f32 %v4211, %v4147
  %v4213 = vadd.f32 %v4212, %v4148
  %v4214 = vadd.f32 %v4213, %v4149
  %v4215 = vadd.f32 %v4214, %v4150
  %v4216 = vadd.f32 %v4215, %v4151
  %v4217 = vadd.f32 %v4216, %v4152
  %v4218 = vadd.f32 %v4217, %v4153
  %v4219 = vadd.f32 %v4218, %v4154
  %v4220 = vadd.f32 %v4219, %v4155
  %v4221 = vadd.f32 %v4220, %v4156
  %v4222 = vadd.f32 %v4221, %v4157
  %v4223 = vadd.f32 %v4222, %v4158
  %v4224 = vadd.f32 %v4223, %v4159
  %v4225 = vadd.f32 %v4224, %v4160
  %v4226 = vadd.f32 %v4225, %v4161
  %v4227 = vadd.f32 %v4226, %v4162
  %v4228 = vadd.f32 %v4227, %v4163
  %v4229 = vadd.f32 %v4228, %v4164
  %v4230 = vadd.f32 %v4229, %v4165
  %v4231 = vadd.f32 %v4230, %v4166
  %v4232 = vadd.f32 %v4231, %v4167
  %v4233 = vadd.f32 %v4232, %v4168
  %v4234 = vadd.f32 %v4233, %v4169
  %v4235 = vadd.f32 %v4234, %v4170
  %v4236 = vadd.f32 %v4235, %v4171
  %v4237 = vadd.f32 %v4236, %v4172
  %v4238 = vadd.f32 %v4237, %v4173
  %v4239 = vadd.f32 %v4238, %v4174
  %v4240 = vadd.f32 %v4239, %v4175
  %v4241 = vadd.f32 %v4240, %v4176
  %v4242 = vadd.f32 %v4241, %v4177
  %v4243 = vadd.f32 %v4242, %v4178
  %v4244 = vadd.f32 %v4243, %v4179
  %v4245 = vadd.f32 %v4244, %v4180
  %v4246 = vadd.f32 %v4245, %v4181
  %v4247 = vadd.f32 %v4246, %v4182
  %v4248 = vadd.f32 %v4247, %v4183
  %v4249 = vadd.f32 %v4248, %v4184
  %v4250 = vadd.f32 %v4249, %v4185
  %v4251 = vadd.f32 %v4250, %v4186
  %v4252 = vadd.f32 %v4251, %v4187
  %v4253 = vadd.f32 %v4252, %v4188
  %v4254 = vadd.f32 %v4253, %v4189
  %v4255 = vadd.f32 %v4254, %v4190
  %v4256 = vadd.f32 %v4255, %v4191
  %v4257 = vadd.f32 %v4256, %v4192
  %v4258 = vadd.f32 %v4257, %v4193
  %v4259 = vadd.f32 %v4258, %v4194
  %v4260 = vadd.f32 %v4259, %v4195
  %v4261 = vadd.f32 %v4260, %v4196
  %v4262 = vadd.f32 %v4261, %v4197
  %v4263 = vadd.f32 %v4262, %v4198
  %v4264 = vadd.f32 %v4263, %v4199
  %v4265 = vadd.f32 %v4264, %v4200
  %v4266 = vadd.f32 %v4265, %v4201
  %v4267 = vadd.f32 %v4266, %v4202
  %v4268 = vadd.f32 %v4267, %v4203
  %v4269 = vrot.slane %v4268, 4
  %v4270 = vadd.f32 %v4268, %v4269
  %v4271 = vrot.slane %v4270, 2
  %v4272 = vadd.f32 %v4270, %v4271
  %v4273 = vrot.slane %v4272, 1
  %v4274 = vadd.f32 %v4272, %v4273
  %v4275 = vmul.f32 %v4274, 0.001953125
  %v4276 = vsub.f32 %v4140, %v4275
  %v4277 = vsub.f32 %v4141, %v4275
  %v4278 = vsub.f32 %v4142, %v4275
  %v4279 = vsub.f32 %v4143, %v4275
  %v4280 = vsub.f32 %v4144, %v4275
  %v4281 = vsub.f32 %v4145, %v4275
  %v4282 = vsub.f32 %v4146, %v4275
  %v4283 = vsub.f32 %v4147, %v4275
  %v4284 = vsub.f32 %v4148, %v4275
  %v4285 = vsub.f32 %v4149, %v4275
  %v4286 = vsub.f32 %v4150, %v4275
  %v4287 = vsub.f32 %v4151, %v4275
  %v4288 = vsub.f32 %v4152, %v4275
  %v4289 = vsub.f32 %v4153, %v4275
  %v4290 = vsub.f32 %v4154, %v4275
  %v4291 = vsub.f32 %v4155, %v4275
  %v4292 = vsub.f32 %v4156, %v4275
  %v4293 = vsub.f32 %v4157, %v4275
  %v4294 = vsub.f32 %v4158, %v4275
  %v4295 = vsub.f32 %v4159, %v4275
  %v4296 = vsub.f32 %v4160, %v4275
  %v4297 = vsub.f32 %v4161, %v4275
  %v4298 = vsub.f32 %v4162, %v4275
  %v4299 = vsub.f32 %v4163, %v4275
  %v4300 = vsub.f32 %v4164, %v4275
  %v4301 = vsub.f32 %v4165, %v4275
  %v4302 = vsub.f32 %v4166, %v4275
  %v4303 = vsub.f32 %v4167, %v4275
  %v4304 = vsub.f32 %v4168, %v4275
  %v4305 = vsub.f32 %v4169, %v4275
  %v4306 = vsub.f32 %v4170, %v4275
  %v4307 = vsub.f32 %v4171, %v4275
  %v4308 = vsub.f32 %v4172, %v4275
  %v4309 = vsub.f32 %v4173, %v4275
  %v4310 = vsub.f32 %v4174, %v4275
  %v4311 = vsub.f32 %v4175, %v4275
  %v4312 = vsub.f32 %v4176, %v4275
  %v4313 = vsub.f32 %v4177, %v4275
  %v4314 = vsub.f32 %v4178, %v4275
  %v4315 = vsub.f32 %v4179, %v4275
  %v4316 = vsub.f32 %v4180, %v4275
  %v4317 = vsub.f32 %v4181, %v4275
  %v4318 = vsub.f32 %v4182, %v4275
  %v4319 = vsub.f32 %v4183, %v4275
  %v4320 = vsub.f32 %v4184, %v4275
  %v4321 = vsub.f32 %v4185, %v4275
  %v4322 = vsub.f32 %v4186, %v4275
  %v4323 = vsub.f32 %v4187, %v4275
  %v4324 = vsub.f32 %v4188, %v4275
  %v4325 = vsub.f32 %v4189, %v4275
  %v4326 = vsub.f32 %v4190, %v4275
  %v4327 = vsub.f32 %v4191, %v4275
  %v4328 = vsub.f32 %v4192, %v4275
  %v4329 = vsub.f32 %v4193, %v4275
  %v4330 = vsub.f32 %v4194, %v4275
  %v4331 = vsub.f32 %v4195, %v4275
  %v4332 = vsub.f32 %v4196, %v4275
  %v4333 = vsub.f32 %v4197, %v4275
  %v4334 = vsub.f32 %v4198, %v4275
  %v4335 = vsub.f32 %v4199, %v4275
  %v4336 = vsub.f32 %v4200, %v4275
  %v4337 = vsub.f32 %v4201, %v4275
  %v4338 = vsub.f32 %v4202, %v4275
  %v4339 = vsub.f32 %v4203, %v4275
  %v4340 = vmul.f32 %v4276, %v4276
  %v4341 = vmul.f32 %v4277, %v4277
  %v4342 = vmul.f32 %v4278, %v4278
  %v4343 = vmul.f32 %v4279, %v4279
  %v4344 = vmul.f32 %v4280, %v4280
  %v4345 = vmul.f32 %v4281, %v4281
  %v4346 = vmul.f32 %v4282, %v4282
  %v4347 = vmul.f32 %v4283, %v4283
  %v4348 = vmul.f32 %v4284, %v4284
  %v4349 = vmul.f32 %v4285, %v4285
  %v4350 = vmul.f32 %v4286, %v4286
  %v4351 = vmul.f32 %v4287, %v4287
  %v4352 = vmul.f32 %v4288, %v4288
  %v4353 = vmul.f32 %v4289, %v4289
  %v4354 = vmul.f32 %v4290, %v4290
  %v4355 = vmul.f32 %v4291, %v4291
  %v4356 = vmul.f32 %v4292, %v4292
  %v4357 = vmul.f32 %v4293, %v4293
  %v4358 = vmul.f32 %v4294, %v4294
  %v4359 = vmul.f32 %v4295, %v4295
  %v4360 = vmul.f32 %v4296, %v4296
  %v4361 = vmul.f32 %v4297, %v4297
  %v4362 = vmul.f32 %v4298, %v4298
  %v4363 = vmul.f32 %v4299, %v4299
  %v4364 = vmul.f32 %v4300, %v4300
  %v4365 = vmul.f32 %v4301, %v4301
  %v4366 = vmul.f32 %v4302, %v4302
  %v4367 = vmul.f32 %v4303, %v4303
  %v4368 = vmul.f32 %v4304, %v4304
  %v4369 = vmul.f32 %v4305, %v4305
  %v4370 = vmul.f32 %v4306, %v4306
  %v4371 = vmul.f32 %v4307, %v4307
  %v4372 = vmul.f32 %v4308, %v4308
  %v4373 = vmul.f32 %v4309, %v4309
  %v4374 = vmul.f32 %v4310, %v4310
  %v4375 = vmul.f32 %v4311, %v4311
  %v4376 = vmul.f32 %v4312, %v4312
  %v4377 = vmul.f32 %v4313, %v4313
  %v4378 = vmul.f32 %v4314, %v4314
  %v4379 = vmul.f32 %v4315, %v4315
  %v4380 = vmul.f32 %v4316, %v4316
  %v4381 = vmul.f32 %v4317, %v4317
  %v4382 = vmul.f32 %v4318, %v4318
  %v4383 = vmul.f32 %v4319, %v4319
  %v4384 = vmul.f32 %v4320, %v4320
  %v4385 = vmul.f32 %v4321, %v4321
  %v4386 = vmul.f32 %v4322, %v4322
  %v4387 = vmul.f32 %v4323, %v4323
  %v4388 = vmul.f32 %v4324, %v4324
  %v4389 = vmul.f32 %v4325, %v4325
  %v4390 = vmul.f32 %v4326, %v4326
  %v4391 = vmul.f32 %v4327, %v4327
  %v4392 = vmul.f32 %v4328, %v4328
  %v4393 = vmul.f32 %v4329, %v4329
  %v4394 = vmul.f32 %v4330, %v4330
  %v4395 = vmul.f32 %v4331, %v4331
  %v4396 = vmul.f32 %v4332, %v4332
  %v4397 = vmul.f32 %v4333, %v4333
  %v4398 = vmul.f32 %v4334, %v4334
  %v4399 = vmul.f32 %v4335, %v4335
  %v4400 = vmul.f32 %v4336, %v4336
  %v4401 = vmul.f32 %v4337, %v4337
  %v4402 = vmul.f32 %v4338, %v4338
  %v4403 = vmul.f32 %v4339, %v4339
  %v4404 = vadd.f32 %v4340, %v4341
  %v4405 = vadd.f32 %v4404, %v4342
  %v4406 = vadd.f32 %v4405, %v4343
  %v4407 = vadd.f32 %v4406, %v4344
  %v4408 = vadd.f32 %v4407, %v4345
  %v4409 = vadd.f32 %v4408, %v4346
  %v4410 = vadd.f32 %v4409, %v4347
  %v4411 = vadd.f32 %v4410, %v4348
  %v4412 = vadd.f32 %v4411, %v4349
  %v4413 = vadd.f32 %v4412, %v4350
  %v4414 = vadd.f32 %v4413, %v4351
  %v4415 = vadd.f32 %v4414, %v4352
  %v4416 = vadd.f32 %v4415, %v4353
  %v4417 = vadd.f32 %v4416, %v4354
  %v4418 = vadd.f32 %v4417, %v4355
  %v4419 = vadd.f32 %v4418, %v4356
  %v4420 = vadd.f32 %v4419, %v4357
  %v4421 = vadd.f32 %v4420, %v4358
  %v4422 = vadd.f32 %v4421, %v4359
  %v4423 = vadd.f32 %v4422, %v4360
  %v4424 = vadd.f32 %v4423, %v4361
  %v4425 = vadd.f32 %v4424, %v4362
  %v4426 = vadd.f32 %v4425, %v4363
  %v4427 = vadd.f32 %v4426, %v4364
  %v4428 = vadd.f32 %v4427, %v4365
  %v4429 = vadd.f32 %v4428, %v4366
  %v4430 = vadd.f32 %v4429, %v4367
  %v4431 = vadd.f32 %v4430, %v4368
  %v4432 = vadd.f32 %v4431, %v4369
  %v4433 = vadd.f32 %v4432, %v4370
  %v4434 = vadd.f32 %v4433, %v4371
  %v4435 = vadd.f32 %v4434, %v4372
  %v4436 = vadd.f32 %v4435, %v4373
  %v4437 = vadd.f32 %v4436, %v4374
  %v4438 = vadd.f32 %v4437, %v4375
  %v4439 = vadd.f32 %v4438, %v4376
  %v4440 = vadd.f32 %v4439, %v4377
  %v4441 = vadd.f32 %v4440, %v4378
  %v4442 = vadd.f32 %v4441, %v4379
  %v4443 = vadd.f32 %v4442, %v4380
  %v4444 = vadd.f32 %v4443, %v4381
  %v4445 = vadd.f32 %v4444, %v4382
  %v4446 = vadd.f32 %v4445, %v4383
  %v4447 = vadd.f32 %v4446, %v4384
  %v4448 = vadd.f32 %v4447, %v4385
  %v4449 = vadd.f32 %v4448, %v4386
  %v4450 = vadd.f32 %v4449, %v4387
  %v4451 = vadd.f32 %v4450, %v4388
  %v4452 = vadd.f32 %v4451, %v4389
  %v4453 = vadd.f32 %v4452, %v4390
  %v4454 = vadd.f32 %v4453, %v4391
  %v4455 = vadd.f32 %v4454, %v4392
  %v4456 = vadd.f32 %v4455, %v4393
  %v4457 = vadd.f32 %v4456, %v4394
  %v4458 = vadd.f32 %v4457, %v4395
  %v4459 = vadd.f32 %v4458, %v4396
  %v4460 = vadd.f32 %v4459, %v4397
  %v4461 = vadd.f32 %v4460, %v4398
  %v4462 = vadd.f32 %v4461, %v4399
  %v4463 = vadd.f32 %v4462, %v4400
  %v4464 = vadd.f32 %v4463, %v4401
  %v4465 = vadd.f32 %v4464, %v4402
  %v4466 = vadd.f32 %v4465, %v4403
  %v4467 = vrot.slane %v4466, 4
  %v4468 = vadd.f32 %v4466, %v4467
  %v4469 = vrot.slane %v4468, 2
  %v4470 = vadd.f32 %v4468, %v4469
  %v4471 = vrot.slane %v4470, 1
  %v4472 = vadd.f32 %v4470, %v4471
  %v4473 = vmul.f32 %v4472, 0.001953125
  %v4474 = vadd.f32 %v4473, 1e-05
  %v4475 = vrsqrt.pop %v4474
  %v4476 = vmul.f32 %v4276, %v4475
  %v4477 = vmul.f32 %v4277, %v4475
  %v4478 = vmul.f32 %v4278, %v4475
  %v4479 = vmul.f32 %v4279, %v4475
  %v4480 = vmul.f32 %v4280, %v4475
  %v4481 = vmul.f32 %v4281, %v4475
  %v4482 = vmul.f32 %v4282, %v4475
  %v4483 = vmul.f32 %v4283, %v4475
  %v4484 = vmul.f32 %v4284, %v4475
  %v4485 = vmul.f32 %v4285, %v4475
  %v4486 = vmul.f32 %v4286, %v4475
  %v4487 = vmul.f32 %v4287, %v4475
  %v4488 = vmul.f32 %v4288, %v4475
  %v4489 = vmul.f32 %v4289, %v4475
  %v4490 = vmul.f32 %v4290, %v4475
  %v4491 = vmul.f32 %v4291, %v4475
  %v4492 = vmul.f32 %v4292, %v4475
  %v4493 = vmul.f32 %v4293, %v4475
  %v4494 = vmul.f32 %v4294, %v4475
  %v4495 = vmul.f32 %v4295, %v4475
  %v4496 = vmul.f32 %v4296, %v4475
  %v4497 = vmul.f32 %v4297, %v4475
  %v4498 = vmul.f32 %v4298, %v4475
  %v4499 = vmul.f32 %v4299, %v4475
  %v4500 = vmul.f32 %v4300, %v4475
  %v4501 = vmul.f32 %v4301, %v4475
  %v4502 = vmul.f32 %v4302, %v4475
  %v4503 = vmul.f32 %v4303, %v4475
  %v4504 = vmul.f32 %v4304, %v4475
  %v4505 = vmul.f32 %v4305, %v4475
  %v4506 = vmul.f32 %v4306, %v4475
  %v4507 = vmul.f32 %v4307, %v4475
  %v4508 = vmul.f32 %v4308, %v4475
  %v4509 = vmul.f32 %v4309, %v4475
  %v4510 = vmul.f32 %v4310, %v4475
  %v4511 = vmul.f32 %v4311, %v4475
  %v4512 = vmul.f32 %v4312, %v4475
  %v4513 = vmul.f32 %v4313, %v4475
  %v4514 = vmul.f32 %v4314, %v4475
  %v4515 = vmul.f32 %v4315, %v4475
  %v4516 = vmul.f32 %v4316, %v4475
  %v4517 = vmul.f32 %v4317, %v4475
  %v4518 = vmul.f32 %v4318, %v4475
  %v4519 = vmul.f32 %v4319, %v4475
  %v4520 = vmul.f32 %v4320, %v4475
  %v4521 = vmul.f32 %v4321, %v4475
  %v4522 = vmul.f32 %v4322, %v4475
  %v4523 = vmul.f32 %v4323, %v4475
  %v4524 = vmul.f32 %v4324, %v4475
  %v4525 = vmul.f32 %v4325, %v4475
  %v4526 = vmul.f32 %v4326, %v4475
  %v4527 = vmul.f32 %v4327, %v4475
  %v4528 = vmul.f32 %v4328, %v4475
  %v4529 = vmul.f32 %v4329, %v4475
  %v4530 = vmul.f32 %v4330, %v4475
  %v4531 = vmul.f32 %v4331, %v4475
  %v4532 = vmul.f32 %v4332, %v4475
  %v4533 = vmul.f32 %v4333, %v4475
  %v4534 = vmul.f32 %v4334, %v4475
  %v4535 = vmul.f32 %v4335, %v4475
  %v4536 = vmul.f32 %v4336, %v4475
  %v4537 = vmul.f32 %v4337, %v4475
  %v4538 = vmul.f32 %v4338, %v4475
  %v4539 = vmul.f32 %v4339, %v4475
  %v4541 = vlaneseq
  %v4542 = vshrl.u32 %v4541, 7
  %v4543 = vsub.s32 0, %v4542
  %v4544 = vrot.slane %v4204, %v4543
  %v4546 = vmul.f32 %v4476, %v4544
  %v4547 = vmul.f32 %v4477, %v4544
  %v4548 = vmul.f32 %v4478, %v4544
  %v4549 = vmul.f32 %v4479, %v4544
  %v4550 = vmul.f32 %v4480, %v4544
  %v4551 = vmul.f32 %v4481, %v4544
  %v4552 = vmul.f32 %v4482, %v4544
  %v4553 = vmul.f32 %v4483, %v4544
  %v4554 = vmul.f32 %v4484, %v4544
  %v4555 = vmul.f32 %v4485, %v4544
  %v4556 = vmul.f32 %v4486, %v4544
  %v4557 = vmul.f32 %v4487, %v4544
  %v4558 = vmul.f32 %v4488, %v4544
  %v4559 = vmul.f32 %v4489, %v4544
  %v4560 = vmul.f32 %v4490, %v4544
  %v4561 = vmul.f32 %v4491, %v4544
  %v4562 = vmul.f32 %v4492, %v4544
  %v4563 = vmul.f32 %v4493, %v4544
  %v4564 = vmul.f32 %v4494, %v4544
  %v4565 = vmul.f32 %v4495, %v4544
  %v4566 = vmul.f32 %v4496, %v4544
  %v4567 = vmul.f32 %v4497, %v4544
  %v4568 = vmul.f32 %v4498, %v4544
  %v4569 = vmul.f32 %v4499, %v4544
  %v4570 = vmul.f32 %v4500, %v4544
  %v4571 = vmul.f32 %v4501, %v4544
  %v4572 = vmul.f32 %v4502, %v4544
  %v4573 = vmul.f32 %v4503, %v4544
  %v4574 = vmul.f32 %v4504, %v4544
  %v4575 = vmul.f32 %v4505, %v4544
  %v4576 = vmul.f32 %v4506, %v4544
  %v4577 = vmul.f32 %v4507, %v4544
  %v4578 = vmul.f32 %v4508, %v4544
  %v4579 = vmul.f32 %v4509, %v4544
  %v4580 = vmul.f32 %v4510, %v4544
  %v4581 = vmul.f32 %v4511, %v4544
  %v4582 = vmul.f32 %v4512, %v4544
  %v4583 = vmul.f32 %v4513, %v4544
  %v4584 = vmul.f32 %v4514, %v4544
  %v4585 = vmul.f32 %v4515, %v4544
  %v4586 = vmul.f32 %v4516, %v4544
  %v4587 = vmul.f32 %v4517, %v4544
  %v4588 = vmul.f32 %v4518, %v4544
  %v4589 = vmul.f32 %v4519, %v4544
  %v4590 = vmul.f32 %v4520, %v4544
  %v4591 = vmul.f32 %v4521, %v4544
  %v4592 = vmul.f32 %v4522, %v4544
  %v4593 = vmul.f32 %v4523, %v4544
  %v4594 = vmul.f32 %v4524, %v4544
  %v4595 = vmul.f32 %v4525, %v4544
  %v4596 = vmul.f32 %v4526, %v4544
  %v4597 = vmul.f32 %v4527, %v4544
  %v4598 = vmul.f32 %v4528, %v4544
  %v4599 = vmul.f32 %v4529, %v4544
  %v4600 = vmul.f32 %v4530, %v4544
  %v4601 = vmul.f32 %v4531, %v4544
  %v4602 = vmul.f32 %v4532, %v4544
  %v4603 = vmul.f32 %v4533, %v4544
  %v4604 = vmul.f32 %v4534, %v4544
  %v4605 = vmul.f32 %v4535, %v4544
  %v4606 = vmul.f32 %v4536, %v4544
  %v4607 = vmul.f32 %v4537, %v4544
  %v4608 = vmul.f32 %v4538, %v4544
  %v4609 = vmul.f32 %v4539, %v4544
  %v4611 = vlaneseq
  %v4612 = vshrl.u32 %v4611, 7
  %v4613 = vsub.s32 0, %v4612
  %v4614 = vrot.slane %v4205, %v4613
  %v4616 = vadd.f32 %v4546, %v4614
  %v4617 = vadd.f32 %v4547, %v4614
  %v4618 = vadd.f32 %v4548, %v4614
  %v4619 = vadd.f32 %v4549, %v4614
  %v4620 = vadd.f32 %v4550, %v4614
  %v4621 = vadd.f32 %v4551, %v4614
  %v4622 = vadd.f32 %v4552, %v4614
  %v4623 = vadd.f32 %v4553, %v4614
  %v4624 = vadd.f32 %v4554, %v4614
  %v4625 = vadd.f32 %v4555, %v4614
  %v4626 = vadd.f32 %v4556, %v4614
  %v4627 = vadd.f32 %v4557, %v4614
  %v4628 = vadd.f32 %v4558, %v4614
  %v4629 = vadd.f32 %v4559, %v4614
  %v4630 = vadd.f32 %v4560, %v4614
  %v4631 = vadd.f32 %v4561, %v4614
  %v4632 = vadd.f32 %v4562, %v4614
  %v4633 = vadd.f32 %v4563, %v4614
  %v4634 = vadd.f32 %v4564, %v4614
  %v4635 = vadd.f32 %v4565, %v4614
  %v4636 = vadd.f32 %v4566, %v4614
  %v4637 = vadd.f32 %v4567, %v4614
  %v4638 = vadd.f32 %v4568, %v4614
  %v4639 = vadd.f32 %v4569, %v4614
  %v4640 = vadd.f32 %v4570, %v4614
  %v4641 = vadd.f32 %v4571, %v4614
  %v4642 = vadd.f32 %v4572, %v4614
  %v4643 = vadd.f32 %v4573, %v4614
  %v4644 = vadd.f32 %v4574, %v4614
  %v4645 = vadd.f32 %v4575, %v4614
  %v4646 = vadd.f32 %v4576, %v4614
  %v4647 = vadd.f32 %v4577, %v4614
  %v4648 = vadd.f32 %v4578, %v4614
  %v4649 = vadd.f32 %v4579, %v4614
  %v4650 = vadd.f32 %v4580, %v4614
  %v4651 = vadd.f32 %v4581, %v4614
  %v4652 = vadd.f32 %v4582, %v4614
  %v4653 = vadd.f32 %v4583, %v4614
  %v4654 = vadd.f32 %v4584, %v4614
  %v4655 = vadd.f32 %v4585, %v4614
  %v4656 = vadd.f32 %v4586, %v4614
  %v4657 = vadd.f32 %v4587, %v4614
  %v4658 = vadd.f32 %v4588, %v4614
  %v4659 = vadd.f32 %v4589, %v4614
  %v4660 = vadd.f32 %v4590, %v4614
  %v4661 = vadd.f32 %v4591, %v4614
  %v4662 = vadd.f32 %v4592, %v4614
  %v4663 = vadd.f32 %v4593, %v4614
  %v4664 = vadd.f32 %v4594, %v4614
  %v4665 = vadd.f32 %v4595, %v4614
  %v4666 = vadd.f32 %v4596, %v4614
  %v4667 = vadd.f32 %v4597, %v4614
  %v4668 = vadd.f32 %v4598, %v4614
  %v4669 = vadd.f32 %v4599, %v4614
  %v4670 = vadd.f32 %v4600, %v4614
  %v4671 = vadd.f32 %v4601, %v4614
  %v4672 = vadd.f32 %v4602, %v4614
  %v4673 = vadd.f32 %v4603, %v4614
  %v4674 = vadd.f32 %v4604, %v4614
  %v4675 = vadd.f32 %v4605, %v4614
  %v4676 = vadd.f32 %v4606, %v4614
  %v4677 = vadd.f32 %v4607, %v4614
  %v4678 = vadd.f32 %v4608, %v4614
  %v4679 = vadd.f32 %v4609, %v4614
  %v4680 = vmax.f32 %v4616, 0.0
  %v4681 = vmax.f32 %v4617, 0.0
  %v4682 = vmax.f32 %v4618, 0.0
  %v4683 = vmax.f32 %v4619, 0.0
  %v4684 = vmax.f32 %v4620, 0.0
  %v4685 = vmax.f32 %v4621, 0.0
  %v4686 = vmax.f32 %v4622, 0.0
  %v4687 = vmax.f32 %v4623, 0.0
  %v4688 = vmax.f32 %v4624, 0.0
  %v4689 = vmax.f32 %v4625, 0.0
  %v4690 = vmax.f32 %v4626, 0.0
  %v4691 = vmax.f32 %v4627, 0.0
  %v4692 = vmax.f32 %v4628, 0.0
  %v4693 = vmax.f32 %v4629, 0.0
  %v4694 = vmax.f32 %v4630, 0.0
  %v4695 = vmax.f32 %v4631, 0.0
  %v4696 = vmax.f32 %v4632, 0.0
  %v4697 = vmax.f32 %v4633, 0.0
  %v4698 = vmax.f32 %v4634, 0.0
  %v4699 = vmax.f32 %v4635, 0.0
  %v4700 = vmax.f32 %v4636, 0.0
  %v4701 = vmax.f32 %v4637, 0.0
  %v4702 = vmax.f32 %v4638, 0.0
  %v4703 = vmax.f32 %v4639, 0.0
  %v4704 = vmax.f32 %v4640, 0.0
  %v4705 = vmax.f32 %v4641, 0.0
  %v4706 = vmax.f32 %v4642, 0.0
  %v4707 = vmax.f32 %v4643, 0.0
  %v4708 = vmax.f32 %v4644, 0.0
  %v4709 = vmax.f32 %v4645, 0.0
  %v4710 = vmax.f32 %v4646, 0.0
  %v4711 = vmax.f32 %v4647, 0.0
  %v4712 = vmax.f32 %v4648, 0.0
  %v4713 = vmax.f32 %v4649, 0.0
  %v4714 = vmax.f32 %v4650, 0.0
  %v4715 = vmax.f32 %v4651, 0.0
  %v4716 = vmax.f32 %v4652, 0.0
  %v4717 = vmax.f32 %v4653, 0.0
  %v4718 = vmax.f32 %v4654, 0.0
  %v4719 = vmax.f32 %v4655, 0.0
  %v4720 = vmax.f32 %v4656, 0.0
  %v4721 = vmax.f32 %v4657, 0.0
  %v4722 = vmax.f32 %v4658, 0.0
  %v4723 = vmax.f32 %v4659, 0.0
  %v4724 = vmax.f32 %v4660, 0.0
  %v4725 = vmax.f32 %v4661, 0.0
  %v4726 = vmax.f32 %v4662, 0.0
  %v4727 = vmax.f32 %v4663, 0.0
  %v4728 = vmax.f32 %v4664, 0.0
  %v4729 = vmax.f32 %v4665, 0.0
  %v4730 = vmax.f32 %v4666, 0.0
  %v4731 = vmax.f32 %v4667, 0.0
  %v4732 = vmax.f32 %v4668, 0.0
  %v4733 = vmax.f32 %v4669, 0.0
  %v4734 = vmax.f32 %v4670, 0.0
  %v4735 = vmax.f32 %v4671, 0.0
  %v4736 = vmax.f32 %v4672, 0.0
  %v4737 = vmax.f32 %v4673, 0.0
  %v4738 = vmax.f32 %v4674, 0.0
  %v4739 = vmax.f32 %v4675, 0.0
  %v4740 = vmax.f32 %v4676, 0.0
  %v4741 = vmax.f32 %v4677, 0.0
  %v4742 = vmax.f32 %v4678, 0.0
  %v4743 = vmax.f32 %v4679, 0.0
  %v4744 = vpack.c.bf16 %v4681, %v4680
  %v4745 = vpack.c.bf16 %v4683, %v4682
  %v4746 = vpack.c.bf16 %v4685, %v4684
  %v4747 = vpack.c.bf16 %v4687, %v4686
  %v4748 = vpack.c.bf16 %v4689, %v4688
  %v4749 = vpack.c.bf16 %v4691, %v4690
  %v4750 = vpack.c.bf16 %v4693, %v4692
  %v4751 = vpack.c.bf16 %v4695, %v4694
  %v4752 = vpack.c.bf16 %v4697, %v4696
  %v4753 = vpack.c.bf16 %v4699, %v4698
  %v4754 = vpack.c.bf16 %v4701, %v4700
  %v4755 = vpack.c.bf16 %v4703, %v4702
  %v4756 = vpack.c.bf16 %v4705, %v4704
  %v4757 = vpack.c.bf16 %v4707, %v4706
  %v4758 = vpack.c.bf16 %v4709, %v4708
  %v4759 = vpack.c.bf16 %v4711, %v4710
  %v4760 = vpack.c.bf16 %v4713, %v4712
  %v4761 = vpack.c.bf16 %v4715, %v4714
  %v4762 = vpack.c.bf16 %v4717, %v4716
  %v4763 = vpack.c.bf16 %v4719, %v4718
  %v4764 = vpack.c.bf16 %v4721, %v4720
  %v4765 = vpack.c.bf16 %v4723, %v4722
  %v4766 = vpack.c.bf16 %v4725, %v4724
  %v4767 = vpack.c.bf16 %v4727, %v4726
  %v4768 = vpack.c.bf16 %v4729, %v4728
  %v4769 = vpack.c.bf16 %v4731, %v4730
  %v4770 = vpack.c.bf16 %v4733, %v4732
  %v4771 = vpack.c.bf16 %v4735, %v4734
  %v4772 = vpack.c.bf16 %v4737, %v4736
  %v4773 = vpack.c.bf16 %v4739, %v4738
  %v4774 = vpack.c.bf16 %v4741, %v4740
  %v4775 = vpack.c.bf16 %v4743, %v4742
  %v4777 = vshrl.u32 0, 16
  %v4779 = vrot.slane %v4777, 7
  %v4780 = vshll.u32 0, 16
  %v4782 = vor.u32 %v4779, %v4780
  %v4784 = vshrl.u32 %v4744, 16
  %v4786 = vrot.slane %v4784, 7
  %v4787 = vshll.u32 %v4744, 16
  %v4789 = vor.u32 %v4786, %v4787
  %v4791 = vshrl.u32 %v4745, 16
  %v4793 = vrot.slane %v4791, 7
  %v4794 = vshll.u32 %v4745, 16
  %v4796 = vor.u32 %v4793, %v4794
  %v4798 = vshrl.u32 %v4746, 16
  %v4800 = vrot.slane %v4798, 7
  %v4801 = vshll.u32 %v4746, 16
  %v4803 = vor.u32 %v4800, %v4801
  %v4805 = vshrl.u32 %v4747, 16
  %v4807 = vrot.slane %v4805, 7
  %v4808 = vshll.u32 %v4747, 16
  %v4810 = vor.u32 %v4807, %v4808
  %v4812 = vshrl.u32 %v4748, 16
  %v4814 = vrot.slane %v4812, 7
  %v4815 = vshll.u32 %v4748, 16
  %v4817 = vor.u32 %v4814, %v4815
  %v4819 = vshrl.u32 %v4749, 16
  %v4821 = vrot.slane %v4819, 7
  %v4822 = vshll.u32 %v4749, 16
  %v4824 = vor.u32 %v4821, %v4822
  %v4826 = vshrl.u32 %v4750, 16
  %v4828 = vrot.slane %v4826, 7
  %v4829 = vshll.u32 %v4750, 16
  %v4831 = vor.u32 %v4828, %v4829
  %v4833 = vshrl.u32 %v4751, 16
  %v4835 = vrot.slane %v4833, 7
  %v4836 = vshll.u32 %v4751, 16
  %v4838 = vor.u32 %v4835, %v4836
  %v4840 = vshrl.u32 %v4752, 16
  %v4842 = vrot.slane %v4840, 7
  %v4843 = vshll.u32 %v4752, 16
  %v4845 = vor.u32 %v4842, %v4843
  %v4847 = vshrl.u32 %v4753, 16
  %v4849 = vrot.slane %v4847, 7
  %v4850 = vshll.u32 %v4753, 16
  %v4852 = vor.u32 %v4849, %v4850
  %v4854 = vshrl.u32 %v4754, 16
  %v4856 = vrot.slane %v4854, 7
  %v4857 = vshll.u32 %v4754, 16
  %v4859 = vor.u32 %v4856, %v4857
  %v4861 = vshrl.u32 %v4755, 16
  %v4863 = vrot.slane %v4861, 7
  %v4864 = vshll.u32 %v4755, 16
  %v4866 = vor.u32 %v4863, %v4864
  %v4868 = vshrl.u32 %v4756, 16
  %v4870 = vrot.slane %v4868, 7
  %v4871 = vshll.u32 %v4756, 16
  %v4873 = vor.u32 %v4870, %v4871
  %v4875 = vshrl.u32 %v4757, 16
  %v4877 = vrot.slane %v4875, 7
  %v4878 = vshll.u32 %v4757, 16
  %v4880 = vor.u32 %v4877, %v4878
  %v4882 = vshrl.u32 %v4758, 16
  %v4884 = vrot.slane %v4882, 7
  %v4885 = vshll.u32 %v4758, 16
  %v4887 = vor.u32 %v4884, %v4885
  %v4889 = vshrl.u32 %v4759, 16
  %v4891 = vrot.slane %v4889, 7
  %v4892 = vshll.u32 %v4759, 16
  %v4894 = vor.u32 %v4891, %v4892
  %v4896 = vshrl.u32 %v4760, 16
  %v4898 = vrot.slane %v4896, 7
  %v4899 = vshll.u32 %v4760, 16
  %v4901 = vor.u32 %v4898, %v4899
  %v4903 = vshrl.u32 %v4761, 16
  %v4905 = vrot.slane %v4903, 7
  %v4906 = vshll.u32 %v4761, 16
  %v4908 = vor.u32 %v4905, %v4906
  %v4910 = vshrl.u32 %v4762, 16
  %v4912 = vrot.slane %v4910, 7
  %v4913 = vshll.u32 %v4762, 16
  %v4915 = vor.u32 %v4912, %v4913
  %v4917 = vshrl.u32 %v4763, 16
  %v4919 = vrot.slane %v4917, 7
  %v4920 = vshll.u32 %v4763, 16
  %v4922 = vor.u32 %v4919, %v4920
  %v4924 = vshrl.u32 %v4764, 16
  %v4926 = vrot.slane %v4924, 7
  %v4927 = vshll.u32 %v4764, 16
  %v4929 = vor.u32 %v4926, %v4927
  %v4931 = vshrl.u32 %v4765, 16
  %v4933 = vrot.slane %v4931, 7
  %v4934 = vshll.u32 %v4765, 16
  %v4936 = vor.u32 %v4933, %v4934
  %v4938 = vshrl.u32 %v4766, 16
  %v4940 = vrot.slane %v4938, 7
  %v4941 = vshll.u32 %v4766, 16
  %v4943 = vor.u32 %v4940, %v4941
  %v4945 = vshrl.u32 %v4767, 16
  %v4947 = vrot.slane %v4945, 7
  %v4948 = vshll.u32 %v4767, 16
  %v4950 = vor.u32 %v4947, %v4948
  %v4952 = vshrl.u32 %v4768, 16
  %v4954 = vrot.slane %v4952, 7
  %v4955 = vshll.u32 %v4768, 16
  %v4957 = vor.u32 %v4954, %v4955
  %v4959 = vshrl.u32 %v4769, 16
  %v4961 = vrot.slane %v4959, 7
  %v4962 = vshll.u32 %v4769, 16
  %v4964 = vor.u32 %v4961, %v4962
  %v4966 = vshrl.u32 %v4770, 16
  %v4968 = vrot.slane %v4966, 7
  %v4969 = vshll.u32 %v4770, 16
  %v4971 = vor.u32 %v4968, %v4969
  %v4973 = vshrl.u32 %v4771, 16
  %v4975 = vrot.slane %v4973, 7
  %v4976 = vshll.u32 %v4771, 16
  %v4978 = vor.u32 %v4975, %v4976
  %v4980 = vshrl.u32 %v4772, 16
  %v4982 = vrot.slane %v4980, 7
  %v4983 = vshll.u32 %v4772, 16
  %v4985 = vor.u32 %v4982, %v4983
  %v4987 = vshrl.u32 %v4773, 16
  %v4989 = vrot.slane %v4987, 7
  %v4990 = vshll.u32 %v4773, 16
  %v4992 = vor.u32 %v4989, %v4990
  %v4994 = vshrl.u32 %v4774, 16
  %v4996 = vrot.slane %v4994, 7
  %v4997 = vshll.u32 %v4774, 16
  %v4999 = vor.u32 %v4996, %v4997
  %v5001 = vshrl.u32 %v4775, 16
  %v5003 = vrot.slane %v5001, 7
  %v5004 = vshll.u32 %v4775, 16
  %v5006 = vor.u32 %v5003, %v5004
  %vm5073 = vcmask 1040384
  %vm5074 = vsmask.f32 256
  %vm5075 = vmand %vm5073, %vm5074
  %v5076 = vsel %vm5075, 0, %v4782
  %v5077 = vsel %vm5075, 0, %v4789
  %v5078 = vsel %vm5075, 0, %v4796
  %v5079 = vsel %vm5075, 0, %v4803
  %v5080 = vsel %vm5075, 0, %v4810
  %v5081 = vsel %vm5075, 0, %v4817
  %v5082 = vsel %vm5075, 0, %v4824
  %v5083 = vsel %vm5075, 0, %v4831
  %v5084 = vsel %vm5075, 0, %v4838
  %v5085 = vsel %vm5075, 0, %v4845
  %v5086 = vsel %vm5075, 0, %v4852
  %v5087 = vsel %vm5075, 0, %v4859
  %v5088 = vsel %vm5075, 0, %v4866
  %v5089 = vsel %vm5075, 0, %v4873
  %v5090 = vsel %vm5075, 0, %v4880
  %v5091 = vsel %vm5075, 0, %v4887
  %v5092 = vsel %vm5075, 0, %v4894
  %v5093 = vsel %vm5075, 0, %v4901
  %v5094 = vsel %vm5075, 0, %v4908
  %v5095 = vsel %vm5075, 0, %v4915
  %v5096 = vsel %vm5075, 0, %v4922
  %v5097 = vsel %vm5075, 0, %v4929
  %v5098 = vsel %vm5075, 0, %v4936
  %v5099 = vsel %vm5075, 0, %v4943
  %v5100 = vsel %vm5075, 0, %v4950
  %v5101 = vsel %vm5075, 0, %v4957
  %v5102 = vsel %vm5075, 0, %v4964
  %v5103 = vsel %vm5075, 0, %v4971
  %v5104 = vsel %vm5075, 0, %v4978
  %v5105 = vsel %vm5075, 0, %v4985
  %v5106 = vsel %vm5075, 0, %v4992
  %v5107 = vsel %vm5075, 0, %v4999
  %v5108 = vsel %vm5075, 0, %v5006
  %v5109 = vsel %vm5075, %v4779, 0
  %v5110 = vsel %vm5075, %v4786, 0
  %v5111 = vsel %vm5075, %v4793, 0
  %v5112 = vsel %vm5075, %v4800, 0
  %v5113 = vsel %vm5075, %v4807, 0
  %v5114 = vsel %vm5075, %v4814, 0
  %v5115 = vsel %vm5075, %v4821, 0
  %v5116 = vsel %vm5075, %v4828, 0
  %v5117 = vsel %vm5075, %v4835, 0
  %v5118 = vsel %vm5075, %v4842, 0
  %v5119 = vsel %vm5075, %v4849, 0
  %v5120 = vsel %vm5075, %v4856, 0
  %v5121 = vsel %vm5075, %v4863, 0
  %v5122 = vsel %vm5075, %v4870, 0
  %v5123 = vsel %vm5075, %v4877, 0
  %v5124 = vsel %vm5075, %v4884, 0
  %v5125 = vsel %vm5075, %v4891, 0
  %v5126 = vsel %vm5075, %v4898, 0
  %v5127 = vsel %vm5075, %v4905, 0
  %v5128 = vsel %vm5075, %v4912, 0
  %v5129 = vsel %vm5075, %v4919, 0
  %v5130 = vsel %vm5075, %v4926, 0
  %v5131 = vsel %vm5075, %v4933, 0
  %v5132 = vsel %vm5075, %v4940, 0
  %v5133 = vsel %vm5075, %v4947, 0
  %v5134 = vsel %vm5075, %v4954, 0
  %v5135 = vsel %vm5075, %v4961, 0
  %v5136 = vsel %vm5075, %v4968, 0
  %v5137 = vsel %vm5075, %v4975, 0
  %v5138 = vsel %vm5075, %v4982, 0
  %v5139 = vsel %vm5075, %v4989, 0
  %v5140 = vsel %vm5075, %v4996, 0
  %v5141 = vsel %vm5075, %v5003, 0
  %v5142 = vld [vmem:[%s4] sm:$0xf]
  %v5144 = vshrl.u32 %v5076, 16
  %v5146 = vshll.u32 %v5076, 16
  %v5148 = vrot.slane %v5146, 1
  %v5149 = vor.u32 %v5144, %v5148
  %v5151 = vshll.u32 %v5109, 16
  %v5153 = vrot.slane %v5151, 1
  %v5154 = vsel %vm208, %v5149, %v5153
  %v5156 = vshrl.u32 %v5077, 16
  %v5158 = vshll.u32 %v5077, 16
  %v5160 = vrot.slane %v5158, 1
  %v5161 = vor.u32 %v5156, %v5160
  %v5163 = vshll.u32 %v5110, 16
  %v5165 = vrot.slane %v5163, 1
  %v5166 = vsel %vm208, %v5161, %v5165
  %v5168 = vshrl.u32 %v5078, 16
  %v5170 = vshll.u32 %v5078, 16
  %v5172 = vrot.slane %v5170, 1
  %v5173 = vor.u32 %v5168, %v5172
  %v5175 = vshll.u32 %v5111, 16
  %v5177 = vrot.slane %v5175, 1
  %v5178 = vsel %vm208, %v5173, %v5177
  %v5180 = vshrl.u32 %v5079, 16
  %v5182 = vshll.u32 %v5079, 16
  %v5184 = vrot.slane %v5182, 1
  %v5185 = vor.u32 %v5180, %v5184
  %v5187 = vshll.u32 %v5112, 16
  %v5189 = vrot.slane %v5187, 1
  %v5190 = vsel %vm208, %v5185, %v5189
  %v5192 = vshrl.u32 %v5080, 16
  %v5194 = vshll.u32 %v5080, 16
  %v5196 = vrot.slane %v5194, 1
  %v5197 = vor.u32 %v5192, %v5196
  %v5199 = vshll.u32 %v5113, 16
  %v5201 = vrot.slane %v5199, 1
  %v5202 = vsel %vm208, %v5197, %v5201
  %v5204 = vshrl.u32 %v5081, 16
  %v5206 = vshll.u32 %v5081, 16
  %v5208 = vrot.slane %v5206, 1
  %v5209 = vor.u32 %v5204, %v5208
  %v5211 = vshll.u32 %v5114, 16
  %v5213 = vrot.slane %v5211, 1
  %v5214 = vsel %vm208, %v5209, %v5213
  %v5216 = vshrl.u32 %v5082, 16
  %v5218 = vshll.u32 %v5082, 16
  %v5220 = vrot.slane %v5218, 1
  %v5221 = vor.u32 %v5216, %v5220
  %v5223 = vshll.u32 %v5115, 16
  %v5225 = vrot.slane %v5223, 1
  %v5226 = vsel %vm208, %v5221, %v5225
  %v5228 = vshrl.u32 %v5083, 16
  %v5230 = vshll.u32 %v5083, 16
  %v5232 = vrot.slane %v5230, 1
  %v5233 = vor.u32 %v5228, %v5232
  %v5235 = vshll.u32 %v5116, 16
  %v5237 = vrot.slane %v5235, 1
  %v5238 = vsel %vm208, %v5233, %v5237
  %v5240 = vshrl.u32 %v5084, 16
  %v5242 = vshll.u32 %v5084, 16
  %v5244 = vrot.slane %v5242, 1
  %v5245 = vor.u32 %v5240, %v5244
  %v5247 = vshll.u32 %v5117, 16
  %v5249 = vrot.slane %v5247, 1
  %v5250 = vsel %vm208, %v5245, %v5249
  %v5252 = vshrl.u32 %v5085, 16
  %v5254 = vshll.u32 %v5085, 16
  %v5256 = vrot.slane %v5254, 1
  %v5257 = vor.u32 %v5252, %v5256
  %v5259 = vshll.u32 %v5118, 16
  %v5261 = vrot.slane %v5259, 1
  %v5262 = vsel %vm208, %v5257, %v5261
  %v5264 = vshrl.u32 %v5086, 16
  %v5266 = vshll.u32 %v5086, 16
  %v5268 = vrot.slane %v5266, 1
  %v5269 = vor.u32 %v5264, %v5268
  %v5271 = vshll.u32 %v5119, 16
  %v5273 = vrot.slane %v5271, 1
  %v5274 = vsel %vm208, %v5269, %v5273
  %v5276 = vshrl.u32 %v5087, 16
  %v5278 = vshll.u32 %v5087, 16
  %v5280 = vrot.slane %v5278, 1
  %v5281 = vor.u32 %v5276, %v5280
  %v5283 = vshll.u32 %v5120, 16
  %v5285 = vrot.slane %v5283, 1
  %v5286 = vsel %vm208, %v5281, %v5285
  %v5288 = vshrl.u32 %v5088, 16
  %v5290 = vshll.u32 %v5088, 16
  %v5292 = vrot.slane %v5290, 1
  %v5293 = vor.u32 %v5288, %v5292
  %v5295 = vshll.u32 %v5121, 16
  %v5297 = vrot.slane %v5295, 1
  %v5298 = vsel %vm208, %v5293, %v5297
  %v5300 = vshrl.u32 %v5089, 16
  %v5302 = vshll.u32 %v5089, 16
  %v5304 = vrot.slane %v5302, 1
  %v5305 = vor.u32 %v5300, %v5304
  %v5307 = vshll.u32 %v5122, 16
  %v5309 = vrot.slane %v5307, 1
  %v5310 = vsel %vm208, %v5305, %v5309
  %v5312 = vshrl.u32 %v5090, 16
  %v5314 = vshll.u32 %v5090, 16
  %v5316 = vrot.slane %v5314, 1
  %v5317 = vor.u32 %v5312, %v5316
  %v5319 = vshll.u32 %v5123, 16
  %v5321 = vrot.slane %v5319, 1
  %v5322 = vsel %vm208, %v5317, %v5321
  %v5324 = vshrl.u32 %v5091, 16
  %v5326 = vshll.u32 %v5091, 16
  %v5328 = vrot.slane %v5326, 1
  %v5329 = vor.u32 %v5324, %v5328
  %v5331 = vshll.u32 %v5124, 16
  %v5333 = vrot.slane %v5331, 1
  %v5334 = vsel %vm208, %v5329, %v5333
  %v5336 = vshrl.u32 %v5093, 16
  %v5338 = vshll.u32 %v5093, 16
  %v5340 = vrot.slane %v5338, 1
  %v5341 = vor.u32 %v5336, %v5340
  %v5343 = vshll.u32 %v5126, 16
  %v5345 = vrot.slane %v5343, 1
  %v5346 = vsel %vm208, %v5341, %v5345
  %v5348 = vshrl.u32 %v5094, 16
  %v5350 = vshll.u32 %v5094, 16
  %v5352 = vrot.slane %v5350, 1
  %v5353 = vor.u32 %v5348, %v5352
  %v5355 = vshll.u32 %v5127, 16
  %v5357 = vrot.slane %v5355, 1
  %v5358 = vsel %vm208, %v5353, %v5357
  %v5360 = vshrl.u32 %v5095, 16
  %v5362 = vshll.u32 %v5095, 16
  %v5364 = vrot.slane %v5362, 1
  %v5365 = vor.u32 %v5360, %v5364
  %v5367 = vshll.u32 %v5128, 16
  %v5369 = vrot.slane %v5367, 1
  %v5370 = vsel %vm208, %v5365, %v5369
  %v5372 = vshrl.u32 %v5096, 16
  %v5374 = vshll.u32 %v5096, 16
  %v5376 = vrot.slane %v5374, 1
  %v5377 = vor.u32 %v5372, %v5376
  %v5379 = vshll.u32 %v5129, 16
  %v5381 = vrot.slane %v5379, 1
  %v5382 = vsel %vm208, %v5377, %v5381
  %v5384 = vshrl.u32 %v5097, 16
  %v5386 = vshll.u32 %v5097, 16
  %v5388 = vrot.slane %v5386, 1
  %v5389 = vor.u32 %v5384, %v5388
  %v5391 = vshll.u32 %v5130, 16
  %v5393 = vrot.slane %v5391, 1
  %v5394 = vsel %vm208, %v5389, %v5393
  %v5396 = vshrl.u32 %v5098, 16
  %v5398 = vshll.u32 %v5098, 16
  %v5400 = vrot.slane %v5398, 1
  %v5401 = vor.u32 %v5396, %v5400
  %v5403 = vshll.u32 %v5131, 16
  %v5405 = vrot.slane %v5403, 1
  %v5406 = vsel %vm208, %v5401, %v5405
  %v5408 = vshrl.u32 %v5099, 16
  %v5410 = vshll.u32 %v5099, 16
  %v5412 = vrot.slane %v5410, 1
  %v5413 = vor.u32 %v5408, %v5412
  %v5415 = vshll.u32 %v5132, 16
  %v5417 = vrot.slane %v5415, 1
  %v5418 = vsel %vm208, %v5413, %v5417
  %v5420 = vshrl.u32 %v5100, 16
  %v5422 = vshll.u32 %v5100, 16
  %v5424 = vrot.slane %v5422, 1
  %v5425 = vor.u32 %v5420, %v5424
  %v5427 = vshll.u32 %v5133, 16
  %v5429 = vrot.slane %v5427, 1
  %v5430 = vsel %vm208, %v5425, %v5429
  %v5432 = vshrl.u32 %v5101, 16
  %v5434 = vshll.u32 %v5101, 16
  %v5436 = vrot.slane %v5434, 1
  %v5437 = vor.u32 %v5432, %v5436
  %v5439 = vshll.u32 %v5134, 16
  %v5441 = vrot.slane %v5439, 1
  %v5442 = vsel %vm208, %v5437, %v5441
  %v5444 = vshrl.u32 %v5102, 16
  %v5446 = vshll.u32 %v5102, 16
  %v5448 = vrot.slane %v5446, 1
  %v5449 = vor.u32 %v5444, %v5448
  %v5451 = vshll.u32 %v5135, 16
  %v5453 = vrot.slane %v5451, 1
  %v5454 = vsel %vm208, %v5449, %v5453
  %v5456 = vshrl.u32 %v5103, 16
  %v5458 = vshll.u32 %v5103, 16
  %v5460 = vrot.slane %v5458, 1
  %v5461 = vor.u32 %v5456, %v5460
  %v5463 = vshll.u32 %v5136, 16
  %v5465 = vrot.slane %v5463, 1
  %v5466 = vsel %vm208, %v5461, %v5465
  %v5468 = vshrl.u32 %v5104, 16
  %v5470 = vshll.u32 %v5104, 16
  %v5472 = vrot.slane %v5470, 1
  %v5473 = vor.u32 %v5468, %v5472
  %v5475 = vshll.u32 %v5137, 16
  %v5477 = vrot.slane %v5475, 1
  %v5478 = vsel %vm208, %v5473, %v5477
  %v5480 = vshrl.u32 %v5105, 16
  %v5482 = vshll.u32 %v5105, 16
  %v5484 = vrot.slane %v5482, 1
  %v5485 = vor.u32 %v5480, %v5484
  %v5487 = vshll.u32 %v5138, 16
  %v5489 = vrot.slane %v5487, 1
  %v5490 = vsel %vm208, %v5485, %v5489
  %v5492 = vshrl.u32 %v5106, 16
  %v5494 = vshll.u32 %v5106, 16
  %v5496 = vrot.slane %v5494, 1
  %v5497 = vor.u32 %v5492, %v5496
  %v5499 = vshll.u32 %v5139, 16
  %v5501 = vrot.slane %v5499, 1
  %v5502 = vsel %vm208, %v5497, %v5501
  %v5504 = vshrl.u32 %v5107, 16
  %v5506 = vshll.u32 %v5107, 16
  %v5508 = vrot.slane %v5506, 1
  %v5509 = vor.u32 %v5504, %v5508
  %v5511 = vshll.u32 %v5140, 16
  %v5513 = vrot.slane %v5511, 1
  %v5514 = vsel %vm208, %v5509, %v5513
  %s5515 = scalar_lea.vmem %s4, 4
  %v5516 = vld [vmem:[%s5515] sm:$0xf]
  %v5518 = vsel %vm595, %v5154, 0
  %v5521 = vsel %vm595, %v5166, 0
  %v5524 = vsel %vm595, %v5178, 0
  %v5527 = vsel %vm595, %v5190, 0
  %v5530 = vsel %vm595, %v5202, 0
  %v5533 = vsel %vm595, %v5214, 0
  %v5536 = vsel %vm595, %v5226, 0
  %v5539 = vsel %vm595, %v5238, 0
  %v5542 = vsel %vm595, %v5250, 0
  %v5545 = vsel %vm595, %v5262, 0
  %v5548 = vsel %vm595, %v5274, 0
  %v5551 = vsel %vm595, %v5286, 0
  %v5554 = vsel %vm595, %v5298, 0
  %v5557 = vsel %vm595, %v5310, 0
  %v5560 = vsel %vm595, %v5322, 0
  %v5563 = vsel %vm595, %v5334, 0
  %v5566 = vsel %vm595, %v5346, 0
  %v5569 = vsel %vm595, %v5358, 0
  %v5572 = vsel %vm595, %v5370, 0
  %v5575 = vsel %vm595, %v5382, 0
  %v5578 = vsel %vm595, %v5394, 0
  %v5581 = vsel %vm595, %v5406, 0
  %v5584 = vsel %vm595, %v5418, 0
  %v5587 = vsel %vm595, %v5430, 0
  %v5590 = vsel %vm595, %v5442, 0
  %v5593 = vsel %vm595, %v5454, 0
  %v5596 = vsel %vm595, %v5466, 0
  %v5599 = vsel %vm595, %v5478, 0
  %v5602 = vsel %vm595, %v5490, 0
  %v5605 = vsel %vm595, %v5502, 0
  %v5608 = vsel %vm595, %v5514, 0
  %v5611 = vsel %vm692, %v5516, 0
  %5613 = vmatprep.subr.bf16.mxu0 0
  %5614 = vmatpush1.bf16.msra.mxu0 0
  %5615 = vmatprep.subr.bf16.mxu0 0
  %5616 = vmatpush1.bf16.msra.mxu0 0
  %5617 = vmatprep.subr.bf16.mxu0 0
  %5618 = vmatpush1.bf16.msra.mxu0 0
  %5619 = vmatprep.subr.bf16.mxu0 0
  %5620 = vmatpush1.bf16.msra.mxu0 0
  %5621 = vmatprep.subr.bf16.mxu0 0
  %5622 = vmatpush1.bf16.msra.mxu0 0
  %5623 = vmatprep.subr.bf16.mxu0 0
  %5624 = vmatpush1.bf16.msra.mxu0 0
  %5625 = vmatprep.subr.bf16.mxu0 0
  %5626 = vmatpush1.bf16.msra.mxu0 0
  %5627 = vmatprep.subr.bf16.mxu0 0
  %5628 = vmatpush1.bf16.msra.mxu0 %v5611
  %5629 = vmatprep.subr.bf16.mxu0 0
  %5630 = vmatpush2.bf16.msra.mxu0 0
  %5631 = vmatprep.subr.bf16.mxu0 0
  %5632 = vmatpush2.bf16.msra.mxu0 0
  %5633 = vmatprep.subr.bf16.mxu0 0
  %5634 = vmatpush2.bf16.msra.mxu0 0
  %5635 = vmatprep.subr.bf16.mxu0 0
  %5636 = vmatpush2.bf16.msra.mxu0 0
  %5637 = vmatprep.subr.bf16.mxu0 0
  %5638 = vmatpush2.bf16.msra.mxu0 0
  %5639 = vmatprep.subr.bf16.mxu0 0
  %5640 = vmatpush2.bf16.msra.mxu0 0
  %5641 = vmatprep.subr.bf16.mxu0 0
  %5642 = vmatpush2.bf16.msra.mxu0 0
  %5643 = vmatprep.subr.bf16.mxu0 0
  %5644 = vmatpush2.bf16.msra.mxu0 0
  %5645 = vmatprep.mubr.bf16.mxu0 0
  %5646 = vmatmul.mubr.bf16.gmra.mxu0 %v5518
  %v5647 = vpop.f32.mrf.mxu0
  %v5648 = vadd.f32 0.0, %v5647
  %v5649 = vpop.f32.mrf.mxu0
  %v5650 = vpop.f32.mrf.mxu0
  %v5651 = vadd.f32 0.0, %v5650
  %v5652 = vpop.f32.mrf.mxu0
  %5653 = vmatprep.mubr.bf16.mxu0 0
  %5654 = vmatmul.mubr.bf16.gmra.mxu0 %v5521
  %v5655 = vpop.f32.mrf.mxu0
  %v5656 = vadd.f32 0.0, %v5655
  %v5657 = vpop.f32.mrf.mxu0
  %v5658 = vpop.f32.mrf.mxu0
  %v5659 = vadd.f32 0.0, %v5658
  %v5660 = vpop.f32.mrf.mxu0
  %5661 = vmatprep.mubr.bf16.mxu0 0
  %5662 = vmatmul.mubr.bf16.gmra.mxu0 %v5524
  %v5663 = vpop.f32.mrf.mxu0
  %v5664 = vadd.f32 0.0, %v5663
  %v5665 = vpop.f32.mrf.mxu0
  %v5666 = vpop.f32.mrf.mxu0
  %v5667 = vadd.f32 0.0, %v5666
  %v5668 = vpop.f32.mrf.mxu0
  %5669 = vmatprep.mubr.bf16.mxu0 0
  %5670 = vmatmul.mubr.bf16.gmra.mxu0 %v5527
  %v5671 = vpop.f32.mrf.mxu0
  %v5672 = vadd.f32 0.0, %v5671
  %v5673 = vpop.f32.mrf.mxu0
  %v5674 = vpop.f32.mrf.mxu0
  %v5675 = vadd.f32 0.0, %v5674
  %v5676 = vpop.f32.mrf.mxu0
  %5677 = vmatprep.mubr.bf16.mxu0 0
  %5678 = vmatmul.mubr.bf16.gmra.mxu0 %v5530
  %v5679 = vpop.f32.mrf.mxu0
  %v5680 = vadd.f32 0.0, %v5679
  %v5681 = vpop.f32.mrf.mxu0
  %v5682 = vpop.f32.mrf.mxu0
  %v5683 = vadd.f32 0.0, %v5682
  %v5684 = vpop.f32.mrf.mxu0
  %5685 = vmatprep.mubr.bf16.mxu0 0
  %5686 = vmatmul.mubr.bf16.gmra.mxu0 %v5533
  %v5687 = vpop.f32.mrf.mxu0
  %v5688 = vadd.f32 0.0, %v5687
  %v5689 = vpop.f32.mrf.mxu0
  %v5690 = vpop.f32.mrf.mxu0
  %v5691 = vadd.f32 0.0, %v5690
  %v5692 = vpop.f32.mrf.mxu0
  %5693 = vmatprep.mubr.bf16.mxu0 0
  %5694 = vmatmul.mubr.bf16.gmra.mxu0 %v5536
  %v5695 = vpop.f32.mrf.mxu0
  %v5696 = vadd.f32 0.0, %v5695
  %v5697 = vpop.f32.mrf.mxu0
  %v5698 = vpop.f32.mrf.mxu0
  %v5699 = vadd.f32 0.0, %v5698
  %v5700 = vpop.f32.mrf.mxu0
  %5701 = vmatprep.mubr.bf16.mxu0 0
  %5702 = vmatmul.mubr.bf16.gmra.mxu0 %v5539
  %v5703 = vpop.f32.mrf.mxu0
  %v5704 = vadd.f32 0.0, %v5703
  %v5705 = vpop.f32.mrf.mxu0
  %v5706 = vpop.f32.mrf.mxu0
  %v5707 = vadd.f32 0.0, %v5706
  %v5708 = vpop.f32.mrf.mxu0
  %5709 = vmatprep.mubr.bf16.mxu0 0
  %5710 = vmatmul.mubr.bf16.gmra.mxu0 %v5542
  %v5711 = vpop.f32.mrf.mxu0
  %v5712 = vadd.f32 0.0, %v5711
  %v5713 = vpop.f32.mrf.mxu0
  %v5714 = vpop.f32.mrf.mxu0
  %v5715 = vadd.f32 0.0, %v5714
  %v5716 = vpop.f32.mrf.mxu0
  %5717 = vmatprep.mubr.bf16.mxu0 0
  %5718 = vmatmul.mubr.bf16.gmra.mxu0 %v5545
  %v5719 = vpop.f32.mrf.mxu0
  %v5720 = vadd.f32 0.0, %v5719
  %v5721 = vpop.f32.mrf.mxu0
  %v5722 = vpop.f32.mrf.mxu0
  %v5723 = vadd.f32 0.0, %v5722
  %v5724 = vpop.f32.mrf.mxu0
  %5725 = vmatprep.mubr.bf16.mxu0 0
  %5726 = vmatmul.mubr.bf16.gmra.mxu0 %v5548
  %v5727 = vpop.f32.mrf.mxu0
  %v5728 = vadd.f32 0.0, %v5727
  %v5729 = vpop.f32.mrf.mxu0
  %v5730 = vpop.f32.mrf.mxu0
  %v5731 = vadd.f32 0.0, %v5730
  %v5732 = vpop.f32.mrf.mxu0
  %5733 = vmatprep.mubr.bf16.mxu0 0
  %5734 = vmatmul.mubr.bf16.gmra.mxu0 %v5551
  %v5735 = vpop.f32.mrf.mxu0
  %v5736 = vadd.f32 0.0, %v5735
  %v5737 = vpop.f32.mrf.mxu0
  %v5738 = vpop.f32.mrf.mxu0
  %v5739 = vadd.f32 0.0, %v5738
  %v5740 = vpop.f32.mrf.mxu0
  %5741 = vmatprep.mubr.bf16.mxu0 0
  %5742 = vmatmul.mubr.bf16.gmra.mxu0 %v5554
  %v5743 = vpop.f32.mrf.mxu0
  %v5744 = vadd.f32 0.0, %v5743
  %v5745 = vpop.f32.mrf.mxu0
  %v5746 = vpop.f32.mrf.mxu0
  %v5747 = vadd.f32 0.0, %v5746
  %v5748 = vpop.f32.mrf.mxu0
  %5749 = vmatprep.mubr.bf16.mxu0 0
  %5750 = vmatmul.mubr.bf16.gmra.mxu0 %v5557
  %v5751 = vpop.f32.mrf.mxu0
  %v5752 = vadd.f32 0.0, %v5751
  %v5753 = vpop.f32.mrf.mxu0
  %v5754 = vpop.f32.mrf.mxu0
  %v5755 = vadd.f32 0.0, %v5754
  %v5756 = vpop.f32.mrf.mxu0
  %5757 = vmatprep.mubr.bf16.mxu0 0
  %5758 = vmatmul.mubr.bf16.gmra.mxu0 %v5560
  %v5759 = vpop.f32.mrf.mxu0
  %v5760 = vadd.f32 0.0, %v5759
  %v5761 = vpop.f32.mrf.mxu0
  %v5762 = vpop.f32.mrf.mxu0
  %v5763 = vadd.f32 0.0, %v5762
  %v5764 = vpop.f32.mrf.mxu0
  %5765 = vmatprep.mubr.bf16.mxu0 0
  %5766 = vmatmul.mubr.bf16.gmra.mxu0 %v5563
  %v5767 = vpop.f32.mrf.mxu0
  %v5768 = vadd.f32 0.0, %v5767
  %v5769 = vpop.f32.mrf.mxu0
  %v5770 = vpop.f32.mrf.mxu0
  %v5771 = vadd.f32 0.0, %v5770
  %v5772 = vpop.f32.mrf.mxu0
  %5773 = vmatprep.mubr.bf16.mxu0 0
  %5774 = vmatmul.mubr.bf16.gmra.mxu0 %v5518
  %v5775 = vpop.f32.mrf.mxu0
  %v5776 = vadd.f32 0.0, %v5775
  %v5777 = vpop.f32.mrf.mxu0
  %v5778 = vpop.f32.mrf.mxu0
  %v5779 = vadd.f32 0.0, %v5778
  %v5780 = vpop.f32.mrf.mxu0
  %5781 = vmatprep.mubr.bf16.mxu0 0
  %5782 = vmatmul.mubr.bf16.gmra.mxu0 %v5566
  %v5783 = vpop.f32.mrf.mxu0
  %v5784 = vadd.f32 0.0, %v5783
  %v5785 = vpop.f32.mrf.mxu0
  %v5786 = vpop.f32.mrf.mxu0
  %v5787 = vadd.f32 0.0, %v5786
  %v5788 = vpop.f32.mrf.mxu0
  %5789 = vmatprep.mubr.bf16.mxu0 0
  %5790 = vmatmul.mubr.bf16.gmra.mxu0 %v5569
  %v5791 = vpop.f32.mrf.mxu0
  %v5792 = vadd.f32 0.0, %v5791
  %v5793 = vpop.f32.mrf.mxu0
  %v5794 = vpop.f32.mrf.mxu0
  %v5795 = vadd.f32 0.0, %v5794
  %v5796 = vpop.f32.mrf.mxu0
  %5797 = vmatprep.mubr.bf16.mxu0 0
  %5798 = vmatmul.mubr.bf16.gmra.mxu0 %v5572
  %v5799 = vpop.f32.mrf.mxu0
  %v5800 = vadd.f32 0.0, %v5799
  %v5801 = vpop.f32.mrf.mxu0
  %v5802 = vpop.f32.mrf.mxu0
  %v5803 = vadd.f32 0.0, %v5802
  %v5804 = vpop.f32.mrf.mxu0
  %5805 = vmatprep.mubr.bf16.mxu0 0
  %5806 = vmatmul.mubr.bf16.gmra.mxu0 %v5575
  %v5807 = vpop.f32.mrf.mxu0
  %v5808 = vadd.f32 0.0, %v5807
  %v5809 = vpop.f32.mrf.mxu0
  %v5810 = vpop.f32.mrf.mxu0
  %v5811 = vadd.f32 0.0, %v5810
  %v5812 = vpop.f32.mrf.mxu0
  %5813 = vmatprep.mubr.bf16.mxu0 0
  %5814 = vmatmul.mubr.bf16.gmra.mxu0 %v5578
  %v5815 = vpop.f32.mrf.mxu0
  %v5816 = vadd.f32 0.0, %v5815
  %v5817 = vpop.f32.mrf.mxu0
  %v5818 = vpop.f32.mrf.mxu0
  %v5819 = vadd.f32 0.0, %v5818
  %v5820 = vpop.f32.mrf.mxu0
  %5821 = vmatprep.mubr.bf16.mxu0 0
  %5822 = vmatmul.mubr.bf16.gmra.mxu0 %v5581
  %v5823 = vpop.f32.mrf.mxu0
  %v5824 = vadd.f32 0.0, %v5823
  %v5825 = vpop.f32.mrf.mxu0
  %v5826 = vpop.f32.mrf.mxu0
  %v5827 = vadd.f32 0.0, %v5826
  %v5828 = vpop.f32.mrf.mxu0
  %5829 = vmatprep.mubr.bf16.mxu0 0
  %5830 = vmatmul.mubr.bf16.gmra.mxu0 %v5584
  %v5831 = vpop.f32.mrf.mxu0
  %v5832 = vadd.f32 0.0, %v5831
  %v5833 = vpop.f32.mrf.mxu0
  %v5834 = vpop.f32.mrf.mxu0
  %v5835 = vadd.f32 0.0, %v5834
  %v5836 = vpop.f32.mrf.mxu0
  %5837 = vmatprep.mubr.bf16.mxu0 0
  %5838 = vmatmul.mubr.bf16.gmra.mxu0 %v5587
  %v5839 = vpop.f32.mrf.mxu0
  %v5840 = vadd.f32 0.0, %v5839
  %v5841 = vpop.f32.mrf.mxu0
  %v5842 = vpop.f32.mrf.mxu0
  %v5843 = vadd.f32 0.0, %v5842
  %v5844 = vpop.f32.mrf.mxu0
  %5845 = vmatprep.mubr.bf16.mxu0 0
  %5846 = vmatmul.mubr.bf16.gmra.mxu0 %v5590
  %v5847 = vpop.f32.mrf.mxu0
  %v5848 = vadd.f32 0.0, %v5847
  %v5849 = vpop.f32.mrf.mxu0
  %v5850 = vpop.f32.mrf.mxu0
  %v5851 = vadd.f32 0.0, %v5850
  %v5852 = vpop.f32.mrf.mxu0
  %5853 = vmatprep.mubr.bf16.mxu0 0
  %5854 = vmatmul.mubr.bf16.gmra.mxu0 %v5593
  %v5855 = vpop.f32.mrf.mxu0
  %v5856 = vadd.f32 0.0, %v5855
  %v5857 = vpop.f32.mrf.mxu0
  %v5858 = vpop.f32.mrf.mxu0
  %v5859 = vadd.f32 0.0, %v5858
  %v5860 = vpop.f32.mrf.mxu0
  %5861 = vmatprep.mubr.bf16.mxu0 0
  %5862 = vmatmul.mubr.bf16.gmra.mxu0 %v5596
  %v5863 = vpop.f32.mrf.mxu0
  %v5864 = vadd.f32 0.0, %v5863
  %v5865 = vpop.f32.mrf.mxu0
  %v5866 = vpop.f32.mrf.mxu0
  %v5867 = vadd.f32 0.0, %v5866
  %v5868 = vpop.f32.mrf.mxu0
  %5869 = vmatprep.mubr.bf16.mxu0 0
  %5870 = vmatmul.mubr.bf16.gmra.mxu0 %v5599
  %v5871 = vpop.f32.mrf.mxu0
  %v5872 = vadd.f32 0.0, %v5871
  %v5873 = vpop.f32.mrf.mxu0
  %v5874 = vpop.f32.mrf.mxu0
  %v5875 = vadd.f32 0.0, %v5874
  %v5876 = vpop.f32.mrf.mxu0
  %5877 = vmatprep.mubr.bf16.mxu0 0
  %5878 = vmatmul.mubr.bf16.gmra.mxu0 %v5602
  %v5879 = vpop.f32.mrf.mxu0
  %v5880 = vadd.f32 0.0, %v5879
  %v5881 = vpop.f32.mrf.mxu0
  %v5882 = vpop.f32.mrf.mxu0
  %v5883 = vadd.f32 0.0, %v5882
  %v5884 = vpop.f32.mrf.mxu0
  %5885 = vmatprep.mubr.bf16.mxu0 0
  %5886 = vmatmul.mubr.bf16.gmra.mxu0 %v5605
  %v5887 = vpop.f32.mrf.mxu0
  %v5888 = vadd.f32 0.0, %v5887
  %v5889 = vpop.f32.mrf.mxu0
  %v5890 = vpop.f32.mrf.mxu0
  %v5891 = vadd.f32 0.0, %v5890
  %v5892 = vpop.f32.mrf.mxu0
  %5893 = vmatprep.mubr.bf16.mxu0 0
  %5894 = vmatmul.mubr.bf16.gmra.mxu0 %v5608
  %v5895 = vpop.f32.mrf.mxu0
  %v5896 = vadd.f32 0.0, %v5895
  %v5897 = vpop.f32.mrf.mxu0
  %v5898 = vpop.f32.mrf.mxu0
  %v5899 = vadd.f32 0.0, %v5898
  %v5900 = vpop.f32.mrf.mxu0
  %5901 = vdwg.mxu0
  %v5902 = vsel %vm595, %v5076, 0
  %v5904 = vsel %vm595, %v5077, 0
  %v5906 = vsel %vm595, %v5078, 0
  %v5908 = vsel %vm595, %v5079, 0
  %v5910 = vsel %vm595, %v5080, 0
  %v5912 = vsel %vm595, %v5081, 0
  %v5914 = vsel %vm595, %v5082, 0
  %v5916 = vsel %vm595, %v5083, 0
  %v5918 = vsel %vm595, %v5084, 0
  %v5920 = vsel %vm595, %v5085, 0
  %v5922 = vsel %vm595, %v5086, 0
  %v5924 = vsel %vm595, %v5087, 0
  %v5926 = vsel %vm595, %v5088, 0
  %v5928 = vsel %vm595, %v5089, 0
  %v5930 = vsel %vm595, %v5090, 0
  %v5932 = vsel %vm595, %v5091, 0
  %v5934 = vsel %vm595, %v5093, 0
  %v5936 = vsel %vm595, %v5094, 0
  %v5938 = vsel %vm595, %v5095, 0
  %v5940 = vsel %vm595, %v5096, 0
  %v5942 = vsel %vm595, %v5097, 0
  %v5944 = vsel %vm595, %v5098, 0
  %v5946 = vsel %vm595, %v5099, 0
  %v5948 = vsel %vm595, %v5100, 0
  %v5950 = vsel %vm595, %v5101, 0
  %v5952 = vsel %vm595, %v5102, 0
  %v5954 = vsel %vm595, %v5103, 0
  %v5956 = vsel %vm595, %v5104, 0
  %v5958 = vsel %vm595, %v5105, 0
  %v5960 = vsel %vm595, %v5106, 0
  %v5962 = vsel %vm595, %v5107, 0
  %v5965 = vsel %vm692, %v5142, 0
  %5967 = vmatprep.subr.bf16.mxu0 0
  %5968 = vmatpush1.bf16.msra.mxu0 0
  %5969 = vmatprep.subr.bf16.mxu0 0
  %5970 = vmatpush1.bf16.msra.mxu0 0
  %5971 = vmatprep.subr.bf16.mxu0 0
  %5972 = vmatpush1.bf16.msra.mxu0 0
  %5973 = vmatprep.subr.bf16.mxu0 0
  %5974 = vmatpush1.bf16.msra.mxu0 0
  %5975 = vmatprep.subr.bf16.mxu0 0
  %5976 = vmatpush1.bf16.msra.mxu0 0
  %5977 = vmatprep.subr.bf16.mxu0 0
  %5978 = vmatpush1.bf16.msra.mxu0 0
  %5979 = vmatprep.subr.bf16.mxu0 0
  %5980 = vmatpush1.bf16.msra.mxu0 0
  %5981 = vmatprep.subr.bf16.mxu0 0
  %5982 = vmatpush1.bf16.msra.mxu0 %v5965
  %5983 = vmatprep.subr.bf16.mxu0 0
  %5984 = vmatpush2.bf16.msra.mxu0 0
  %5985 = vmatprep.subr.bf16.mxu0 0
  %5986 = vmatpush2.bf16.msra.mxu0 0
  %5987 = vmatprep.subr.bf16.mxu0 0
  %5988 = vmatpush2.bf16.msra.mxu0 0
  %5989 = vmatprep.subr.bf16.mxu0 0
  %5990 = vmatpush2.bf16.msra.mxu0 0
  %5991 = vmatprep.subr.bf16.mxu0 0
  %5992 = vmatpush2.bf16.msra.mxu0 0
  %5993 = vmatprep.subr.bf16.mxu0 0
  %5994 = vmatpush2.bf16.msra.mxu0 0
  %5995 = vmatprep.subr.bf16.mxu0 0
  %5996 = vmatpush2.bf16.msra.mxu0 0
  %5997 = vmatprep.subr.bf16.mxu0 0
  %5998 = vmatpush2.bf16.msra.mxu0 0
  %5999 = vmatprep.mubr.bf16.mxu0 0
  %6000 = vmatmul.mubr.bf16.gmra.mxu0 %v5902
  %v6001 = vpop.f32.mrf.mxu0
  %v6002 = vadd.f32 %v5648, %v6001
  %v6003 = vpop.f32.mrf.mxu0
  %v6004 = vpop.f32.mrf.mxu0
  %v6005 = vadd.f32 %v5651, %v6004
  %v6006 = vpop.f32.mrf.mxu0
  %6007 = vmatprep.mubr.bf16.mxu0 0
  %6008 = vmatmul.mubr.bf16.gmra.mxu0 %v5904
  %v6009 = vpop.f32.mrf.mxu0
  %v6010 = vadd.f32 %v5656, %v6009
  %v6011 = vpop.f32.mrf.mxu0
  %v6012 = vpop.f32.mrf.mxu0
  %v6013 = vadd.f32 %v5659, %v6012
  %v6014 = vpop.f32.mrf.mxu0
  %6015 = vmatprep.mubr.bf16.mxu0 0
  %6016 = vmatmul.mubr.bf16.gmra.mxu0 %v5906
  %v6017 = vpop.f32.mrf.mxu0
  %v6018 = vadd.f32 %v5664, %v6017
  %v6019 = vpop.f32.mrf.mxu0
  %v6020 = vpop.f32.mrf.mxu0
  %v6021 = vadd.f32 %v5667, %v6020
  %v6022 = vpop.f32.mrf.mxu0
  %6023 = vmatprep.mubr.bf16.mxu0 0
  %6024 = vmatmul.mubr.bf16.gmra.mxu0 %v5908
  %v6025 = vpop.f32.mrf.mxu0
  %v6026 = vadd.f32 %v5672, %v6025
  %v6027 = vpop.f32.mrf.mxu0
  %v6028 = vpop.f32.mrf.mxu0
  %v6029 = vadd.f32 %v5675, %v6028
  %v6030 = vpop.f32.mrf.mxu0
  %6031 = vmatprep.mubr.bf16.mxu0 0
  %6032 = vmatmul.mubr.bf16.gmra.mxu0 %v5910
  %v6033 = vpop.f32.mrf.mxu0
  %v6034 = vadd.f32 %v5680, %v6033
  %v6035 = vpop.f32.mrf.mxu0
  %v6036 = vpop.f32.mrf.mxu0
  %v6037 = vadd.f32 %v5683, %v6036
  %v6038 = vpop.f32.mrf.mxu0
  %6039 = vmatprep.mubr.bf16.mxu0 0
  %6040 = vmatmul.mubr.bf16.gmra.mxu0 %v5912
  %v6041 = vpop.f32.mrf.mxu0
  %v6042 = vadd.f32 %v5688, %v6041
  %v6043 = vpop.f32.mrf.mxu0
  %v6044 = vpop.f32.mrf.mxu0
  %v6045 = vadd.f32 %v5691, %v6044
  %v6046 = vpop.f32.mrf.mxu0
  %6047 = vmatprep.mubr.bf16.mxu0 0
  %6048 = vmatmul.mubr.bf16.gmra.mxu0 %v5914
  %v6049 = vpop.f32.mrf.mxu0
  %v6050 = vadd.f32 %v5696, %v6049
  %v6051 = vpop.f32.mrf.mxu0
  %v6052 = vpop.f32.mrf.mxu0
  %v6053 = vadd.f32 %v5699, %v6052
  %v6054 = vpop.f32.mrf.mxu0
  %6055 = vmatprep.mubr.bf16.mxu0 0
  %6056 = vmatmul.mubr.bf16.gmra.mxu0 %v5916
  %v6057 = vpop.f32.mrf.mxu0
  %v6058 = vadd.f32 %v5704, %v6057
  %v6059 = vpop.f32.mrf.mxu0
  %v6060 = vpop.f32.mrf.mxu0
  %v6061 = vadd.f32 %v5707, %v6060
  %v6062 = vpop.f32.mrf.mxu0
  %6063 = vmatprep.mubr.bf16.mxu0 0
  %6064 = vmatmul.mubr.bf16.gmra.mxu0 %v5918
  %v6065 = vpop.f32.mrf.mxu0
  %v6066 = vadd.f32 %v5712, %v6065
  %v6067 = vpop.f32.mrf.mxu0
  %v6068 = vpop.f32.mrf.mxu0
  %v6069 = vadd.f32 %v5715, %v6068
  %v6070 = vpop.f32.mrf.mxu0
  %6071 = vmatprep.mubr.bf16.mxu0 0
  %6072 = vmatmul.mubr.bf16.gmra.mxu0 %v5920
  %v6073 = vpop.f32.mrf.mxu0
  %v6074 = vadd.f32 %v5720, %v6073
  %v6075 = vpop.f32.mrf.mxu0
  %v6076 = vpop.f32.mrf.mxu0
  %v6077 = vadd.f32 %v5723, %v6076
  %v6078 = vpop.f32.mrf.mxu0
  %6079 = vmatprep.mubr.bf16.mxu0 0
  %6080 = vmatmul.mubr.bf16.gmra.mxu0 %v5922
  %v6081 = vpop.f32.mrf.mxu0
  %v6082 = vadd.f32 %v5728, %v6081
  %v6083 = vpop.f32.mrf.mxu0
  %v6084 = vpop.f32.mrf.mxu0
  %v6085 = vadd.f32 %v5731, %v6084
  %v6086 = vpop.f32.mrf.mxu0
  %6087 = vmatprep.mubr.bf16.mxu0 0
  %6088 = vmatmul.mubr.bf16.gmra.mxu0 %v5924
  %v6089 = vpop.f32.mrf.mxu0
  %v6090 = vadd.f32 %v5736, %v6089
  %v6091 = vpop.f32.mrf.mxu0
  %v6092 = vpop.f32.mrf.mxu0
  %v6093 = vadd.f32 %v5739, %v6092
  %v6094 = vpop.f32.mrf.mxu0
  %6095 = vmatprep.mubr.bf16.mxu0 0
  %6096 = vmatmul.mubr.bf16.gmra.mxu0 %v5926
  %v6097 = vpop.f32.mrf.mxu0
  %v6098 = vadd.f32 %v5744, %v6097
  %v6099 = vpop.f32.mrf.mxu0
  %v6100 = vpop.f32.mrf.mxu0
  %v6101 = vadd.f32 %v5747, %v6100
  %v6102 = vpop.f32.mrf.mxu0
  %6103 = vmatprep.mubr.bf16.mxu0 0
  %6104 = vmatmul.mubr.bf16.gmra.mxu0 %v5928
  %v6105 = vpop.f32.mrf.mxu0
  %v6106 = vadd.f32 %v5752, %v6105
  %v6107 = vpop.f32.mrf.mxu0
  %v6108 = vpop.f32.mrf.mxu0
  %v6109 = vadd.f32 %v5755, %v6108
  %v6110 = vpop.f32.mrf.mxu0
  %6111 = vmatprep.mubr.bf16.mxu0 0
  %6112 = vmatmul.mubr.bf16.gmra.mxu0 %v5930
  %v6113 = vpop.f32.mrf.mxu0
  %v6114 = vadd.f32 %v5760, %v6113
  %v6115 = vpop.f32.mrf.mxu0
  %v6116 = vpop.f32.mrf.mxu0
  %v6117 = vadd.f32 %v5763, %v6116
  %v6118 = vpop.f32.mrf.mxu0
  %6119 = vmatprep.mubr.bf16.mxu0 0
  %6120 = vmatmul.mubr.bf16.gmra.mxu0 %v5932
  %v6121 = vpop.f32.mrf.mxu0
  %v6122 = vadd.f32 %v5768, %v6121
  %v6123 = vpop.f32.mrf.mxu0
  %v6124 = vpop.f32.mrf.mxu0
  %v6125 = vadd.f32 %v5771, %v6124
  %v6126 = vpop.f32.mrf.mxu0
  %6127 = vmatprep.mubr.bf16.mxu0 0
  %6128 = vmatmul.mubr.bf16.gmra.mxu0 %v5902
  %v6129 = vpop.f32.mrf.mxu0
  %v6130 = vadd.f32 %v5776, %v6129
  %v6131 = vpop.f32.mrf.mxu0
  %v6132 = vpop.f32.mrf.mxu0
  %v6133 = vadd.f32 %v5779, %v6132
  %v6134 = vpop.f32.mrf.mxu0
  %6135 = vmatprep.mubr.bf16.mxu0 0
  %6136 = vmatmul.mubr.bf16.gmra.mxu0 %v5934
  %v6137 = vpop.f32.mrf.mxu0
  %v6138 = vadd.f32 %v5784, %v6137
  %v6139 = vpop.f32.mrf.mxu0
  %v6140 = vpop.f32.mrf.mxu0
  %v6141 = vadd.f32 %v5787, %v6140
  %v6142 = vpop.f32.mrf.mxu0
  %6143 = vmatprep.mubr.bf16.mxu0 0
  %6144 = vmatmul.mubr.bf16.gmra.mxu0 %v5936
  %v6145 = vpop.f32.mrf.mxu0
  %v6146 = vadd.f32 %v5792, %v6145
  %v6147 = vpop.f32.mrf.mxu0
  %v6148 = vpop.f32.mrf.mxu0
  %v6149 = vadd.f32 %v5795, %v6148
  %v6150 = vpop.f32.mrf.mxu0
  %6151 = vmatprep.mubr.bf16.mxu0 0
  %6152 = vmatmul.mubr.bf16.gmra.mxu0 %v5938
  %v6153 = vpop.f32.mrf.mxu0
  %v6154 = vadd.f32 %v5800, %v6153
  %v6155 = vpop.f32.mrf.mxu0
  %v6156 = vpop.f32.mrf.mxu0
  %v6157 = vadd.f32 %v5803, %v6156
  %v6158 = vpop.f32.mrf.mxu0
  %6159 = vmatprep.mubr.bf16.mxu0 0
  %6160 = vmatmul.mubr.bf16.gmra.mxu0 %v5940
  %v6161 = vpop.f32.mrf.mxu0
  %v6162 = vadd.f32 %v5808, %v6161
  %v6163 = vpop.f32.mrf.mxu0
  %v6164 = vpop.f32.mrf.mxu0
  %v6165 = vadd.f32 %v5811, %v6164
  %v6166 = vpop.f32.mrf.mxu0
  %6167 = vmatprep.mubr.bf16.mxu0 0
  %6168 = vmatmul.mubr.bf16.gmra.mxu0 %v5942
  %v6169 = vpop.f32.mrf.mxu0
  %v6170 = vadd.f32 %v5816, %v6169
  %v6171 = vpop.f32.mrf.mxu0
  %v6172 = vpop.f32.mrf.mxu0
  %v6173 = vadd.f32 %v5819, %v6172
  %v6174 = vpop.f32.mrf.mxu0
  %6175 = vmatprep.mubr.bf16.mxu0 0
  %6176 = vmatmul.mubr.bf16.gmra.mxu0 %v5944
  %v6177 = vpop.f32.mrf.mxu0
  %v6178 = vadd.f32 %v5824, %v6177
  %v6179 = vpop.f32.mrf.mxu0
  %v6180 = vpop.f32.mrf.mxu0
  %v6181 = vadd.f32 %v5827, %v6180
  %v6182 = vpop.f32.mrf.mxu0
  %6183 = vmatprep.mubr.bf16.mxu0 0
  %6184 = vmatmul.mubr.bf16.gmra.mxu0 %v5946
  %v6185 = vpop.f32.mrf.mxu0
  %v6186 = vadd.f32 %v5832, %v6185
  %v6187 = vpop.f32.mrf.mxu0
  %v6188 = vpop.f32.mrf.mxu0
  %v6189 = vadd.f32 %v5835, %v6188
  %v6190 = vpop.f32.mrf.mxu0
  %6191 = vmatprep.mubr.bf16.mxu0 0
  %6192 = vmatmul.mubr.bf16.gmra.mxu0 %v5948
  %v6193 = vpop.f32.mrf.mxu0
  %v6194 = vadd.f32 %v5840, %v6193
  %v6195 = vpop.f32.mrf.mxu0
  %v6196 = vpop.f32.mrf.mxu0
  %v6197 = vadd.f32 %v5843, %v6196
  %v6198 = vpop.f32.mrf.mxu0
  %6199 = vmatprep.mubr.bf16.mxu0 0
  %6200 = vmatmul.mubr.bf16.gmra.mxu0 %v5950
  %v6201 = vpop.f32.mrf.mxu0
  %v6202 = vadd.f32 %v5848, %v6201
  %v6203 = vpop.f32.mrf.mxu0
  %v6204 = vpop.f32.mrf.mxu0
  %v6205 = vadd.f32 %v5851, %v6204
  %v6206 = vpop.f32.mrf.mxu0
  %6207 = vmatprep.mubr.bf16.mxu0 0
  %6208 = vmatmul.mubr.bf16.gmra.mxu0 %v5952
  %v6209 = vpop.f32.mrf.mxu0
  %v6210 = vadd.f32 %v5856, %v6209
  %v6211 = vpop.f32.mrf.mxu0
  %v6212 = vpop.f32.mrf.mxu0
  %v6213 = vadd.f32 %v5859, %v6212
  %v6214 = vpop.f32.mrf.mxu0
  %6215 = vmatprep.mubr.bf16.mxu0 0
  %6216 = vmatmul.mubr.bf16.gmra.mxu0 %v5954
  %v6217 = vpop.f32.mrf.mxu0
  %v6218 = vadd.f32 %v5864, %v6217
  %v6219 = vpop.f32.mrf.mxu0
  %v6220 = vpop.f32.mrf.mxu0
  %v6221 = vadd.f32 %v5867, %v6220
  %v6222 = vpop.f32.mrf.mxu0
  %6223 = vmatprep.mubr.bf16.mxu0 0
  %6224 = vmatmul.mubr.bf16.gmra.mxu0 %v5956
  %v6225 = vpop.f32.mrf.mxu0
  %v6226 = vadd.f32 %v5872, %v6225
  %v6227 = vpop.f32.mrf.mxu0
  %v6228 = vpop.f32.mrf.mxu0
  %v6229 = vadd.f32 %v5875, %v6228
  %v6230 = vpop.f32.mrf.mxu0
  %6231 = vmatprep.mubr.bf16.mxu0 0
  %6232 = vmatmul.mubr.bf16.gmra.mxu0 %v5958
  %v6233 = vpop.f32.mrf.mxu0
  %v6234 = vadd.f32 %v5880, %v6233
  %v6235 = vpop.f32.mrf.mxu0
  %v6236 = vpop.f32.mrf.mxu0
  %v6237 = vadd.f32 %v5883, %v6236
  %v6238 = vpop.f32.mrf.mxu0
  %6239 = vmatprep.mubr.bf16.mxu0 0
  %6240 = vmatmul.mubr.bf16.gmra.mxu0 %v5960
  %v6241 = vpop.f32.mrf.mxu0
  %v6242 = vadd.f32 %v5888, %v6241
  %v6243 = vpop.f32.mrf.mxu0
  %v6244 = vpop.f32.mrf.mxu0
  %v6245 = vadd.f32 %v5891, %v6244
  %v6246 = vpop.f32.mrf.mxu0
  %6247 = vmatprep.mubr.bf16.mxu0 0
  %6248 = vmatmul.mubr.bf16.gmra.mxu0 %v5962
  %v6249 = vpop.f32.mrf.mxu0
  %v6250 = vadd.f32 %v5896, %v6249
  %v6251 = vpop.f32.mrf.mxu0
  %v6252 = vpop.f32.mrf.mxu0
  %v6253 = vadd.f32 %v5899, %v6252
  %v6254 = vpop.f32.mrf.mxu0
  %6255 = vdwg.mxu0
  %v6318 = vrot.slane %v5076, 1
  %v6319 = vrot.slane %v5109, 1
  %v6320 = vsel %vm1405, %v6318, %v6319
  %v6321 = vrot.slane %v5077, 1
  %v6322 = vrot.slane %v5110, 1
  %v6323 = vsel %vm1405, %v6321, %v6322
  %v6324 = vrot.slane %v5078, 1
  %v6325 = vrot.slane %v5111, 1
  %v6326 = vsel %vm1405, %v6324, %v6325
  %v6327 = vrot.slane %v5079, 1
  %v6328 = vrot.slane %v5112, 1
  %v6329 = vsel %vm1405, %v6327, %v6328
  %v6330 = vrot.slane %v5080, 1
  %v6331 = vrot.slane %v5113, 1
  %v6332 = vsel %vm1405, %v6330, %v6331
  %v6333 = vrot.slane %v5081, 1
  %v6334 = vrot.slane %v5114, 1
  %v6335 = vsel %vm1405, %v6333, %v6334
  %v6336 = vrot.slane %v5082, 1
  %v6337 = vrot.slane %v5115, 1
  %v6338 = vsel %vm1405, %v6336, %v6337
  %v6339 = vrot.slane %v5083, 1
  %v6340 = vrot.slane %v5116, 1
  %v6341 = vsel %vm1405, %v6339, %v6340
  %v6342 = vrot.slane %v5084, 1
  %v6343 = vrot.slane %v5117, 1
  %v6344 = vsel %vm1405, %v6342, %v6343
  %v6345 = vrot.slane %v5085, 1
  %v6346 = vrot.slane %v5118, 1
  %v6347 = vsel %vm1405, %v6345, %v6346
  %v6348 = vrot.slane %v5086, 1
  %v6349 = vrot.slane %v5119, 1
  %v6350 = vsel %vm1405, %v6348, %v6349
  %v6351 = vrot.slane %v5087, 1
  %v6352 = vrot.slane %v5120, 1
  %v6353 = vsel %vm1405, %v6351, %v6352
  %v6354 = vrot.slane %v5088, 1
  %v6355 = vrot.slane %v5121, 1
  %v6356 = vsel %vm1405, %v6354, %v6355
  %v6357 = vrot.slane %v5089, 1
  %v6358 = vrot.slane %v5122, 1
  %v6359 = vsel %vm1405, %v6357, %v6358
  %v6360 = vrot.slane %v5090, 1
  %v6361 = vrot.slane %v5123, 1
  %v6362 = vsel %vm1405, %v6360, %v6361
  %v6363 = vrot.slane %v5091, 1
  %v6364 = vrot.slane %v5124, 1
  %v6365 = vsel %vm1405, %v6363, %v6364
  %v6366 = vrot.slane %v5093, 1
  %v6367 = vrot.slane %v5126, 1
  %v6368 = vsel %vm1405, %v6366, %v6367
  %v6369 = vrot.slane %v5094, 1
  %v6370 = vrot.slane %v5127, 1
  %v6371 = vsel %vm1405, %v6369, %v6370
  %v6372 = vrot.slane %v5095, 1
  %v6373 = vrot.slane %v5128, 1
  %v6374 = vsel %vm1405, %v6372, %v6373
  %v6375 = vrot.slane %v5096, 1
  %v6376 = vrot.slane %v5129, 1
  %v6377 = vsel %vm1405, %v6375, %v6376
  %v6378 = vrot.slane %v5097, 1
  %v6379 = vrot.slane %v5130, 1
  %v6380 = vsel %vm1405, %v6378, %v6379
  %v6381 = vrot.slane %v5098, 1
  %v6382 = vrot.slane %v5131, 1
  %v6383 = vsel %vm1405, %v6381, %v6382
  %v6384 = vrot.slane %v5099, 1
  %v6385 = vrot.slane %v5132, 1
  %v6386 = vsel %vm1405, %v6384, %v6385
  %v6387 = vrot.slane %v5100, 1
  %v6388 = vrot.slane %v5133, 1
  %v6389 = vsel %vm1405, %v6387, %v6388
  %v6390 = vrot.slane %v5101, 1
  %v6391 = vrot.slane %v5134, 1
  %v6392 = vsel %vm1405, %v6390, %v6391
  %v6393 = vrot.slane %v5102, 1
  %v6394 = vrot.slane %v5135, 1
  %v6395 = vsel %vm1405, %v6393, %v6394
  %v6396 = vrot.slane %v5103, 1
  %v6397 = vrot.slane %v5136, 1
  %v6398 = vsel %vm1405, %v6396, %v6397
  %v6399 = vrot.slane %v5104, 1
  %v6400 = vrot.slane %v5137, 1
  %v6401 = vsel %vm1405, %v6399, %v6400
  %v6402 = vrot.slane %v5105, 1
  %v6403 = vrot.slane %v5138, 1
  %v6404 = vsel %vm1405, %v6402, %v6403
  %v6405 = vrot.slane %v5106, 1
  %v6406 = vrot.slane %v5139, 1
  %v6407 = vsel %vm1405, %v6405, %v6406
  %v6408 = vrot.slane %v5107, 1
  %v6409 = vrot.slane %v5140, 1
  %v6410 = vsel %vm1405, %v6408, %v6409
  %s6411 = scalar_lea.vmem %s4, 8
  %v6412 = vld [vmem:[%s6411] sm:$0xf]
  %v6414 = vsel %vm595, %v6320, 0
  %v6417 = vsel %vm595, %v6323, 0
  %v6420 = vsel %vm595, %v6326, 0
  %v6423 = vsel %vm595, %v6329, 0
  %v6426 = vsel %vm595, %v6332, 0
  %v6429 = vsel %vm595, %v6335, 0
  %v6432 = vsel %vm595, %v6338, 0
  %v6435 = vsel %vm595, %v6341, 0
  %v6438 = vsel %vm595, %v6344, 0
  %v6441 = vsel %vm595, %v6347, 0
  %v6444 = vsel %vm595, %v6350, 0
  %v6447 = vsel %vm595, %v6353, 0
  %v6450 = vsel %vm595, %v6356, 0
  %v6453 = vsel %vm595, %v6359, 0
  %v6456 = vsel %vm595, %v6362, 0
  %v6459 = vsel %vm595, %v6365, 0
  %v6462 = vsel %vm595, %v6368, 0
  %v6465 = vsel %vm595, %v6371, 0
  %v6468 = vsel %vm595, %v6374, 0
  %v6471 = vsel %vm595, %v6377, 0
  %v6474 = vsel %vm595, %v6380, 0
  %v6477 = vsel %vm595, %v6383, 0
  %v6480 = vsel %vm595, %v6386, 0
  %v6483 = vsel %vm595, %v6389, 0
  %v6486 = vsel %vm595, %v6392, 0
  %v6489 = vsel %vm595, %v6395, 0
  %v6492 = vsel %vm595, %v6398, 0
  %v6495 = vsel %vm595, %v6401, 0
  %v6498 = vsel %vm595, %v6404, 0
  %v6501 = vsel %vm595, %v6407, 0
  %v6504 = vsel %vm595, %v6410, 0
  %v6507 = vsel %vm692, %v6412, 0
  %6509 = vmatprep.subr.bf16.mxu0 0
  %6510 = vmatpush1.bf16.msra.mxu0 0
  %6511 = vmatprep.subr.bf16.mxu0 0
  %6512 = vmatpush1.bf16.msra.mxu0 0
  %6513 = vmatprep.subr.bf16.mxu0 0
  %6514 = vmatpush1.bf16.msra.mxu0 0
  %6515 = vmatprep.subr.bf16.mxu0 0
  %6516 = vmatpush1.bf16.msra.mxu0 0
  %6517 = vmatprep.subr.bf16.mxu0 0
  %6518 = vmatpush1.bf16.msra.mxu0 0
  %6519 = vmatprep.subr.bf16.mxu0 0
  %6520 = vmatpush1.bf16.msra.mxu0 0
  %6521 = vmatprep.subr.bf16.mxu0 0
  %6522 = vmatpush1.bf16.msra.mxu0 0
  %6523 = vmatprep.subr.bf16.mxu0 0
  %6524 = vmatpush1.bf16.msra.mxu0 %v6507
  %6525 = vmatprep.subr.bf16.mxu0 0
  %6526 = vmatpush2.bf16.msra.mxu0 0
  %6527 = vmatprep.subr.bf16.mxu0 0
  %6528 = vmatpush2.bf16.msra.mxu0 0
  %6529 = vmatprep.subr.bf16.mxu0 0
  %6530 = vmatpush2.bf16.msra.mxu0 0
  %6531 = vmatprep.subr.bf16.mxu0 0
  %6532 = vmatpush2.bf16.msra.mxu0 0
  %6533 = vmatprep.subr.bf16.mxu0 0
  %6534 = vmatpush2.bf16.msra.mxu0 0
  %6535 = vmatprep.subr.bf16.mxu0 0
  %6536 = vmatpush2.bf16.msra.mxu0 0
  %6537 = vmatprep.subr.bf16.mxu0 0
  %6538 = vmatpush2.bf16.msra.mxu0 0
  %6539 = vmatprep.subr.bf16.mxu0 0
  %6540 = vmatpush2.bf16.msra.mxu0 0
  %6541 = vmatprep.mubr.bf16.mxu0 0
  %6542 = vmatmul.mubr.bf16.gmra.mxu0 %v6414
  %v6543 = vpop.f32.mrf.mxu0
  %v6544 = vadd.f32 0.0, %v6543
  %v6545 = vpop.f32.mrf.mxu0
  %v6546 = vpop.f32.mrf.mxu0
  %v6547 = vadd.f32 0.0, %v6546
  %v6548 = vpop.f32.mrf.mxu0
  %6549 = vmatprep.mubr.bf16.mxu0 0
  %6550 = vmatmul.mubr.bf16.gmra.mxu0 %v6417
  %v6551 = vpop.f32.mrf.mxu0
  %v6552 = vadd.f32 0.0, %v6551
  %v6553 = vpop.f32.mrf.mxu0
  %v6554 = vpop.f32.mrf.mxu0
  %v6555 = vadd.f32 0.0, %v6554
  %v6556 = vpop.f32.mrf.mxu0
  %6557 = vmatprep.mubr.bf16.mxu0 0
  %6558 = vmatmul.mubr.bf16.gmra.mxu0 %v6420
  %v6559 = vpop.f32.mrf.mxu0
  %v6560 = vadd.f32 0.0, %v6559
  %v6561 = vpop.f32.mrf.mxu0
  %v6562 = vpop.f32.mrf.mxu0
  %v6563 = vadd.f32 0.0, %v6562
  %v6564 = vpop.f32.mrf.mxu0
  %6565 = vmatprep.mubr.bf16.mxu0 0
  %6566 = vmatmul.mubr.bf16.gmra.mxu0 %v6423
  %v6567 = vpop.f32.mrf.mxu0
  %v6568 = vadd.f32 0.0, %v6567
  %v6569 = vpop.f32.mrf.mxu0
  %v6570 = vpop.f32.mrf.mxu0
  %v6571 = vadd.f32 0.0, %v6570
  %v6572 = vpop.f32.mrf.mxu0
  %6573 = vmatprep.mubr.bf16.mxu0 0
  %6574 = vmatmul.mubr.bf16.gmra.mxu0 %v6426
  %v6575 = vpop.f32.mrf.mxu0
  %v6576 = vadd.f32 0.0, %v6575
  %v6577 = vpop.f32.mrf.mxu0
  %v6578 = vpop.f32.mrf.mxu0
  %v6579 = vadd.f32 0.0, %v6578
  %v6580 = vpop.f32.mrf.mxu0
  %6581 = vmatprep.mubr.bf16.mxu0 0
  %6582 = vmatmul.mubr.bf16.gmra.mxu0 %v6429
  %v6583 = vpop.f32.mrf.mxu0
  %v6584 = vadd.f32 0.0, %v6583
  %v6585 = vpop.f32.mrf.mxu0
  %v6586 = vpop.f32.mrf.mxu0
  %v6587 = vadd.f32 0.0, %v6586
  %v6588 = vpop.f32.mrf.mxu0
  %6589 = vmatprep.mubr.bf16.mxu0 0
  %6590 = vmatmul.mubr.bf16.gmra.mxu0 %v6432
  %v6591 = vpop.f32.mrf.mxu0
  %v6592 = vadd.f32 0.0, %v6591
  %v6593 = vpop.f32.mrf.mxu0
  %v6594 = vpop.f32.mrf.mxu0
  %v6595 = vadd.f32 0.0, %v6594
  %v6596 = vpop.f32.mrf.mxu0
  %6597 = vmatprep.mubr.bf16.mxu0 0
  %6598 = vmatmul.mubr.bf16.gmra.mxu0 %v6435
  %v6599 = vpop.f32.mrf.mxu0
  %v6600 = vadd.f32 0.0, %v6599
  %v6601 = vpop.f32.mrf.mxu0
  %v6602 = vpop.f32.mrf.mxu0
  %v6603 = vadd.f32 0.0, %v6602
  %v6604 = vpop.f32.mrf.mxu0
  %6605 = vmatprep.mubr.bf16.mxu0 0
  %6606 = vmatmul.mubr.bf16.gmra.mxu0 %v6438
  %v6607 = vpop.f32.mrf.mxu0
  %v6608 = vadd.f32 0.0, %v6607
  %v6609 = vpop.f32.mrf.mxu0
  %v6610 = vpop.f32.mrf.mxu0
  %v6611 = vadd.f32 0.0, %v6610
  %v6612 = vpop.f32.mrf.mxu0
  %6613 = vmatprep.mubr.bf16.mxu0 0
  %6614 = vmatmul.mubr.bf16.gmra.mxu0 %v6441
  %v6615 = vpop.f32.mrf.mxu0
  %v6616 = vadd.f32 0.0, %v6615
  %v6617 = vpop.f32.mrf.mxu0
  %v6618 = vpop.f32.mrf.mxu0
  %v6619 = vadd.f32 0.0, %v6618
  %v6620 = vpop.f32.mrf.mxu0
  %6621 = vmatprep.mubr.bf16.mxu0 0
  %6622 = vmatmul.mubr.bf16.gmra.mxu0 %v6444
  %v6623 = vpop.f32.mrf.mxu0
  %v6624 = vadd.f32 0.0, %v6623
  %v6625 = vpop.f32.mrf.mxu0
  %v6626 = vpop.f32.mrf.mxu0
  %v6627 = vadd.f32 0.0, %v6626
  %v6628 = vpop.f32.mrf.mxu0
  %6629 = vmatprep.mubr.bf16.mxu0 0
  %6630 = vmatmul.mubr.bf16.gmra.mxu0 %v6447
  %v6631 = vpop.f32.mrf.mxu0
  %v6632 = vadd.f32 0.0, %v6631
  %v6633 = vpop.f32.mrf.mxu0
  %v6634 = vpop.f32.mrf.mxu0
  %v6635 = vadd.f32 0.0, %v6634
  %v6636 = vpop.f32.mrf.mxu0
  %6637 = vmatprep.mubr.bf16.mxu0 0
  %6638 = vmatmul.mubr.bf16.gmra.mxu0 %v6450
  %v6639 = vpop.f32.mrf.mxu0
  %v6640 = vadd.f32 0.0, %v6639
  %v6641 = vpop.f32.mrf.mxu0
  %v6642 = vpop.f32.mrf.mxu0
  %v6643 = vadd.f32 0.0, %v6642
  %v6644 = vpop.f32.mrf.mxu0
  %6645 = vmatprep.mubr.bf16.mxu0 0
  %6646 = vmatmul.mubr.bf16.gmra.mxu0 %v6453
  %v6647 = vpop.f32.mrf.mxu0
  %v6648 = vadd.f32 0.0, %v6647
  %v6649 = vpop.f32.mrf.mxu0
  %v6650 = vpop.f32.mrf.mxu0
  %v6651 = vadd.f32 0.0, %v6650
  %v6652 = vpop.f32.mrf.mxu0
  %6653 = vmatprep.mubr.bf16.mxu0 0
  %6654 = vmatmul.mubr.bf16.gmra.mxu0 %v6456
  %v6655 = vpop.f32.mrf.mxu0
  %v6656 = vadd.f32 0.0, %v6655
  %v6657 = vpop.f32.mrf.mxu0
  %v6658 = vpop.f32.mrf.mxu0
  %v6659 = vadd.f32 0.0, %v6658
  %v6660 = vpop.f32.mrf.mxu0
  %6661 = vmatprep.mubr.bf16.mxu0 0
  %6662 = vmatmul.mubr.bf16.gmra.mxu0 %v6459
  %v6663 = vpop.f32.mrf.mxu0
  %v6664 = vadd.f32 0.0, %v6663
  %v6665 = vpop.f32.mrf.mxu0
  %v6666 = vpop.f32.mrf.mxu0
  %v6667 = vadd.f32 0.0, %v6666
  %v6668 = vpop.f32.mrf.mxu0
  %6669 = vmatprep.mubr.bf16.mxu0 0
  %6670 = vmatmul.mubr.bf16.gmra.mxu0 %v6414
  %v6671 = vpop.f32.mrf.mxu0
  %v6672 = vadd.f32 0.0, %v6671
  %v6673 = vpop.f32.mrf.mxu0
  %v6674 = vpop.f32.mrf.mxu0
  %v6675 = vadd.f32 0.0, %v6674
  %v6676 = vpop.f32.mrf.mxu0
  %6677 = vmatprep.mubr.bf16.mxu0 0
  %6678 = vmatmul.mubr.bf16.gmra.mxu0 %v6462
  %v6679 = vpop.f32.mrf.mxu0
  %v6680 = vadd.f32 0.0, %v6679
  %v6681 = vpop.f32.mrf.mxu0
  %v6682 = vpop.f32.mrf.mxu0
  %v6683 = vadd.f32 0.0, %v6682
  %v6684 = vpop.f32.mrf.mxu0
  %6685 = vmatprep.mubr.bf16.mxu0 0
  %6686 = vmatmul.mubr.bf16.gmra.mxu0 %v6465
  %v6687 = vpop.f32.mrf.mxu0
  %v6688 = vadd.f32 0.0, %v6687
  %v6689 = vpop.f32.mrf.mxu0
  %v6690 = vpop.f32.mrf.mxu0
  %v6691 = vadd.f32 0.0, %v6690
  %v6692 = vpop.f32.mrf.mxu0
  %6693 = vmatprep.mubr.bf16.mxu0 0
  %6694 = vmatmul.mubr.bf16.gmra.mxu0 %v6468
  %v6695 = vpop.f32.mrf.mxu0
  %v6696 = vadd.f32 0.0, %v6695
  %v6697 = vpop.f32.mrf.mxu0
  %v6698 = vpop.f32.mrf.mxu0
  %v6699 = vadd.f32 0.0, %v6698
  %v6700 = vpop.f32.mrf.mxu0
  %6701 = vmatprep.mubr.bf16.mxu0 0
  %6702 = vmatmul.mubr.bf16.gmra.mxu0 %v6471
  %v6703 = vpop.f32.mrf.mxu0
  %v6704 = vadd.f32 0.0, %v6703
  %v6705 = vpop.f32.mrf.mxu0
  %v6706 = vpop.f32.mrf.mxu0
  %v6707 = vadd.f32 0.0, %v6706
  %v6708 = vpop.f32.mrf.mxu0
  %6709 = vmatprep.mubr.bf16.mxu0 0
  %6710 = vmatmul.mubr.bf16.gmra.mxu0 %v6474
  %v6711 = vpop.f32.mrf.mxu0
  %v6712 = vadd.f32 0.0, %v6711
  %v6713 = vpop.f32.mrf.mxu0
  %v6714 = vpop.f32.mrf.mxu0
  %v6715 = vadd.f32 0.0, %v6714
  %v6716 = vpop.f32.mrf.mxu0
  %6717 = vmatprep.mubr.bf16.mxu0 0
  %6718 = vmatmul.mubr.bf16.gmra.mxu0 %v6477
  %v6719 = vpop.f32.mrf.mxu0
  %v6720 = vadd.f32 0.0, %v6719
  %v6721 = vpop.f32.mrf.mxu0
  %v6722 = vpop.f32.mrf.mxu0
  %v6723 = vadd.f32 0.0, %v6722
  %v6724 = vpop.f32.mrf.mxu0
  %6725 = vmatprep.mubr.bf16.mxu0 0
  %6726 = vmatmul.mubr.bf16.gmra.mxu0 %v6480
  %v6727 = vpop.f32.mrf.mxu0
  %v6728 = vadd.f32 0.0, %v6727
  %v6729 = vpop.f32.mrf.mxu0
  %v6730 = vpop.f32.mrf.mxu0
  %v6731 = vadd.f32 0.0, %v6730
  %v6732 = vpop.f32.mrf.mxu0
  %6733 = vmatprep.mubr.bf16.mxu0 0
  %6734 = vmatmul.mubr.bf16.gmra.mxu0 %v6483
  %v6735 = vpop.f32.mrf.mxu0
  %v6736 = vadd.f32 0.0, %v6735
  %v6737 = vpop.f32.mrf.mxu0
  %v6738 = vpop.f32.mrf.mxu0
  %v6739 = vadd.f32 0.0, %v6738
  %v6740 = vpop.f32.mrf.mxu0
  %6741 = vmatprep.mubr.bf16.mxu0 0
  %6742 = vmatmul.mubr.bf16.gmra.mxu0 %v6486
  %v6743 = vpop.f32.mrf.mxu0
  %v6744 = vadd.f32 0.0, %v6743
  %v6745 = vpop.f32.mrf.mxu0
  %v6746 = vpop.f32.mrf.mxu0
  %v6747 = vadd.f32 0.0, %v6746
  %v6748 = vpop.f32.mrf.mxu0
  %6749 = vmatprep.mubr.bf16.mxu0 0
  %6750 = vmatmul.mubr.bf16.gmra.mxu0 %v6489
  %v6751 = vpop.f32.mrf.mxu0
  %v6752 = vadd.f32 0.0, %v6751
  %v6753 = vpop.f32.mrf.mxu0
  %v6754 = vpop.f32.mrf.mxu0
  %v6755 = vadd.f32 0.0, %v6754
  %v6756 = vpop.f32.mrf.mxu0
  %6757 = vmatprep.mubr.bf16.mxu0 0
  %6758 = vmatmul.mubr.bf16.gmra.mxu0 %v6492
  %v6759 = vpop.f32.mrf.mxu0
  %v6760 = vadd.f32 0.0, %v6759
  %v6761 = vpop.f32.mrf.mxu0
  %v6762 = vpop.f32.mrf.mxu0
  %v6763 = vadd.f32 0.0, %v6762
  %v6764 = vpop.f32.mrf.mxu0
  %6765 = vmatprep.mubr.bf16.mxu0 0
  %6766 = vmatmul.mubr.bf16.gmra.mxu0 %v6495
  %v6767 = vpop.f32.mrf.mxu0
  %v6768 = vadd.f32 0.0, %v6767
  %v6769 = vpop.f32.mrf.mxu0
  %v6770 = vpop.f32.mrf.mxu0
  %v6771 = vadd.f32 0.0, %v6770
  %v6772 = vpop.f32.mrf.mxu0
  %6773 = vmatprep.mubr.bf16.mxu0 0
  %6774 = vmatmul.mubr.bf16.gmra.mxu0 %v6498
  %v6775 = vpop.f32.mrf.mxu0
  %v6776 = vadd.f32 0.0, %v6775
  %v6777 = vpop.f32.mrf.mxu0
  %v6778 = vpop.f32.mrf.mxu0
  %v6779 = vadd.f32 0.0, %v6778
  %v6780 = vpop.f32.mrf.mxu0
  %6781 = vmatprep.mubr.bf16.mxu0 0
  %6782 = vmatmul.mubr.bf16.gmra.mxu0 %v6501
  %v6783 = vpop.f32.mrf.mxu0
  %v6784 = vadd.f32 0.0, %v6783
  %v6785 = vpop.f32.mrf.mxu0
  %v6786 = vpop.f32.mrf.mxu0
  %v6787 = vadd.f32 0.0, %v6786
  %v6788 = vpop.f32.mrf.mxu0
  %6789 = vmatprep.mubr.bf16.mxu0 0
  %6790 = vmatmul.mubr.bf16.gmra.mxu0 %v6504
  %v6791 = vpop.f32.mrf.mxu0
  %v6792 = vadd.f32 0.0, %v6791
  %v6793 = vpop.f32.mrf.mxu0
  %v6794 = vpop.f32.mrf.mxu0
  %v6795 = vadd.f32 0.0, %v6794
  %v6796 = vpop.f32.mrf.mxu0
  %6797 = vdwg.mxu0
  %v6798 = vadd.f32 %v6002, %v6544
  %v6799 = vadd.f32 %v6005, %v6547
  %v6800 = vadd.f32 %v6010, %v6552
  %v6801 = vadd.f32 %v6013, %v6555
  %v6802 = vadd.f32 %v6018, %v6560
  %v6803 = vadd.f32 %v6021, %v6563
  %v6804 = vadd.f32 %v6026, %v6568
  %v6805 = vadd.f32 %v6029, %v6571
  %v6806 = vadd.f32 %v6034, %v6576
  %v6807 = vadd.f32 %v6037, %v6579
  %v6808 = vadd.f32 %v6042, %v6584
  %v6809 = vadd.f32 %v6045, %v6587
  %v6810 = vadd.f32 %v6050, %v6592
  %v6811 = vadd.f32 %v6053, %v6595
  %v6812 = vadd.f32 %v6058, %v6600
  %v6813 = vadd.f32 %v6061, %v6603
  %v6814 = vadd.f32 %v6066, %v6608
  %v6815 = vadd.f32 %v6069, %v6611
  %v6816 = vadd.f32 %v6074, %v6616
  %v6817 = vadd.f32 %v6077, %v6619
  %v6818 = vadd.f32 %v6082, %v6624
  %v6819 = vadd.f32 %v6085, %v6627
  %v6820 = vadd.f32 %v6090, %v6632
  %v6821 = vadd.f32 %v6093, %v6635
  %v6822 = vadd.f32 %v6098, %v6640
  %v6823 = vadd.f32 %v6101, %v6643
  %v6824 = vadd.f32 %v6106, %v6648
  %v6825 = vadd.f32 %v6109, %v6651
  %v6826 = vadd.f32 %v6114, %v6656
  %v6827 = vadd.f32 %v6117, %v6659
  %v6828 = vadd.f32 %v6122, %v6664
  %v6829 = vadd.f32 %v6125, %v6667
  %v6830 = vadd.f32 %v6130, %v6672
  %v6831 = vadd.f32 %v6133, %v6675
  %v6832 = vadd.f32 %v6138, %v6680
  %v6833 = vadd.f32 %v6141, %v6683
  %v6834 = vadd.f32 %v6146, %v6688
  %v6835 = vadd.f32 %v6149, %v6691
  %v6836 = vadd.f32 %v6154, %v6696
  %v6837 = vadd.f32 %v6157, %v6699
  %v6838 = vadd.f32 %v6162, %v6704
  %v6839 = vadd.f32 %v6165, %v6707
  %v6840 = vadd.f32 %v6170, %v6712
  %v6841 = vadd.f32 %v6173, %v6715
  %v6842 = vadd.f32 %v6178, %v6720
  %v6843 = vadd.f32 %v6181, %v6723
  %v6844 = vadd.f32 %v6186, %v6728
  %v6845 = vadd.f32 %v6189, %v6731
  %v6846 = vadd.f32 %v6194, %v6736
  %v6847 = vadd.f32 %v6197, %v6739
  %v6848 = vadd.f32 %v6202, %v6744
  %v6849 = vadd.f32 %v6205, %v6747
  %v6850 = vadd.f32 %v6210, %v6752
  %v6851 = vadd.f32 %v6213, %v6755
  %v6852 = vadd.f32 %v6218, %v6760
  %v6853 = vadd.f32 %v6221, %v6763
  %v6854 = vadd.f32 %v6226, %v6768
  %v6855 = vadd.f32 %v6229, %v6771
  %v6856 = vadd.f32 %v6234, %v6776
  %v6857 = vadd.f32 %v6237, %v6779
  %v6858 = vadd.f32 %v6242, %v6784
  %v6859 = vadd.f32 %v6245, %v6787
  %v6860 = vadd.f32 %v6250, %v6792
  %v6861 = vadd.f32 %v6253, %v6795
  %s6862 = scalar_lea.vmem %s4, 12
  %v6863 = vld [vmem:[%s6862] sm:$0xf]
  %v6865 = vsel %vm595, %v5092, 0
  %v6868 = vsel %vm595, %v5108, 0
  %v6871 = vsel %vm692, %v6863, 0
  %6873 = vmatprep.subr.bf16.mxu0 0
  %6874 = vmatpush1.bf16.msra.mxu0 0
  %6875 = vmatprep.subr.bf16.mxu0 0
  %6876 = vmatpush1.bf16.msra.mxu0 0
  %6877 = vmatprep.subr.bf16.mxu0 0
  %6878 = vmatpush1.bf16.msra.mxu0 0
  %6879 = vmatprep.subr.bf16.mxu0 0
  %6880 = vmatpush1.bf16.msra.mxu0 0
  %6881 = vmatprep.subr.bf16.mxu0 0
  %6882 = vmatpush1.bf16.msra.mxu0 0
  %6883 = vmatprep.subr.bf16.mxu0 0
  %6884 = vmatpush1.bf16.msra.mxu0 0
  %6885 = vmatprep.subr.bf16.mxu0 0
  %6886 = vmatpush1.bf16.msra.mxu0 0
  %6887 = vmatprep.subr.bf16.mxu0 0
  %6888 = vmatpush1.bf16.msra.mxu0 %v6871
  %6889 = vmatprep.subr.bf16.mxu0 0
  %6890 = vmatpush2.bf16.msra.mxu0 0
  %6891 = vmatprep.subr.bf16.mxu0 0
  %6892 = vmatpush2.bf16.msra.mxu0 0
  %6893 = vmatprep.subr.bf16.mxu0 0
  %6894 = vmatpush2.bf16.msra.mxu0 0
  %6895 = vmatprep.subr.bf16.mxu0 0
  %6896 = vmatpush2.bf16.msra.mxu0 0
  %6897 = vmatprep.subr.bf16.mxu0 0
  %6898 = vmatpush2.bf16.msra.mxu0 0
  %6899 = vmatprep.subr.bf16.mxu0 0
  %6900 = vmatpush2.bf16.msra.mxu0 0
  %6901 = vmatprep.subr.bf16.mxu0 0
  %6902 = vmatpush2.bf16.msra.mxu0 0
  %6903 = vmatprep.subr.bf16.mxu0 0
  %6904 = vmatpush2.bf16.msra.mxu0 0
  %6905 = vmatprep.mubr.bf16.mxu0 0
  %6906 = vmatmul.mubr.bf16.gmra.mxu0 %v5904
  %v6907 = vpop.f32.mrf.mxu0
  %v6908 = vadd.f32 0.0, %v6907
  %v6909 = vpop.f32.mrf.mxu0
  %v6910 = vpop.f32.mrf.mxu0
  %v6911 = vadd.f32 0.0, %v6910
  %v6912 = vpop.f32.mrf.mxu0
  %6913 = vmatprep.mubr.bf16.mxu0 0
  %6914 = vmatmul.mubr.bf16.gmra.mxu0 %v5906
  %v6915 = vpop.f32.mrf.mxu0
  %v6916 = vadd.f32 0.0, %v6915
  %v6917 = vpop.f32.mrf.mxu0
  %v6918 = vpop.f32.mrf.mxu0
  %v6919 = vadd.f32 0.0, %v6918
  %v6920 = vpop.f32.mrf.mxu0
  %6921 = vmatprep.mubr.bf16.mxu0 0
  %6922 = vmatmul.mubr.bf16.gmra.mxu0 %v5908
  %v6923 = vpop.f32.mrf.mxu0
  %v6924 = vadd.f32 0.0, %v6923
  %v6925 = vpop.f32.mrf.mxu0
  %v6926 = vpop.f32.mrf.mxu0
  %v6927 = vadd.f32 0.0, %v6926
  %v6928 = vpop.f32.mrf.mxu0
  %6929 = vmatprep.mubr.bf16.mxu0 0
  %6930 = vmatmul.mubr.bf16.gmra.mxu0 %v5910
  %v6931 = vpop.f32.mrf.mxu0
  %v6932 = vadd.f32 0.0, %v6931
  %v6933 = vpop.f32.mrf.mxu0
  %v6934 = vpop.f32.mrf.mxu0
  %v6935 = vadd.f32 0.0, %v6934
  %v6936 = vpop.f32.mrf.mxu0
  %6937 = vmatprep.mubr.bf16.mxu0 0
  %6938 = vmatmul.mubr.bf16.gmra.mxu0 %v5912
  %v6939 = vpop.f32.mrf.mxu0
  %v6940 = vadd.f32 0.0, %v6939
  %v6941 = vpop.f32.mrf.mxu0
  %v6942 = vpop.f32.mrf.mxu0
  %v6943 = vadd.f32 0.0, %v6942
  %v6944 = vpop.f32.mrf.mxu0
  %6945 = vmatprep.mubr.bf16.mxu0 0
  %6946 = vmatmul.mubr.bf16.gmra.mxu0 %v5914
  %v6947 = vpop.f32.mrf.mxu0
  %v6948 = vadd.f32 0.0, %v6947
  %v6949 = vpop.f32.mrf.mxu0
  %v6950 = vpop.f32.mrf.mxu0
  %v6951 = vadd.f32 0.0, %v6950
  %v6952 = vpop.f32.mrf.mxu0
  %6953 = vmatprep.mubr.bf16.mxu0 0
  %6954 = vmatmul.mubr.bf16.gmra.mxu0 %v5916
  %v6955 = vpop.f32.mrf.mxu0
  %v6956 = vadd.f32 0.0, %v6955
  %v6957 = vpop.f32.mrf.mxu0
  %v6958 = vpop.f32.mrf.mxu0
  %v6959 = vadd.f32 0.0, %v6958
  %v6960 = vpop.f32.mrf.mxu0
  %6961 = vmatprep.mubr.bf16.mxu0 0
  %6962 = vmatmul.mubr.bf16.gmra.mxu0 %v5918
  %v6963 = vpop.f32.mrf.mxu0
  %v6964 = vadd.f32 0.0, %v6963
  %v6965 = vpop.f32.mrf.mxu0
  %v6966 = vpop.f32.mrf.mxu0
  %v6967 = vadd.f32 0.0, %v6966
  %v6968 = vpop.f32.mrf.mxu0
  %6969 = vmatprep.mubr.bf16.mxu0 0
  %6970 = vmatmul.mubr.bf16.gmra.mxu0 %v5920
  %v6971 = vpop.f32.mrf.mxu0
  %v6972 = vadd.f32 0.0, %v6971
  %v6973 = vpop.f32.mrf.mxu0
  %v6974 = vpop.f32.mrf.mxu0
  %v6975 = vadd.f32 0.0, %v6974
  %v6976 = vpop.f32.mrf.mxu0
  %6977 = vmatprep.mubr.bf16.mxu0 0
  %6978 = vmatmul.mubr.bf16.gmra.mxu0 %v5922
  %v6979 = vpop.f32.mrf.mxu0
  %v6980 = vadd.f32 0.0, %v6979
  %v6981 = vpop.f32.mrf.mxu0
  %v6982 = vpop.f32.mrf.mxu0
  %v6983 = vadd.f32 0.0, %v6982
  %v6984 = vpop.f32.mrf.mxu0
  %6985 = vmatprep.mubr.bf16.mxu0 0
  %6986 = vmatmul.mubr.bf16.gmra.mxu0 %v5924
  %v6987 = vpop.f32.mrf.mxu0
  %v6988 = vadd.f32 0.0, %v6987
  %v6989 = vpop.f32.mrf.mxu0
  %v6990 = vpop.f32.mrf.mxu0
  %v6991 = vadd.f32 0.0, %v6990
  %v6992 = vpop.f32.mrf.mxu0
  %6993 = vmatprep.mubr.bf16.mxu0 0
  %6994 = vmatmul.mubr.bf16.gmra.mxu0 %v5926
  %v6995 = vpop.f32.mrf.mxu0
  %v6996 = vadd.f32 0.0, %v6995
  %v6997 = vpop.f32.mrf.mxu0
  %v6998 = vpop.f32.mrf.mxu0
  %v6999 = vadd.f32 0.0, %v6998
  %v7000 = vpop.f32.mrf.mxu0
  %7001 = vmatprep.mubr.bf16.mxu0 0
  %7002 = vmatmul.mubr.bf16.gmra.mxu0 %v5928
  %v7003 = vpop.f32.mrf.mxu0
  %v7004 = vadd.f32 0.0, %v7003
  %v7005 = vpop.f32.mrf.mxu0
  %v7006 = vpop.f32.mrf.mxu0
  %v7007 = vadd.f32 0.0, %v7006
  %v7008 = vpop.f32.mrf.mxu0
  %7009 = vmatprep.mubr.bf16.mxu0 0
  %7010 = vmatmul.mubr.bf16.gmra.mxu0 %v5930
  %v7011 = vpop.f32.mrf.mxu0
  %v7012 = vadd.f32 0.0, %v7011
  %v7013 = vpop.f32.mrf.mxu0
  %v7014 = vpop.f32.mrf.mxu0
  %v7015 = vadd.f32 0.0, %v7014
  %v7016 = vpop.f32.mrf.mxu0
  %7017 = vmatprep.mubr.bf16.mxu0 0
  %7018 = vmatmul.mubr.bf16.gmra.mxu0 %v5932
  %v7019 = vpop.f32.mrf.mxu0
  %v7020 = vadd.f32 0.0, %v7019
  %v7021 = vpop.f32.mrf.mxu0
  %v7022 = vpop.f32.mrf.mxu0
  %v7023 = vadd.f32 0.0, %v7022
  %v7024 = vpop.f32.mrf.mxu0
  %7025 = vmatprep.mubr.bf16.mxu0 0
  %7026 = vmatmul.mubr.bf16.gmra.mxu0 %v6865
  %v7027 = vpop.f32.mrf.mxu0
  %v7028 = vadd.f32 0.0, %v7027
  %v7029 = vpop.f32.mrf.mxu0
  %v7030 = vpop.f32.mrf.mxu0
  %v7031 = vadd.f32 0.0, %v7030
  %v7032 = vpop.f32.mrf.mxu0
  %7033 = vmatprep.mubr.bf16.mxu0 0
  %7034 = vmatmul.mubr.bf16.gmra.mxu0 %v5934
  %v7035 = vpop.f32.mrf.mxu0
  %v7036 = vadd.f32 0.0, %v7035
  %v7037 = vpop.f32.mrf.mxu0
  %v7038 = vpop.f32.mrf.mxu0
  %v7039 = vadd.f32 0.0, %v7038
  %v7040 = vpop.f32.mrf.mxu0
  %7041 = vmatprep.mubr.bf16.mxu0 0
  %7042 = vmatmul.mubr.bf16.gmra.mxu0 %v5936
  %v7043 = vpop.f32.mrf.mxu0
  %v7044 = vadd.f32 0.0, %v7043
  %v7045 = vpop.f32.mrf.mxu0
  %v7046 = vpop.f32.mrf.mxu0
  %v7047 = vadd.f32 0.0, %v7046
  %v7048 = vpop.f32.mrf.mxu0
  %7049 = vmatprep.mubr.bf16.mxu0 0
  %7050 = vmatmul.mubr.bf16.gmra.mxu0 %v5938
  %v7051 = vpop.f32.mrf.mxu0
  %v7052 = vadd.f32 0.0, %v7051
  %v7053 = vpop.f32.mrf.mxu0
  %v7054 = vpop.f32.mrf.mxu0
  %v7055 = vadd.f32 0.0, %v7054
  %v7056 = vpop.f32.mrf.mxu0
  %7057 = vmatprep.mubr.bf16.mxu0 0
  %7058 = vmatmul.mubr.bf16.gmra.mxu0 %v5940
  %v7059 = vpop.f32.mrf.mxu0
  %v7060 = vadd.f32 0.0, %v7059
  %v7061 = vpop.f32.mrf.mxu0
  %v7062 = vpop.f32.mrf.mxu0
  %v7063 = vadd.f32 0.0, %v7062
  %v7064 = vpop.f32.mrf.mxu0
  %7065 = vmatprep.mubr.bf16.mxu0 0
  %7066 = vmatmul.mubr.bf16.gmra.mxu0 %v5942
  %v7067 = vpop.f32.mrf.mxu0
  %v7068 = vadd.f32 0.0, %v7067
  %v7069 = vpop.f32.mrf.mxu0
  %v7070 = vpop.f32.mrf.mxu0
  %v7071 = vadd.f32 0.0, %v7070
  %v7072 = vpop.f32.mrf.mxu0
  %7073 = vmatprep.mubr.bf16.mxu0 0
  %7074 = vmatmul.mubr.bf16.gmra.mxu0 %v5944
  %v7075 = vpop.f32.mrf.mxu0
  %v7076 = vadd.f32 0.0, %v7075
  %v7077 = vpop.f32.mrf.mxu0
  %v7078 = vpop.f32.mrf.mxu0
  %v7079 = vadd.f32 0.0, %v7078
  %v7080 = vpop.f32.mrf.mxu0
  %7081 = vmatprep.mubr.bf16.mxu0 0
  %7082 = vmatmul.mubr.bf16.gmra.mxu0 %v5946
  %v7083 = vpop.f32.mrf.mxu0
  %v7084 = vadd.f32 0.0, %v7083
  %v7085 = vpop.f32.mrf.mxu0
  %v7086 = vpop.f32.mrf.mxu0
  %v7087 = vadd.f32 0.0, %v7086
  %v7088 = vpop.f32.mrf.mxu0
  %7089 = vmatprep.mubr.bf16.mxu0 0
  %7090 = vmatmul.mubr.bf16.gmra.mxu0 %v5948
  %v7091 = vpop.f32.mrf.mxu0
  %v7092 = vadd.f32 0.0, %v7091
  %v7093 = vpop.f32.mrf.mxu0
  %v7094 = vpop.f32.mrf.mxu0
  %v7095 = vadd.f32 0.0, %v7094
  %v7096 = vpop.f32.mrf.mxu0
  %7097 = vmatprep.mubr.bf16.mxu0 0
  %7098 = vmatmul.mubr.bf16.gmra.mxu0 %v5950
  %v7099 = vpop.f32.mrf.mxu0
  %v7100 = vadd.f32 0.0, %v7099
  %v7101 = vpop.f32.mrf.mxu0
  %v7102 = vpop.f32.mrf.mxu0
  %v7103 = vadd.f32 0.0, %v7102
  %v7104 = vpop.f32.mrf.mxu0
  %7105 = vmatprep.mubr.bf16.mxu0 0
  %7106 = vmatmul.mubr.bf16.gmra.mxu0 %v5952
  %v7107 = vpop.f32.mrf.mxu0
  %v7108 = vadd.f32 0.0, %v7107
  %v7109 = vpop.f32.mrf.mxu0
  %v7110 = vpop.f32.mrf.mxu0
  %v7111 = vadd.f32 0.0, %v7110
  %v7112 = vpop.f32.mrf.mxu0
  %7113 = vmatprep.mubr.bf16.mxu0 0
  %7114 = vmatmul.mubr.bf16.gmra.mxu0 %v5954
  %v7115 = vpop.f32.mrf.mxu0
  %v7116 = vadd.f32 0.0, %v7115
  %v7117 = vpop.f32.mrf.mxu0
  %v7118 = vpop.f32.mrf.mxu0
  %v7119 = vadd.f32 0.0, %v7118
  %v7120 = vpop.f32.mrf.mxu0
  %7121 = vmatprep.mubr.bf16.mxu0 0
  %7122 = vmatmul.mubr.bf16.gmra.mxu0 %v5956
  %v7123 = vpop.f32.mrf.mxu0
  %v7124 = vadd.f32 0.0, %v7123
  %v7125 = vpop.f32.mrf.mxu0
  %v7126 = vpop.f32.mrf.mxu0
  %v7127 = vadd.f32 0.0, %v7126
  %v7128 = vpop.f32.mrf.mxu0
  %7129 = vmatprep.mubr.bf16.mxu0 0
  %7130 = vmatmul.mubr.bf16.gmra.mxu0 %v5958
  %v7131 = vpop.f32.mrf.mxu0
  %v7132 = vadd.f32 0.0, %v7131
  %v7133 = vpop.f32.mrf.mxu0
  %v7134 = vpop.f32.mrf.mxu0
  %v7135 = vadd.f32 0.0, %v7134
  %v7136 = vpop.f32.mrf.mxu0
  %7137 = vmatprep.mubr.bf16.mxu0 0
  %7138 = vmatmul.mubr.bf16.gmra.mxu0 %v5960
  %v7139 = vpop.f32.mrf.mxu0
  %v7140 = vadd.f32 0.0, %v7139
  %v7141 = vpop.f32.mrf.mxu0
  %v7142 = vpop.f32.mrf.mxu0
  %v7143 = vadd.f32 0.0, %v7142
  %v7144 = vpop.f32.mrf.mxu0
  %7145 = vmatprep.mubr.bf16.mxu0 0
  %7146 = vmatmul.mubr.bf16.gmra.mxu0 %v5962
  %v7147 = vpop.f32.mrf.mxu0
  %v7148 = vadd.f32 0.0, %v7147
  %v7149 = vpop.f32.mrf.mxu0
  %v7150 = vpop.f32.mrf.mxu0
  %v7151 = vadd.f32 0.0, %v7150
  %v7152 = vpop.f32.mrf.mxu0
  %7153 = vmatprep.mubr.bf16.mxu0 0
  %7154 = vmatmul.mubr.bf16.gmra.mxu0 %v6868
  %v7155 = vpop.f32.mrf.mxu0
  %v7156 = vadd.f32 0.0, %v7155
  %v7157 = vpop.f32.mrf.mxu0
  %v7158 = vpop.f32.mrf.mxu0
  %v7159 = vadd.f32 0.0, %v7158
  %v7160 = vpop.f32.mrf.mxu0
  %7161 = vdwg.mxu0
  %v7162 = vadd.f32 %v6798, %v6908
  %v7163 = vadd.f32 %v6799, %v6911
  %v7164 = vadd.f32 %v6800, %v6916
  %v7165 = vadd.f32 %v6801, %v6919
  %v7166 = vadd.f32 %v6802, %v6924
  %v7167 = vadd.f32 %v6803, %v6927
  %v7168 = vadd.f32 %v6804, %v6932
  %v7169 = vadd.f32 %v6805, %v6935
  %v7170 = vadd.f32 %v6806, %v6940
  %v7171 = vadd.f32 %v6807, %v6943
  %v7172 = vadd.f32 %v6808, %v6948
  %v7173 = vadd.f32 %v6809, %v6951
  %v7174 = vadd.f32 %v6810, %v6956
  %v7175 = vadd.f32 %v6811, %v6959
  %v7176 = vadd.f32 %v6812, %v6964
  %v7177 = vadd.f32 %v6813, %v6967
  %v7178 = vadd.f32 %v6814, %v6972
  %v7179 = vadd.f32 %v6815, %v6975
  %v7180 = vadd.f32 %v6816, %v6980
  %v7181 = vadd.f32 %v6817, %v6983
  %v7182 = vadd.f32 %v6818, %v6988
  %v7183 = vadd.f32 %v6819, %v6991
  %v7184 = vadd.f32 %v6820, %v6996
  %v7185 = vadd.f32 %v6821, %v6999
  %v7186 = vadd.f32 %v6822, %v7004
  %v7187 = vadd.f32 %v6823, %v7007
  %v7188 = vadd.f32 %v6824, %v7012
  %v7189 = vadd.f32 %v6825, %v7015
  %v7190 = vadd.f32 %v6826, %v7020
  %v7191 = vadd.f32 %v6827, %v7023
  %v7192 = vadd.f32 %v6828, %v7028
  %v7193 = vadd.f32 %v6829, %v7031
  %v7194 = vadd.f32 %v6830, %v7036
  %v7195 = vadd.f32 %v6831, %v7039
  %v7196 = vadd.f32 %v6832, %v7044
  %v7197 = vadd.f32 %v6833, %v7047
  %v7198 = vadd.f32 %v6834, %v7052
  %v7199 = vadd.f32 %v6835, %v7055
  %v7200 = vadd.f32 %v6836, %v7060
  %v7201 = vadd.f32 %v6837, %v7063
  %v7202 = vadd.f32 %v6838, %v7068
  %v7203 = vadd.f32 %v6839, %v7071
  %v7204 = vadd.f32 %v6840, %v7076
  %v7205 = vadd.f32 %v6841, %v7079
  %v7206 = vadd.f32 %v6842, %v7084
  %v7207 = vadd.f32 %v6843, %v7087
  %v7208 = vadd.f32 %v6844, %v7092
  %v7209 = vadd.f32 %v6845, %v7095
  %v7210 = vadd.f32 %v6846, %v7100
  %v7211 = vadd.f32 %v6847, %v7103
  %v7212 = vadd.f32 %v6848, %v7108
  %v7213 = vadd.f32 %v6849, %v7111
  %v7214 = vadd.f32 %v6850, %v7116
  %v7215 = vadd.f32 %v6851, %v7119
  %v7216 = vadd.f32 %v6852, %v7124
  %v7217 = vadd.f32 %v6853, %v7127
  %v7218 = vadd.f32 %v6854, %v7132
  %v7219 = vadd.f32 %v6855, %v7135
  %v7220 = vadd.f32 %v6856, %v7140
  %v7221 = vadd.f32 %v6857, %v7143
  %v7222 = vadd.f32 %v6858, %v7148
  %v7223 = vadd.f32 %v6859, %v7151
  %v7224 = vadd.f32 %v6860, %v7156
  %v7225 = vadd.f32 %v6861, %v7159
  %v7226 = vshrl.u32 %v5092, 16
  %v7228 = vshll.u32 %v5092, 16
  %v7230 = vrot.slane %v7228, 1
  %v7231 = vor.u32 %v7226, %v7230
  %v7233 = vshll.u32 %v5125, 16
  %v7235 = vrot.slane %v7233, 1
  %v7236 = vsel %vm208, %v7231, %v7235
  %v7237 = vshrl.u32 %v5108, 16
  %v7239 = vshll.u32 %v5108, 16
  %v7241 = vrot.slane %v7239, 1
  %v7242 = vor.u32 %v7237, %v7241
  %v7244 = vshll.u32 %v5141, 16
  %v7246 = vrot.slane %v7244, 1
  %v7247 = vsel %vm208, %v7242, %v7246
  %s7248 = scalar_lea.vmem %s4, 16
  %v7249 = vld [vmem:[%s7248] sm:$0xf]
  %v7251 = vsel %vm595, %v7236, 0
  %v7254 = vsel %vm595, %v7247, 0
  %v7257 = vsel %vm692, %v7249, 0
  %7259 = vmatprep.subr.bf16.mxu0 0
  %7260 = vmatpush1.bf16.msra.mxu0 0
  %7261 = vmatprep.subr.bf16.mxu0 0
  %7262 = vmatpush1.bf16.msra.mxu0 0
  %7263 = vmatprep.subr.bf16.mxu0 0
  %7264 = vmatpush1.bf16.msra.mxu0 0
  %7265 = vmatprep.subr.bf16.mxu0 0
  %7266 = vmatpush1.bf16.msra.mxu0 0
  %7267 = vmatprep.subr.bf16.mxu0 0
  %7268 = vmatpush1.bf16.msra.mxu0 0
  %7269 = vmatprep.subr.bf16.mxu0 0
  %7270 = vmatpush1.bf16.msra.mxu0 0
  %7271 = vmatprep.subr.bf16.mxu0 0
  %7272 = vmatpush1.bf16.msra.mxu0 0
  %7273 = vmatprep.subr.bf16.mxu0 0
  %7274 = vmatpush1.bf16.msra.mxu0 %v7257
  %7275 = vmatprep.subr.bf16.mxu0 0
  %7276 = vmatpush2.bf16.msra.mxu0 0
  %7277 = vmatprep.subr.bf16.mxu0 0
  %7278 = vmatpush2.bf16.msra.mxu0 0
  %7279 = vmatprep.subr.bf16.mxu0 0
  %7280 = vmatpush2.bf16.msra.mxu0 0
  %7281 = vmatprep.subr.bf16.mxu0 0
  %7282 = vmatpush2.bf16.msra.mxu0 0
  %7283 = vmatprep.subr.bf16.mxu0 0
  %7284 = vmatpush2.bf16.msra.mxu0 0
  %7285 = vmatprep.subr.bf16.mxu0 0
  %7286 = vmatpush2.bf16.msra.mxu0 0
  %7287 = vmatprep.subr.bf16.mxu0 0
  %7288 = vmatpush2.bf16.msra.mxu0 0
  %7289 = vmatprep.subr.bf16.mxu0 0
  %7290 = vmatpush2.bf16.msra.mxu0 0
  %7291 = vmatprep.mubr.bf16.mxu0 0
  %7292 = vmatmul.mubr.bf16.gmra.mxu0 %v5521
  %v7293 = vpop.f32.mrf.mxu0
  %v7294 = vadd.f32 0.0, %v7293
  %v7295 = vpop.f32.mrf.mxu0
  %v7296 = vpop.f32.mrf.mxu0
  %v7297 = vadd.f32 0.0, %v7296
  %v7298 = vpop.f32.mrf.mxu0
  %7299 = vmatprep.mubr.bf16.mxu0 0
  %7300 = vmatmul.mubr.bf16.gmra.mxu0 %v5524
  %v7301 = vpop.f32.mrf.mxu0
  %v7302 = vadd.f32 0.0, %v7301
  %v7303 = vpop.f32.mrf.mxu0
  %v7304 = vpop.f32.mrf.mxu0
  %v7305 = vadd.f32 0.0, %v7304
  %v7306 = vpop.f32.mrf.mxu0
  %7307 = vmatprep.mubr.bf16.mxu0 0
  %7308 = vmatmul.mubr.bf16.gmra.mxu0 %v5527
  %v7309 = vpop.f32.mrf.mxu0
  %v7310 = vadd.f32 0.0, %v7309
  %v7311 = vpop.f32.mrf.mxu0
  %v7312 = vpop.f32.mrf.mxu0
  %v7313 = vadd.f32 0.0, %v7312
  %v7314 = vpop.f32.mrf.mxu0
  %7315 = vmatprep.mubr.bf16.mxu0 0
  %7316 = vmatmul.mubr.bf16.gmra.mxu0 %v5530
  %v7317 = vpop.f32.mrf.mxu0
  %v7318 = vadd.f32 0.0, %v7317
  %v7319 = vpop.f32.mrf.mxu0
  %v7320 = vpop.f32.mrf.mxu0
  %v7321 = vadd.f32 0.0, %v7320
  %v7322 = vpop.f32.mrf.mxu0
  %7323 = vmatprep.mubr.bf16.mxu0 0
  %7324 = vmatmul.mubr.bf16.gmra.mxu0 %v5533
  %v7325 = vpop.f32.mrf.mxu0
  %v7326 = vadd.f32 0.0, %v7325
  %v7327 = vpop.f32.mrf.mxu0
  %v7328 = vpop.f32.mrf.mxu0
  %v7329 = vadd.f32 0.0, %v7328
  %v7330 = vpop.f32.mrf.mxu0
  %7331 = vmatprep.mubr.bf16.mxu0 0
  %7332 = vmatmul.mubr.bf16.gmra.mxu0 %v5536
  %v7333 = vpop.f32.mrf.mxu0
  %v7334 = vadd.f32 0.0, %v7333
  %v7335 = vpop.f32.mrf.mxu0
  %v7336 = vpop.f32.mrf.mxu0
  %v7337 = vadd.f32 0.0, %v7336
  %v7338 = vpop.f32.mrf.mxu0
  %7339 = vmatprep.mubr.bf16.mxu0 0
  %7340 = vmatmul.mubr.bf16.gmra.mxu0 %v5539
  %v7341 = vpop.f32.mrf.mxu0
  %v7342 = vadd.f32 0.0, %v7341
  %v7343 = vpop.f32.mrf.mxu0
  %v7344 = vpop.f32.mrf.mxu0
  %v7345 = vadd.f32 0.0, %v7344
  %v7346 = vpop.f32.mrf.mxu0
  %7347 = vmatprep.mubr.bf16.mxu0 0
  %7348 = vmatmul.mubr.bf16.gmra.mxu0 %v5542
  %v7349 = vpop.f32.mrf.mxu0
  %v7350 = vadd.f32 0.0, %v7349
  %v7351 = vpop.f32.mrf.mxu0
  %v7352 = vpop.f32.mrf.mxu0
  %v7353 = vadd.f32 0.0, %v7352
  %v7354 = vpop.f32.mrf.mxu0
  %7355 = vmatprep.mubr.bf16.mxu0 0
  %7356 = vmatmul.mubr.bf16.gmra.mxu0 %v5545
  %v7357 = vpop.f32.mrf.mxu0
  %v7358 = vadd.f32 0.0, %v7357
  %v7359 = vpop.f32.mrf.mxu0
  %v7360 = vpop.f32.mrf.mxu0
  %v7361 = vadd.f32 0.0, %v7360
  %v7362 = vpop.f32.mrf.mxu0
  %7363 = vmatprep.mubr.bf16.mxu0 0
  %7364 = vmatmul.mubr.bf16.gmra.mxu0 %v5548
  %v7365 = vpop.f32.mrf.mxu0
  %v7366 = vadd.f32 0.0, %v7365
  %v7367 = vpop.f32.mrf.mxu0
  %v7368 = vpop.f32.mrf.mxu0
  %v7369 = vadd.f32 0.0, %v7368
  %v7370 = vpop.f32.mrf.mxu0
  %7371 = vmatprep.mubr.bf16.mxu0 0
  %7372 = vmatmul.mubr.bf16.gmra.mxu0 %v5551
  %v7373 = vpop.f32.mrf.mxu0
  %v7374 = vadd.f32 0.0, %v7373
  %v7375 = vpop.f32.mrf.mxu0
  %v7376 = vpop.f32.mrf.mxu0
  %v7377 = vadd.f32 0.0, %v7376
  %v7378 = vpop.f32.mrf.mxu0
  %7379 = vmatprep.mubr.bf16.mxu0 0
  %7380 = vmatmul.mubr.bf16.gmra.mxu0 %v5554
  %v7381 = vpop.f32.mrf.mxu0
  %v7382 = vadd.f32 0.0, %v7381
  %v7383 = vpop.f32.mrf.mxu0
  %v7384 = vpop.f32.mrf.mxu0
  %v7385 = vadd.f32 0.0, %v7384
  %v7386 = vpop.f32.mrf.mxu0
  %7387 = vmatprep.mubr.bf16.mxu0 0
  %7388 = vmatmul.mubr.bf16.gmra.mxu0 %v5557
  %v7389 = vpop.f32.mrf.mxu0
  %v7390 = vadd.f32 0.0, %v7389
  %v7391 = vpop.f32.mrf.mxu0
  %v7392 = vpop.f32.mrf.mxu0
  %v7393 = vadd.f32 0.0, %v7392
  %v7394 = vpop.f32.mrf.mxu0
  %7395 = vmatprep.mubr.bf16.mxu0 0
  %7396 = vmatmul.mubr.bf16.gmra.mxu0 %v5560
  %v7397 = vpop.f32.mrf.mxu0
  %v7398 = vadd.f32 0.0, %v7397
  %v7399 = vpop.f32.mrf.mxu0
  %v7400 = vpop.f32.mrf.mxu0
  %v7401 = vadd.f32 0.0, %v7400
  %v7402 = vpop.f32.mrf.mxu0
  %7403 = vmatprep.mubr.bf16.mxu0 0
  %7404 = vmatmul.mubr.bf16.gmra.mxu0 %v5563
  %v7405 = vpop.f32.mrf.mxu0
  %v7406 = vadd.f32 0.0, %v7405
  %v7407 = vpop.f32.mrf.mxu0
  %v7408 = vpop.f32.mrf.mxu0
  %v7409 = vadd.f32 0.0, %v7408
  %v7410 = vpop.f32.mrf.mxu0
  %7411 = vmatprep.mubr.bf16.mxu0 0
  %7412 = vmatmul.mubr.bf16.gmra.mxu0 %v7251
  %v7413 = vpop.f32.mrf.mxu0
  %v7414 = vadd.f32 0.0, %v7413
  %v7415 = vpop.f32.mrf.mxu0
  %v7416 = vpop.f32.mrf.mxu0
  %v7417 = vadd.f32 0.0, %v7416
  %v7418 = vpop.f32.mrf.mxu0
  %7419 = vmatprep.mubr.bf16.mxu0 0
  %7420 = vmatmul.mubr.bf16.gmra.mxu0 %v5566
  %v7421 = vpop.f32.mrf.mxu0
  %v7422 = vadd.f32 0.0, %v7421
  %v7423 = vpop.f32.mrf.mxu0
  %v7424 = vpop.f32.mrf.mxu0
  %v7425 = vadd.f32 0.0, %v7424
  %v7426 = vpop.f32.mrf.mxu0
  %7427 = vmatprep.mubr.bf16.mxu0 0
  %7428 = vmatmul.mubr.bf16.gmra.mxu0 %v5569
  %v7429 = vpop.f32.mrf.mxu0
  %v7430 = vadd.f32 0.0, %v7429
  %v7431 = vpop.f32.mrf.mxu0
  %v7432 = vpop.f32.mrf.mxu0
  %v7433 = vadd.f32 0.0, %v7432
  %v7434 = vpop.f32.mrf.mxu0
  %7435 = vmatprep.mubr.bf16.mxu0 0
  %7436 = vmatmul.mubr.bf16.gmra.mxu0 %v5572
  %v7437 = vpop.f32.mrf.mxu0
  %v7438 = vadd.f32 0.0, %v7437
  %v7439 = vpop.f32.mrf.mxu0
  %v7440 = vpop.f32.mrf.mxu0
  %v7441 = vadd.f32 0.0, %v7440
  %v7442 = vpop.f32.mrf.mxu0
  %7443 = vmatprep.mubr.bf16.mxu0 0
  %7444 = vmatmul.mubr.bf16.gmra.mxu0 %v5575
  %v7445 = vpop.f32.mrf.mxu0
  %v7446 = vadd.f32 0.0, %v7445
  %v7447 = vpop.f32.mrf.mxu0
  %v7448 = vpop.f32.mrf.mxu0
  %v7449 = vadd.f32 0.0, %v7448
  %v7450 = vpop.f32.mrf.mxu0
  %7451 = vmatprep.mubr.bf16.mxu0 0
  %7452 = vmatmul.mubr.bf16.gmra.mxu0 %v5578
  %v7453 = vpop.f32.mrf.mxu0
  %v7454 = vadd.f32 0.0, %v7453
  %v7455 = vpop.f32.mrf.mxu0
  %v7456 = vpop.f32.mrf.mxu0
  %v7457 = vadd.f32 0.0, %v7456
  %v7458 = vpop.f32.mrf.mxu0
  %7459 = vmatprep.mubr.bf16.mxu0 0
  %7460 = vmatmul.mubr.bf16.gmra.mxu0 %v5581
  %v7461 = vpop.f32.mrf.mxu0
  %v7462 = vadd.f32 0.0, %v7461
  %v7463 = vpop.f32.mrf.mxu0
  %v7464 = vpop.f32.mrf.mxu0
  %v7465 = vadd.f32 0.0, %v7464
  %v7466 = vpop.f32.mrf.mxu0
  %7467 = vmatprep.mubr.bf16.mxu0 0
  %7468 = vmatmul.mubr.bf16.gmra.mxu0 %v5584
  %v7469 = vpop.f32.mrf.mxu0
  %v7470 = vadd.f32 0.0, %v7469
  %v7471 = vpop.f32.mrf.mxu0
  %v7472 = vpop.f32.mrf.mxu0
  %v7473 = vadd.f32 0.0, %v7472
  %v7474 = vpop.f32.mrf.mxu0
  %7475 = vmatprep.mubr.bf16.mxu0 0
  %7476 = vmatmul.mubr.bf16.gmra.mxu0 %v5587
  %v7477 = vpop.f32.mrf.mxu0
  %v7478 = vadd.f32 0.0, %v7477
  %v7479 = vpop.f32.mrf.mxu0
  %v7480 = vpop.f32.mrf.mxu0
  %v7481 = vadd.f32 0.0, %v7480
  %v7482 = vpop.f32.mrf.mxu0
  %7483 = vmatprep.mubr.bf16.mxu0 0
  %7484 = vmatmul.mubr.bf16.gmra.mxu0 %v5590
  %v7485 = vpop.f32.mrf.mxu0
  %v7486 = vadd.f32 0.0, %v7485
  %v7487 = vpop.f32.mrf.mxu0
  %v7488 = vpop.f32.mrf.mxu0
  %v7489 = vadd.f32 0.0, %v7488
  %v7490 = vpop.f32.mrf.mxu0
  %7491 = vmatprep.mubr.bf16.mxu0 0
  %7492 = vmatmul.mubr.bf16.gmra.mxu0 %v5593
  %v7493 = vpop.f32.mrf.mxu0
  %v7494 = vadd.f32 0.0, %v7493
  %v7495 = vpop.f32.mrf.mxu0
  %v7496 = vpop.f32.mrf.mxu0
  %v7497 = vadd.f32 0.0, %v7496
  %v7498 = vpop.f32.mrf.mxu0
  %7499 = vmatprep.mubr.bf16.mxu0 0
  %7500 = vmatmul.mubr.bf16.gmra.mxu0 %v5596
  %v7501 = vpop.f32.mrf.mxu0
  %v7502 = vadd.f32 0.0, %v7501
  %v7503 = vpop.f32.mrf.mxu0
  %v7504 = vpop.f32.mrf.mxu0
  %v7505 = vadd.f32 0.0, %v7504
  %v7506 = vpop.f32.mrf.mxu0
  %7507 = vmatprep.mubr.bf16.mxu0 0
  %7508 = vmatmul.mubr.bf16.gmra.mxu0 %v5599
  %v7509 = vpop.f32.mrf.mxu0
  %v7510 = vadd.f32 0.0, %v7509
  %v7511 = vpop.f32.mrf.mxu0
  %v7512 = vpop.f32.mrf.mxu0
  %v7513 = vadd.f32 0.0, %v7512
  %v7514 = vpop.f32.mrf.mxu0
  %7515 = vmatprep.mubr.bf16.mxu0 0
  %7516 = vmatmul.mubr.bf16.gmra.mxu0 %v5602
  %v7517 = vpop.f32.mrf.mxu0
  %v7518 = vadd.f32 0.0, %v7517
  %v7519 = vpop.f32.mrf.mxu0
  %v7520 = vpop.f32.mrf.mxu0
  %v7521 = vadd.f32 0.0, %v7520
  %v7522 = vpop.f32.mrf.mxu0
  %7523 = vmatprep.mubr.bf16.mxu0 0
  %7524 = vmatmul.mubr.bf16.gmra.mxu0 %v5605
  %v7525 = vpop.f32.mrf.mxu0
  %v7526 = vadd.f32 0.0, %v7525
  %v7527 = vpop.f32.mrf.mxu0
  %v7528 = vpop.f32.mrf.mxu0
  %v7529 = vadd.f32 0.0, %v7528
  %v7530 = vpop.f32.mrf.mxu0
  %7531 = vmatprep.mubr.bf16.mxu0 0
  %7532 = vmatmul.mubr.bf16.gmra.mxu0 %v5608
  %v7533 = vpop.f32.mrf.mxu0
  %v7534 = vadd.f32 0.0, %v7533
  %v7535 = vpop.f32.mrf.mxu0
  %v7536 = vpop.f32.mrf.mxu0
  %v7537 = vadd.f32 0.0, %v7536
  %v7538 = vpop.f32.mrf.mxu0
  %7539 = vmatprep.mubr.bf16.mxu0 0
  %7540 = vmatmul.mubr.bf16.gmra.mxu0 %v7254
  %v7541 = vpop.f32.mrf.mxu0
  %v7542 = vadd.f32 0.0, %v7541
  %v7543 = vpop.f32.mrf.mxu0
  %v7544 = vpop.f32.mrf.mxu0
  %v7545 = vadd.f32 0.0, %v7544
  %v7546 = vpop.f32.mrf.mxu0
  %7547 = vdwg.mxu0
  %v7548 = vadd.f32 %v7162, %v7294
  %v7549 = vadd.f32 %v7163, %v7297
  %v7550 = vadd.f32 %v7164, %v7302
  %v7551 = vadd.f32 %v7165, %v7305
  %v7552 = vadd.f32 %v7166, %v7310
  %v7553 = vadd.f32 %v7167, %v7313
  %v7554 = vadd.f32 %v7168, %v7318
  %v7555 = vadd.f32 %v7169, %v7321
  %v7556 = vadd.f32 %v7170, %v7326
  %v7557 = vadd.f32 %v7171, %v7329
  %v7558 = vadd.f32 %v7172, %v7334
  %v7559 = vadd.f32 %v7173, %v7337
  %v7560 = vadd.f32 %v7174, %v7342
  %v7561 = vadd.f32 %v7175, %v7345
  %v7562 = vadd.f32 %v7176, %v7350
  %v7563 = vadd.f32 %v7177, %v7353
  %v7564 = vadd.f32 %v7178, %v7358
  %v7565 = vadd.f32 %v7179, %v7361
  %v7566 = vadd.f32 %v7180, %v7366
  %v7567 = vadd.f32 %v7181, %v7369
  %v7568 = vadd.f32 %v7182, %v7374
  %v7569 = vadd.f32 %v7183, %v7377
  %v7570 = vadd.f32 %v7184, %v7382
  %v7571 = vadd.f32 %v7185, %v7385
  %v7572 = vadd.f32 %v7186, %v7390
  %v7573 = vadd.f32 %v7187, %v7393
  %v7574 = vadd.f32 %v7188, %v7398
  %v7575 = vadd.f32 %v7189, %v7401
  %v7576 = vadd.f32 %v7190, %v7406
  %v7577 = vadd.f32 %v7191, %v7409
  %v7578 = vadd.f32 %v7192, %v7414
  %v7579 = vadd.f32 %v7193, %v7417
  %v7580 = vadd.f32 %v7194, %v7422
  %v7581 = vadd.f32 %v7195, %v7425
  %v7582 = vadd.f32 %v7196, %v7430
  %v7583 = vadd.f32 %v7197, %v7433
  %v7584 = vadd.f32 %v7198, %v7438
  %v7585 = vadd.f32 %v7199, %v7441
  %v7586 = vadd.f32 %v7200, %v7446
  %v7587 = vadd.f32 %v7201, %v7449
  %v7588 = vadd.f32 %v7202, %v7454
  %v7589 = vadd.f32 %v7203, %v7457
  %v7590 = vadd.f32 %v7204, %v7462
  %v7591 = vadd.f32 %v7205, %v7465
  %v7592 = vadd.f32 %v7206, %v7470
  %v7593 = vadd.f32 %v7207, %v7473
  %v7594 = vadd.f32 %v7208, %v7478
  %v7595 = vadd.f32 %v7209, %v7481
  %v7596 = vadd.f32 %v7210, %v7486
  %v7597 = vadd.f32 %v7211, %v7489
  %v7598 = vadd.f32 %v7212, %v7494
  %v7599 = vadd.f32 %v7213, %v7497
  %v7600 = vadd.f32 %v7214, %v7502
  %v7601 = vadd.f32 %v7215, %v7505
  %v7602 = vadd.f32 %v7216, %v7510
  %v7603 = vadd.f32 %v7217, %v7513
  %v7604 = vadd.f32 %v7218, %v7518
  %v7605 = vadd.f32 %v7219, %v7521
  %v7606 = vadd.f32 %v7220, %v7526
  %v7607 = vadd.f32 %v7221, %v7529
  %v7608 = vadd.f32 %v7222, %v7534
  %v7609 = vadd.f32 %v7223, %v7537
  %v7610 = vadd.f32 %v7224, %v7542
  %v7611 = vadd.f32 %v7225, %v7545
  %v7616 = vrot.slane %v5092, 1
  %v7617 = vrot.slane %v5125, 1
  %v7618 = vsel %vm1405, %v7616, %v7617
  %v7619 = vrot.slane %v5108, 1
  %v7620 = vrot.slane %v5141, 1
  %v7621 = vsel %vm1405, %v7619, %v7620
  %s7622 = scalar_lea.vmem %s4, 20
  %v7623 = vld [vmem:[%s7622] sm:$0xf]
  %v7625 = vsel %vm595, %v7618, 0
  %v7628 = vsel %vm595, %v7621, 0
  %v7631 = vsel %vm692, %v7623, 0
  %7633 = vmatprep.subr.bf16.mxu0 0
  %7634 = vmatpush1.bf16.msra.mxu0 0
  %7635 = vmatprep.subr.bf16.mxu0 0
  %7636 = vmatpush1.bf16.msra.mxu0 0
  %7637 = vmatprep.subr.bf16.mxu0 0
  %7638 = vmatpush1.bf16.msra.mxu0 0
  %7639 = vmatprep.subr.bf16.mxu0 0
  %7640 = vmatpush1.bf16.msra.mxu0 0
  %7641 = vmatprep.subr.bf16.mxu0 0
  %7642 = vmatpush1.bf16.msra.mxu0 0
  %7643 = vmatprep.subr.bf16.mxu0 0
  %7644 = vmatpush1.bf16.msra.mxu0 0
  %7645 = vmatprep.subr.bf16.mxu0 0
  %7646 = vmatpush1.bf16.msra.mxu0 0
  %7647 = vmatprep.subr.bf16.mxu0 0
  %7648 = vmatpush1.bf16.msra.mxu0 %v7631
  %7649 = vmatprep.subr.bf16.mxu0 0
  %7650 = vmatpush2.bf16.msra.mxu0 0
  %7651 = vmatprep.subr.bf16.mxu0 0
  %7652 = vmatpush2.bf16.msra.mxu0 0
  %7653 = vmatprep.subr.bf16.mxu0 0
  %7654 = vmatpush2.bf16.msra.mxu0 0
  %7655 = vmatprep.subr.bf16.mxu0 0
  %7656 = vmatpush2.bf16.msra.mxu0 0
  %7657 = vmatprep.subr.bf16.mxu0 0
  %7658 = vmatpush2.bf16.msra.mxu0 0
  %7659 = vmatprep.subr.bf16.mxu0 0
  %7660 = vmatpush2.bf16.msra.mxu0 0
  %7661 = vmatprep.subr.bf16.mxu0 0
  %7662 = vmatpush2.bf16.msra.mxu0 0
  %7663 = vmatprep.subr.bf16.mxu0 0
  %7664 = vmatpush2.bf16.msra.mxu0 0
  %7665 = vmatprep.mubr.bf16.mxu0 0
  %7666 = vmatmul.mubr.bf16.gmra.mxu0 %v6417
  %v7667 = vpop.f32.mrf.mxu0
  %v7668 = vadd.f32 0.0, %v7667
  %v7669 = vpop.f32.mrf.mxu0
  %v7670 = vpop.f32.mrf.mxu0
  %v7671 = vadd.f32 0.0, %v7670
  %v7672 = vpop.f32.mrf.mxu0
  %7673 = vmatprep.mubr.bf16.mxu0 0
  %7674 = vmatmul.mubr.bf16.gmra.mxu0 %v6420
  %v7675 = vpop.f32.mrf.mxu0
  %v7676 = vadd.f32 0.0, %v7675
  %v7677 = vpop.f32.mrf.mxu0
  %v7678 = vpop.f32.mrf.mxu0
  %v7679 = vadd.f32 0.0, %v7678
  %v7680 = vpop.f32.mrf.mxu0
  %7681 = vmatprep.mubr.bf16.mxu0 0
  %7682 = vmatmul.mubr.bf16.gmra.mxu0 %v6423
  %v7683 = vpop.f32.mrf.mxu0
  %v7684 = vadd.f32 0.0, %v7683
  %v7685 = vpop.f32.mrf.mxu0
  %v7686 = vpop.f32.mrf.mxu0
  %v7687 = vadd.f32 0.0, %v7686
  %v7688 = vpop.f32.mrf.mxu0
  %7689 = vmatprep.mubr.bf16.mxu0 0
  %7690 = vmatmul.mubr.bf16.gmra.mxu0 %v6426
  %v7691 = vpop.f32.mrf.mxu0
  %v7692 = vadd.f32 0.0, %v7691
  %v7693 = vpop.f32.mrf.mxu0
  %v7694 = vpop.f32.mrf.mxu0
  %v7695 = vadd.f32 0.0, %v7694
  %v7696 = vpop.f32.mrf.mxu0
  %7697 = vmatprep.mubr.bf16.mxu0 0
  %7698 = vmatmul.mubr.bf16.gmra.mxu0 %v6429
  %v7699 = vpop.f32.mrf.mxu0
  %v7700 = vadd.f32 0.0, %v7699
  %v7701 = vpop.f32.mrf.mxu0
  %v7702 = vpop.f32.mrf.mxu0
  %v7703 = vadd.f32 0.0, %v7702
  %v7704 = vpop.f32.mrf.mxu0
  %7705 = vmatprep.mubr.bf16.mxu0 0
  %7706 = vmatmul.mubr.bf16.gmra.mxu0 %v6432
  %v7707 = vpop.f32.mrf.mxu0
  %v7708 = vadd.f32 0.0, %v7707
  %v7709 = vpop.f32.mrf.mxu0
  %v7710 = vpop.f32.mrf.mxu0
  %v7711 = vadd.f32 0.0, %v7710
  %v7712 = vpop.f32.mrf.mxu0
  %7713 = vmatprep.mubr.bf16.mxu0 0
  %7714 = vmatmul.mubr.bf16.gmra.mxu0 %v6435
  %v7715 = vpop.f32.mrf.mxu0
  %v7716 = vadd.f32 0.0, %v7715
  %v7717 = vpop.f32.mrf.mxu0
  %v7718 = vpop.f32.mrf.mxu0
  %v7719 = vadd.f32 0.0, %v7718
  %v7720 = vpop.f32.mrf.mxu0
  %7721 = vmatprep.mubr.bf16.mxu0 0
  %7722 = vmatmul.mubr.bf16.gmra.mxu0 %v6438
  %v7723 = vpop.f32.mrf.mxu0
  %v7724 = vadd.f32 0.0, %v7723
  %v7725 = vpop.f32.mrf.mxu0
  %v7726 = vpop.f32.mrf.mxu0
  %v7727 = vadd.f32 0.0, %v7726
  %v7728 = vpop.f32.mrf.mxu0
  %7729 = vmatprep.mubr.bf16.mxu0 0
  %7730 = vmatmul.mubr.bf16.gmra.mxu0 %v6441
  %v7731 = vpop.f32.mrf.mxu0
  %v7732 = vadd.f32 0.0, %v7731
  %v7733 = vpop.f32.mrf.mxu0
  %v7734 = vpop.f32.mrf.mxu0
  %v7735 = vadd.f32 0.0, %v7734
  %v7736 = vpop.f32.mrf.mxu0
  %7737 = vmatprep.mubr.bf16.mxu0 0
  %7738 = vmatmul.mubr.bf16.gmra.mxu0 %v6444
  %v7739 = vpop.f32.mrf.mxu0
  %v7740 = vadd.f32 0.0, %v7739
  %v7741 = vpop.f32.mrf.mxu0
  %v7742 = vpop.f32.mrf.mxu0
  %v7743 = vadd.f32 0.0, %v7742
  %v7744 = vpop.f32.mrf.mxu0
  %7745 = vmatprep.mubr.bf16.mxu0 0
  %7746 = vmatmul.mubr.bf16.gmra.mxu0 %v6447
  %v7747 = vpop.f32.mrf.mxu0
  %v7748 = vadd.f32 0.0, %v7747
  %v7749 = vpop.f32.mrf.mxu0
  %v7750 = vpop.f32.mrf.mxu0
  %v7751 = vadd.f32 0.0, %v7750
  %v7752 = vpop.f32.mrf.mxu0
  %7753 = vmatprep.mubr.bf16.mxu0 0
  %7754 = vmatmul.mubr.bf16.gmra.mxu0 %v6450
  %v7755 = vpop.f32.mrf.mxu0
  %v7756 = vadd.f32 0.0, %v7755
  %v7757 = vpop.f32.mrf.mxu0
  %v7758 = vpop.f32.mrf.mxu0
  %v7759 = vadd.f32 0.0, %v7758
  %v7760 = vpop.f32.mrf.mxu0
  %7761 = vmatprep.mubr.bf16.mxu0 0
  %7762 = vmatmul.mubr.bf16.gmra.mxu0 %v6453
  %v7763 = vpop.f32.mrf.mxu0
  %v7764 = vadd.f32 0.0, %v7763
  %v7765 = vpop.f32.mrf.mxu0
  %v7766 = vpop.f32.mrf.mxu0
  %v7767 = vadd.f32 0.0, %v7766
  %v7768 = vpop.f32.mrf.mxu0
  %7769 = vmatprep.mubr.bf16.mxu0 0
  %7770 = vmatmul.mubr.bf16.gmra.mxu0 %v6456
  %v7771 = vpop.f32.mrf.mxu0
  %v7772 = vadd.f32 0.0, %v7771
  %v7773 = vpop.f32.mrf.mxu0
  %v7774 = vpop.f32.mrf.mxu0
  %v7775 = vadd.f32 0.0, %v7774
  %v7776 = vpop.f32.mrf.mxu0
  %7777 = vmatprep.mubr.bf16.mxu0 0
  %7778 = vmatmul.mubr.bf16.gmra.mxu0 %v6459
  %v7779 = vpop.f32.mrf.mxu0
  %v7780 = vadd.f32 0.0, %v7779
  %v7781 = vpop.f32.mrf.mxu0
  %v7782 = vpop.f32.mrf.mxu0
  %v7783 = vadd.f32 0.0, %v7782
  %v7784 = vpop.f32.mrf.mxu0
  %7785 = vmatprep.mubr.bf16.mxu0 0
  %7786 = vmatmul.mubr.bf16.gmra.mxu0 %v7625
  %v7787 = vpop.f32.mrf.mxu0
  %v7788 = vadd.f32 0.0, %v7787
  %v7789 = vpop.f32.mrf.mxu0
  %v7790 = vpop.f32.mrf.mxu0
  %v7791 = vadd.f32 0.0, %v7790
  %v7792 = vpop.f32.mrf.mxu0
  %7793 = vmatprep.mubr.bf16.mxu0 0
  %7794 = vmatmul.mubr.bf16.gmra.mxu0 %v6462
  %v7795 = vpop.f32.mrf.mxu0
  %v7796 = vadd.f32 0.0, %v7795
  %v7797 = vpop.f32.mrf.mxu0
  %v7798 = vpop.f32.mrf.mxu0
  %v7799 = vadd.f32 0.0, %v7798
  %v7800 = vpop.f32.mrf.mxu0
  %7801 = vmatprep.mubr.bf16.mxu0 0
  %7802 = vmatmul.mubr.bf16.gmra.mxu0 %v6465
  %v7803 = vpop.f32.mrf.mxu0
  %v7804 = vadd.f32 0.0, %v7803
  %v7805 = vpop.f32.mrf.mxu0
  %v7806 = vpop.f32.mrf.mxu0
  %v7807 = vadd.f32 0.0, %v7806
  %v7808 = vpop.f32.mrf.mxu0
  %7809 = vmatprep.mubr.bf16.mxu0 0
  %7810 = vmatmul.mubr.bf16.gmra.mxu0 %v6468
  %v7811 = vpop.f32.mrf.mxu0
  %v7812 = vadd.f32 0.0, %v7811
  %v7813 = vpop.f32.mrf.mxu0
  %v7814 = vpop.f32.mrf.mxu0
  %v7815 = vadd.f32 0.0, %v7814
  %v7816 = vpop.f32.mrf.mxu0
  %7817 = vmatprep.mubr.bf16.mxu0 0
  %7818 = vmatmul.mubr.bf16.gmra.mxu0 %v6471
  %v7819 = vpop.f32.mrf.mxu0
  %v7820 = vadd.f32 0.0, %v7819
  %v7821 = vpop.f32.mrf.mxu0
  %v7822 = vpop.f32.mrf.mxu0
  %v7823 = vadd.f32 0.0, %v7822
  %v7824 = vpop.f32.mrf.mxu0
  %7825 = vmatprep.mubr.bf16.mxu0 0
  %7826 = vmatmul.mubr.bf16.gmra.mxu0 %v6474
  %v7827 = vpop.f32.mrf.mxu0
  %v7828 = vadd.f32 0.0, %v7827
  %v7829 = vpop.f32.mrf.mxu0
  %v7830 = vpop.f32.mrf.mxu0
  %v7831 = vadd.f32 0.0, %v7830
  %v7832 = vpop.f32.mrf.mxu0
  %7833 = vmatprep.mubr.bf16.mxu0 0
  %7834 = vmatmul.mubr.bf16.gmra.mxu0 %v6477
  %v7835 = vpop.f32.mrf.mxu0
  %v7836 = vadd.f32 0.0, %v7835
  %v7837 = vpop.f32.mrf.mxu0
  %v7838 = vpop.f32.mrf.mxu0
  %v7839 = vadd.f32 0.0, %v7838
  %v7840 = vpop.f32.mrf.mxu0
  %7841 = vmatprep.mubr.bf16.mxu0 0
  %7842 = vmatmul.mubr.bf16.gmra.mxu0 %v6480
  %v7843 = vpop.f32.mrf.mxu0
  %v7844 = vadd.f32 0.0, %v7843
  %v7845 = vpop.f32.mrf.mxu0
  %v7846 = vpop.f32.mrf.mxu0
  %v7847 = vadd.f32 0.0, %v7846
  %v7848 = vpop.f32.mrf.mxu0
  %7849 = vmatprep.mubr.bf16.mxu0 0
  %7850 = vmatmul.mubr.bf16.gmra.mxu0 %v6483
  %v7851 = vpop.f32.mrf.mxu0
  %v7852 = vadd.f32 0.0, %v7851
  %v7853 = vpop.f32.mrf.mxu0
  %v7854 = vpop.f32.mrf.mxu0
  %v7855 = vadd.f32 0.0, %v7854
  %v7856 = vpop.f32.mrf.mxu0
  %7857 = vmatprep.mubr.bf16.mxu0 0
  %7858 = vmatmul.mubr.bf16.gmra.mxu0 %v6486
  %v7859 = vpop.f32.mrf.mxu0
  %v7860 = vadd.f32 0.0, %v7859
  %v7861 = vpop.f32.mrf.mxu0
  %v7862 = vpop.f32.mrf.mxu0
  %v7863 = vadd.f32 0.0, %v7862
  %v7864 = vpop.f32.mrf.mxu0
  %7865 = vmatprep.mubr.bf16.mxu0 0
  %7866 = vmatmul.mubr.bf16.gmra.mxu0 %v6489
  %v7867 = vpop.f32.mrf.mxu0
  %v7868 = vadd.f32 0.0, %v7867
  %v7869 = vpop.f32.mrf.mxu0
  %v7870 = vpop.f32.mrf.mxu0
  %v7871 = vadd.f32 0.0, %v7870
  %v7872 = vpop.f32.mrf.mxu0
  %7873 = vmatprep.mubr.bf16.mxu0 0
  %7874 = vmatmul.mubr.bf16.gmra.mxu0 %v6492
  %v7875 = vpop.f32.mrf.mxu0
  %v7876 = vadd.f32 0.0, %v7875
  %v7877 = vpop.f32.mrf.mxu0
  %v7878 = vpop.f32.mrf.mxu0
  %v7879 = vadd.f32 0.0, %v7878
  %v7880 = vpop.f32.mrf.mxu0
  %7881 = vmatprep.mubr.bf16.mxu0 0
  %7882 = vmatmul.mubr.bf16.gmra.mxu0 %v6495
  %v7883 = vpop.f32.mrf.mxu0
  %v7884 = vadd.f32 0.0, %v7883
  %v7885 = vpop.f32.mrf.mxu0
  %v7886 = vpop.f32.mrf.mxu0
  %v7887 = vadd.f32 0.0, %v7886
  %v7888 = vpop.f32.mrf.mxu0
  %7889 = vmatprep.mubr.bf16.mxu0 0
  %7890 = vmatmul.mubr.bf16.gmra.mxu0 %v6498
  %v7891 = vpop.f32.mrf.mxu0
  %v7892 = vadd.f32 0.0, %v7891
  %v7893 = vpop.f32.mrf.mxu0
  %v7894 = vpop.f32.mrf.mxu0
  %v7895 = vadd.f32 0.0, %v7894
  %v7896 = vpop.f32.mrf.mxu0
  %7897 = vmatprep.mubr.bf16.mxu0 0
  %7898 = vmatmul.mubr.bf16.gmra.mxu0 %v6501
  %v7899 = vpop.f32.mrf.mxu0
  %v7900 = vadd.f32 0.0, %v7899
  %v7901 = vpop.f32.mrf.mxu0
  %v7902 = vpop.f32.mrf.mxu0
  %v7903 = vadd.f32 0.0, %v7902
  %v7904 = vpop.f32.mrf.mxu0
  %7905 = vmatprep.mubr.bf16.mxu0 0
  %7906 = vmatmul.mubr.bf16.gmra.mxu0 %v6504
  %v7907 = vpop.f32.mrf.mxu0
  %v7908 = vadd.f32 0.0, %v7907
  %v7909 = vpop.f32.mrf.mxu0
  %v7910 = vpop.f32.mrf.mxu0
  %v7911 = vadd.f32 0.0, %v7910
  %v7912 = vpop.f32.mrf.mxu0
  %7913 = vmatprep.mubr.bf16.mxu0 0
  %7914 = vmatmul.mubr.bf16.gmra.mxu0 %v7628
  %v7915 = vpop.f32.mrf.mxu0
  %v7916 = vadd.f32 0.0, %v7915
  %v7917 = vpop.f32.mrf.mxu0
  %v7918 = vpop.f32.mrf.mxu0
  %v7919 = vadd.f32 0.0, %v7918
  %v7920 = vpop.f32.mrf.mxu0
  %7921 = vdwg.mxu0
  %v7922 = vadd.f32 %v7548, %v7668
  %v7923 = vadd.f32 %v7549, %v7671
  %v7924 = vadd.f32 %v7550, %v7676
  %v7925 = vadd.f32 %v7551, %v7679
  %v7926 = vadd.f32 %v7552, %v7684
  %v7927 = vadd.f32 %v7553, %v7687
  %v7928 = vadd.f32 %v7554, %v7692
  %v7929 = vadd.f32 %v7555, %v7695
  %v7930 = vadd.f32 %v7556, %v7700
  %v7931 = vadd.f32 %v7557, %v7703
  %v7932 = vadd.f32 %v7558, %v7708
  %v7933 = vadd.f32 %v7559, %v7711
  %v7934 = vadd.f32 %v7560, %v7716
  %v7935 = vadd.f32 %v7561, %v7719
  %v7936 = vadd.f32 %v7562, %v7724
  %v7937 = vadd.f32 %v7563, %v7727
  %v7938 = vadd.f32 %v7564, %v7732
  %v7939 = vadd.f32 %v7565, %v7735
  %v7940 = vadd.f32 %v7566, %v7740
  %v7941 = vadd.f32 %v7567, %v7743
  %v7942 = vadd.f32 %v7568, %v7748
  %v7943 = vadd.f32 %v7569, %v7751
  %v7944 = vadd.f32 %v7570, %v7756
  %v7945 = vadd.f32 %v7571, %v7759
  %v7946 = vadd.f32 %v7572, %v7764
  %v7947 = vadd.f32 %v7573, %v7767
  %v7948 = vadd.f32 %v7574, %v7772
  %v7949 = vadd.f32 %v7575, %v7775
  %v7950 = vadd.f32 %v7576, %v7780
  %v7951 = vadd.f32 %v7577, %v7783
  %v7952 = vadd.f32 %v7578, %v7788
  %v7953 = vadd.f32 %v7579, %v7791
  %v7954 = vadd.f32 %v7580, %v7796
  %v7955 = vadd.f32 %v7581, %v7799
  %v7956 = vadd.f32 %v7582, %v7804
  %v7957 = vadd.f32 %v7583, %v7807
  %v7958 = vadd.f32 %v7584, %v7812
  %v7959 = vadd.f32 %v7585, %v7815
  %v7960 = vadd.f32 %v7586, %v7820
  %v7961 = vadd.f32 %v7587, %v7823
  %v7962 = vadd.f32 %v7588, %v7828
  %v7963 = vadd.f32 %v7589, %v7831
  %v7964 = vadd.f32 %v7590, %v7836
  %v7965 = vadd.f32 %v7591, %v7839
  %v7966 = vadd.f32 %v7592, %v7844
  %v7967 = vadd.f32 %v7593, %v7847
  %v7968 = vadd.f32 %v7594, %v7852
  %v7969 = vadd.f32 %v7595, %v7855
  %v7970 = vadd.f32 %v7596, %v7860
  %v7971 = vadd.f32 %v7597, %v7863
  %v7972 = vadd.f32 %v7598, %v7868
  %v7973 = vadd.f32 %v7599, %v7871
  %v7974 = vadd.f32 %v7600, %v7876
  %v7975 = vadd.f32 %v7601, %v7879
  %v7976 = vadd.f32 %v7602, %v7884
  %v7977 = vadd.f32 %v7603, %v7887
  %v7978 = vadd.f32 %v7604, %v7892
  %v7979 = vadd.f32 %v7605, %v7895
  %v7980 = vadd.f32 %v7606, %v7900
  %v7981 = vadd.f32 %v7607, %v7903
  %v7982 = vadd.f32 %v7608, %v7908
  %v7983 = vadd.f32 %v7609, %v7911
  %v7984 = vadd.f32 %v7610, %v7916
  %v7985 = vadd.f32 %v7611, %v7919
  %s7986 = scalar_lea.vmem %s4, 24
  %v7987 = vld [vmem:[%s7986] sm:$0xf]
  %v7989 = vsel %vm692, %v7987, 0
  %7991 = vmatprep.subr.bf16.mxu0 0
  %7992 = vmatpush1.bf16.msra.mxu0 0
  %7993 = vmatprep.subr.bf16.mxu0 0
  %7994 = vmatpush1.bf16.msra.mxu0 0
  %7995 = vmatprep.subr.bf16.mxu0 0
  %7996 = vmatpush1.bf16.msra.mxu0 0
  %7997 = vmatprep.subr.bf16.mxu0 0
  %7998 = vmatpush1.bf16.msra.mxu0 0
  %7999 = vmatprep.subr.bf16.mxu0 0
  %8000 = vmatpush1.bf16.msra.mxu0 0
  %8001 = vmatprep.subr.bf16.mxu0 0
  %8002 = vmatpush1.bf16.msra.mxu0 0
  %8003 = vmatprep.subr.bf16.mxu0 0
  %8004 = vmatpush1.bf16.msra.mxu0 0
  %8005 = vmatprep.subr.bf16.mxu0 0
  %8006 = vmatpush1.bf16.msra.mxu0 %v7989
  %8007 = vmatprep.subr.bf16.mxu0 0
  %8008 = vmatpush2.bf16.msra.mxu0 0
  %8009 = vmatprep.subr.bf16.mxu0 0
  %8010 = vmatpush2.bf16.msra.mxu0 0
  %8011 = vmatprep.subr.bf16.mxu0 0
  %8012 = vmatpush2.bf16.msra.mxu0 0
  %8013 = vmatprep.subr.bf16.mxu0 0
  %8014 = vmatpush2.bf16.msra.mxu0 0
  %8015 = vmatprep.subr.bf16.mxu0 0
  %8016 = vmatpush2.bf16.msra.mxu0 0
  %8017 = vmatprep.subr.bf16.mxu0 0
  %8018 = vmatpush2.bf16.msra.mxu0 0
  %8019 = vmatprep.subr.bf16.mxu0 0
  %8020 = vmatpush2.bf16.msra.mxu0 0
  %8021 = vmatprep.subr.bf16.mxu0 0
  %8022 = vmatpush2.bf16.msra.mxu0 0
  %8023 = vmatprep.mubr.bf16.mxu0 0
  %8024 = vmatmul.mubr.bf16.gmra.mxu0 %v5906
  %v8025 = vpop.f32.mrf.mxu0
  %v8026 = vadd.f32 0.0, %v8025
  %v8027 = vpop.f32.mrf.mxu0
  %v8028 = vpop.f32.mrf.mxu0
  %v8029 = vadd.f32 0.0, %v8028
  %v8030 = vpop.f32.mrf.mxu0
  %8031 = vmatprep.mubr.bf16.mxu0 0
  %8032 = vmatmul.mubr.bf16.gmra.mxu0 %v5908
  %v8033 = vpop.f32.mrf.mxu0
  %v8034 = vadd.f32 0.0, %v8033
  %v8035 = vpop.f32.mrf.mxu0
  %v8036 = vpop.f32.mrf.mxu0
  %v8037 = vadd.f32 0.0, %v8036
  %v8038 = vpop.f32.mrf.mxu0
  %8039 = vmatprep.mubr.bf16.mxu0 0
  %8040 = vmatmul.mubr.bf16.gmra.mxu0 %v5910
  %v8041 = vpop.f32.mrf.mxu0
  %v8042 = vadd.f32 0.0, %v8041
  %v8043 = vpop.f32.mrf.mxu0
  %v8044 = vpop.f32.mrf.mxu0
  %v8045 = vadd.f32 0.0, %v8044
  %v8046 = vpop.f32.mrf.mxu0
  %8047 = vmatprep.mubr.bf16.mxu0 0
  %8048 = vmatmul.mubr.bf16.gmra.mxu0 %v5912
  %v8049 = vpop.f32.mrf.mxu0
  %v8050 = vadd.f32 0.0, %v8049
  %v8051 = vpop.f32.mrf.mxu0
  %v8052 = vpop.f32.mrf.mxu0
  %v8053 = vadd.f32 0.0, %v8052
  %v8054 = vpop.f32.mrf.mxu0
  %8055 = vmatprep.mubr.bf16.mxu0 0
  %8056 = vmatmul.mubr.bf16.gmra.mxu0 %v5914
  %v8057 = vpop.f32.mrf.mxu0
  %v8058 = vadd.f32 0.0, %v8057
  %v8059 = vpop.f32.mrf.mxu0
  %v8060 = vpop.f32.mrf.mxu0
  %v8061 = vadd.f32 0.0, %v8060
  %v8062 = vpop.f32.mrf.mxu0
  %8063 = vmatprep.mubr.bf16.mxu0 0
  %8064 = vmatmul.mubr.bf16.gmra.mxu0 %v5916
  %v8065 = vpop.f32.mrf.mxu0
  %v8066 = vadd.f32 0.0, %v8065
  %v8067 = vpop.f32.mrf.mxu0
  %v8068 = vpop.f32.mrf.mxu0
  %v8069 = vadd.f32 0.0, %v8068
  %v8070 = vpop.f32.mrf.mxu0
  %8071 = vmatprep.mubr.bf16.mxu0 0
  %8072 = vmatmul.mubr.bf16.gmra.mxu0 %v5918
  %v8073 = vpop.f32.mrf.mxu0
  %v8074 = vadd.f32 0.0, %v8073
  %v8075 = vpop.f32.mrf.mxu0
  %v8076 = vpop.f32.mrf.mxu0
  %v8077 = vadd.f32 0.0, %v8076
  %v8078 = vpop.f32.mrf.mxu0
  %8079 = vmatprep.mubr.bf16.mxu0 0
  %8080 = vmatmul.mubr.bf16.gmra.mxu0 %v5920
  %v8081 = vpop.f32.mrf.mxu0
  %v8082 = vadd.f32 0.0, %v8081
  %v8083 = vpop.f32.mrf.mxu0
  %v8084 = vpop.f32.mrf.mxu0
  %v8085 = vadd.f32 0.0, %v8084
  %v8086 = vpop.f32.mrf.mxu0
  %8087 = vmatprep.mubr.bf16.mxu0 0
  %8088 = vmatmul.mubr.bf16.gmra.mxu0 %v5922
  %v8089 = vpop.f32.mrf.mxu0
  %v8090 = vadd.f32 0.0, %v8089
  %v8091 = vpop.f32.mrf.mxu0
  %v8092 = vpop.f32.mrf.mxu0
  %v8093 = vadd.f32 0.0, %v8092
  %v8094 = vpop.f32.mrf.mxu0
  %8095 = vmatprep.mubr.bf16.mxu0 0
  %8096 = vmatmul.mubr.bf16.gmra.mxu0 %v5924
  %v8097 = vpop.f32.mrf.mxu0
  %v8098 = vadd.f32 0.0, %v8097
  %v8099 = vpop.f32.mrf.mxu0
  %v8100 = vpop.f32.mrf.mxu0
  %v8101 = vadd.f32 0.0, %v8100
  %v8102 = vpop.f32.mrf.mxu0
  %8103 = vmatprep.mubr.bf16.mxu0 0
  %8104 = vmatmul.mubr.bf16.gmra.mxu0 %v5926
  %v8105 = vpop.f32.mrf.mxu0
  %v8106 = vadd.f32 0.0, %v8105
  %v8107 = vpop.f32.mrf.mxu0
  %v8108 = vpop.f32.mrf.mxu0
  %v8109 = vadd.f32 0.0, %v8108
  %v8110 = vpop.f32.mrf.mxu0
  %8111 = vmatprep.mubr.bf16.mxu0 0
  %8112 = vmatmul.mubr.bf16.gmra.mxu0 %v5928
  %v8113 = vpop.f32.mrf.mxu0
  %v8114 = vadd.f32 0.0, %v8113
  %v8115 = vpop.f32.mrf.mxu0
  %v8116 = vpop.f32.mrf.mxu0
  %v8117 = vadd.f32 0.0, %v8116
  %v8118 = vpop.f32.mrf.mxu0
  %8119 = vmatprep.mubr.bf16.mxu0 0
  %8120 = vmatmul.mubr.bf16.gmra.mxu0 %v5930
  %v8121 = vpop.f32.mrf.mxu0
  %v8122 = vadd.f32 0.0, %v8121
  %v8123 = vpop.f32.mrf.mxu0
  %v8124 = vpop.f32.mrf.mxu0
  %v8125 = vadd.f32 0.0, %v8124
  %v8126 = vpop.f32.mrf.mxu0
  %8127 = vmatprep.mubr.bf16.mxu0 0
  %8128 = vmatmul.mubr.bf16.gmra.mxu0 %v5932
  %v8129 = vpop.f32.mrf.mxu0
  %v8130 = vadd.f32 0.0, %v8129
  %v8131 = vpop.f32.mrf.mxu0
  %v8132 = vpop.f32.mrf.mxu0
  %v8133 = vadd.f32 0.0, %v8132
  %v8134 = vpop.f32.mrf.mxu0
  %8135 = vmatprep.mubr.bf16.mxu0 0
  %8136 = vmatmul.mubr.bf16.gmra.mxu0 %v6865
  %v8137 = vpop.f32.mrf.mxu0
  %v8138 = vadd.f32 0.0, %v8137
  %v8139 = vpop.f32.mrf.mxu0
  %v8140 = vpop.f32.mrf.mxu0
  %v8141 = vadd.f32 0.0, %v8140
  %v8142 = vpop.f32.mrf.mxu0
  %8143 = vmatprep.mubr.bf16.mxu0 0
  %8144 = vmatmul.mubr.bf16.gmra.mxu0 %v5902
  %v8145 = vpop.f32.mrf.mxu0
  %v8146 = vadd.f32 0.0, %v8145
  %v8147 = vpop.f32.mrf.mxu0
  %v8148 = vpop.f32.mrf.mxu0
  %v8149 = vadd.f32 0.0, %v8148
  %v8150 = vpop.f32.mrf.mxu0
  %8151 = vmatprep.mubr.bf16.mxu0 0
  %8152 = vmatmul.mubr.bf16.gmra.mxu0 %v5936
  %v8153 = vpop.f32.mrf.mxu0
  %v8154 = vadd.f32 0.0, %v8153
  %v8155 = vpop.f32.mrf.mxu0
  %v8156 = vpop.f32.mrf.mxu0
  %v8157 = vadd.f32 0.0, %v8156
  %v8158 = vpop.f32.mrf.mxu0
  %8159 = vmatprep.mubr.bf16.mxu0 0
  %8160 = vmatmul.mubr.bf16.gmra.mxu0 %v5938
  %v8161 = vpop.f32.mrf.mxu0
  %v8162 = vadd.f32 0.0, %v8161
  %v8163 = vpop.f32.mrf.mxu0
  %v8164 = vpop.f32.mrf.mxu0
  %v8165 = vadd.f32 0.0, %v8164
  %v8166 = vpop.f32.mrf.mxu0
  %8167 = vmatprep.mubr.bf16.mxu0 0
  %8168 = vmatmul.mubr.bf16.gmra.mxu0 %v5940
  %v8169 = vpop.f32.mrf.mxu0
  %v8170 = vadd.f32 0.0, %v8169
  %v8171 = vpop.f32.mrf.mxu0
  %v8172 = vpop.f32.mrf.mxu0
  %v8173 = vadd.f32 0.0, %v8172
  %v8174 = vpop.f32.mrf.mxu0
  %8175 = vmatprep.mubr.bf16.mxu0 0
  %8176 = vmatmul.mubr.bf16.gmra.mxu0 %v5942
  %v8177 = vpop.f32.mrf.mxu0
  %v8178 = vadd.f32 0.0, %v8177
  %v8179 = vpop.f32.mrf.mxu0
  %v8180 = vpop.f32.mrf.mxu0
  %v8181 = vadd.f32 0.0, %v8180
  %v8182 = vpop.f32.mrf.mxu0
  %8183 = vmatprep.mubr.bf16.mxu0 0
  %8184 = vmatmul.mubr.bf16.gmra.mxu0 %v5944
  %v8185 = vpop.f32.mrf.mxu0
  %v8186 = vadd.f32 0.0, %v8185
  %v8187 = vpop.f32.mrf.mxu0
  %v8188 = vpop.f32.mrf.mxu0
  %v8189 = vadd.f32 0.0, %v8188
  %v8190 = vpop.f32.mrf.mxu0
  %8191 = vmatprep.mubr.bf16.mxu0 0
  %8192 = vmatmul.mubr.bf16.gmra.mxu0 %v5946
  %v8193 = vpop.f32.mrf.mxu0
  %v8194 = vadd.f32 0.0, %v8193
  %v8195 = vpop.f32.mrf.mxu0
  %v8196 = vpop.f32.mrf.mxu0
  %v8197 = vadd.f32 0.0, %v8196
  %v8198 = vpop.f32.mrf.mxu0
  %8199 = vmatprep.mubr.bf16.mxu0 0
  %8200 = vmatmul.mubr.bf16.gmra.mxu0 %v5948
  %v8201 = vpop.f32.mrf.mxu0
  %v8202 = vadd.f32 0.0, %v8201
  %v8203 = vpop.f32.mrf.mxu0
  %v8204 = vpop.f32.mrf.mxu0
  %v8205 = vadd.f32 0.0, %v8204
  %v8206 = vpop.f32.mrf.mxu0
  %8207 = vmatprep.mubr.bf16.mxu0 0
  %8208 = vmatmul.mubr.bf16.gmra.mxu0 %v5950
  %v8209 = vpop.f32.mrf.mxu0
  %v8210 = vadd.f32 0.0, %v8209
  %v8211 = vpop.f32.mrf.mxu0
  %v8212 = vpop.f32.mrf.mxu0
  %v8213 = vadd.f32 0.0, %v8212
  %v8214 = vpop.f32.mrf.mxu0
  %8215 = vmatprep.mubr.bf16.mxu0 0
  %8216 = vmatmul.mubr.bf16.gmra.mxu0 %v5952
  %v8217 = vpop.f32.mrf.mxu0
  %v8218 = vadd.f32 0.0, %v8217
  %v8219 = vpop.f32.mrf.mxu0
  %v8220 = vpop.f32.mrf.mxu0
  %v8221 = vadd.f32 0.0, %v8220
  %v8222 = vpop.f32.mrf.mxu0
  %8223 = vmatprep.mubr.bf16.mxu0 0
  %8224 = vmatmul.mubr.bf16.gmra.mxu0 %v5954
  %v8225 = vpop.f32.mrf.mxu0
  %v8226 = vadd.f32 0.0, %v8225
  %v8227 = vpop.f32.mrf.mxu0
  %v8228 = vpop.f32.mrf.mxu0
  %v8229 = vadd.f32 0.0, %v8228
  %v8230 = vpop.f32.mrf.mxu0
  %8231 = vmatprep.mubr.bf16.mxu0 0
  %8232 = vmatmul.mubr.bf16.gmra.mxu0 %v5956
  %v8233 = vpop.f32.mrf.mxu0
  %v8234 = vadd.f32 0.0, %v8233
  %v8235 = vpop.f32.mrf.mxu0
  %v8236 = vpop.f32.mrf.mxu0
  %v8237 = vadd.f32 0.0, %v8236
  %v8238 = vpop.f32.mrf.mxu0
  %8239 = vmatprep.mubr.bf16.mxu0 0
  %8240 = vmatmul.mubr.bf16.gmra.mxu0 %v5958
  %v8241 = vpop.f32.mrf.mxu0
  %v8242 = vadd.f32 0.0, %v8241
  %v8243 = vpop.f32.mrf.mxu0
  %v8244 = vpop.f32.mrf.mxu0
  %v8245 = vadd.f32 0.0, %v8244
  %v8246 = vpop.f32.mrf.mxu0
  %8247 = vmatprep.mubr.bf16.mxu0 0
  %8248 = vmatmul.mubr.bf16.gmra.mxu0 %v5960
  %v8249 = vpop.f32.mrf.mxu0
  %v8250 = vadd.f32 0.0, %v8249
  %v8251 = vpop.f32.mrf.mxu0
  %v8252 = vpop.f32.mrf.mxu0
  %v8253 = vadd.f32 0.0, %v8252
  %v8254 = vpop.f32.mrf.mxu0
  %8255 = vmatprep.mubr.bf16.mxu0 0
  %8256 = vmatmul.mubr.bf16.gmra.mxu0 %v5962
  %v8257 = vpop.f32.mrf.mxu0
  %v8258 = vadd.f32 0.0, %v8257
  %v8259 = vpop.f32.mrf.mxu0
  %v8260 = vpop.f32.mrf.mxu0
  %v8261 = vadd.f32 0.0, %v8260
  %v8262 = vpop.f32.mrf.mxu0
  %8263 = vmatprep.mubr.bf16.mxu0 0
  %8264 = vmatmul.mubr.bf16.gmra.mxu0 %v6868
  %v8265 = vpop.f32.mrf.mxu0
  %v8266 = vadd.f32 0.0, %v8265
  %v8267 = vpop.f32.mrf.mxu0
  %v8268 = vpop.f32.mrf.mxu0
  %v8269 = vadd.f32 0.0, %v8268
  %v8270 = vpop.f32.mrf.mxu0
  %8271 = vmatprep.mubr.bf16.mxu0 0
  %8272 = vmatmul.mubr.bf16.gmra.mxu0 %v5902
  %v8273 = vpop.f32.mrf.mxu0
  %v8274 = vadd.f32 0.0, %v8273
  %v8275 = vpop.f32.mrf.mxu0
  %v8276 = vpop.f32.mrf.mxu0
  %v8277 = vadd.f32 0.0, %v8276
  %v8278 = vpop.f32.mrf.mxu0
  %8279 = vdwg.mxu0
  %v8280 = vadd.f32 %v7922, %v8026
  %v8281 = vadd.f32 %v7923, %v8029
  %v8282 = vadd.f32 %v7924, %v8034
  %v8283 = vadd.f32 %v7925, %v8037
  %v8284 = vadd.f32 %v7926, %v8042
  %v8285 = vadd.f32 %v7927, %v8045
  %v8286 = vadd.f32 %v7928, %v8050
  %v8287 = vadd.f32 %v7929, %v8053
  %v8288 = vadd.f32 %v7930, %v8058
  %v8289 = vadd.f32 %v7931, %v8061
  %v8290 = vadd.f32 %v7932, %v8066
  %v8291 = vadd.f32 %v7933, %v8069
  %v8292 = vadd.f32 %v7934, %v8074
  %v8293 = vadd.f32 %v7935, %v8077
  %v8294 = vadd.f32 %v7936, %v8082
  %v8295 = vadd.f32 %v7937, %v8085
  %v8296 = vadd.f32 %v7938, %v8090
  %v8297 = vadd.f32 %v7939, %v8093
  %v8298 = vadd.f32 %v7940, %v8098
  %v8299 = vadd.f32 %v7941, %v8101
  %v8300 = vadd.f32 %v7942, %v8106
  %v8301 = vadd.f32 %v7943, %v8109
  %v8302 = vadd.f32 %v7944, %v8114
  %v8303 = vadd.f32 %v7945, %v8117
  %v8304 = vadd.f32 %v7946, %v8122
  %v8305 = vadd.f32 %v7947, %v8125
  %v8306 = vadd.f32 %v7948, %v8130
  %v8307 = vadd.f32 %v7949, %v8133
  %v8308 = vadd.f32 %v7950, %v8138
  %v8309 = vadd.f32 %v7951, %v8141
  %v8310 = vadd.f32 %v7952, %v8146
  %v8311 = vadd.f32 %v7953, %v8149
  %v8312 = vadd.f32 %v7954, %v8154
  %v8313 = vadd.f32 %v7955, %v8157
  %v8314 = vadd.f32 %v7956, %v8162
  %v8315 = vadd.f32 %v7957, %v8165
  %v8316 = vadd.f32 %v7958, %v8170
  %v8317 = vadd.f32 %v7959, %v8173
  %v8318 = vadd.f32 %v7960, %v8178
  %v8319 = vadd.f32 %v7961, %v8181
  %v8320 = vadd.f32 %v7962, %v8186
  %v8321 = vadd.f32 %v7963, %v8189
  %v8322 = vadd.f32 %v7964, %v8194
  %v8323 = vadd.f32 %v7965, %v8197
  %v8324 = vadd.f32 %v7966, %v8202
  %v8325 = vadd.f32 %v7967, %v8205
  %v8326 = vadd.f32 %v7968, %v8210
  %v8327 = vadd.f32 %v7969, %v8213
  %v8328 = vadd.f32 %v7970, %v8218
  %v8329 = vadd.f32 %v7971, %v8221
  %v8330 = vadd.f32 %v7972, %v8226
  %v8331 = vadd.f32 %v7973, %v8229
  %v8332 = vadd.f32 %v7974, %v8234
  %v8333 = vadd.f32 %v7975, %v8237
  %v8334 = vadd.f32 %v7976, %v8242
  %v8335 = vadd.f32 %v7977, %v8245
  %v8336 = vadd.f32 %v7978, %v8250
  %v8337 = vadd.f32 %v7979, %v8253
  %v8338 = vadd.f32 %v7980, %v8258
  %v8339 = vadd.f32 %v7981, %v8261
  %v8340 = vadd.f32 %v7982, %v8266
  %v8341 = vadd.f32 %v7983, %v8269
  %v8342 = vadd.f32 %v7984, %v8274
  %v8343 = vadd.f32 %v7985, %v8277
  %s8344 = scalar_lea.vmem %s4, 28
  %v8345 = vld [vmem:[%s8344] sm:$0xf]
  %v8347 = vsel %vm692, %v8345, 0
  %8349 = vmatprep.subr.bf16.mxu0 0
  %8350 = vmatpush1.bf16.msra.mxu0 0
  %8351 = vmatprep.subr.bf16.mxu0 0
  %8352 = vmatpush1.bf16.msra.mxu0 0
  %8353 = vmatprep.subr.bf16.mxu0 0
  %8354 = vmatpush1.bf16.msra.mxu0 0
  %8355 = vmatprep.subr.bf16.mxu0 0
  %8356 = vmatpush1.bf16.msra.mxu0 0
  %8357 = vmatprep.subr.bf16.mxu0 0
  %8358 = vmatpush1.bf16.msra.mxu0 0
  %8359 = vmatprep.subr.bf16.mxu0 0
  %8360 = vmatpush1.bf16.msra.mxu0 0
  %8361 = vmatprep.subr.bf16.mxu0 0
  %8362 = vmatpush1.bf16.msra.mxu0 0
  %8363 = vmatprep.subr.bf16.mxu0 0
  %8364 = vmatpush1.bf16.msra.mxu0 %v8347
  %8365 = vmatprep.subr.bf16.mxu0 0
  %8366 = vmatpush2.bf16.msra.mxu0 0
  %8367 = vmatprep.subr.bf16.mxu0 0
  %8368 = vmatpush2.bf16.msra.mxu0 0
  %8369 = vmatprep.subr.bf16.mxu0 0
  %8370 = vmatpush2.bf16.msra.mxu0 0
  %8371 = vmatprep.subr.bf16.mxu0 0
  %8372 = vmatpush2.bf16.msra.mxu0 0
  %8373 = vmatprep.subr.bf16.mxu0 0
  %8374 = vmatpush2.bf16.msra.mxu0 0
  %8375 = vmatprep.subr.bf16.mxu0 0
  %8376 = vmatpush2.bf16.msra.mxu0 0
  %8377 = vmatprep.subr.bf16.mxu0 0
  %8378 = vmatpush2.bf16.msra.mxu0 0
  %8379 = vmatprep.subr.bf16.mxu0 0
  %8380 = vmatpush2.bf16.msra.mxu0 0
  %8381 = vmatprep.mubr.bf16.mxu0 0
  %8382 = vmatmul.mubr.bf16.gmra.mxu0 %v5524
  %v8383 = vpop.f32.mrf.mxu0
  %v8384 = vadd.f32 0.0, %v8383
  %v8385 = vpop.f32.mrf.mxu0
  %v8386 = vpop.f32.mrf.mxu0
  %v8387 = vadd.f32 0.0, %v8386
  %v8388 = vpop.f32.mrf.mxu0
  %8389 = vmatprep.mubr.bf16.mxu0 0
  %8390 = vmatmul.mubr.bf16.gmra.mxu0 %v5527
  %v8391 = vpop.f32.mrf.mxu0
  %v8392 = vadd.f32 0.0, %v8391
  %v8393 = vpop.f32.mrf.mxu0
  %v8394 = vpop.f32.mrf.mxu0
  %v8395 = vadd.f32 0.0, %v8394
  %v8396 = vpop.f32.mrf.mxu0
  %8397 = vmatprep.mubr.bf16.mxu0 0
  %8398 = vmatmul.mubr.bf16.gmra.mxu0 %v5530
  %v8399 = vpop.f32.mrf.mxu0
  %v8400 = vadd.f32 0.0, %v8399
  %v8401 = vpop.f32.mrf.mxu0
  %v8402 = vpop.f32.mrf.mxu0
  %v8403 = vadd.f32 0.0, %v8402
  %v8404 = vpop.f32.mrf.mxu0
  %8405 = vmatprep.mubr.bf16.mxu0 0
  %8406 = vmatmul.mubr.bf16.gmra.mxu0 %v5533
  %v8407 = vpop.f32.mrf.mxu0
  %v8408 = vadd.f32 0.0, %v8407
  %v8409 = vpop.f32.mrf.mxu0
  %v8410 = vpop.f32.mrf.mxu0
  %v8411 = vadd.f32 0.0, %v8410
  %v8412 = vpop.f32.mrf.mxu0
  %8413 = vmatprep.mubr.bf16.mxu0 0
  %8414 = vmatmul.mubr.bf16.gmra.mxu0 %v5536
  %v8415 = vpop.f32.mrf.mxu0
  %v8416 = vadd.f32 0.0, %v8415
  %v8417 = vpop.f32.mrf.mxu0
  %v8418 = vpop.f32.mrf.mxu0
  %v8419 = vadd.f32 0.0, %v8418
  %v8420 = vpop.f32.mrf.mxu0
  %8421 = vmatprep.mubr.bf16.mxu0 0
  %8422 = vmatmul.mubr.bf16.gmra.mxu0 %v5539
  %v8423 = vpop.f32.mrf.mxu0
  %v8424 = vadd.f32 0.0, %v8423
  %v8425 = vpop.f32.mrf.mxu0
  %v8426 = vpop.f32.mrf.mxu0
  %v8427 = vadd.f32 0.0, %v8426
  %v8428 = vpop.f32.mrf.mxu0
  %8429 = vmatprep.mubr.bf16.mxu0 0
  %8430 = vmatmul.mubr.bf16.gmra.mxu0 %v5542
  %v8431 = vpop.f32.mrf.mxu0
  %v8432 = vadd.f32 0.0, %v8431
  %v8433 = vpop.f32.mrf.mxu0
  %v8434 = vpop.f32.mrf.mxu0
  %v8435 = vadd.f32 0.0, %v8434
  %v8436 = vpop.f32.mrf.mxu0
  %8437 = vmatprep.mubr.bf16.mxu0 0
  %8438 = vmatmul.mubr.bf16.gmra.mxu0 %v5545
  %v8439 = vpop.f32.mrf.mxu0
  %v8440 = vadd.f32 0.0, %v8439
  %v8441 = vpop.f32.mrf.mxu0
  %v8442 = vpop.f32.mrf.mxu0
  %v8443 = vadd.f32 0.0, %v8442
  %v8444 = vpop.f32.mrf.mxu0
  %8445 = vmatprep.mubr.bf16.mxu0 0
  %8446 = vmatmul.mubr.bf16.gmra.mxu0 %v5548
  %v8447 = vpop.f32.mrf.mxu0
  %v8448 = vadd.f32 0.0, %v8447
  %v8449 = vpop.f32.mrf.mxu0
  %v8450 = vpop.f32.mrf.mxu0
  %v8451 = vadd.f32 0.0, %v8450
  %v8452 = vpop.f32.mrf.mxu0
  %8453 = vmatprep.mubr.bf16.mxu0 0
  %8454 = vmatmul.mubr.bf16.gmra.mxu0 %v5551
  %v8455 = vpop.f32.mrf.mxu0
  %v8456 = vadd.f32 0.0, %v8455
  %v8457 = vpop.f32.mrf.mxu0
  %v8458 = vpop.f32.mrf.mxu0
  %v8459 = vadd.f32 0.0, %v8458
  %v8460 = vpop.f32.mrf.mxu0
  %8461 = vmatprep.mubr.bf16.mxu0 0
  %8462 = vmatmul.mubr.bf16.gmra.mxu0 %v5554
  %v8463 = vpop.f32.mrf.mxu0
  %v8464 = vadd.f32 0.0, %v8463
  %v8465 = vpop.f32.mrf.mxu0
  %v8466 = vpop.f32.mrf.mxu0
  %v8467 = vadd.f32 0.0, %v8466
  %v8468 = vpop.f32.mrf.mxu0
  %8469 = vmatprep.mubr.bf16.mxu0 0
  %8470 = vmatmul.mubr.bf16.gmra.mxu0 %v5557
  %v8471 = vpop.f32.mrf.mxu0
  %v8472 = vadd.f32 0.0, %v8471
  %v8473 = vpop.f32.mrf.mxu0
  %v8474 = vpop.f32.mrf.mxu0
  %v8475 = vadd.f32 0.0, %v8474
  %v8476 = vpop.f32.mrf.mxu0
  %8477 = vmatprep.mubr.bf16.mxu0 0
  %8478 = vmatmul.mubr.bf16.gmra.mxu0 %v5560
  %v8479 = vpop.f32.mrf.mxu0
  %v8480 = vadd.f32 0.0, %v8479
  %v8481 = vpop.f32.mrf.mxu0
  %v8482 = vpop.f32.mrf.mxu0
  %v8483 = vadd.f32 0.0, %v8482
  %v8484 = vpop.f32.mrf.mxu0
  %8485 = vmatprep.mubr.bf16.mxu0 0
  %8486 = vmatmul.mubr.bf16.gmra.mxu0 %v5563
  %v8487 = vpop.f32.mrf.mxu0
  %v8488 = vadd.f32 0.0, %v8487
  %v8489 = vpop.f32.mrf.mxu0
  %v8490 = vpop.f32.mrf.mxu0
  %v8491 = vadd.f32 0.0, %v8490
  %v8492 = vpop.f32.mrf.mxu0
  %8493 = vmatprep.mubr.bf16.mxu0 0
  %8494 = vmatmul.mubr.bf16.gmra.mxu0 %v7251
  %v8495 = vpop.f32.mrf.mxu0
  %v8496 = vadd.f32 0.0, %v8495
  %v8497 = vpop.f32.mrf.mxu0
  %v8498 = vpop.f32.mrf.mxu0
  %v8499 = vadd.f32 0.0, %v8498
  %v8500 = vpop.f32.mrf.mxu0
  %8501 = vmatprep.mubr.bf16.mxu0 0
  %8502 = vmatmul.mubr.bf16.gmra.mxu0 %v5518
  %v8503 = vpop.f32.mrf.mxu0
  %v8504 = vadd.f32 0.0, %v8503
  %v8505 = vpop.f32.mrf.mxu0
  %v8506 = vpop.f32.mrf.mxu0
  %v8507 = vadd.f32 0.0, %v8506
  %v8508 = vpop.f32.mrf.mxu0
  %8509 = vmatprep.mubr.bf16.mxu0 0
  %8510 = vmatmul.mubr.bf16.gmra.mxu0 %v5569
  %v8511 = vpop.f32.mrf.mxu0
  %v8512 = vadd.f32 0.0, %v8511
  %v8513 = vpop.f32.mrf.mxu0
  %v8514 = vpop.f32.mrf.mxu0
  %v8515 = vadd.f32 0.0, %v8514
  %v8516 = vpop.f32.mrf.mxu0
  %8517 = vmatprep.mubr.bf16.mxu0 0
  %8518 = vmatmul.mubr.bf16.gmra.mxu0 %v5572
  %v8519 = vpop.f32.mrf.mxu0
  %v8520 = vadd.f32 0.0, %v8519
  %v8521 = vpop.f32.mrf.mxu0
  %v8522 = vpop.f32.mrf.mxu0
  %v8523 = vadd.f32 0.0, %v8522
  %v8524 = vpop.f32.mrf.mxu0
  %8525 = vmatprep.mubr.bf16.mxu0 0
  %8526 = vmatmul.mubr.bf16.gmra.mxu0 %v5575
  %v8527 = vpop.f32.mrf.mxu0
  %v8528 = vadd.f32 0.0, %v8527
  %v8529 = vpop.f32.mrf.mxu0
  %v8530 = vpop.f32.mrf.mxu0
  %v8531 = vadd.f32 0.0, %v8530
  %v8532 = vpop.f32.mrf.mxu0
  %8533 = vmatprep.mubr.bf16.mxu0 0
  %8534 = vmatmul.mubr.bf16.gmra.mxu0 %v5578
  %v8535 = vpop.f32.mrf.mxu0
  %v8536 = vadd.f32 0.0, %v8535
  %v8537 = vpop.f32.mrf.mxu0
  %v8538 = vpop.f32.mrf.mxu0
  %v8539 = vadd.f32 0.0, %v8538
  %v8540 = vpop.f32.mrf.mxu0
  %8541 = vmatprep.mubr.bf16.mxu0 0
  %8542 = vmatmul.mubr.bf16.gmra.mxu0 %v5581
  %v8543 = vpop.f32.mrf.mxu0
  %v8544 = vadd.f32 0.0, %v8543
  %v8545 = vpop.f32.mrf.mxu0
  %v8546 = vpop.f32.mrf.mxu0
  %v8547 = vadd.f32 0.0, %v8546
  %v8548 = vpop.f32.mrf.mxu0
  %8549 = vmatprep.mubr.bf16.mxu0 0
  %8550 = vmatmul.mubr.bf16.gmra.mxu0 %v5584
  %v8551 = vpop.f32.mrf.mxu0
  %v8552 = vadd.f32 0.0, %v8551
  %v8553 = vpop.f32.mrf.mxu0
  %v8554 = vpop.f32.mrf.mxu0
  %v8555 = vadd.f32 0.0, %v8554
  %v8556 = vpop.f32.mrf.mxu0
  %8557 = vmatprep.mubr.bf16.mxu0 0
  %8558 = vmatmul.mubr.bf16.gmra.mxu0 %v5587
  %v8559 = vpop.f32.mrf.mxu0
  %v8560 = vadd.f32 0.0, %v8559
  %v8561 = vpop.f32.mrf.mxu0
  %v8562 = vpop.f32.mrf.mxu0
  %v8563 = vadd.f32 0.0, %v8562
  %v8564 = vpop.f32.mrf.mxu0
  %8565 = vmatprep.mubr.bf16.mxu0 0
  %8566 = vmatmul.mubr.bf16.gmra.mxu0 %v5590
  %v8567 = vpop.f32.mrf.mxu0
  %v8568 = vadd.f32 0.0, %v8567
  %v8569 = vpop.f32.mrf.mxu0
  %v8570 = vpop.f32.mrf.mxu0
  %v8571 = vadd.f32 0.0, %v8570
  %v8572 = vpop.f32.mrf.mxu0
  %8573 = vmatprep.mubr.bf16.mxu0 0
  %8574 = vmatmul.mubr.bf16.gmra.mxu0 %v5593
  %v8575 = vpop.f32.mrf.mxu0
  %v8576 = vadd.f32 0.0, %v8575
  %v8577 = vpop.f32.mrf.mxu0
  %v8578 = vpop.f32.mrf.mxu0
  %v8579 = vadd.f32 0.0, %v8578
  %v8580 = vpop.f32.mrf.mxu0
  %8581 = vmatprep.mubr.bf16.mxu0 0
  %8582 = vmatmul.mubr.bf16.gmra.mxu0 %v5596
  %v8583 = vpop.f32.mrf.mxu0
  %v8584 = vadd.f32 0.0, %v8583
  %v8585 = vpop.f32.mrf.mxu0
  %v8586 = vpop.f32.mrf.mxu0
  %v8587 = vadd.f32 0.0, %v8586
  %v8588 = vpop.f32.mrf.mxu0
  %8589 = vmatprep.mubr.bf16.mxu0 0
  %8590 = vmatmul.mubr.bf16.gmra.mxu0 %v5599
  %v8591 = vpop.f32.mrf.mxu0
  %v8592 = vadd.f32 0.0, %v8591
  %v8593 = vpop.f32.mrf.mxu0
  %v8594 = vpop.f32.mrf.mxu0
  %v8595 = vadd.f32 0.0, %v8594
  %v8596 = vpop.f32.mrf.mxu0
  %8597 = vmatprep.mubr.bf16.mxu0 0
  %8598 = vmatmul.mubr.bf16.gmra.mxu0 %v5602
  %v8599 = vpop.f32.mrf.mxu0
  %v8600 = vadd.f32 0.0, %v8599
  %v8601 = vpop.f32.mrf.mxu0
  %v8602 = vpop.f32.mrf.mxu0
  %v8603 = vadd.f32 0.0, %v8602
  %v8604 = vpop.f32.mrf.mxu0
  %8605 = vmatprep.mubr.bf16.mxu0 0
  %8606 = vmatmul.mubr.bf16.gmra.mxu0 %v5605
  %v8607 = vpop.f32.mrf.mxu0
  %v8608 = vadd.f32 0.0, %v8607
  %v8609 = vpop.f32.mrf.mxu0
  %v8610 = vpop.f32.mrf.mxu0
  %v8611 = vadd.f32 0.0, %v8610
  %v8612 = vpop.f32.mrf.mxu0
  %8613 = vmatprep.mubr.bf16.mxu0 0
  %8614 = vmatmul.mubr.bf16.gmra.mxu0 %v5608
  %v8615 = vpop.f32.mrf.mxu0
  %v8616 = vadd.f32 0.0, %v8615
  %v8617 = vpop.f32.mrf.mxu0
  %v8618 = vpop.f32.mrf.mxu0
  %v8619 = vadd.f32 0.0, %v8618
  %v8620 = vpop.f32.mrf.mxu0
  %8621 = vmatprep.mubr.bf16.mxu0 0
  %8622 = vmatmul.mubr.bf16.gmra.mxu0 %v7254
  %v8623 = vpop.f32.mrf.mxu0
  %v8624 = vadd.f32 0.0, %v8623
  %v8625 = vpop.f32.mrf.mxu0
  %v8626 = vpop.f32.mrf.mxu0
  %v8627 = vadd.f32 0.0, %v8626
  %v8628 = vpop.f32.mrf.mxu0
  %8629 = vmatprep.mubr.bf16.mxu0 0
  %8630 = vmatmul.mubr.bf16.gmra.mxu0 %v5518
  %v8631 = vpop.f32.mrf.mxu0
  %v8632 = vadd.f32 0.0, %v8631
  %v8633 = vpop.f32.mrf.mxu0
  %v8634 = vpop.f32.mrf.mxu0
  %v8635 = vadd.f32 0.0, %v8634
  %v8636 = vpop.f32.mrf.mxu0
  %8637 = vdwg.mxu0
  %v8638 = vadd.f32 %v8280, %v8384
  %v8639 = vadd.f32 %v8281, %v8387
  %v8640 = vadd.f32 %v8282, %v8392
  %v8641 = vadd.f32 %v8283, %v8395
  %v8642 = vadd.f32 %v8284, %v8400
  %v8643 = vadd.f32 %v8285, %v8403
  %v8644 = vadd.f32 %v8286, %v8408
  %v8645 = vadd.f32 %v8287, %v8411
  %v8646 = vadd.f32 %v8288, %v8416
  %v8647 = vadd.f32 %v8289, %v8419
  %v8648 = vadd.f32 %v8290, %v8424
  %v8649 = vadd.f32 %v8291, %v8427
  %v8650 = vadd.f32 %v8292, %v8432
  %v8651 = vadd.f32 %v8293, %v8435
  %v8652 = vadd.f32 %v8294, %v8440
  %v8653 = vadd.f32 %v8295, %v8443
  %v8654 = vadd.f32 %v8296, %v8448
  %v8655 = vadd.f32 %v8297, %v8451
  %v8656 = vadd.f32 %v8298, %v8456
  %v8657 = vadd.f32 %v8299, %v8459
  %v8658 = vadd.f32 %v8300, %v8464
  %v8659 = vadd.f32 %v8301, %v8467
  %v8660 = vadd.f32 %v8302, %v8472
  %v8661 = vadd.f32 %v8303, %v8475
  %v8662 = vadd.f32 %v8304, %v8480
  %v8663 = vadd.f32 %v8305, %v8483
  %v8664 = vadd.f32 %v8306, %v8488
  %v8665 = vadd.f32 %v8307, %v8491
  %v8666 = vadd.f32 %v8308, %v8496
  %v8667 = vadd.f32 %v8309, %v8499
  %v8668 = vadd.f32 %v8310, %v8504
  %v8669 = vadd.f32 %v8311, %v8507
  %v8670 = vadd.f32 %v8312, %v8512
  %v8671 = vadd.f32 %v8313, %v8515
  %v8672 = vadd.f32 %v8314, %v8520
  %v8673 = vadd.f32 %v8315, %v8523
  %v8674 = vadd.f32 %v8316, %v8528
  %v8675 = vadd.f32 %v8317, %v8531
  %v8676 = vadd.f32 %v8318, %v8536
  %v8677 = vadd.f32 %v8319, %v8539
  %v8678 = vadd.f32 %v8320, %v8544
  %v8679 = vadd.f32 %v8321, %v8547
  %v8680 = vadd.f32 %v8322, %v8552
  %v8681 = vadd.f32 %v8323, %v8555
  %v8682 = vadd.f32 %v8324, %v8560
  %v8683 = vadd.f32 %v8325, %v8563
  %v8684 = vadd.f32 %v8326, %v8568
  %v8685 = vadd.f32 %v8327, %v8571
  %v8686 = vadd.f32 %v8328, %v8576
  %v8687 = vadd.f32 %v8329, %v8579
  %v8688 = vadd.f32 %v8330, %v8584
  %v8689 = vadd.f32 %v8331, %v8587
  %v8690 = vadd.f32 %v8332, %v8592
  %v8691 = vadd.f32 %v8333, %v8595
  %v8692 = vadd.f32 %v8334, %v8600
  %v8693 = vadd.f32 %v8335, %v8603
  %v8694 = vadd.f32 %v8336, %v8608
  %v8695 = vadd.f32 %v8337, %v8611
  %v8696 = vadd.f32 %v8338, %v8616
  %v8697 = vadd.f32 %v8339, %v8619
  %v8698 = vadd.f32 %v8340, %v8624
  %v8699 = vadd.f32 %v8341, %v8627
  %v8700 = vadd.f32 %v8342, %v8632
  %v8701 = vadd.f32 %v8343, %v8635
  %s8702 = scalar_lea.vmem %s4, 32
  %v8703 = vld [vmem:[%s8702] sm:$0xf]
  %v8705 = vsel %vm692, %v8703, 0
  %8707 = vmatprep.subr.bf16.mxu0 0
  %8708 = vmatpush1.bf16.msra.mxu0 0
  %8709 = vmatprep.subr.bf16.mxu0 0
  %8710 = vmatpush1.bf16.msra.mxu0 0
  %8711 = vmatprep.subr.bf16.mxu0 0
  %8712 = vmatpush1.bf16.msra.mxu0 0
  %8713 = vmatprep.subr.bf16.mxu0 0
  %8714 = vmatpush1.bf16.msra.mxu0 0
  %8715 = vmatprep.subr.bf16.mxu0 0
  %8716 = vmatpush1.bf16.msra.mxu0 0
  %8717 = vmatprep.subr.bf16.mxu0 0
  %8718 = vmatpush1.bf16.msra.mxu0 0
  %8719 = vmatprep.subr.bf16.mxu0 0
  %8720 = vmatpush1.bf16.msra.mxu0 0
  %8721 = vmatprep.subr.bf16.mxu0 0
  %8722 = vmatpush1.bf16.msra.mxu0 %v8705
  %8723 = vmatprep.subr.bf16.mxu0 0
  %8724 = vmatpush2.bf16.msra.mxu0 0
  %8725 = vmatprep.subr.bf16.mxu0 0
  %8726 = vmatpush2.bf16.msra.mxu0 0
  %8727 = vmatprep.subr.bf16.mxu0 0
  %8728 = vmatpush2.bf16.msra.mxu0 0
  %8729 = vmatprep.subr.bf16.mxu0 0
  %8730 = vmatpush2.bf16.msra.mxu0 0
  %8731 = vmatprep.subr.bf16.mxu0 0
  %8732 = vmatpush2.bf16.msra.mxu0 0
  %8733 = vmatprep.subr.bf16.mxu0 0
  %8734 = vmatpush2.bf16.msra.mxu0 0
  %8735 = vmatprep.subr.bf16.mxu0 0
  %8736 = vmatpush2.bf16.msra.mxu0 0
  %8737 = vmatprep.subr.bf16.mxu0 0
  %8738 = vmatpush2.bf16.msra.mxu0 0
  %8739 = vmatprep.mubr.bf16.mxu0 0
  %8740 = vmatmul.mubr.bf16.gmra.mxu0 %v6420
  %v8741 = vpop.f32.mrf.mxu0
  %v8742 = vadd.f32 0.0, %v8741
  %v8743 = vpop.f32.mrf.mxu0
  %v8744 = vpop.f32.mrf.mxu0
  %v8745 = vadd.f32 0.0, %v8744
  %v8746 = vpop.f32.mrf.mxu0
  %8747 = vmatprep.mubr.bf16.mxu0 0
  %8748 = vmatmul.mubr.bf16.gmra.mxu0 %v6423
  %v8749 = vpop.f32.mrf.mxu0
  %v8750 = vadd.f32 0.0, %v8749
  %v8751 = vpop.f32.mrf.mxu0
  %v8752 = vpop.f32.mrf.mxu0
  %v8753 = vadd.f32 0.0, %v8752
  %v8754 = vpop.f32.mrf.mxu0
  %8755 = vmatprep.mubr.bf16.mxu0 0
  %8756 = vmatmul.mubr.bf16.gmra.mxu0 %v6426
  %v8757 = vpop.f32.mrf.mxu0
  %v8758 = vadd.f32 0.0, %v8757
  %v8759 = vpop.f32.mrf.mxu0
  %v8760 = vpop.f32.mrf.mxu0
  %v8761 = vadd.f32 0.0, %v8760
  %v8762 = vpop.f32.mrf.mxu0
  %8763 = vmatprep.mubr.bf16.mxu0 0
  %8764 = vmatmul.mubr.bf16.gmra.mxu0 %v6429
  %v8765 = vpop.f32.mrf.mxu0
  %v8766 = vadd.f32 0.0, %v8765
  %v8767 = vpop.f32.mrf.mxu0
  %v8768 = vpop.f32.mrf.mxu0
  %v8769 = vadd.f32 0.0, %v8768
  %v8770 = vpop.f32.mrf.mxu0
  %8771 = vmatprep.mubr.bf16.mxu0 0
  %8772 = vmatmul.mubr.bf16.gmra.mxu0 %v6432
  %v8773 = vpop.f32.mrf.mxu0
  %v8774 = vadd.f32 0.0, %v8773
  %v8775 = vpop.f32.mrf.mxu0
  %v8776 = vpop.f32.mrf.mxu0
  %v8777 = vadd.f32 0.0, %v8776
  %v8778 = vpop.f32.mrf.mxu0
  %8779 = vmatprep.mubr.bf16.mxu0 0
  %8780 = vmatmul.mubr.bf16.gmra.mxu0 %v6435
  %v8781 = vpop.f32.mrf.mxu0
  %v8782 = vadd.f32 0.0, %v8781
  %v8783 = vpop.f32.mrf.mxu0
  %v8784 = vpop.f32.mrf.mxu0
  %v8785 = vadd.f32 0.0, %v8784
  %v8786 = vpop.f32.mrf.mxu0
  %8787 = vmatprep.mubr.bf16.mxu0 0
  %8788 = vmatmul.mubr.bf16.gmra.mxu0 %v6438
  %v8789 = vpop.f32.mrf.mxu0
  %v8790 = vadd.f32 0.0, %v8789
  %v8791 = vpop.f32.mrf.mxu0
  %v8792 = vpop.f32.mrf.mxu0
  %v8793 = vadd.f32 0.0, %v8792
  %v8794 = vpop.f32.mrf.mxu0
  %8795 = vmatprep.mubr.bf16.mxu0 0
  %8796 = vmatmul.mubr.bf16.gmra.mxu0 %v6441
  %v8797 = vpop.f32.mrf.mxu0
  %v8798 = vadd.f32 0.0, %v8797
  %v8799 = vpop.f32.mrf.mxu0
  %v8800 = vpop.f32.mrf.mxu0
  %v8801 = vadd.f32 0.0, %v8800
  %v8802 = vpop.f32.mrf.mxu0
  %8803 = vmatprep.mubr.bf16.mxu0 0
  %8804 = vmatmul.mubr.bf16.gmra.mxu0 %v6444
  %v8805 = vpop.f32.mrf.mxu0
  %v8806 = vadd.f32 0.0, %v8805
  %v8807 = vpop.f32.mrf.mxu0
  %v8808 = vpop.f32.mrf.mxu0
  %v8809 = vadd.f32 0.0, %v8808
  %v8810 = vpop.f32.mrf.mxu0
  %8811 = vmatprep.mubr.bf16.mxu0 0
  %8812 = vmatmul.mubr.bf16.gmra.mxu0 %v6447
  %v8813 = vpop.f32.mrf.mxu0
  %v8814 = vadd.f32 0.0, %v8813
  %v8815 = vpop.f32.mrf.mxu0
  %v8816 = vpop.f32.mrf.mxu0
  %v8817 = vadd.f32 0.0, %v8816
  %v8818 = vpop.f32.mrf.mxu0
  %8819 = vmatprep.mubr.bf16.mxu0 0
  %8820 = vmatmul.mubr.bf16.gmra.mxu0 %v6450
  %v8821 = vpop.f32.mrf.mxu0
  %v8822 = vadd.f32 0.0, %v8821
  %v8823 = vpop.f32.mrf.mxu0
  %v8824 = vpop.f32.mrf.mxu0
  %v8825 = vadd.f32 0.0, %v8824
  %v8826 = vpop.f32.mrf.mxu0
  %8827 = vmatprep.mubr.bf16.mxu0 0
  %8828 = vmatmul.mubr.bf16.gmra.mxu0 %v6453
  %v8829 = vpop.f32.mrf.mxu0
  %v8830 = vadd.f32 0.0, %v8829
  %v8831 = vpop.f32.mrf.mxu0
  %v8832 = vpop.f32.mrf.mxu0
  %v8833 = vadd.f32 0.0, %v8832
  %v8834 = vpop.f32.mrf.mxu0
  %8835 = vmatprep.mubr.bf16.mxu0 0
  %8836 = vmatmul.mubr.bf16.gmra.mxu0 %v6456
  %v8837 = vpop.f32.mrf.mxu0
  %v8838 = vadd.f32 0.0, %v8837
  %v8839 = vpop.f32.mrf.mxu0
  %v8840 = vpop.f32.mrf.mxu0
  %v8841 = vadd.f32 0.0, %v8840
  %v8842 = vpop.f32.mrf.mxu0
  %8843 = vmatprep.mubr.bf16.mxu0 0
  %8844 = vmatmul.mubr.bf16.gmra.mxu0 %v6459
  %v8845 = vpop.f32.mrf.mxu0
  %v8846 = vadd.f32 0.0, %v8845
  %v8847 = vpop.f32.mrf.mxu0
  %v8848 = vpop.f32.mrf.mxu0
  %v8849 = vadd.f32 0.0, %v8848
  %v8850 = vpop.f32.mrf.mxu0
  %8851 = vmatprep.mubr.bf16.mxu0 0
  %8852 = vmatmul.mubr.bf16.gmra.mxu0 %v7625
  %v8853 = vpop.f32.mrf.mxu0
  %v8854 = vadd.f32 0.0, %v8853
  %v8855 = vpop.f32.mrf.mxu0
  %v8856 = vpop.f32.mrf.mxu0
  %v8857 = vadd.f32 0.0, %v8856
  %v8858 = vpop.f32.mrf.mxu0
  %8859 = vmatprep.mubr.bf16.mxu0 0
  %8860 = vmatmul.mubr.bf16.gmra.mxu0 %v6414
  %v8861 = vpop.f32.mrf.mxu0
  %v8862 = vadd.f32 0.0, %v8861
  %v8863 = vpop.f32.mrf.mxu0
  %v8864 = vpop.f32.mrf.mxu0
  %v8865 = vadd.f32 0.0, %v8864
  %v8866 = vpop.f32.mrf.mxu0
  %8867 = vmatprep.mubr.bf16.mxu0 0
  %8868 = vmatmul.mubr.bf16.gmra.mxu0 %v6465
  %v8869 = vpop.f32.mrf.mxu0
  %v8870 = vadd.f32 0.0, %v8869
  %v8871 = vpop.f32.mrf.mxu0
  %v8872 = vpop.f32.mrf.mxu0
  %v8873 = vadd.f32 0.0, %v8872
  %v8874 = vpop.f32.mrf.mxu0
  %8875 = vmatprep.mubr.bf16.mxu0 0
  %8876 = vmatmul.mubr.bf16.gmra.mxu0 %v6468
  %v8877 = vpop.f32.mrf.mxu0
  %v8878 = vadd.f32 0.0, %v8877
  %v8879 = vpop.f32.mrf.mxu0
  %v8880 = vpop.f32.mrf.mxu0
  %v8881 = vadd.f32 0.0, %v8880
  %v8882 = vpop.f32.mrf.mxu0
  %8883 = vmatprep.mubr.bf16.mxu0 0
  %8884 = vmatmul.mubr.bf16.gmra.mxu0 %v6471
  %v8885 = vpop.f32.mrf.mxu0
  %v8886 = vadd.f32 0.0, %v8885
  %v8887 = vpop.f32.mrf.mxu0
  %v8888 = vpop.f32.mrf.mxu0
  %v8889 = vadd.f32 0.0, %v8888
  %v8890 = vpop.f32.mrf.mxu0
  %8891 = vmatprep.mubr.bf16.mxu0 0
  %8892 = vmatmul.mubr.bf16.gmra.mxu0 %v6474
  %v8893 = vpop.f32.mrf.mxu0
  %v8894 = vadd.f32 0.0, %v8893
  %v8895 = vpop.f32.mrf.mxu0
  %v8896 = vpop.f32.mrf.mxu0
  %v8897 = vadd.f32 0.0, %v8896
  %v8898 = vpop.f32.mrf.mxu0
  %8899 = vmatprep.mubr.bf16.mxu0 0
  %8900 = vmatmul.mubr.bf16.gmra.mxu0 %v6477
  %v8901 = vpop.f32.mrf.mxu0
  %v8902 = vadd.f32 0.0, %v8901
  %v8903 = vpop.f32.mrf.mxu0
  %v8904 = vpop.f32.mrf.mxu0
  %v8905 = vadd.f32 0.0, %v8904
  %v8906 = vpop.f32.mrf.mxu0
  %8907 = vmatprep.mubr.bf16.mxu0 0
  %8908 = vmatmul.mubr.bf16.gmra.mxu0 %v6480
  %v8909 = vpop.f32.mrf.mxu0
  %v8910 = vadd.f32 0.0, %v8909
  %v8911 = vpop.f32.mrf.mxu0
  %v8912 = vpop.f32.mrf.mxu0
  %v8913 = vadd.f32 0.0, %v8912
  %v8914 = vpop.f32.mrf.mxu0
  %8915 = vmatprep.mubr.bf16.mxu0 0
  %8916 = vmatmul.mubr.bf16.gmra.mxu0 %v6483
  %v8917 = vpop.f32.mrf.mxu0
  %v8918 = vadd.f32 0.0, %v8917
  %v8919 = vpop.f32.mrf.mxu0
  %v8920 = vpop.f32.mrf.mxu0
  %v8921 = vadd.f32 0.0, %v8920
  %v8922 = vpop.f32.mrf.mxu0
  %8923 = vmatprep.mubr.bf16.mxu0 0
  %8924 = vmatmul.mubr.bf16.gmra.mxu0 %v6486
  %v8925 = vpop.f32.mrf.mxu0
  %v8926 = vadd.f32 0.0, %v8925
  %v8927 = vpop.f32.mrf.mxu0
  %v8928 = vpop.f32.mrf.mxu0
  %v8929 = vadd.f32 0.0, %v8928
  %v8930 = vpop.f32.mrf.mxu0
  %8931 = vmatprep.mubr.bf16.mxu0 0
  %8932 = vmatmul.mubr.bf16.gmra.mxu0 %v6489
  %v8933 = vpop.f32.mrf.mxu0
  %v8934 = vadd.f32 0.0, %v8933
  %v8935 = vpop.f32.mrf.mxu0
  %v8936 = vpop.f32.mrf.mxu0
  %v8937 = vadd.f32 0.0, %v8936
  %v8938 = vpop.f32.mrf.mxu0
  %8939 = vmatprep.mubr.bf16.mxu0 0
  %8940 = vmatmul.mubr.bf16.gmra.mxu0 %v6492
  %v8941 = vpop.f32.mrf.mxu0
  %v8942 = vadd.f32 0.0, %v8941
  %v8943 = vpop.f32.mrf.mxu0
  %v8944 = vpop.f32.mrf.mxu0
  %v8945 = vadd.f32 0.0, %v8944
  %v8946 = vpop.f32.mrf.mxu0
  %8947 = vmatprep.mubr.bf16.mxu0 0
  %8948 = vmatmul.mubr.bf16.gmra.mxu0 %v6495
  %v8949 = vpop.f32.mrf.mxu0
  %v8950 = vadd.f32 0.0, %v8949
  %v8951 = vpop.f32.mrf.mxu0
  %v8952 = vpop.f32.mrf.mxu0
  %v8953 = vadd.f32 0.0, %v8952
  %v8954 = vpop.f32.mrf.mxu0
  %8955 = vmatprep.mubr.bf16.mxu0 0
  %8956 = vmatmul.mubr.bf16.gmra.mxu0 %v6498
  %v8957 = vpop.f32.mrf.mxu0
  %v8958 = vadd.f32 0.0, %v8957
  %v8959 = vpop.f32.mrf.mxu0
  %v8960 = vpop.f32.mrf.mxu0
  %v8961 = vadd.f32 0.0, %v8960
  %v8962 = vpop.f32.mrf.mxu0
  %8963 = vmatprep.mubr.bf16.mxu0 0
  %8964 = vmatmul.mubr.bf16.gmra.mxu0 %v6501
  %v8965 = vpop.f32.mrf.mxu0
  %v8966 = vadd.f32 0.0, %v8965
  %v8967 = vpop.f32.mrf.mxu0
  %v8968 = vpop.f32.mrf.mxu0
  %v8969 = vadd.f32 0.0, %v8968
  %v8970 = vpop.f32.mrf.mxu0
  %8971 = vmatprep.mubr.bf16.mxu0 0
  %8972 = vmatmul.mubr.bf16.gmra.mxu0 %v6504
  %v8973 = vpop.f32.mrf.mxu0
  %v8974 = vadd.f32 0.0, %v8973
  %v8975 = vpop.f32.mrf.mxu0
  %v8976 = vpop.f32.mrf.mxu0
  %v8977 = vadd.f32 0.0, %v8976
  %v8978 = vpop.f32.mrf.mxu0
  %8979 = vmatprep.mubr.bf16.mxu0 0
  %8980 = vmatmul.mubr.bf16.gmra.mxu0 %v7628
  %v8981 = vpop.f32.mrf.mxu0
  %v8982 = vadd.f32 0.0, %v8981
  %v8983 = vpop.f32.mrf.mxu0
  %v8984 = vpop.f32.mrf.mxu0
  %v8985 = vadd.f32 0.0, %v8984
  %v8986 = vpop.f32.mrf.mxu0
  %8987 = vmatprep.mubr.bf16.mxu0 0
  %8988 = vmatmul.mubr.bf16.gmra.mxu0 %v6414
  %v8989 = vpop.f32.mrf.mxu0
  %v8990 = vadd.f32 0.0, %v8989
  %v8991 = vpop.f32.mrf.mxu0
  %v8992 = vpop.f32.mrf.mxu0
  %v8993 = vadd.f32 0.0, %v8992
  %v8994 = vpop.f32.mrf.mxu0
  %8995 = vdwg.mxu0
  %v8996 = vadd.f32 %v8638, %v8742
  %v8997 = vadd.f32 %v8639, %v8745
  %v8998 = vadd.f32 %v8640, %v8750
  %v8999 = vadd.f32 %v8641, %v8753
  %v9000 = vadd.f32 %v8642, %v8758
  %v9001 = vadd.f32 %v8643, %v8761
  %v9002 = vadd.f32 %v8644, %v8766
  %v9003 = vadd.f32 %v8645, %v8769
  %v9004 = vadd.f32 %v8646, %v8774
  %v9005 = vadd.f32 %v8647, %v8777
  %v9006 = vadd.f32 %v8648, %v8782
  %v9007 = vadd.f32 %v8649, %v8785
  %v9008 = vadd.f32 %v8650, %v8790
  %v9009 = vadd.f32 %v8651, %v8793
  %v9010 = vadd.f32 %v8652, %v8798
  %v9011 = vadd.f32 %v8653, %v8801
  %v9012 = vadd.f32 %v8654, %v8806
  %v9013 = vadd.f32 %v8655, %v8809
  %v9014 = vadd.f32 %v8656, %v8814
  %v9015 = vadd.f32 %v8657, %v8817
  %v9016 = vadd.f32 %v8658, %v8822
  %v9017 = vadd.f32 %v8659, %v8825
  %v9018 = vadd.f32 %v8660, %v8830
  %v9019 = vadd.f32 %v8661, %v8833
  %v9020 = vadd.f32 %v8662, %v8838
  %v9021 = vadd.f32 %v8663, %v8841
  %v9022 = vadd.f32 %v8664, %v8846
  %v9023 = vadd.f32 %v8665, %v8849
  %v9024 = vadd.f32 %v8666, %v8854
  %v9025 = vadd.f32 %v8667, %v8857
  %v9026 = vadd.f32 %v8668, %v8862
  %v9027 = vadd.f32 %v8669, %v8865
  %v9028 = vadd.f32 %v8670, %v8870
  %v9029 = vadd.f32 %v8671, %v8873
  %v9030 = vadd.f32 %v8672, %v8878
  %v9031 = vadd.f32 %v8673, %v8881
  %v9032 = vadd.f32 %v8674, %v8886
  %v9033 = vadd.f32 %v8675, %v8889
  %v9034 = vadd.f32 %v8676, %v8894
  %v9035 = vadd.f32 %v8677, %v8897
  %v9036 = vadd.f32 %v8678, %v8902
  %v9037 = vadd.f32 %v8679, %v8905
  %v9038 = vadd.f32 %v8680, %v8910
  %v9039 = vadd.f32 %v8681, %v8913
  %v9040 = vadd.f32 %v8682, %v8918
  %v9041 = vadd.f32 %v8683, %v8921
  %v9042 = vadd.f32 %v8684, %v8926
  %v9043 = vadd.f32 %v8685, %v8929
  %v9044 = vadd.f32 %v8686, %v8934
  %v9045 = vadd.f32 %v8687, %v8937
  %v9046 = vadd.f32 %v8688, %v8942
  %v9047 = vadd.f32 %v8689, %v8945
  %v9048 = vadd.f32 %v8690, %v8950
  %v9049 = vadd.f32 %v8691, %v8953
  %v9050 = vadd.f32 %v8692, %v8958
  %v9051 = vadd.f32 %v8693, %v8961
  %v9052 = vadd.f32 %v8694, %v8966
  %v9053 = vadd.f32 %v8695, %v8969
  %v9054 = vadd.f32 %v8696, %v8974
  %v9055 = vadd.f32 %v8697, %v8977
  %v9056 = vadd.f32 %v8698, %v8982
  %v9057 = vadd.f32 %v8699, %v8985
  %v9058 = vadd.f32 %v8700, %v8990
  %v9059 = vadd.f32 %v8701, %v8993
  %v9060 = vld [vmem:[%s5] sm:$0x1]
  %v9061 = vld [vmem:[%s6] sm:$0x1]
  %v9062 = vadd.f32 %v8996, %v8997
  %v9063 = vadd.f32 %v9062, %v8998
  %v9064 = vadd.f32 %v9063, %v8999
  %v9065 = vadd.f32 %v9064, %v9000
  %v9066 = vadd.f32 %v9065, %v9001
  %v9067 = vadd.f32 %v9066, %v9002
  %v9068 = vadd.f32 %v9067, %v9003
  %v9069 = vadd.f32 %v9068, %v9004
  %v9070 = vadd.f32 %v9069, %v9005
  %v9071 = vadd.f32 %v9070, %v9006
  %v9072 = vadd.f32 %v9071, %v9007
  %v9073 = vadd.f32 %v9072, %v9008
  %v9074 = vadd.f32 %v9073, %v9009
  %v9075 = vadd.f32 %v9074, %v9010
  %v9076 = vadd.f32 %v9075, %v9011
  %v9077 = vadd.f32 %v9076, %v9012
  %v9078 = vadd.f32 %v9077, %v9013
  %v9079 = vadd.f32 %v9078, %v9014
  %v9080 = vadd.f32 %v9079, %v9015
  %v9081 = vadd.f32 %v9080, %v9016
  %v9082 = vadd.f32 %v9081, %v9017
  %v9083 = vadd.f32 %v9082, %v9018
  %v9084 = vadd.f32 %v9083, %v9019
  %v9085 = vadd.f32 %v9084, %v9020
  %v9086 = vadd.f32 %v9085, %v9021
  %v9087 = vadd.f32 %v9086, %v9022
  %v9088 = vadd.f32 %v9087, %v9023
  %v9089 = vadd.f32 %v9088, %v9024
  %v9090 = vadd.f32 %v9089, %v9025
  %v9091 = vadd.f32 %v9090, %v9026
  %v9092 = vadd.f32 %v9091, %v9027
  %v9093 = vadd.f32 %v9092, %v9028
  %v9094 = vadd.f32 %v9093, %v9029
  %v9095 = vadd.f32 %v9094, %v9030
  %v9096 = vadd.f32 %v9095, %v9031
  %v9097 = vadd.f32 %v9096, %v9032
  %v9098 = vadd.f32 %v9097, %v9033
  %v9099 = vadd.f32 %v9098, %v9034
  %v9100 = vadd.f32 %v9099, %v9035
  %v9101 = vadd.f32 %v9100, %v9036
  %v9102 = vadd.f32 %v9101, %v9037
  %v9103 = vadd.f32 %v9102, %v9038
  %v9104 = vadd.f32 %v9103, %v9039
  %v9105 = vadd.f32 %v9104, %v9040
  %v9106 = vadd.f32 %v9105, %v9041
  %v9107 = vadd.f32 %v9106, %v9042
  %v9108 = vadd.f32 %v9107, %v9043
  %v9109 = vadd.f32 %v9108, %v9044
  %v9110 = vadd.f32 %v9109, %v9045
  %v9111 = vadd.f32 %v9110, %v9046
  %v9112 = vadd.f32 %v9111, %v9047
  %v9113 = vadd.f32 %v9112, %v9048
  %v9114 = vadd.f32 %v9113, %v9049
  %v9115 = vadd.f32 %v9114, %v9050
  %v9116 = vadd.f32 %v9115, %v9051
  %v9117 = vadd.f32 %v9116, %v9052
  %v9118 = vadd.f32 %v9117, %v9053
  %v9119 = vadd.f32 %v9118, %v9054
  %v9120 = vadd.f32 %v9119, %v9055
  %v9121 = vadd.f32 %v9120, %v9056
  %v9122 = vadd.f32 %v9121, %v9057
  %v9123 = vadd.f32 %v9122, %v9058
  %v9124 = vadd.f32 %v9123, %v9059
  %v9125 = vrot.slane %v9124, 4
  %v9126 = vadd.f32 %v9124, %v9125
  %v9127 = vrot.slane %v9126, 2
  %v9128 = vadd.f32 %v9126, %v9127
  %v9129 = vrot.slane %v9128, 1
  %v9130 = vadd.f32 %v9128, %v9129
  %v9131 = vmul.f32 %v9130, 0.001953125
  %v9132 = vsub.f32 %v8996, %v9131
  %v9133 = vsub.f32 %v8997, %v9131
  %v9134 = vsub.f32 %v8998, %v9131
  %v9135 = vsub.f32 %v8999, %v9131
  %v9136 = vsub.f32 %v9000, %v9131
  %v9137 = vsub.f32 %v9001, %v9131
  %v9138 = vsub.f32 %v9002, %v9131
  %v9139 = vsub.f32 %v9003, %v9131
  %v9140 = vsub.f32 %v9004, %v9131
  %v9141 = vsub.f32 %v9005, %v9131
  %v9142 = vsub.f32 %v9006, %v9131
  %v9143 = vsub.f32 %v9007, %v9131
  %v9144 = vsub.f32 %v9008, %v9131
  %v9145 = vsub.f32 %v9009, %v9131
  %v9146 = vsub.f32 %v9010, %v9131
  %v9147 = vsub.f32 %v9011, %v9131
  %v9148 = vsub.f32 %v9012, %v9131
  %v9149 = vsub.f32 %v9013, %v9131
  %v9150 = vsub.f32 %v9014, %v9131
  %v9151 = vsub.f32 %v9015, %v9131
  %v9152 = vsub.f32 %v9016, %v9131
  %v9153 = vsub.f32 %v9017, %v9131
  %v9154 = vsub.f32 %v9018, %v9131
  %v9155 = vsub.f32 %v9019, %v9131
  %v9156 = vsub.f32 %v9020, %v9131
  %v9157 = vsub.f32 %v9021, %v9131
  %v9158 = vsub.f32 %v9022, %v9131
  %v9159 = vsub.f32 %v9023, %v9131
  %v9160 = vsub.f32 %v9024, %v9131
  %v9161 = vsub.f32 %v9025, %v9131
  %v9162 = vsub.f32 %v9026, %v9131
  %v9163 = vsub.f32 %v9027, %v9131
  %v9164 = vsub.f32 %v9028, %v9131
  %v9165 = vsub.f32 %v9029, %v9131
  %v9166 = vsub.f32 %v9030, %v9131
  %v9167 = vsub.f32 %v9031, %v9131
  %v9168 = vsub.f32 %v9032, %v9131
  %v9169 = vsub.f32 %v9033, %v9131
  %v9170 = vsub.f32 %v9034, %v9131
  %v9171 = vsub.f32 %v9035, %v9131
  %v9172 = vsub.f32 %v9036, %v9131
  %v9173 = vsub.f32 %v9037, %v9131
  %v9174 = vsub.f32 %v9038, %v9131
  %v9175 = vsub.f32 %v9039, %v9131
  %v9176 = vsub.f32 %v9040, %v9131
  %v9177 = vsub.f32 %v9041, %v9131
  %v9178 = vsub.f32 %v9042, %v9131
  %v9179 = vsub.f32 %v9043, %v9131
  %v9180 = vsub.f32 %v9044, %v9131
  %v9181 = vsub.f32 %v9045, %v9131
  %v9182 = vsub.f32 %v9046, %v9131
  %v9183 = vsub.f32 %v9047, %v9131
  %v9184 = vsub.f32 %v9048, %v9131
  %v9185 = vsub.f32 %v9049, %v9131
  %v9186 = vsub.f32 %v9050, %v9131
  %v9187 = vsub.f32 %v9051, %v9131
  %v9188 = vsub.f32 %v9052, %v9131
  %v9189 = vsub.f32 %v9053, %v9131
  %v9190 = vsub.f32 %v9054, %v9131
  %v9191 = vsub.f32 %v9055, %v9131
  %v9192 = vsub.f32 %v9056, %v9131
  %v9193 = vsub.f32 %v9057, %v9131
  %v9194 = vsub.f32 %v9058, %v9131
  %v9195 = vsub.f32 %v9059, %v9131
  %v9196 = vmul.f32 %v9132, %v9132
  %v9197 = vmul.f32 %v9133, %v9133
  %v9198 = vmul.f32 %v9134, %v9134
  %v9199 = vmul.f32 %v9135, %v9135
  %v9200 = vmul.f32 %v9136, %v9136
  %v9201 = vmul.f32 %v9137, %v9137
  %v9202 = vmul.f32 %v9138, %v9138
  %v9203 = vmul.f32 %v9139, %v9139
  %v9204 = vmul.f32 %v9140, %v9140
  %v9205 = vmul.f32 %v9141, %v9141
  %v9206 = vmul.f32 %v9142, %v9142
  %v9207 = vmul.f32 %v9143, %v9143
  %v9208 = vmul.f32 %v9144, %v9144
  %v9209 = vmul.f32 %v9145, %v9145
  %v9210 = vmul.f32 %v9146, %v9146
  %v9211 = vmul.f32 %v9147, %v9147
  %v9212 = vmul.f32 %v9148, %v9148
  %v9213 = vmul.f32 %v9149, %v9149
  %v9214 = vmul.f32 %v9150, %v9150
  %v9215 = vmul.f32 %v9151, %v9151
  %v9216 = vmul.f32 %v9152, %v9152
  %v9217 = vmul.f32 %v9153, %v9153
  %v9218 = vmul.f32 %v9154, %v9154
  %v9219 = vmul.f32 %v9155, %v9155
  %v9220 = vmul.f32 %v9156, %v9156
  %v9221 = vmul.f32 %v9157, %v9157
  %v9222 = vmul.f32 %v9158, %v9158
  %v9223 = vmul.f32 %v9159, %v9159
  %v9224 = vmul.f32 %v9160, %v9160
  %v9225 = vmul.f32 %v9161, %v9161
  %v9226 = vmul.f32 %v9162, %v9162
  %v9227 = vmul.f32 %v9163, %v9163
  %v9228 = vmul.f32 %v9164, %v9164
  %v9229 = vmul.f32 %v9165, %v9165
  %v9230 = vmul.f32 %v9166, %v9166
  %v9231 = vmul.f32 %v9167, %v9167
  %v9232 = vmul.f32 %v9168, %v9168
  %v9233 = vmul.f32 %v9169, %v9169
  %v9234 = vmul.f32 %v9170, %v9170
  %v9235 = vmul.f32 %v9171, %v9171
  %v9236 = vmul.f32 %v9172, %v9172
  %v9237 = vmul.f32 %v9173, %v9173
  %v9238 = vmul.f32 %v9174, %v9174
  %v9239 = vmul.f32 %v9175, %v9175
  %v9240 = vmul.f32 %v9176, %v9176
  %v9241 = vmul.f32 %v9177, %v9177
  %v9242 = vmul.f32 %v9178, %v9178
  %v9243 = vmul.f32 %v9179, %v9179
  %v9244 = vmul.f32 %v9180, %v9180
  %v9245 = vmul.f32 %v9181, %v9181
  %v9246 = vmul.f32 %v9182, %v9182
  %v9247 = vmul.f32 %v9183, %v9183
  %v9248 = vmul.f32 %v9184, %v9184
  %v9249 = vmul.f32 %v9185, %v9185
  %v9250 = vmul.f32 %v9186, %v9186
  %v9251 = vmul.f32 %v9187, %v9187
  %v9252 = vmul.f32 %v9188, %v9188
  %v9253 = vmul.f32 %v9189, %v9189
  %v9254 = vmul.f32 %v9190, %v9190
  %v9255 = vmul.f32 %v9191, %v9191
  %v9256 = vmul.f32 %v9192, %v9192
  %v9257 = vmul.f32 %v9193, %v9193
  %v9258 = vmul.f32 %v9194, %v9194
  %v9259 = vmul.f32 %v9195, %v9195
  %v9260 = vadd.f32 %v9196, %v9197
  %v9261 = vadd.f32 %v9260, %v9198
  %v9262 = vadd.f32 %v9261, %v9199
  %v9263 = vadd.f32 %v9262, %v9200
  %v9264 = vadd.f32 %v9263, %v9201
  %v9265 = vadd.f32 %v9264, %v9202
  %v9266 = vadd.f32 %v9265, %v9203
  %v9267 = vadd.f32 %v9266, %v9204
  %v9268 = vadd.f32 %v9267, %v9205
  %v9269 = vadd.f32 %v9268, %v9206
  %v9270 = vadd.f32 %v9269, %v9207
  %v9271 = vadd.f32 %v9270, %v9208
  %v9272 = vadd.f32 %v9271, %v9209
  %v9273 = vadd.f32 %v9272, %v9210
  %v9274 = vadd.f32 %v9273, %v9211
  %v9275 = vadd.f32 %v9274, %v9212
  %v9276 = vadd.f32 %v9275, %v9213
  %v9277 = vadd.f32 %v9276, %v9214
  %v9278 = vadd.f32 %v9277, %v9215
  %v9279 = vadd.f32 %v9278, %v9216
  %v9280 = vadd.f32 %v9279, %v9217
  %v9281 = vadd.f32 %v9280, %v9218
  %v9282 = vadd.f32 %v9281, %v9219
  %v9283 = vadd.f32 %v9282, %v9220
  %v9284 = vadd.f32 %v9283, %v9221
  %v9285 = vadd.f32 %v9284, %v9222
  %v9286 = vadd.f32 %v9285, %v9223
  %v9287 = vadd.f32 %v9286, %v9224
  %v9288 = vadd.f32 %v9287, %v9225
  %v9289 = vadd.f32 %v9288, %v9226
  %v9290 = vadd.f32 %v9289, %v9227
  %v9291 = vadd.f32 %v9290, %v9228
  %v9292 = vadd.f32 %v9291, %v9229
  %v9293 = vadd.f32 %v9292, %v9230
  %v9294 = vadd.f32 %v9293, %v9231
  %v9295 = vadd.f32 %v9294, %v9232
  %v9296 = vadd.f32 %v9295, %v9233
  %v9297 = vadd.f32 %v9296, %v9234
  %v9298 = vadd.f32 %v9297, %v9235
  %v9299 = vadd.f32 %v9298, %v9236
  %v9300 = vadd.f32 %v9299, %v9237
  %v9301 = vadd.f32 %v9300, %v9238
  %v9302 = vadd.f32 %v9301, %v9239
  %v9303 = vadd.f32 %v9302, %v9240
  %v9304 = vadd.f32 %v9303, %v9241
  %v9305 = vadd.f32 %v9304, %v9242
  %v9306 = vadd.f32 %v9305, %v9243
  %v9307 = vadd.f32 %v9306, %v9244
  %v9308 = vadd.f32 %v9307, %v9245
  %v9309 = vadd.f32 %v9308, %v9246
  %v9310 = vadd.f32 %v9309, %v9247
  %v9311 = vadd.f32 %v9310, %v9248
  %v9312 = vadd.f32 %v9311, %v9249
  %v9313 = vadd.f32 %v9312, %v9250
  %v9314 = vadd.f32 %v9313, %v9251
  %v9315 = vadd.f32 %v9314, %v9252
  %v9316 = vadd.f32 %v9315, %v9253
  %v9317 = vadd.f32 %v9316, %v9254
  %v9318 = vadd.f32 %v9317, %v9255
  %v9319 = vadd.f32 %v9318, %v9256
  %v9320 = vadd.f32 %v9319, %v9257
  %v9321 = vadd.f32 %v9320, %v9258
  %v9322 = vadd.f32 %v9321, %v9259
  %v9323 = vrot.slane %v9322, 4
  %v9324 = vadd.f32 %v9322, %v9323
  %v9325 = vrot.slane %v9324, 2
  %v9326 = vadd.f32 %v9324, %v9325
  %v9327 = vrot.slane %v9326, 1
  %v9328 = vadd.f32 %v9326, %v9327
  %v9329 = vmul.f32 %v9328, 0.001953125
  %v9330 = vadd.f32 %v9329, 1e-05
  %v9331 = vrsqrt.pop %v9330
  %v9332 = vmul.f32 %v9132, %v9331
  %v9333 = vmul.f32 %v9133, %v9331
  %v9334 = vmul.f32 %v9134, %v9331
  %v9335 = vmul.f32 %v9135, %v9331
  %v9336 = vmul.f32 %v9136, %v9331
  %v9337 = vmul.f32 %v9137, %v9331
  %v9338 = vmul.f32 %v9138, %v9331
  %v9339 = vmul.f32 %v9139, %v9331
  %v9340 = vmul.f32 %v9140, %v9331
  %v9341 = vmul.f32 %v9141, %v9331
  %v9342 = vmul.f32 %v9142, %v9331
  %v9343 = vmul.f32 %v9143, %v9331
  %v9344 = vmul.f32 %v9144, %v9331
  %v9345 = vmul.f32 %v9145, %v9331
  %v9346 = vmul.f32 %v9146, %v9331
  %v9347 = vmul.f32 %v9147, %v9331
  %v9348 = vmul.f32 %v9148, %v9331
  %v9349 = vmul.f32 %v9149, %v9331
  %v9350 = vmul.f32 %v9150, %v9331
  %v9351 = vmul.f32 %v9151, %v9331
  %v9352 = vmul.f32 %v9152, %v9331
  %v9353 = vmul.f32 %v9153, %v9331
  %v9354 = vmul.f32 %v9154, %v9331
  %v9355 = vmul.f32 %v9155, %v9331
  %v9356 = vmul.f32 %v9156, %v9331
  %v9357 = vmul.f32 %v9157, %v9331
  %v9358 = vmul.f32 %v9158, %v9331
  %v9359 = vmul.f32 %v9159, %v9331
  %v9360 = vmul.f32 %v9160, %v9331
  %v9361 = vmul.f32 %v9161, %v9331
  %v9362 = vmul.f32 %v9162, %v9331
  %v9363 = vmul.f32 %v9163, %v9331
  %v9364 = vmul.f32 %v9164, %v9331
  %v9365 = vmul.f32 %v9165, %v9331
  %v9366 = vmul.f32 %v9166, %v9331
  %v9367 = vmul.f32 %v9167, %v9331
  %v9368 = vmul.f32 %v9168, %v9331
  %v9369 = vmul.f32 %v9169, %v9331
  %v9370 = vmul.f32 %v9170, %v9331
  %v9371 = vmul.f32 %v9171, %v9331
  %v9372 = vmul.f32 %v9172, %v9331
  %v9373 = vmul.f32 %v9173, %v9331
  %v9374 = vmul.f32 %v9174, %v9331
  %v9375 = vmul.f32 %v9175, %v9331
  %v9376 = vmul.f32 %v9176, %v9331
  %v9377 = vmul.f32 %v9177, %v9331
  %v9378 = vmul.f32 %v9178, %v9331
  %v9379 = vmul.f32 %v9179, %v9331
  %v9380 = vmul.f32 %v9180, %v9331
  %v9381 = vmul.f32 %v9181, %v9331
  %v9382 = vmul.f32 %v9182, %v9331
  %v9383 = vmul.f32 %v9183, %v9331
  %v9384 = vmul.f32 %v9184, %v9331
  %v9385 = vmul.f32 %v9185, %v9331
  %v9386 = vmul.f32 %v9186, %v9331
  %v9387 = vmul.f32 %v9187, %v9331
  %v9388 = vmul.f32 %v9188, %v9331
  %v9389 = vmul.f32 %v9189, %v9331
  %v9390 = vmul.f32 %v9190, %v9331
  %v9391 = vmul.f32 %v9191, %v9331
  %v9392 = vmul.f32 %v9192, %v9331
  %v9393 = vmul.f32 %v9193, %v9331
  %v9394 = vmul.f32 %v9194, %v9331
  %v9395 = vmul.f32 %v9195, %v9331
  %v9397 = vlaneseq
  %v9398 = vshrl.u32 %v9397, 7
  %v9399 = vsub.s32 0, %v9398
  %v9400 = vrot.slane %v9060, %v9399
  %v9402 = vmul.f32 %v9332, %v9400
  %v9403 = vmul.f32 %v9333, %v9400
  %v9404 = vmul.f32 %v9334, %v9400
  %v9405 = vmul.f32 %v9335, %v9400
  %v9406 = vmul.f32 %v9336, %v9400
  %v9407 = vmul.f32 %v9337, %v9400
  %v9408 = vmul.f32 %v9338, %v9400
  %v9409 = vmul.f32 %v9339, %v9400
  %v9410 = vmul.f32 %v9340, %v9400
  %v9411 = vmul.f32 %v9341, %v9400
  %v9412 = vmul.f32 %v9342, %v9400
  %v9413 = vmul.f32 %v9343, %v9400
  %v9414 = vmul.f32 %v9344, %v9400
  %v9415 = vmul.f32 %v9345, %v9400
  %v9416 = vmul.f32 %v9346, %v9400
  %v9417 = vmul.f32 %v9347, %v9400
  %v9418 = vmul.f32 %v9348, %v9400
  %v9419 = vmul.f32 %v9349, %v9400
  %v9420 = vmul.f32 %v9350, %v9400
  %v9421 = vmul.f32 %v9351, %v9400
  %v9422 = vmul.f32 %v9352, %v9400
  %v9423 = vmul.f32 %v9353, %v9400
  %v9424 = vmul.f32 %v9354, %v9400
  %v9425 = vmul.f32 %v9355, %v9400
  %v9426 = vmul.f32 %v9356, %v9400
  %v9427 = vmul.f32 %v9357, %v9400
  %v9428 = vmul.f32 %v9358, %v9400
  %v9429 = vmul.f32 %v9359, %v9400
  %v9430 = vmul.f32 %v9360, %v9400
  %v9431 = vmul.f32 %v9361, %v9400
  %v9432 = vmul.f32 %v9362, %v9400
  %v9433 = vmul.f32 %v9363, %v9400
  %v9434 = vmul.f32 %v9364, %v9400
  %v9435 = vmul.f32 %v9365, %v9400
  %v9436 = vmul.f32 %v9366, %v9400
  %v9437 = vmul.f32 %v9367, %v9400
  %v9438 = vmul.f32 %v9368, %v9400
  %v9439 = vmul.f32 %v9369, %v9400
  %v9440 = vmul.f32 %v9370, %v9400
  %v9441 = vmul.f32 %v9371, %v9400
  %v9442 = vmul.f32 %v9372, %v9400
  %v9443 = vmul.f32 %v9373, %v9400
  %v9444 = vmul.f32 %v9374, %v9400
  %v9445 = vmul.f32 %v9375, %v9400
  %v9446 = vmul.f32 %v9376, %v9400
  %v9447 = vmul.f32 %v9377, %v9400
  %v9448 = vmul.f32 %v9378, %v9400
  %v9449 = vmul.f32 %v9379, %v9400
  %v9450 = vmul.f32 %v9380, %v9400
  %v9451 = vmul.f32 %v9381, %v9400
  %v9452 = vmul.f32 %v9382, %v9400
  %v9453 = vmul.f32 %v9383, %v9400
  %v9454 = vmul.f32 %v9384, %v9400
  %v9455 = vmul.f32 %v9385, %v9400
  %v9456 = vmul.f32 %v9386, %v9400
  %v9457 = vmul.f32 %v9387, %v9400
  %v9458 = vmul.f32 %v9388, %v9400
  %v9459 = vmul.f32 %v9389, %v9400
  %v9460 = vmul.f32 %v9390, %v9400
  %v9461 = vmul.f32 %v9391, %v9400
  %v9462 = vmul.f32 %v9392, %v9400
  %v9463 = vmul.f32 %v9393, %v9400
  %v9464 = vmul.f32 %v9394, %v9400
  %v9465 = vmul.f32 %v9395, %v9400
  %v9467 = vlaneseq
  %v9468 = vshrl.u32 %v9467, 7
  %v9469 = vsub.s32 0, %v9468
  %v9470 = vrot.slane %v9061, %v9469
  %v9472 = vadd.f32 %v9402, %v9470
  %v9473 = vadd.f32 %v9403, %v9470
  %v9474 = vadd.f32 %v9404, %v9470
  %v9475 = vadd.f32 %v9405, %v9470
  %v9476 = vadd.f32 %v9406, %v9470
  %v9477 = vadd.f32 %v9407, %v9470
  %v9478 = vadd.f32 %v9408, %v9470
  %v9479 = vadd.f32 %v9409, %v9470
  %v9480 = vadd.f32 %v9410, %v9470
  %v9481 = vadd.f32 %v9411, %v9470
  %v9482 = vadd.f32 %v9412, %v9470
  %v9483 = vadd.f32 %v9413, %v9470
  %v9484 = vadd.f32 %v9414, %v9470
  %v9485 = vadd.f32 %v9415, %v9470
  %v9486 = vadd.f32 %v9416, %v9470
  %v9487 = vadd.f32 %v9417, %v9470
  %v9488 = vadd.f32 %v9418, %v9470
  %v9489 = vadd.f32 %v9419, %v9470
  %v9490 = vadd.f32 %v9420, %v9470
  %v9491 = vadd.f32 %v9421, %v9470
  %v9492 = vadd.f32 %v9422, %v9470
  %v9493 = vadd.f32 %v9423, %v9470
  %v9494 = vadd.f32 %v9424, %v9470
  %v9495 = vadd.f32 %v9425, %v9470
  %v9496 = vadd.f32 %v9426, %v9470
  %v9497 = vadd.f32 %v9427, %v9470
  %v9498 = vadd.f32 %v9428, %v9470
  %v9499 = vadd.f32 %v9429, %v9470
  %v9500 = vadd.f32 %v9430, %v9470
  %v9501 = vadd.f32 %v9431, %v9470
  %v9502 = vadd.f32 %v9432, %v9470
  %v9503 = vadd.f32 %v9433, %v9470
  %v9504 = vadd.f32 %v9434, %v9470
  %v9505 = vadd.f32 %v9435, %v9470
  %v9506 = vadd.f32 %v9436, %v9470
  %v9507 = vadd.f32 %v9437, %v9470
  %v9508 = vadd.f32 %v9438, %v9470
  %v9509 = vadd.f32 %v9439, %v9470
  %v9510 = vadd.f32 %v9440, %v9470
  %v9511 = vadd.f32 %v9441, %v9470
  %v9512 = vadd.f32 %v9442, %v9470
  %v9513 = vadd.f32 %v9443, %v9470
  %v9514 = vadd.f32 %v9444, %v9470
  %v9515 = vadd.f32 %v9445, %v9470
  %v9516 = vadd.f32 %v9446, %v9470
  %v9517 = vadd.f32 %v9447, %v9470
  %v9518 = vadd.f32 %v9448, %v9470
  %v9519 = vadd.f32 %v9449, %v9470
  %v9520 = vadd.f32 %v9450, %v9470
  %v9521 = vadd.f32 %v9451, %v9470
  %v9522 = vadd.f32 %v9452, %v9470
  %v9523 = vadd.f32 %v9453, %v9470
  %v9524 = vadd.f32 %v9454, %v9470
  %v9525 = vadd.f32 %v9455, %v9470
  %v9526 = vadd.f32 %v9456, %v9470
  %v9527 = vadd.f32 %v9457, %v9470
  %v9528 = vadd.f32 %v9458, %v9470
  %v9529 = vadd.f32 %v9459, %v9470
  %v9530 = vadd.f32 %v9460, %v9470
  %v9531 = vadd.f32 %v9461, %v9470
  %v9532 = vadd.f32 %v9462, %v9470
  %v9533 = vadd.f32 %v9463, %v9470
  %v9534 = vadd.f32 %v9464, %v9470
  %v9535 = vadd.f32 %v9465, %v9470
  %vm9632 = vcmask 1046528
  %v9633 = vrot.slane %v30, 1
  %v9634 = vrot.slane %v31, 1
  %v9635 = vsel %vm9632, %v9633, %v9634
  %v9636 = vrot.slane %v32, 1
  %v9637 = vsel %vm9632, %v9634, %v9636
  %v9638 = vrot.slane %v33, 1
  %v9639 = vrot.slane %v34, 1
  %v9640 = vsel %vm9632, %v9638, %v9639
  %v9641 = vrot.slane %v35, 1
  %v9642 = vsel %vm9632, %v9639, %v9641
  %v9643 = vrot.slane %v36, 1
  %v9644 = vrot.slane %v37, 1
  %v9645 = vsel %vm9632, %v9643, %v9644
  %v9646 = vrot.slane %v38, 1
  %v9647 = vsel %vm9632, %v9644, %v9646
  %v9648 = vrot.slane %v39, 1
  %v9649 = vrot.slane %v40, 1
  %v9650 = vsel %vm9632, %v9648, %v9649
  %v9651 = vrot.slane %v41, 1
  %v9652 = vsel %vm9632, %v9649, %v9651
  %v9653 = vrot.slane %v42, 1
  %v9654 = vrot.slane %v43, 1
  %v9655 = vsel %vm9632, %v9653, %v9654
  %v9656 = vrot.slane %v44, 1
  %v9657 = vsel %vm9632, %v9654, %v9656
  %v9658 = vrot.slane %v45, 1
  %v9659 = vrot.slane %v46, 1
  %v9660 = vsel %vm9632, %v9658, %v9659
  %v9661 = vrot.slane %v47, 1
  %v9662 = vsel %vm9632, %v9659, %v9661
  %v9663 = vrot.slane %v48, 1
  %v9664 = vrot.slane %v49, 1
  %v9665 = vsel %vm9632, %v9663, %v9664
  %v9666 = vrot.slane %v50, 1
  %v9667 = vsel %vm9632, %v9664, %v9666
  %v9668 = vrot.slane %v51, 1
  %v9669 = vrot.slane %v52, 1
  %v9670 = vsel %vm9632, %v9668, %v9669
  %v9671 = vrot.slane %v53, 1
  %v9672 = vsel %vm9632, %v9669, %v9671
  %v9673 = vrot.slane %v54, 1
  %v9674 = vrot.slane %v55, 1
  %v9675 = vsel %vm9632, %v9673, %v9674
  %v9676 = vrot.slane %v56, 1
  %v9677 = vsel %vm9632, %v9674, %v9676
  %v9678 = vrot.slane %v57, 1
  %v9679 = vrot.slane %v58, 1
  %v9680 = vsel %vm9632, %v9678, %v9679
  %v9681 = vrot.slane %v59, 1
  %v9682 = vsel %vm9632, %v9679, %v9681
  %v9683 = vrot.slane %v60, 1
  %v9684 = vrot.slane %v61, 1
  %v9685 = vsel %vm9632, %v9683, %v9684
  %v9686 = vrot.slane %v62, 1
  %v9687 = vsel %vm9632, %v9684, %v9686
  %v9688 = vrot.slane %v63, 1
  %v9689 = vrot.slane %v64, 1
  %v9690 = vsel %vm9632, %v9688, %v9689
  %v9691 = vrot.slane %v65, 1
  %v9692 = vsel %vm9632, %v9689, %v9691
  %v9693 = vrot.slane %v66, 1
  %v9694 = vrot.slane %v67, 1
  %v9695 = vsel %vm9632, %v9693, %v9694
  %v9696 = vrot.slane %v68, 1
  %v9697 = vsel %vm9632, %v9694, %v9696
  %v9698 = vrot.slane %v69, 1
  %v9699 = vrot.slane %v70, 1
  %v9700 = vsel %vm9632, %v9698, %v9699
  %v9701 = vrot.slane %v71, 1
  %v9702 = vsel %vm9632, %v9699, %v9701
  %v9703 = vrot.slane %v72, 1
  %v9704 = vrot.slane %v73, 1
  %v9705 = vsel %vm9632, %v9703, %v9704
  %v9706 = vrot.slane %v74, 1
  %v9707 = vsel %vm9632, %v9704, %v9706
  %v9708 = vrot.slane %v75, 1
  %v9709 = vrot.slane %v76, 1
  %v9710 = vsel %vm9632, %v9708, %v9709
  %v9711 = vrot.slane %v77, 1
  %v9712 = vsel %vm9632, %v9709, %v9711
  %v9713 = vrot.slane %v84, 1
  %v9714 = vrot.slane %v85, 1
  %v9715 = vsel %vm9632, %v9713, %v9714
  %v9716 = vrot.slane %v86, 1
  %v9717 = vsel %vm9632, %v9714, %v9716
  %v9718 = vrot.slane %v87, 1
  %v9719 = vrot.slane %v88, 1
  %v9720 = vsel %vm9632, %v9718, %v9719
  %v9721 = vrot.slane %v89, 1
  %v9722 = vsel %vm9632, %v9719, %v9721
  %v9723 = vrot.slane %v90, 1
  %v9724 = vrot.slane %v91, 1
  %v9725 = vsel %vm9632, %v9723, %v9724
  %v9726 = vrot.slane %v92, 1
  %v9727 = vsel %vm9632, %v9724, %v9726
  %v9728 = vrot.slane %v93, 1
  %v9729 = vrot.slane %v94, 1
  %v9730 = vsel %vm9632, %v9728, %v9729
  %v9731 = vrot.slane %v95, 1
  %v9732 = vsel %vm9632, %v9729, %v9731
  %v9733 = vrot.slane %v96, 1
  %v9734 = vrot.slane %v97, 1
  %v9735 = vsel %vm9632, %v9733, %v9734
  %v9736 = vrot.slane %v98, 1
  %v9737 = vsel %vm9632, %v9734, %v9736
  %v9738 = vrot.slane %v99, 1
  %v9739 = vrot.slane %v100, 1
  %v9740 = vsel %vm9632, %v9738, %v9739
  %v9741 = vrot.slane %v101, 1
  %v9742 = vsel %vm9632, %v9739, %v9741
  %v9743 = vrot.slane %v102, 1
  %v9744 = vrot.slane %v103, 1
  %v9745 = vsel %vm9632, %v9743, %v9744
  %v9746 = vrot.slane %v104, 1
  %v9747 = vsel %vm9632, %v9744, %v9746
  %v9748 = vrot.slane %v105, 1
  %v9749 = vrot.slane %v106, 1
  %v9750 = vsel %vm9632, %v9748, %v9749
  %v9751 = vrot.slane %v107, 1
  %v9752 = vsel %vm9632, %v9749, %v9751
  %v9753 = vrot.slane %v108, 1
  %v9754 = vrot.slane %v109, 1
  %v9755 = vsel %vm9632, %v9753, %v9754
  %v9756 = vrot.slane %v110, 1
  %v9757 = vsel %vm9632, %v9754, %v9756
  %v9758 = vrot.slane %v111, 1
  %v9759 = vrot.slane %v112, 1
  %v9760 = vsel %vm9632, %v9758, %v9759
  %v9761 = vrot.slane %v113, 1
  %v9762 = vsel %vm9632, %v9759, %v9761
  %v9763 = vrot.slane %v114, 1
  %v9764 = vrot.slane %v115, 1
  %v9765 = vsel %vm9632, %v9763, %v9764
  %v9766 = vrot.slane %v116, 1
  %v9767 = vsel %vm9632, %v9764, %v9766
  %v9768 = vrot.slane %v117, 1
  %v9769 = vrot.slane %v118, 1
  %v9770 = vsel %vm9632, %v9768, %v9769
  %v9771 = vrot.slane %v119, 1
  %v9772 = vsel %vm9632, %v9769, %v9771
  %v9773 = vrot.slane %v120, 1
  %v9774 = vrot.slane %v121, 1
  %v9775 = vsel %vm9632, %v9773, %v9774
  %v9776 = vrot.slane %v122, 1
  %v9777 = vsel %vm9632, %v9774, %v9776
  %v9778 = vrot.slane %v123, 1
  %v9779 = vrot.slane %v124, 1
  %v9780 = vsel %vm9632, %v9778, %v9779
  %v9781 = vrot.slane %v125, 1
  %v9782 = vsel %vm9632, %v9779, %v9781
  %v9783 = vrot.slane %v126, 1
  %v9784 = vrot.slane %v127, 1
  %v9785 = vsel %vm9632, %v9783, %v9784
  %v9786 = vrot.slane %v128, 1
  %v9787 = vsel %vm9632, %v9784, %v9786
  %v9788 = vrot.slane %v129, 1
  %v9789 = vrot.slane %v130, 1
  %v9790 = vsel %vm9632, %v9788, %v9789
  %v9791 = vrot.slane %v131, 1
  %v9792 = vsel %vm9632, %v9789, %v9791
  %v9857 = vsel %vm595, %v9635, 0.0
  %v9858 = vsel %vm595, %v9637, 0.0
  %v9859 = vsel %vm595, %v9640, 0.0
  %v9860 = vsel %vm595, %v9642, 0.0
  %v9861 = vsel %vm595, %v9645, 0.0
  %v9862 = vsel %vm595, %v9647, 0.0
  %v9863 = vsel %vm595, %v9650, 0.0
  %v9864 = vsel %vm595, %v9652, 0.0
  %v9865 = vsel %vm595, %v9655, 0.0
  %v9866 = vsel %vm595, %v9657, 0.0
  %v9867 = vsel %vm595, %v9660, 0.0
  %v9868 = vsel %vm595, %v9662, 0.0
  %v9869 = vsel %vm595, %v9665, 0.0
  %v9870 = vsel %vm595, %v9667, 0.0
  %v9871 = vsel %vm595, %v9670, 0.0
  %v9872 = vsel %vm595, %v9672, 0.0
  %v9873 = vsel %vm595, %v9675, 0.0
  %v9874 = vsel %vm595, %v9677, 0.0
  %v9875 = vsel %vm595, %v9680, 0.0
  %v9876 = vsel %vm595, %v9682, 0.0
  %v9877 = vsel %vm595, %v9685, 0.0
  %v9878 = vsel %vm595, %v9687, 0.0
  %v9879 = vsel %vm595, %v9690, 0.0
  %v9880 = vsel %vm595, %v9692, 0.0
  %v9881 = vsel %vm595, %v9695, 0.0
  %v9882 = vsel %vm595, %v9697, 0.0
  %v9883 = vsel %vm595, %v9700, 0.0
  %v9884 = vsel %vm595, %v9702, 0.0
  %v9885 = vsel %vm595, %v9705, 0.0
  %v9886 = vsel %vm595, %v9707, 0.0
  %v9887 = vsel %vm595, %v9710, 0.0
  %v9888 = vsel %vm595, %v9712, 0.0
  %v9889 = vsel %vm595, %v9715, 0.0
  %v9890 = vsel %vm595, %v9717, 0.0
  %v9891 = vsel %vm595, %v9720, 0.0
  %v9892 = vsel %vm595, %v9722, 0.0
  %v9893 = vsel %vm595, %v9725, 0.0
  %v9894 = vsel %vm595, %v9727, 0.0
  %v9895 = vsel %vm595, %v9730, 0.0
  %v9896 = vsel %vm595, %v9732, 0.0
  %v9897 = vsel %vm595, %v9735, 0.0
  %v9898 = vsel %vm595, %v9737, 0.0
  %v9899 = vsel %vm595, %v9740, 0.0
  %v9900 = vsel %vm595, %v9742, 0.0
  %v9901 = vsel %vm595, %v9745, 0.0
  %v9902 = vsel %vm595, %v9747, 0.0
  %v9903 = vsel %vm595, %v9750, 0.0
  %v9904 = vsel %vm595, %v9752, 0.0
  %v9905 = vsel %vm595, %v9755, 0.0
  %v9906 = vsel %vm595, %v9757, 0.0
  %v9907 = vsel %vm595, %v9760, 0.0
  %v9908 = vsel %vm595, %v9762, 0.0
  %v9909 = vsel %vm595, %v9765, 0.0
  %v9910 = vsel %vm595, %v9767, 0.0
  %v9911 = vsel %vm595, %v9770, 0.0
  %v9912 = vsel %vm595, %v9772, 0.0
  %v9913 = vsel %vm595, %v9775, 0.0
  %v9914 = vsel %vm595, %v9777, 0.0
  %v9915 = vsel %vm595, %v9780, 0.0
  %v9916 = vsel %vm595, %v9782, 0.0
  %v9917 = vsel %vm595, %v9785, 0.0
  %v9918 = vsel %vm595, %v9787, 0.0
  %v9919 = vsel %vm595, %v9790, 0.0
  %v9920 = vsel %vm595, %v9792, 0.0
  %v9921 = vadd.f32 %v9472, %v9857
  %v9922 = vadd.f32 %v9473, %v9858
  %v9923 = vadd.f32 %v9474, %v9859
  %v9924 = vadd.f32 %v9475, %v9860
  %v9925 = vadd.f32 %v9476, %v9861
  %v9926 = vadd.f32 %v9477, %v9862
  %v9927 = vadd.f32 %v9478, %v9863
  %v9928 = vadd.f32 %v9479, %v9864
  %v9929 = vadd.f32 %v9480, %v9865
  %v9930 = vadd.f32 %v9481, %v9866
  %v9931 = vadd.f32 %v9482, %v9867
  %v9932 = vadd.f32 %v9483, %v9868
  %v9933 = vadd.f32 %v9484, %v9869
  %v9934 = vadd.f32 %v9485, %v9870
  %v9935 = vadd.f32 %v9486, %v9871
  %v9936 = vadd.f32 %v9487, %v9872
  %v9937 = vadd.f32 %v9488, %v9873
  %v9938 = vadd.f32 %v9489, %v9874
  %v9939 = vadd.f32 %v9490, %v9875
  %v9940 = vadd.f32 %v9491, %v9876
  %v9941 = vadd.f32 %v9492, %v9877
  %v9942 = vadd.f32 %v9493, %v9878
  %v9943 = vadd.f32 %v9494, %v9879
  %v9944 = vadd.f32 %v9495, %v9880
  %v9945 = vadd.f32 %v9496, %v9881
  %v9946 = vadd.f32 %v9497, %v9882
  %v9947 = vadd.f32 %v9498, %v9883
  %v9948 = vadd.f32 %v9499, %v9884
  %v9949 = vadd.f32 %v9500, %v9885
  %v9950 = vadd.f32 %v9501, %v9886
  %v9951 = vadd.f32 %v9502, %v9887
  %v9952 = vadd.f32 %v9503, %v9888
  %v9953 = vadd.f32 %v9504, %v9889
  %v9954 = vadd.f32 %v9505, %v9890
  %v9955 = vadd.f32 %v9506, %v9891
  %v9956 = vadd.f32 %v9507, %v9892
  %v9957 = vadd.f32 %v9508, %v9893
  %v9958 = vadd.f32 %v9509, %v9894
  %v9959 = vadd.f32 %v9510, %v9895
  %v9960 = vadd.f32 %v9511, %v9896
  %v9961 = vadd.f32 %v9512, %v9897
  %v9962 = vadd.f32 %v9513, %v9898
  %v9963 = vadd.f32 %v9514, %v9899
  %v9964 = vadd.f32 %v9515, %v9900
  %v9965 = vadd.f32 %v9516, %v9901
  %v9966 = vadd.f32 %v9517, %v9902
  %v9967 = vadd.f32 %v9518, %v9903
  %v9968 = vadd.f32 %v9519, %v9904
  %v9969 = vadd.f32 %v9520, %v9905
  %v9970 = vadd.f32 %v9521, %v9906
  %v9971 = vadd.f32 %v9522, %v9907
  %v9972 = vadd.f32 %v9523, %v9908
  %v9973 = vadd.f32 %v9524, %v9909
  %v9974 = vadd.f32 %v9525, %v9910
  %v9975 = vadd.f32 %v9526, %v9911
  %v9976 = vadd.f32 %v9527, %v9912
  %v9977 = vadd.f32 %v9528, %v9913
  %v9978 = vadd.f32 %v9529, %v9914
  %v9979 = vadd.f32 %v9530, %v9915
  %v9980 = vadd.f32 %v9531, %v9916
  %v9981 = vadd.f32 %v9532, %v9917
  %v9982 = vadd.f32 %v9533, %v9918
  %v9983 = vadd.f32 %v9534, %v9919
  %v9984 = vadd.f32 %v9535, %v9920
  %v9985 = vmax.f32 %v9921, 0.0
  %v9986 = vmax.f32 %v9922, 0.0
  %v9987 = vmax.f32 %v9923, 0.0
  %v9988 = vmax.f32 %v9924, 0.0
  %v9989 = vmax.f32 %v9925, 0.0
  %v9990 = vmax.f32 %v9926, 0.0
  %v9991 = vmax.f32 %v9927, 0.0
  %v9992 = vmax.f32 %v9928, 0.0
  %v9993 = vmax.f32 %v9929, 0.0
  %v9994 = vmax.f32 %v9930, 0.0
  %v9995 = vmax.f32 %v9931, 0.0
  %v9996 = vmax.f32 %v9932, 0.0
  %v9997 = vmax.f32 %v9933, 0.0
  %v9998 = vmax.f32 %v9934, 0.0
  %v9999 = vmax.f32 %v9935, 0.0
  %v10000 = vmax.f32 %v9936, 0.0
  %v10001 = vmax.f32 %v9937, 0.0
  %v10002 = vmax.f32 %v9938, 0.0
  %v10003 = vmax.f32 %v9939, 0.0
  %v10004 = vmax.f32 %v9940, 0.0
  %v10005 = vmax.f32 %v9941, 0.0
  %v10006 = vmax.f32 %v9942, 0.0
  %v10007 = vmax.f32 %v9943, 0.0
  %v10008 = vmax.f32 %v9944, 0.0
  %v10009 = vmax.f32 %v9945, 0.0
  %v10010 = vmax.f32 %v9946, 0.0
  %v10011 = vmax.f32 %v9947, 0.0
  %v10012 = vmax.f32 %v9948, 0.0
  %v10013 = vmax.f32 %v9949, 0.0
  %v10014 = vmax.f32 %v9950, 0.0
  %v10015 = vmax.f32 %v9951, 0.0
  %v10016 = vmax.f32 %v9952, 0.0
  %v10017 = vmax.f32 %v9953, 0.0
  %v10018 = vmax.f32 %v9954, 0.0
  %v10019 = vmax.f32 %v9955, 0.0
  %v10020 = vmax.f32 %v9956, 0.0
  %v10021 = vmax.f32 %v9957, 0.0
  %v10022 = vmax.f32 %v9958, 0.0
  %v10023 = vmax.f32 %v9959, 0.0
  %v10024 = vmax.f32 %v9960, 0.0
  %v10025 = vmax.f32 %v9961, 0.0
  %v10026 = vmax.f32 %v9962, 0.0
  %v10027 = vmax.f32 %v9963, 0.0
  %v10028 = vmax.f32 %v9964, 0.0
  %v10029 = vmax.f32 %v9965, 0.0
  %v10030 = vmax.f32 %v9966, 0.0
  %v10031 = vmax.f32 %v9967, 0.0
  %v10032 = vmax.f32 %v9968, 0.0
  %v10033 = vmax.f32 %v9969, 0.0
  %v10034 = vmax.f32 %v9970, 0.0
  %v10035 = vmax.f32 %v9971, 0.0
  %v10036 = vmax.f32 %v9972, 0.0
  %v10037 = vmax.f32 %v9973, 0.0
  %v10038 = vmax.f32 %v9974, 0.0
  %v10039 = vmax.f32 %v9975, 0.0
  %v10040 = vmax.f32 %v9976, 0.0
  %v10041 = vmax.f32 %v9977, 0.0
  %v10042 = vmax.f32 %v9978, 0.0
  %v10043 = vmax.f32 %v9979, 0.0
  %v10044 = vmax.f32 %v9980, 0.0
  %v10045 = vmax.f32 %v9981, 0.0
  %v10046 = vmax.f32 %v9982, 0.0
  %v10047 = vmax.f32 %v9983, 0.0
  %v10048 = vmax.f32 %v9984, 0.0
  %10049 = vst [vmem:[%s7] sm:$0xff] %v9985
  %10050 = vst [vmem:[%s7 + $0x8] sm:$0xff] %v9986
  %10051 = vst [vmem:[%s7 + $0x10] sm:$0xff] %v9987
  %10052 = vst [vmem:[%s7 + $0x18] sm:$0xff] %v9988
  %10053 = vst [vmem:[%s7 + $0x20] sm:$0xff] %v9989
  %10054 = vst [vmem:[%s7 + $0x28] sm:$0xff] %v9990
  %10055 = vst [vmem:[%s7 + $0x30] sm:$0xff] %v9991
  %10056 = vst [vmem:[%s7 + $0x38] sm:$0xff] %v9992
  %10057 = vst [vmem:[%s7 + $0x40] sm:$0xff] %v9993
  %10058 = vst [vmem:[%s7 + $0x48] sm:$0xff] %v9994
  %10059 = vst [vmem:[%s7 + $0x50] sm:$0xff] %v9995
  %10060 = vst [vmem:[%s7 + $0x58] sm:$0xff] %v9996
  %10061 = vst [vmem:[%s7 + $0x60] sm:$0xff] %v9997
  %10062 = vst [vmem:[%s7 + $0x68] sm:$0xff] %v9998
  %10063 = vst [vmem:[%s7 + $0x70] sm:$0xff] %v9999
  %10064 = vst [vmem:[%s7 + $0x78] sm:$0xff] %v10000
  %10065 = vst [vmem:[%s7 + $0x80] sm:$0xff] %v10001
  %10066 = vst [vmem:[%s7 + $0x88] sm:$0xff] %v10002
  %10067 = vst [vmem:[%s7 + $0x90] sm:$0xff] %v10003
  %10068 = vst [vmem:[%s7 + $0x98] sm:$0xff] %v10004
  %10069 = vst [vmem:[%s7 + $0xa0] sm:$0xff] %v10005
  %10070 = vst [vmem:[%s7 + $0xa8] sm:$0xff] %v10006
  %10071 = vst [vmem:[%s7 + $0xb0] sm:$0xff] %v10007
  %10072 = vst [vmem:[%s7 + $0xb8] sm:$0xff] %v10008
  %10073 = vst [vmem:[%s7 + $0xc0] sm:$0xff] %v10009
  %10074 = vst [vmem:[%s7 + $0xc8] sm:$0xff] %v10010
  %10075 = vst [vmem:[%s7 + $0xd0] sm:$0xff] %v10011
  %10076 = vst [vmem:[%s7 + $0xd8] sm:$0xff] %v10012
  %10077 = vst [vmem:[%s7 + $0xe0] sm:$0xff] %v10013
  %10078 = vst [vmem:[%s7 + $0xe8] sm:$0xff] %v10014
  %10079 = vst [vmem:[%s7 + $0xf0] sm:$0xff] %v10015
  %10080 = vst [vmem:[%s7 + $0xf8] sm:$0xff] %v10016
  %10081 = vst [vmem:[%s7 + $0x100] sm:$0xff] %v10017
  %10082 = vst [vmem:[%s7 + $0x108] sm:$0xff] %v10018
  %10083 = vst [vmem:[%s7 + $0x110] sm:$0xff] %v10019
  %10084 = vst [vmem:[%s7 + $0x118] sm:$0xff] %v10020
  %10085 = vst [vmem:[%s7 + $0x120] sm:$0xff] %v10021
  %10086 = vst [vmem:[%s7 + $0x128] sm:$0xff] %v10022
  %10087 = vst [vmem:[%s7 + $0x130] sm:$0xff] %v10023
  %10088 = vst [vmem:[%s7 + $0x138] sm:$0xff] %v10024
  %10089 = vst [vmem:[%s7 + $0x140] sm:$0xff] %v10025
  %10090 = vst [vmem:[%s7 + $0x148] sm:$0xff] %v10026
  %10091 = vst [vmem:[%s7 + $0x150] sm:$0xff] %v10027
  %10092 = vst [vmem:[%s7 + $0x158] sm:$0xff] %v10028
  %10093 = vst [vmem:[%s7 + $0x160] sm:$0xff] %v10029
  %10094 = vst [vmem:[%s7 + $0x168] sm:$0xff] %v10030
  %10095 = vst [vmem:[%s7 + $0x170] sm:$0xff] %v10031
  %10096 = vst [vmem:[%s7 + $0x178] sm:$0xff] %v10032
  %10097 = vst [vmem:[%s7 + $0x180] sm:$0xff] %v10033
  %10098 = vst [vmem:[%s7 + $0x188] sm:$0xff] %v10034
  %10099 = vst [vmem:[%s7 + $0x190] sm:$0xff] %v10035
  %10100 = vst [vmem:[%s7 + $0x198] sm:$0xff] %v10036
  %10101 = vst [vmem:[%s7 + $0x1a0] sm:$0xff] %v10037
  %10102 = vst [vmem:[%s7 + $0x1a8] sm:$0xff] %v10038
  %10103 = vst [vmem:[%s7 + $0x1b0] sm:$0xff] %v10039
  %10104 = vst [vmem:[%s7 + $0x1b8] sm:$0xff] %v10040
  %10105 = vst [vmem:[%s7 + $0x1c0] sm:$0xff] %v10041
  %10106 = vst [vmem:[%s7 + $0x1c8] sm:$0xff] %v10042
  %10107 = vst [vmem:[%s7 + $0x1d0] sm:$0xff] %v10043
  %10108 = vst [vmem:[%s7 + $0x1d8] sm:$0xff] %v10044
  %10109 = vst [vmem:[%s7 + $0x1e0] sm:$0xff] %v10045
  %10110 = vst [vmem:[%s7 + $0x1e8] sm:$0xff] %v10046
  %10111 = vst [vmem:[%s7 + $0x1f0] sm:$0xff] %v10047
  %10112 = vst [vmem:[%s7 + $0x1f8] sm:$0xff] %v10048
  // Predicated region
  $region30: #{basic_block_forward.1} parent=0 // pred_check
    _
  $region31: #{basic_block_forward.1} parent=0 // pred_check_branch
    %10114 = sbr.rel (0) target = $region33
  $region32: #{basic_block_forward.1} parent=0 // pred_region
    _
  $region33: #{basic_block_forward.1} parent=0 // pred_fallthru
    _
  // Predicated region
  $region34: #{basic_block_forward.1} parent=0 // pred_check
    _
  $region35: #{basic_block_forward.1} parent=0 // pred_check_branch
    %10116 = sbr.rel (0) target = $region37
  $region36: #{basic_block_forward.1} parent=0 // pred_region
    _
  $region37: #{basic_block_forward.1} parent=0 // pred_fallthru
    _

</llo_original>
